<compile_context>
chip_gen: v5e
topology: v5e:2x2
jax: 0.10.0
libtpu: 0.0.40
codegen_flags: <defaults>
</compile_context>

<pallas_src>
import jax
import jax.numpy as jnp
from jax.experimental import pallas as pl
from jax.experimental.pallas import tpu as pltpu

OUTPUT_DIM = 256
IN_FEATURES = 3 * 224 * 224  # 150528


def _pick_config():
    """Returns (tk, tn, vmem_limit_bytes) tuned per TPU generation."""
    try:
        info = pltpu.get_tpu_info()
        vmem_bytes = getattr(info, "vmem_capacity_bytes", None)
    except Exception:
        vmem_bytes = None

    if vmem_bytes is not None and vmem_bytes >= 100 * 1024 * 1024:
        # v5e / v6e: single TensorCore, 128 MiB VMEM.  Full-width contiguous
        # weight slabs, 7 reduction steps.  Double-buffered W = 2 x 21 MiB.
        return 21504, 256, 56 * 1024 * 1024
    if vmem_bytes is not None:
        # v7x: 64 MiB VMEM, 2 TensorCores.  128-wide per-core halves,
        # double-buffered W = 2 x 10.5 MiB.
        return 21504, 128, 28 * 1024 * 1024
    # Unknown generation: conservative tiles that fit all VMEM budgets.
    return 10752, 256, 30 * 1024 * 1024


def linear_kernel(x_ref, w_ref, o_ref):
    # grid = (N blocks [parallel], K blocks [reduction, innermost]).
    # Output block index is constant over the K axis -> VMEM-resident f32
    # accumulator; zero it on the first reduction step.
    @pl.when(pl.program_id(1) == 0)
    def _():
        o_ref[...] = jnp.zeros_like(o_ref)

    o_ref[...] += jnp.dot(
        x_ref[...], w_ref[...], preferred_element_type=jnp.float32
    )


def prepare_weight(w_t, tn):
    """Re-layout W.T (K, N) -> (N//tn, K, tn) so each N block is contiguous.

    One-time host-side cost on a constant weight; for tn == N it is a pure
    reshape (no data movement).
    """
    k, n = w_t.shape
    grid_n = n // tn
    return jnp.transpose(w_t.reshape(k, grid_n, tn), (1, 0, 2))


def dummy_model_forward(x, w_blocks, *, tk, tn, vmem_limit_bytes):
    """x: (B, 3, 224, 224) f32; w_blocks: (N//tn, K, tn) f32. Returns (B, N)."""
    b = x.shape[0]
    grid_n, k, tn_w = w_blocks.shape
    n = grid_n * tn_w
    assert k == IN_FEATURES and n == OUTPUT_DIM and tn_w == tn
    assert k % tk == 0

    x_flat = x.reshape(b, -1)  # torch .view(B, -1); no padding, no copy pass
    grid_k = k // tk

    cost = pl.CostEstimate(
        flops=2 * b * k * n,
        transcendentals=0,
        bytes_accessed=k * n * 4 + grid_n * b * k * 4 + b * n * 4,
    )

    return pl.pallas_call(
        linear_kernel,
        out_shape=jax.ShapeDtypeStruct((b, n), jnp.float32),
        grid_spec=pltpu.PrefetchScalarGridSpec(
            num_scalar_prefetch=0,
            grid=(grid_n, grid_k),
            in_specs=[
                # b == full array dim -> exempt from the 8-sublane rule.
                pl.BlockSpec((b, tk), lambda nn, kk: (0, kk)),
                # Leading dim squeezed: kernel sees a contiguous (tk, tn) tile.
                pl.BlockSpec((None, tk, tn), lambda nn, kk: (nn, kk, 0)),
            ],
            out_specs=pl.BlockSpec((b, tn), lambda nn, kk: (0, nn)),
        ),
        compiler_params=pltpu.CompilerParams(
            dimension_semantics=("parallel", "arbitrary"),
            vmem_limit_bytes=vmem_limit_bytes,
        ),
        cost_estimate=cost,
    )(x_flat, w_blocks)


if __name__ == "__main__":
    tk, tn, vmem_limit = _pick_config()

    # Deterministic parameters: nn.init.constant_(weight, 0.01), no bias.
    # Stored transposed (K, N) so the kernel computes x_flat @ W.T directly,
    # then re-laid out once into per-N-block contiguous slabs.
    w_t = jnp.full((IN_FEATURES, OUTPUT_DIM), 0.01, dtype=jnp.float32)
    w_blocks = jax.block_until_ready(prepare_weight(w_t, tn))

    # Deterministic small-batch input consistent with the module's forward.
    key = jax.random.PRNGKey(0)
    x = jax.random.normal(key, (2, 3, 224, 224), dtype=jnp.float32)

    out = dummy_model_forward(
        x, w_blocks, tk=tk, tn=tn, vmem_limit_bytes=vmem_limit
    )
    out = jax.block_until_ready(out)

    # Correctness check against a plain-JAX reference of the torch forward.
    ref = x.reshape(x.shape[0], -1) @ w_t
    assert out.shape == (2, OUTPUT_DIM)
    assert jnp.allclose(out, ref, rtol=1e-4, atol=1e-3), "mismatch vs reference"

    print("KERNEL_OK")
</pallas_src>

<mosaic_0001>
module attributes {stable_mosaic.version = 11 : i64} {
  func.func @linear_kernel(%arg0: i32, %arg1: i32, %arg2: memref<2x10752xf32, #tpu.memory_space<vmem>>, %arg3: memref<1x10752x256xf32, #tpu.memory_space<vmem>>, %arg4: memref<2x256xf32, #tpu.memory_space<vmem>>) attributes {dimension_semantics = [#tpu.dimension_semantics<parallel>, #tpu.dimension_semantics<arbitrary>], iteration_bounds = array<i64: 1, 14>, scalar_prefetch = 0 : i64, scratch_operands = 0 : i64, tpu.core_type = #tpu.core_type<tc>, window_params = [{transform_indices = @transform_0, window_bounds = array<i64: 2, 10752>}, {transform_indices = @transform_1, window_bounds = array<i64: 1, 10752, 256>}, {transform_indices = @transform_2, window_bounds = array<i64: 2, 256>}]} {
    %c0_i32 = arith.constant 0 : i32
    %0 = arith.cmpi eq, %arg1, %c0_i32 : i32
    %1 = arith.extui %0 : i1 to i32
    %c0_i32_0 = arith.constant 0 : i32
    %2 = arith.cmpi ne, %1, %c0_i32_0 : i32
    scf.if %2 {
      %cst_9 = arith.constant 0.000000e+00 : f32
      %10 = vector.broadcast %cst_9 : f32 to vector<2x256xf32>
      %c0_10 = arith.constant 0 : index
      %c0_11 = arith.constant 0 : index
      %11 = vector.load %arg4[%c0_10, %c0_11] : memref<2x256xf32, #tpu.memory_space<vmem>>, vector<2x256xf32>
      tpu.vector_store %arg4[%c0_10, %c0_11], %10 {strides = array<i32>} : memref<2x256xf32, #tpu.memory_space<vmem>>, vector<2x256xf32>,
    } else {
    }
    %c0 = arith.constant 0 : index
    %c0_1 = arith.constant 0 : index
    %3 = vector.load %arg4[%c0, %c0_1] : memref<2x256xf32, #tpu.memory_space<vmem>>, vector<2x256xf32>
    %c0_2 = arith.constant 0 : index
    %c0_3 = arith.constant 0 : index
    %4 = vector.load %arg2[%c0_2, %c0_3] : memref<2x10752xf32, #tpu.memory_space<vmem>>, vector<2x10752xf32>
    %c0_4 = arith.constant 0 : index
    %c0_5 = arith.constant 0 : index
    %c0_6 = arith.constant 0 : index
    %5 = vector.load %arg3[%c0_4, %c0_5, %c0_6] : memref<1x10752x256xf32, #tpu.memory_space<vmem>>, vector<1x10752x256xf32>
    %6 = vector.shape_cast %5 : vector<1x10752x256xf32> to vector<10752x256xf32>
    %cst = arith.constant dense<0.000000e+00> : vector<2x256xf32>
    %7 = tpu.matmul %4, %6, %cst {dimension_numbers = #tpu.dot_dimension_numbers<[1], [0], [0], [1], [0, 0, 1, 1], [], []>} : vector<2x10752xf32>, vector<10752x256xf32>, vector<2x256xf32> -> vector<2x256xf32>
    %8 = arith.addf %3, %7 : vector<2x256xf32>
    %c0_7 = arith.constant 0 : index
    %c0_8 = arith.constant 0 : index
    %9 = vector.load %arg4[%c0_7, %c0_8] : memref<2x256xf32, #tpu.memory_space<vmem>>, vector<2x256xf32>
    tpu.vector_store %arg4[%c0_7, %c0_8], %8 {strides = array<i32>} : memref<2x256xf32, #tpu.memory_space<vmem>>, vector<2x256xf32>,
    return
  }
  func.func @transform_0(%arg0: i32, %arg1: i32) -> (i32, i32) {
    %c0_i32 = arith.constant 0 : i32
    %c0_i32_0 = arith.constant 0 : i32
    return %c0_i32, %arg1 : i32, i32
  }
  func.func @transform_1(%arg0: i32, %arg1: i32) -> (i32, i32, i32) {
    %c0_i32 = arith.constant 0 : i32
    %c0_i32_0 = arith.constant 0 : i32
    return %arg0, %arg1, %c0_i32 : i32, i32, i32
  }
  func.func @transform_2(%arg0: i32, %arg1: i32) -> (i32, i32) {
    %c0_i32 = arith.constant 0 : i32
    %c0_i32_0 = arith.constant 0 : i32
    return %c0_i32, %arg0 : i32, i32
  }
}

</mosaic_0001>

<llo_original>
// kernel: tpu_custom_call.1
$region0: #{tpu_custom_call.1}
  #allocation0 [shape = 'u32[]', space=smem, size = 0x4, offset = 0x4, fixed_abs, tag = 'smem constant byte address 0x4 - core index']
  #allocation1 [shape = 'u32[72,128]{1,0:T(1,128)}', space=vmem, size = 0x9000, scoped, tag = 'internal scratch']
  %s0 = inlined_call_operand.hbm [shape: f32[2,150528], index: 0, kind: input, shape index: {}]
  %s1 = inlined_call_operand.hbm [shape: f32[1,150528,256], index: 1, kind: input, shape index: {}]
  %s2 = inlined_call_operand.hbm [shape: f32[2,256], index: 2, kind: output, shape index: {}]
  %s3 = sld [smem:[#allocation0]]
  $region53: #{tpu_custom_call.1} parent=0
    _
  %s5 = ssub.s32 1, %s3
  %s6 = scalar_select 0, %s5, %s3
  $region1: #{tpu_custom_call.1} parent=0
    #allocation2 [shape = 'u8[172032]{0}', space=vmem, size = 0x2a000, scoped, tag = 'input window, operand 0']
    #allocation3 [shape = 's32[2]{0}', space=sflag, size = 0x8, scoped, tag = 'scoped memory for tpu_custom_call.1']
    #allocation4 [shape = 's32[2]{0}', space=sflag, size = 0x8, scoped, tag = 'scoped memory for tpu_custom_call.1']
    #allocation5 [shape = 'u8[22020096]{0}', space=vmem, size = 0x1500000, scoped, tag = 'input window, operand 1']
    #allocation6 [shape = 's32[2]{0}', space=sflag, size = 0x8, scoped, tag = 'scoped memory for tpu_custom_call.1']
    #allocation7 [shape = 'u8[2048]{0}', space=vmem, size = 0x800, scoped, tag = 'output window, operand 0, single buffered']
    %7 = vsyncpa [#allocation3], 0
    %s8 = scalar_lea.sflag [#allocation3], 1
    %9 = vsyncpa %s8, 0
    %10 = vsyncpa [#allocation6], 0
    %s11 = scalar_lea.sflag [#allocation6], 1
    %12 = vsyncpa %s11, 0
    %13 = vsyncpa [#allocation4], 0
    loop: start=0, step=1, limit=16
    $region2: #{tpu_custom_call.1} parent=1 // loop_pre_header
      _
    $region3: #{tpu_custom_call.1} parent=1 // loop_header
      %s15 = sphi 0, %s19
      %p16 = scmp.ge.s32.totalorder %s15, 16
      %s22 = sphi 0, %s34
      %s23 = sphi 0, %s30
      %s24 = sphi 0, %s22
      %s25 = sphi 0, %s23
      %s26 = sphi 0, %s24
      %s27 = sphi 0, %s25
      %s37 = sphi 0, %s39
      %s40 = sphi 0, %s37
      %s41 = sphi 0, %s40
      %s57 = sphi 0, %s41
      %s65 = sphi 0, %s67
      %s68 = sphi 0, %s65
      %s69 = sphi 0, %s68
      %s85 = sphi 0, %s69
      %s91 = sphi 0, %s93
      %s94 = sphi 0, %s91
      %s95 = sphi 0, %s94
      %s111 = sphi 0, %s95
    $region4: #{tpu_custom_call.1} parent=1 // loop_header_branch
      %18 = sbr.rel (%p16) target = $region8
    $region5: #{tpu_custom_call.1} parent=1 // loop_body
      %s20 = ssub.s32 %s15, 1
      %s21 = ssub.s32 %s15, 2
      %s28 = sadd.s32 1, %s23
      %p29 = scmp.ge.s32.totalorder %s28, 14
      %s30 = scalar_select %p29, 0, %s28
      %s31 = sadd.s32 1, %s22
      %s32 = scalar_select %p29, %s31, %s22
      %p33 = scmp.ge.s32.totalorder %s32, 1
      %s34 = scalar_select %p33, 0, %s32
      %s35 = ssub.s32 %s23, %s30
      %p36 = scmp.eq.s32.totalorder %s35, 0
      %s38 = sadd.s32 %s37, 1
      %s39 = scalar_select %p36, %s37, %s38
      %p42 = pneg %p36
      %p43 = scmp.eq.s32.totalorder %s15, 13
      %p44 = por %p42, %p43
      %p45 = scmp.ne.s32.totalorder %s37, %s40
      %p46 = scmp.eq.s32.totalorder %s15, 0
      %p47 = por %p45, %p46
      %p48 = scmp.ne.s32.totalorder %s37, %s40
      %p49 = scmp.eq.s32.totalorder %s20, 13
      %p50 = por %p48, %p49
      %p51 = scmp.ne.s32.totalorder %s40, %s41
      %p52 = scmp.eq.s32.totalorder %s20, 0
      %p53 = por %p51, %p52
      %p54 = scmp.ne.s32.totalorder %s40, %s41
      %p55 = scmp.eq.s32.totalorder %s21, 13
      %p56 = por %p54, %p55
      %p58 = scmp.ne.s32.totalorder %s41, %s57
      %p59 = scmp.eq.s32.totalorder %s21, 0
      %p60 = por %p58, %p59
      %s61 = ssub.s32 %s22, %s34
      %s62 = ssub.s32 %s23, %s30
      %s63 = sor.u32 %s61, %s62
      %p64 = scmp.eq.s32.totalorder %s63, 0
      %s66 = sadd.s32 %s65, 1
      %s67 = scalar_select %p64, %s65, %s66
      %p70 = pneg %p64
      %p71 = scmp.eq.s32.totalorder %s15, 13
      %p72 = por %p70, %p71
      %p73 = scmp.ne.s32.totalorder %s65, %s68
      %p74 = scmp.eq.s32.totalorder %s15, 0
      %p75 = por %p73, %p74
      %p76 = scmp.ne.s32.totalorder %s65, %s68
      %p77 = scmp.eq.s32.totalorder %s20, 13
      %p78 = por %p76, %p77
      %p79 = scmp.ne.s32.totalorder %s68, %s69
      %p80 = scmp.eq.s32.totalorder %s20, 0
      %p81 = por %p79, %p80
      %p82 = scmp.ne.s32.totalorder %s68, %s69
      %p83 = scmp.eq.s32.totalorder %s21, 13
      %p84 = por %p82, %p83
      %p86 = scmp.ne.s32.totalorder %s69, %s85
      %p87 = scmp.eq.s32.totalorder %s21, 0
      %p88 = por %p86, %p87
      %s89 = ssub.s32 %s22, %s34
      %p90 = scmp.eq.s32.totalorder %s89, 0
      %s92 = sadd.s32 %s91, 1
      %s93 = scalar_select %p90, %s91, %s92
      %p96 = pneg %p90
      %p97 = scmp.eq.s32.totalorder %s15, 13
      %p98 = por %p96, %p97
      %p99 = scmp.ne.s32.totalorder %s91, %s94
      %p100 = scmp.eq.s32.totalorder %s15, 0
      %p101 = por %p99, %p100
      %p102 = scmp.ne.s32.totalorder %s91, %s94
      %p103 = scmp.eq.s32.totalorder %s20, 13
      %p104 = por %p102, %p103
      %p105 = scmp.ne.s32.totalorder %s94, %s95
      %p106 = scmp.eq.s32.totalorder %s20, 0
      %p107 = por %p105, %p106
      %p108 = scmp.ne.s32.totalorder %s94, %s95
      %p109 = scmp.eq.s32.totalorder %s21, 13
      %p110 = por %p108, %p109
      %p112 = scmp.ne.s32.totalorder %s95, %s111
      %p113 = scmp.eq.s32.totalorder %s21, 0
      %p114 = por %p112, %p113
      %p115 = scmp.le.s32.totalorder 1, %s15
      %p116 = scmp.lt.s32.totalorder %s15, 15
      %p117 = pnand %p115, %p116
      %p118 = pneg %p117
      // Predicated region
      $region9: #{tpu_custom_call.1} parent=5 // pred_check
        _
      $region10: #{tpu_custom_call.1} parent=5 // pred_check_branch
        %120 = sbr.rel (%p117) target = $region12
      $region11: #{tpu_custom_call.1} parent=5 // pred_region
        %s121 = ssub.s32 %s15, 1
      $region12: #{tpu_custom_call.1} parent=5 // pred_fallthru
        _
      %p122 = scmp.lt.s32.totalorder %s15, 14
      // Predicated region
      $region13: #{tpu_custom_call.1} parent=5 // pred_check
        %p123 = pneg %p122
      $region14: #{tpu_custom_call.1} parent=5 // pred_check_branch
        %125 = sbr.rel (%p123) target = $region16
      $region15: #{tpu_custom_call.1} parent=5 // pred_region
        // Predicated region
        $region17: #{tpu_custom_call.1} parent=15 // pred_check
          %p126 = pneg %p47
        $region18: #{tpu_custom_call.1} parent=15 // pred_check_branch
          %128 = sbr.rel (%p126) target = $region20
        $region19: #{tpu_custom_call.1} parent=15 // pred_region
          %s129 = sand.u32 %s37, 1
          %s130 = scalar_lea.sflag [#allocation3], %s129
          %s131 = sand.u32 %s37, 1
          %s132 = smul.addr %s131, 168
          %s133 = scalar_lea.vmem [#allocation2], %s132
          %s134 = smul.u32 84, %s23
          %136 = vsyncadd %s130, 0
          %s137 = smul.addr %s134, 2
          %s138 = scalar_lea.hbm %s0, %s137
          %s140 = sshll.u32 %s138, 4
          %s141 = int_to_ptr.hbm [resolvable:$true] %s140
          %s142 = sshll.u32 %s133, 4
          %s143 = int_to_ptr.vmem [resolvable:$true] %s142
          %145 = dma.hbm_to_vmem [thread:$0]  %s141, 2688, %s143, %s130
        $region20: #{tpu_custom_call.1} parent=15 // pred_fallthru
          _
        // Predicated region
        $region21: #{tpu_custom_call.1} parent=15 // pred_check
          %p146 = pneg %p75
        $region22: #{tpu_custom_call.1} parent=15 // pred_check_branch
          %148 = sbr.rel (%p146) target = $region24
        $region23: #{tpu_custom_call.1} parent=15 // pred_region
          %s149 = sand.u32 %s65, 1
          %s150 = scalar_lea.sflag [#allocation6], %s149
          %s151 = sand.u32 %s65, 1
          %s152 = smul.addr %s151, 21504
          %s153 = scalar_lea.vmem [#allocation5], %s152
          %s154 = smul.u32 1344, %s23
          %156 = vsyncadd %s150, 0
          %s157 = smul.addr %s154, 2
          %s158 = smul.addr %s22, 37632
          %s159 = sadd.s32 %s157, %s158
          %s160 = smul.addr %s159, 8
          %s161 = scalar_lea.hbm %s1, %s160
          %s162 = sshll.u32 %s161, 4
          %s163 = int_to_ptr.hbm [resolvable:$true] %s162
          %s164 = sshll.u32 %s153, 4
          %s165 = int_to_ptr.vmem [resolvable:$true] %s164
          %170 = dma.hbm_to_vmem [thread:$0]  %s163, 344064, %s165, %s150, 256, 256, 16
        $region24: #{tpu_custom_call.1} parent=15 // pred_fallthru
          _
      $region16: #{tpu_custom_call.1} parent=5 // pred_fallthru
        _
      %p171 = scmp.le.s32.totalorder 1, %s15
      %p172 = scmp.lt.s32.totalorder %s15, 15
      %p173 = pnand %p171, %p172
      %p174 = pneg %p173
      // Predicated region
      $region25: #{tpu_custom_call.1} parent=5 // pred_check
        _
      $region26: #{tpu_custom_call.1} parent=5 // pred_check_branch
        %176 = sbr.rel (%p173) target = $region28
      $region27: #{tpu_custom_call.1} parent=5 // pred_region
        %s177 = ssub.s32 %s15, 1
        %s178 = sand.u32 %s40, 1
        %s179 = scalar_lea.sflag [#allocation3], %s178
        %s180 = sand.u32 %s40, 1
        %s181 = smul.addr %s180, 168
        %s182 = scalar_lea.vmem [#allocation2], %s181
        // Predicated region
        $region29: #{tpu_custom_call.1} parent=27 // pred_check
          %p183 = pneg %p53
        $region30: #{tpu_custom_call.1} parent=27 // pred_check_branch
          %185 = sbr.rel (%p183) target = $region32
        $region31: #{tpu_custom_call.1} parent=27 // pred_region
          %187 = dma.done %s179, 2688
        $region32: #{tpu_custom_call.1} parent=27 // pred_fallthru
          _
        %s188 = sand.u32 %s68, 1
        %s189 = scalar_lea.sflag [#allocation6], %s188
        %s190 = sand.u32 %s68, 1
        %s191 = smul.addr %s190, 21504
        %s192 = scalar_lea.vmem [#allocation5], %s191
        // Predicated region
        $region33: #{tpu_custom_call.1} parent=27 // pred_check
          %p193 = pneg %p81
        $region34: #{tpu_custom_call.1} parent=27 // pred_check_branch
          %195 = sbr.rel (%p193) target = $region36
        $region35: #{tpu_custom_call.1} parent=27 // pred_region
          %197 = dma.done %s189, 344064
        $region36: #{tpu_custom_call.1} parent=27 // pred_fallthru
          _
        %s198 = sand.u32 %s40, 1
        %s199 = scalar_lea.sflag [#allocation3], %s198
        %s200 = sand.u32 %s40, 1
        %s201 = smul.addr %s200, 168
        %s202 = scalar_lea.vmem [#allocation2], %s201
        %p203 = pneg %p53
        %p204 = pneg %p50
        %s205 = sand.u32 %s68, 1
        %s206 = scalar_lea.sflag [#allocation6], %s205
        %s207 = sand.u32 %s68, 1
        %s208 = smul.addr %s207, 21504
        %s209 = scalar_lea.vmem [#allocation5], %s208
        %p210 = pneg %p81
        %p211 = pneg %p78
        %p212 = pneg %p107
        %p213 = pneg %p104
        %s214 = smul.u32 84, %s25
        %s215 = smul.u32 1344, %s25
        %s216 = smul.u32 2, %s24
        %p217 = scmp.eq.s32.totalorder %s25, 0
        // Predicated region
        $region37: #{tpu_custom_call.1} parent=27 // pred_check
          %p218 = pneg %p217
        $region38: #{tpu_custom_call.1} parent=27 // pred_check_branch
          %220 = sbr.rel (%p218) target = $region40
        $region39: #{tpu_custom_call.1} parent=27 // pred_region
          %221 = vst [vmem:[#allocation7] sm:$0xf] 0.0
        $region40: #{tpu_custom_call.1} parent=27 // pred_fallthru
          _
        %v222 = vld [vmem:[#allocation7] sm:$0xf]
        %v223 = vld [vmem:[%s182] sm:$0xff]
        %v224 = vld [vmem:[%s182 + $0x8] sm:$0xff]
        %v225 = vld [vmem:[%s182 + $0x10] sm:$0xff]
        %v226 = vld [vmem:[%s182 + $0x18] sm:$0xff]
        %v227 = vld [vmem:[%s182 + $0x20] sm:$0xff]
        %v228 = vld [vmem:[%s182 + $0x28] sm:$0xff]
        %v229 = vld [vmem:[%s182 + $0x30] sm:$0xff]
        %v230 = vld [vmem:[%s182 + $0x38] sm:$0xff]
        %v231 = vld [vmem:[%s182 + $0x40] sm:$0xff]
        %v232 = vld [vmem:[%s182 + $0x48] sm:$0xff]
        %v233 = vld [vmem:[%s182 + $0x50] sm:$0xff]
        %v234 = vld [vmem:[%s182 + $0x58] sm:$0xff]
        %v235 = vld [vmem:[%s182 + $0x60] sm:$0xff]
        %v236 = vld [vmem:[%s182 + $0x68] sm:$0xff]
        %v237 = vld [vmem:[%s182 + $0x70] sm:$0xff]
        %v238 = vld [vmem:[%s182 + $0x78] sm:$0xff]
        %v239 = vld [vmem:[%s182 + $0x80] sm:$0xff]
        %v240 = vld [vmem:[%s182 + $0x88] sm:$0xff]
        %v241 = vld [vmem:[%s182 + $0x90] sm:$0xff]
        %v242 = vld [vmem:[%s182 + $0x98] sm:$0xff]
        %v243 = vld [vmem:[%s182 + $0xa0] sm:$0xff]
        %v244 = vld [vmem:[%s192] sm:$0xff]
        %v245 = vld [vmem:[%s192 + $0x8] sm:$0xff]
        %v246 = vld [vmem:[%s192 + $0x10] sm:$0xff]
        %v247 = vld [vmem:[%s192 + $0x18] sm:$0xff]
        %v248 = vld [vmem:[%s192 + $0x20] sm:$0xff]
        %v249 = vld [vmem:[%s192 + $0x28] sm:$0xff]
        %v250 = vld [vmem:[%s192 + $0x30] sm:$0xff]
        %v251 = vld [vmem:[%s192 + $0x38] sm:$0xff]
        %v252 = vld [vmem:[%s192 + $0x40] sm:$0xff]
        %v253 = vld [vmem:[%s192 + $0x48] sm:$0xff]
        %v254 = vld [vmem:[%s192 + $0x50] sm:$0xff]
        %v255 = vld [vmem:[%s192 + $0x58] sm:$0xff]
        %v256 = vld [vmem:[%s192 + $0x60] sm:$0xff]
        %v257 = vld [vmem:[%s192 + $0x68] sm:$0xff]
        %v258 = vld [vmem:[%s192 + $0x70] sm:$0xff]
        %v259 = vld [vmem:[%s192 + $0x78] sm:$0xff]
        %v260 = vld [vmem:[%s192 + $0x80] sm:$0xff]
        %v261 = vld [vmem:[%s192 + $0x88] sm:$0xff]
        %v262 = vld [vmem:[%s192 + $0x90] sm:$0xff]
        %v263 = vld [vmem:[%s192 + $0x98] sm:$0xff]
        %v264 = vld [vmem:[%s192 + $0xa0] sm:$0xff]
        %v265 = vld [vmem:[%s192 + $0xa8] sm:$0xff]
        %v266 = vld [vmem:[%s192 + $0xb0] sm:$0xff]
        %v267 = vld [vmem:[%s192 + $0xb8] sm:$0xff]
        %v268 = vld [vmem:[%s192 + $0xc0] sm:$0xff]
        %v269 = vld [vmem:[%s192 + $0xc8] sm:$0xff]
        %v270 = vld [vmem:[%s192 + $0xd0] sm:$0xff]
        %v271 = vld [vmem:[%s192 + $0xd8] sm:$0xff]
        %v272 = vld [vmem:[%s192 + $0xe0] sm:$0xff]
        %v273 = vld [vmem:[%s192 + $0xe8] sm:$0xff]
        %v274 = vld [vmem:[%s192 + $0xf0] sm:$0xff]
        %v275 = vld [vmem:[%s192 + $0xf8] sm:$0xff]
        %v276 = vld [vmem:[%s192 + $0x100] sm:$0xff]
        %v277 = vld [vmem:[%s192 + $0x108] sm:$0xff]
        %v278 = vld [vmem:[%s192 + $0x110] sm:$0xff]
        %v279 = vld [vmem:[%s192 + $0x118] sm:$0xff]
        %v280 = vld [vmem:[%s192 + $0x120] sm:$0xff]
        %v281 = vld [vmem:[%s192 + $0x128] sm:$0xff]
        %v282 = vld [vmem:[%s192 + $0x130] sm:$0xff]
        %v283 = vld [vmem:[%s192 + $0x138] sm:$0xff]
        %v284 = vld [vmem:[%s192 + $0x140] sm:$0xff]
        %v285 = vld [vmem:[%s192 + $0x148] sm:$0xff]
        %v286 = vld [vmem:[%s192 + $0x150] sm:$0xff]
        %v287 = vld [vmem:[%s192 + $0x158] sm:$0xff]
        %v288 = vld [vmem:[%s192 + $0x160] sm:$0xff]
        %v289 = vld [vmem:[%s192 + $0x168] sm:$0xff]
        %v290 = vld [vmem:[%s192 + $0x170] sm:$0xff]
        %v291 = vld [vmem:[%s192 + $0x178] sm:$0xff]
        %v292 = vld [vmem:[%s192 + $0x180] sm:$0xff]
        %v293 = vld [vmem:[%s192 + $0x188] sm:$0xff]
        %v294 = vld [vmem:[%s192 + $0x190] sm:$0xff]
        %v295 = vld [vmem:[%s192 + $0x198] sm:$0xff]
        %v296 = vld [vmem:[%s192 + $0x1a0] sm:$0xff]
        %v297 = vld [vmem:[%s192 + $0x1a8] sm:$0xff]
        %v298 = vld [vmem:[%s192 + $0x1b0] sm:$0xff]
        %v299 = vld [vmem:[%s192 + $0x1b8] sm:$0xff]
        %v300 = vld [vmem:[%s192 + $0x1c0] sm:$0xff]
        %v301 = vld [vmem:[%s192 + $0x1c8] sm:$0xff]
        %v302 = vld [vmem:[%s192 + $0x1d0] sm:$0xff]
        %v303 = vld [vmem:[%s192 + $0x1d8] sm:$0xff]
        %v304 = vld [vmem:[%s192 + $0x1e0] sm:$0xff]
        %v305 = vld [vmem:[%s192 + $0x1e8] sm:$0xff]
        %v306 = vld [vmem:[%s192 + $0x1f0] sm:$0xff]
        %v307 = vld [vmem:[%s192 + $0x1f8] sm:$0xff]
        %v308 = vld [vmem:[%s192 + $0x200] sm:$0xff]
        %v309 = vld [vmem:[%s192 + $0x208] sm:$0xff]
        %v310 = vld [vmem:[%s192 + $0x210] sm:$0xff]
        %v311 = vld [vmem:[%s192 + $0x218] sm:$0xff]
        %v312 = vld [vmem:[%s192 + $0x220] sm:$0xff]
        %v313 = vld [vmem:[%s192 + $0x228] sm:$0xff]
        %v314 = vld [vmem:[%s192 + $0x230] sm:$0xff]
        %v315 = vld [vmem:[%s192 + $0x238] sm:$0xff]
        %v316 = vld [vmem:[%s192 + $0x240] sm:$0xff]
        %v317 = vld [vmem:[%s192 + $0x248] sm:$0xff]
        %v318 = vld [vmem:[%s192 + $0x250] sm:$0xff]
        %v319 = vld [vmem:[%s192 + $0x258] sm:$0xff]
        %v320 = vld [vmem:[%s192 + $0x260] sm:$0xff]
        %v321 = vld [vmem:[%s192 + $0x268] sm:$0xff]
        %v322 = vld [vmem:[%s192 + $0x270] sm:$0xff]
        %v323 = vld [vmem:[%s192 + $0x278] sm:$0xff]
        %v324 = vld [vmem:[%s192 + $0x280] sm:$0xff]
        %v325 = vld [vmem:[%s192 + $0x288] sm:$0xff]
        %v326 = vld [vmem:[%s192 + $0x290] sm:$0xff]
        %v327 = vld [vmem:[%s192 + $0x298] sm:$0xff]
        %v328 = vld [vmem:[%s192 + $0x2a0] sm:$0xff]
        %v329 = vld [vmem:[%s192 + $0x2a8] sm:$0xff]
        %v330 = vld [vmem:[%s192 + $0x2b0] sm:$0xff]
        %v331 = vld [vmem:[%s192 + $0x2b8] sm:$0xff]
        %v332 = vld [vmem:[%s192 + $0x2c0] sm:$0xff]
        %v333 = vld [vmem:[%s192 + $0x2c8] sm:$0xff]
        %v334 = vld [vmem:[%s192 + $0x2d0] sm:$0xff]
        %v335 = vld [vmem:[%s192 + $0x2d8] sm:$0xff]
        %v336 = vld [vmem:[%s192 + $0x2e0] sm:$0xff]
        %v337 = vld [vmem:[%s192 + $0x2e8] sm:$0xff]
        %v338 = vld [vmem:[%s192 + $0x2f0] sm:$0xff]
        %v339 = vld [vmem:[%s192 + $0x2f8] sm:$0xff]
        %v340 = vld [vmem:[%s192 + $0x300] sm:$0xff]
        %v341 = vld [vmem:[%s192 + $0x308] sm:$0xff]
        %v342 = vld [vmem:[%s192 + $0x310] sm:$0xff]
        %v343 = vld [vmem:[%s192 + $0x318] sm:$0xff]
        %v344 = vld [vmem:[%s192 + $0x320] sm:$0xff]
        %v345 = vld [vmem:[%s192 + $0x328] sm:$0xff]
        %v346 = vld [vmem:[%s192 + $0x330] sm:$0xff]
        %v347 = vld [vmem:[%s192 + $0x338] sm:$0xff]
        %v348 = vld [vmem:[%s192 + $0x340] sm:$0xff]
        %v349 = vld [vmem:[%s192 + $0x348] sm:$0xff]
        %v350 = vld [vmem:[%s192 + $0x350] sm:$0xff]
        %v351 = vld [vmem:[%s192 + $0x358] sm:$0xff]
        %v352 = vld [vmem:[%s192 + $0x360] sm:$0xff]
        %v353 = vld [vmem:[%s192 + $0x368] sm:$0xff]
        %v354 = vld [vmem:[%s192 + $0x370] sm:$0xff]
        %v355 = vld [vmem:[%s192 + $0x378] sm:$0xff]
        %v356 = vld [vmem:[%s192 + $0x380] sm:$0xff]
        %v357 = vld [vmem:[%s192 + $0x388] sm:$0xff]
        %v358 = vld [vmem:[%s192 + $0x390] sm:$0xff]
        %v359 = vld [vmem:[%s192 + $0x398] sm:$0xff]
        %v360 = vld [vmem:[%s192 + $0x3a0] sm:$0xff]
        %v361 = vld [vmem:[%s192 + $0x3a8] sm:$0xff]
        %v362 = vld [vmem:[%s192 + $0x3b0] sm:$0xff]
        %v363 = vld [vmem:[%s192 + $0x3b8] sm:$0xff]
        %v364 = vld [vmem:[%s192 + $0x3c0] sm:$0xff]
        %v365 = vld [vmem:[%s192 + $0x3c8] sm:$0xff]
        %v366 = vld [vmem:[%s192 + $0x3d0] sm:$0xff]
        %v367 = vld [vmem:[%s192 + $0x3d8] sm:$0xff]
        %v368 = vld [vmem:[%s192 + $0x3e0] sm:$0xff]
        %v369 = vld [vmem:[%s192 + $0x3e8] sm:$0xff]
        %v370 = vld [vmem:[%s192 + $0x3f0] sm:$0xff]
        %v371 = vld [vmem:[%s192 + $0x3f8] sm:$0xff]
        %v372 = vld [vmem:[%s192 + $0x400] sm:$0xff]
        %v373 = vld [vmem:[%s192 + $0x408] sm:$0xff]
        %v374 = vld [vmem:[%s192 + $0x410] sm:$0xff]
        %v375 = vld [vmem:[%s192 + $0x418] sm:$0xff]
        %v376 = vld [vmem:[%s192 + $0x420] sm:$0xff]
        %v377 = vld [vmem:[%s192 + $0x428] sm:$0xff]
        %v378 = vld [vmem:[%s192 + $0x430] sm:$0xff]
        %v379 = vld [vmem:[%s192 + $0x438] sm:$0xff]
        %v380 = vld [vmem:[%s192 + $0x440] sm:$0xff]
        %v381 = vld [vmem:[%s192 + $0x448] sm:$0xff]
        %v382 = vld [vmem:[%s192 + $0x450] sm:$0xff]
        %v383 = vld [vmem:[%s192 + $0x458] sm:$0xff]
        %v384 = vld [vmem:[%s192 + $0x460] sm:$0xff]
        %v385 = vld [vmem:[%s192 + $0x468] sm:$0xff]
        %v386 = vld [vmem:[%s192 + $0x470] sm:$0xff]
        %v387 = vld [vmem:[%s192 + $0x478] sm:$0xff]
        %v388 = vld [vmem:[%s192 + $0x480] sm:$0xff]
        %v389 = vld [vmem:[%s192 + $0x488] sm:$0xff]
        %v390 = vld [vmem:[%s192 + $0x490] sm:$0xff]
        %v391 = vld [vmem:[%s192 + $0x498] sm:$0xff]
        %v392 = vld [vmem:[%s192 + $0x4a0] sm:$0xff]
        %v393 = vld [vmem:[%s192 + $0x4a8] sm:$0xff]
        %v394 = vld [vmem:[%s192 + $0x4b0] sm:$0xff]
        %v395 = vld [vmem:[%s192 + $0x4b8] sm:$0xff]
        %v396 = vld [vmem:[%s192 + $0x4c0] sm:$0xff]
        %v397 = vld [vmem:[%s192 + $0x4c8] sm:$0xff]
        %v398 = vld [vmem:[%s192 + $0x4d0] sm:$0xff]
        %v399 = vld [vmem:[%s192 + $0x4d8] sm:$0xff]
        %v400 = vld [vmem:[%s192 + $0x4e0] sm:$0xff]
        %v401 = vld [vmem:[%s192 + $0x4e8] sm:$0xff]
        %v402 = vld [vmem:[%s192 + $0x4f0] sm:$0xff]
        %v403 = vld [vmem:[%s192 + $0x4f8] sm:$0xff]
        %v404 = vld [vmem:[%s192 + $0x500] sm:$0xff]
        %v405 = vld [vmem:[%s192 + $0x508] sm:$0xff]
        %v406 = vld [vmem:[%s192 + $0x510] sm:$0xff]
        %v407 = vld [vmem:[%s192 + $0x518] sm:$0xff]
        %v408 = vld [vmem:[%s192 + $0x520] sm:$0xff]
        %v409 = vld [vmem:[%s192 + $0x528] sm:$0xff]
        %v410 = vld [vmem:[%s192 + $0x530] sm:$0xff]
        %v411 = vld [vmem:[%s192 + $0x538] sm:$0xff]
        %v412 = vld [vmem:[%s192 + $0x540] sm:$0xff]
        %v413 = vld [vmem:[%s192 + $0x548] sm:$0xff]
        %v414 = vld [vmem:[%s192 + $0x550] sm:$0xff]
        %v415 = vld [vmem:[%s192 + $0x558] sm:$0xff]
        %v416 = vld [vmem:[%s192 + $0x560] sm:$0xff]
        %v417 = vld [vmem:[%s192 + $0x568] sm:$0xff]
        %v418 = vld [vmem:[%s192 + $0x570] sm:$0xff]
        %v419 = vld [vmem:[%s192 + $0x578] sm:$0xff]
        %v420 = vld [vmem:[%s192 + $0x580] sm:$0xff]
        %v421 = vld [vmem:[%s192 + $0x588] sm:$0xff]
        %v422 = vld [vmem:[%s192 + $0x590] sm:$0xff]
        %v423 = vld [vmem:[%s192 + $0x598] sm:$0xff]
        %v424 = vld [vmem:[%s192 + $0x5a0] sm:$0xff]
        %v425 = vld [vmem:[%s192 + $0x5a8] sm:$0xff]
        %v426 = vld [vmem:[%s192 + $0x5b0] sm:$0xff]
        %v427 = vld [vmem:[%s192 + $0x5b8] sm:$0xff]
        %v428 = vld [vmem:[%s192 + $0x5c0] sm:$0xff]
        %v429 = vld [vmem:[%s192 + $0x5c8] sm:$0xff]
        %v430 = vld [vmem:[%s192 + $0x5d0] sm:$0xff]
        %v431 = vld [vmem:[%s192 + $0x5d8] sm:$0xff]
        %v432 = vld [vmem:[%s192 + $0x5e0] sm:$0xff]
        %v433 = vld [vmem:[%s192 + $0x5e8] sm:$0xff]
        %v434 = vld [vmem:[%s192 + $0x5f0] sm:$0xff]
        %v435 = vld [vmem:[%s192 + $0x5f8] sm:$0xff]
        %v436 = vld [vmem:[%s192 + $0x600] sm:$0xff]
        %v437 = vld [vmem:[%s192 + $0x608] sm:$0xff]
        %v438 = vld [vmem:[%s192 + $0x610] sm:$0xff]
        %v439 = vld [vmem:[%s192 + $0x618] sm:$0xff]
        %v440 = vld [vmem:[%s192 + $0x620] sm:$0xff]
        %v441 = vld [vmem:[%s192 + $0x628] sm:$0xff]
        %v442 = vld [vmem:[%s192 + $0x630] sm:$0xff]
        %v443 = vld [vmem:[%s192 + $0x638] sm:$0xff]
        %v444 = vld [vmem:[%s192 + $0x640] sm:$0xff]
        %v445 = vld [vmem:[%s192 + $0x648] sm:$0xff]
        %v446 = vld [vmem:[%s192 + $0x650] sm:$0xff]
        %v447 = vld [vmem:[%s192 + $0x658] sm:$0xff]
        %v448 = vld [vmem:[%s192 + $0x660] sm:$0xff]
        %v449 = vld [vmem:[%s192 + $0x668] sm:$0xff]
        %v450 = vld [vmem:[%s192 + $0x670] sm:$0xff]
        %v451 = vld [vmem:[%s192 + $0x678] sm:$0xff]
        %v452 = vld [vmem:[%s192 + $0x680] sm:$0xff]
        %v453 = vld [vmem:[%s192 + $0x688] sm:$0xff]
        %v454 = vld [vmem:[%s192 + $0x690] sm:$0xff]
        %v455 = vld [vmem:[%s192 + $0x698] sm:$0xff]
        %v456 = vld [vmem:[%s192 + $0x6a0] sm:$0xff]
        %v457 = vld [vmem:[%s192 + $0x6a8] sm:$0xff]
        %v458 = vld [vmem:[%s192 + $0x6b0] sm:$0xff]
        %v459 = vld [vmem:[%s192 + $0x6b8] sm:$0xff]
        %v460 = vld [vmem:[%s192 + $0x6c0] sm:$0xff]
        %v461 = vld [vmem:[%s192 + $0x6c8] sm:$0xff]
        %v462 = vld [vmem:[%s192 + $0x6d0] sm:$0xff]
        %v463 = vld [vmem:[%s192 + $0x6d8] sm:$0xff]
        %v464 = vld [vmem:[%s192 + $0x6e0] sm:$0xff]
        %v465 = vld [vmem:[%s192 + $0x6e8] sm:$0xff]
        %v466 = vld [vmem:[%s192 + $0x6f0] sm:$0xff]
        %v467 = vld [vmem:[%s192 + $0x6f8] sm:$0xff]
        %v468 = vld [vmem:[%s192 + $0x700] sm:$0xff]
        %v469 = vld [vmem:[%s192 + $0x708] sm:$0xff]
        %v470 = vld [vmem:[%s192 + $0x710] sm:$0xff]
        %v471 = vld [vmem:[%s192 + $0x718] sm:$0xff]
        %v472 = vld [vmem:[%s192 + $0x720] sm:$0xff]
        %v473 = vld [vmem:[%s192 + $0x728] sm:$0xff]
        %v474 = vld [vmem:[%s192 + $0x730] sm:$0xff]
        %v475 = vld [vmem:[%s192 + $0x738] sm:$0xff]
        %v476 = vld [vmem:[%s192 + $0x740] sm:$0xff]
        %v477 = vld [vmem:[%s192 + $0x748] sm:$0xff]
        %v478 = vld [vmem:[%s192 + $0x750] sm:$0xff]
        %v479 = vld [vmem:[%s192 + $0x758] sm:$0xff]
        %v480 = vld [vmem:[%s192 + $0x760] sm:$0xff]
        %v481 = vld [vmem:[%s192 + $0x768] sm:$0xff]
        %v482 = vld [vmem:[%s192 + $0x770] sm:$0xff]
        %v483 = vld [vmem:[%s192 + $0x778] sm:$0xff]
        %v484 = vld [vmem:[%s192 + $0x780] sm:$0xff]
        %v485 = vld [vmem:[%s192 + $0x788] sm:$0xff]
        %v486 = vld [vmem:[%s192 + $0x790] sm:$0xff]
        %v487 = vld [vmem:[%s192 + $0x798] sm:$0xff]
        %v488 = vld [vmem:[%s192 + $0x7a0] sm:$0xff]
        %v489 = vld [vmem:[%s192 + $0x7a8] sm:$0xff]
        %v490 = vld [vmem:[%s192 + $0x7b0] sm:$0xff]
        %v491 = vld [vmem:[%s192 + $0x7b8] sm:$0xff]
        %v492 = vld [vmem:[%s192 + $0x7c0] sm:$0xff]
        %v493 = vld [vmem:[%s192 + $0x7c8] sm:$0xff]
        %v494 = vld [vmem:[%s192 + $0x7d0] sm:$0xff]
        %v495 = vld [vmem:[%s192 + $0x7d8] sm:$0xff]
        %v496 = vld [vmem:[%s192 + $0x7e0] sm:$0xff]
        %v497 = vld [vmem:[%s192 + $0x7e8] sm:$0xff]
        %v498 = vld [vmem:[%s192 + $0x7f0] sm:$0xff]
        %v499 = vld [vmem:[%s192 + $0x7f8] sm:$0xff]
        %v500 = vld [vmem:[%s192 + $0x800] sm:$0xff]
        %v501 = vld [vmem:[%s192 + $0x808] sm:$0xff]
        %v502 = vld [vmem:[%s192 + $0x810] sm:$0xff]
        %v503 = vld [vmem:[%s192 + $0x818] sm:$0xff]
        %v504 = vld [vmem:[%s192 + $0x820] sm:$0xff]
        %v505 = vld [vmem:[%s192 + $0x828] sm:$0xff]
        %v506 = vld [vmem:[%s192 + $0x830] sm:$0xff]
        %v507 = vld [vmem:[%s192 + $0x838] sm:$0xff]
        %v508 = vld [vmem:[%s192 + $0x840] sm:$0xff]
        %v509 = vld [vmem:[%s192 + $0x848] sm:$0xff]
        %v510 = vld [vmem:[%s192 + $0x850] sm:$0xff]
        %v511 = vld [vmem:[%s192 + $0x858] sm:$0xff]
        %v512 = vld [vmem:[%s192 + $0x860] sm:$0xff]
        %v513 = vld [vmem:[%s192 + $0x868] sm:$0xff]
        %v514 = vld [vmem:[%s192 + $0x870] sm:$0xff]
        %v515 = vld [vmem:[%s192 + $0x878] sm:$0xff]
        %v516 = vld [vmem:[%s192 + $0x880] sm:$0xff]
        %v517 = vld [vmem:[%s192 + $0x888] sm:$0xff]
        %v518 = vld [vmem:[%s192 + $0x890] sm:$0xff]
        %v519 = vld [vmem:[%s192 + $0x898] sm:$0xff]
        %v520 = vld [vmem:[%s192 + $0x8a0] sm:$0xff]
        %v521 = vld [vmem:[%s192 + $0x8a8] sm:$0xff]
        %v522 = vld [vmem:[%s192 + $0x8b0] sm:$0xff]
        %v523 = vld [vmem:[%s192 + $0x8b8] sm:$0xff]
        %v524 = vld [vmem:[%s192 + $0x8c0] sm:$0xff]
        %v525 = vld [vmem:[%s192 + $0x8c8] sm:$0xff]
        %v526 = vld [vmem:[%s192 + $0x8d0] sm:$0xff]
        %v527 = vld [vmem:[%s192 + $0x8d8] sm:$0xff]
        %v528 = vld [vmem:[%s192 + $0x8e0] sm:$0xff]
        %v529 = vld [vmem:[%s192 + $0x8e8] sm:$0xff]
        %v530 = vld [vmem:[%s192 + $0x8f0] sm:$0xff]
        %v531 = vld [vmem:[%s192 + $0x8f8] sm:$0xff]
        %v532 = vld [vmem:[%s192 + $0x900] sm:$0xff]
        %v533 = vld [vmem:[%s192 + $0x908] sm:$0xff]
        %v534 = vld [vmem:[%s192 + $0x910] sm:$0xff]
        %v535 = vld [vmem:[%s192 + $0x918] sm:$0xff]
        %v536 = vld [vmem:[%s192 + $0x920] sm:$0xff]
        %v537 = vld [vmem:[%s192 + $0x928] sm:$0xff]
        %v538 = vld [vmem:[%s192 + $0x930] sm:$0xff]
        %v539 = vld [vmem:[%s192 + $0x938] sm:$0xff]
        %v540 = vld [vmem:[%s192 + $0x940] sm:$0xff]
        %v541 = vld [vmem:[%s192 + $0x948] sm:$0xff]
        %v542 = vld [vmem:[%s192 + $0x950] sm:$0xff]
        %v543 = vld [vmem:[%s192 + $0x958] sm:$0xff]
        %v544 = vld [vmem:[%s192 + $0x960] sm:$0xff]
        %v545 = vld [vmem:[%s192 + $0x968] sm:$0xff]
        %v546 = vld [vmem:[%s192 + $0x970] sm:$0xff]
        %v547 = vld [vmem:[%s192 + $0x978] sm:$0xff]
        %v548 = vld [vmem:[%s192 + $0x980] sm:$0xff]
        %v549 = vld [vmem:[%s192 + $0x988] sm:$0xff]
        %v550 = vld [vmem:[%s192 + $0x990] sm:$0xff]
        %v551 = vld [vmem:[%s192 + $0x998] sm:$0xff]
        %v552 = vld [vmem:[%s192 + $0x9a0] sm:$0xff]
        %v553 = vld [vmem:[%s192 + $0x9a8] sm:$0xff]
        %v554 = vld [vmem:[%s192 + $0x9b0] sm:$0xff]
        %v555 = vld [vmem:[%s192 + $0x9b8] sm:$0xff]
        %v556 = vld [vmem:[%s192 + $0x9c0] sm:$0xff]
        %v557 = vld [vmem:[%s192 + $0x9c8] sm:$0xff]
        %v558 = vld [vmem:[%s192 + $0x9d0] sm:$0xff]
        %v559 = vld [vmem:[%s192 + $0x9d8] sm:$0xff]
        %v560 = vld [vmem:[%s192 + $0x9e0] sm:$0xff]
        %v561 = vld [vmem:[%s192 + $0x9e8] sm:$0xff]
        %v562 = vld [vmem:[%s192 + $0x9f0] sm:$0xff]
        %v563 = vld [vmem:[%s192 + $0x9f8] sm:$0xff]
        %v564 = vld [vmem:[%s192 + $0xa00] sm:$0xff]
        %v565 = vld [vmem:[%s192 + $0xa08] sm:$0xff]
        %v566 = vld [vmem:[%s192 + $0xa10] sm:$0xff]
        %v567 = vld [vmem:[%s192 + $0xa18] sm:$0xff]
        %v568 = vld [vmem:[%s192 + $0xa20] sm:$0xff]
        %v569 = vld [vmem:[%s192 + $0xa28] sm:$0xff]
        %v570 = vld [vmem:[%s192 + $0xa30] sm:$0xff]
        %v571 = vld [vmem:[%s192 + $0xa38] sm:$0xff]
        %v572 = vld [vmem:[%s192 + $0xa40] sm:$0xff]
        %v573 = vld [vmem:[%s192 + $0xa48] sm:$0xff]
        %v574 = vld [vmem:[%s192 + $0xa50] sm:$0xff]
        %v575 = vld [vmem:[%s192 + $0xa58] sm:$0xff]
        %v576 = vld [vmem:[%s192 + $0xa60] sm:$0xff]
        %v577 = vld [vmem:[%s192 + $0xa68] sm:$0xff]
        %v578 = vld [vmem:[%s192 + $0xa70] sm:$0xff]
        %v579 = vld [vmem:[%s192 + $0xa78] sm:$0xff]
        %v580 = vld [vmem:[%s192 + $0xa80] sm:$0xff]
        %v581 = vld [vmem:[%s192 + $0xa88] sm:$0xff]
        %v582 = vld [vmem:[%s192 + $0xa90] sm:$0xff]
        %v583 = vld [vmem:[%s192 + $0xa98] sm:$0xff]
        %v584 = vld [vmem:[%s192 + $0xaa0] sm:$0xff]
        %v585 = vld [vmem:[%s192 + $0xaa8] sm:$0xff]
        %v586 = vld [vmem:[%s192 + $0xab0] sm:$0xff]
        %v587 = vld [vmem:[%s192 + $0xab8] sm:$0xff]
        %v588 = vld [vmem:[%s192 + $0xac0] sm:$0xff]
        %v589 = vld [vmem:[%s192 + $0xac8] sm:$0xff]
        %v590 = vld [vmem:[%s192 + $0xad0] sm:$0xff]
        %v591 = vld [vmem:[%s192 + $0xad8] sm:$0xff]
        %v592 = vld [vmem:[%s192 + $0xae0] sm:$0xff]
        %v593 = vld [vmem:[%s192 + $0xae8] sm:$0xff]
        %v594 = vld [vmem:[%s192 + $0xaf0] sm:$0xff]
        %v595 = vld [vmem:[%s192 + $0xaf8] sm:$0xff]
        %v596 = vld [vmem:[%s192 + $0xb00] sm:$0xff]
        %v597 = vld [vmem:[%s192 + $0xb08] sm:$0xff]
        %v598 = vld [vmem:[%s192 + $0xb10] sm:$0xff]
        %v599 = vld [vmem:[%s192 + $0xb18] sm:$0xff]
        %v600 = vld [vmem:[%s192 + $0xb20] sm:$0xff]
        %v601 = vld [vmem:[%s192 + $0xb28] sm:$0xff]
        %v602 = vld [vmem:[%s192 + $0xb30] sm:$0xff]
        %v603 = vld [vmem:[%s192 + $0xb38] sm:$0xff]
        %v604 = vld [vmem:[%s192 + $0xb40] sm:$0xff]
        %v605 = vld [vmem:[%s192 + $0xb48] sm:$0xff]
        %v606 = vld [vmem:[%s192 + $0xb50] sm:$0xff]
        %v607 = vld [vmem:[%s192 + $0xb58] sm:$0xff]
        %v608 = vld [vmem:[%s192 + $0xb60] sm:$0xff]
        %v609 = vld [vmem:[%s192 + $0xb68] sm:$0xff]
        %v610 = vld [vmem:[%s192 + $0xb70] sm:$0xff]
        %v611 = vld [vmem:[%s192 + $0xb78] sm:$0xff]
        %v612 = vld [vmem:[%s192 + $0xb80] sm:$0xff]
        %v613 = vld [vmem:[%s192 + $0xb88] sm:$0xff]
        %v614 = vld [vmem:[%s192 + $0xb90] sm:$0xff]
        %v615 = vld [vmem:[%s192 + $0xb98] sm:$0xff]
        %v616 = vld [vmem:[%s192 + $0xba0] sm:$0xff]
        %v617 = vld [vmem:[%s192 + $0xba8] sm:$0xff]
        %v618 = vld [vmem:[%s192 + $0xbb0] sm:$0xff]
        %v619 = vld [vmem:[%s192 + $0xbb8] sm:$0xff]
        %v620 = vld [vmem:[%s192 + $0xbc0] sm:$0xff]
        %v621 = vld [vmem:[%s192 + $0xbc8] sm:$0xff]
        %v622 = vld [vmem:[%s192 + $0xbd0] sm:$0xff]
        %v623 = vld [vmem:[%s192 + $0xbd8] sm:$0xff]
        %v624 = vld [vmem:[%s192 + $0xbe0] sm:$0xff]
        %v625 = vld [vmem:[%s192 + $0xbe8] sm:$0xff]
        %v626 = vld [vmem:[%s192 + $0xbf0] sm:$0xff]
        %v627 = vld [vmem:[%s192 + $0xbf8] sm:$0xff]
        %v628 = vld [vmem:[%s192 + $0xc00] sm:$0xff]
        %v629 = vld [vmem:[%s192 + $0xc08] sm:$0xff]
        %v630 = vld [vmem:[%s192 + $0xc10] sm:$0xff]
        %v631 = vld [vmem:[%s192 + $0xc18] sm:$0xff]
        %v632 = vld [vmem:[%s192 + $0xc20] sm:$0xff]
        %v633 = vld [vmem:[%s192 + $0xc28] sm:$0xff]
        %v634 = vld [vmem:[%s192 + $0xc30] sm:$0xff]
        %v635 = vld [vmem:[%s192 + $0xc38] sm:$0xff]
        %v636 = vld [vmem:[%s192 + $0xc40] sm:$0xff]
        %v637 = vld [vmem:[%s192 + $0xc48] sm:$0xff]
        %v638 = vld [vmem:[%s192 + $0xc50] sm:$0xff]
        %v639 = vld [vmem:[%s192 + $0xc58] sm:$0xff]
        %v640 = vld [vmem:[%s192 + $0xc60] sm:$0xff]
        %v641 = vld [vmem:[%s192 + $0xc68] sm:$0xff]
        %v642 = vld [vmem:[%s192 + $0xc70] sm:$0xff]
        %v643 = vld [vmem:[%s192 + $0xc78] sm:$0xff]
        %v644 = vld [vmem:[%s192 + $0xc80] sm:$0xff]
        %v645 = vld [vmem:[%s192 + $0xc88] sm:$0xff]
        %v646 = vld [vmem:[%s192 + $0xc90] sm:$0xff]
        %v647 = vld [vmem:[%s192 + $0xc98] sm:$0xff]
        %v648 = vld [vmem:[%s192 + $0xca0] sm:$0xff]
        %v649 = vld [vmem:[%s192 + $0xca8] sm:$0xff]
        %v650 = vld [vmem:[%s192 + $0xcb0] sm:$0xff]
        %v651 = vld [vmem:[%s192 + $0xcb8] sm:$0xff]
        %v652 = vld [vmem:[%s192 + $0xcc0] sm:$0xff]
        %v653 = vld [vmem:[%s192 + $0xcc8] sm:$0xff]
        %v654 = vld [vmem:[%s192 + $0xcd0] sm:$0xff]
        %v655 = vld [vmem:[%s192 + $0xcd8] sm:$0xff]
        %v656 = vld [vmem:[%s192 + $0xce0] sm:$0xff]
        %v657 = vld [vmem:[%s192 + $0xce8] sm:$0xff]
        %v658 = vld [vmem:[%s192 + $0xcf0] sm:$0xff]
        %v659 = vld [vmem:[%s192 + $0xcf8] sm:$0xff]
        %v660 = vld [vmem:[%s192 + $0xd00] sm:$0xff]
        %v661 = vld [vmem:[%s192 + $0xd08] sm:$0xff]
        %v662 = vld [vmem:[%s192 + $0xd10] sm:$0xff]
        %v663 = vld [vmem:[%s192 + $0xd18] sm:$0xff]
        %v664 = vld [vmem:[%s192 + $0xd20] sm:$0xff]
        %v665 = vld [vmem:[%s192 + $0xd28] sm:$0xff]
        %v666 = vld [vmem:[%s192 + $0xd30] sm:$0xff]
        %v667 = vld [vmem:[%s192 + $0xd38] sm:$0xff]
        %v668 = vld [vmem:[%s192 + $0xd40] sm:$0xff]
        %v669 = vld [vmem:[%s192 + $0xd48] sm:$0xff]
        %v670 = vld [vmem:[%s192 + $0xd50] sm:$0xff]
        %v671 = vld [vmem:[%s192 + $0xd58] sm:$0xff]
        %v672 = vld [vmem:[%s192 + $0xd60] sm:$0xff]
        %v673 = vld [vmem:[%s192 + $0xd68] sm:$0xff]
        %v674 = vld [vmem:[%s192 + $0xd70] sm:$0xff]
        %v675 = vld [vmem:[%s192 + $0xd78] sm:$0xff]
        %v676 = vld [vmem:[%s192 + $0xd80] sm:$0xff]
        %v677 = vld [vmem:[%s192 + $0xd88] sm:$0xff]
        %v678 = vld [vmem:[%s192 + $0xd90] sm:$0xff]
        %v679 = vld [vmem:[%s192 + $0xd98] sm:$0xff]
        %v680 = vld [vmem:[%s192 + $0xda0] sm:$0xff]
        %v681 = vld [vmem:[%s192 + $0xda8] sm:$0xff]
        %v682 = vld [vmem:[%s192 + $0xdb0] sm:$0xff]
        %v683 = vld [vmem:[%s192 + $0xdb8] sm:$0xff]
        %v684 = vld [vmem:[%s192 + $0xdc0] sm:$0xff]
        %v685 = vld [vmem:[%s192 + $0xdc8] sm:$0xff]
        %v686 = vld [vmem:[%s192 + $0xdd0] sm:$0xff]
        %v687 = vld [vmem:[%s192 + $0xdd8] sm:$0xff]
        %v688 = vld [vmem:[%s192 + $0xde0] sm:$0xff]
        %v689 = vld [vmem:[%s192 + $0xde8] sm:$0xff]
        %v690 = vld [vmem:[%s192 + $0xdf0] sm:$0xff]
        %v691 = vld [vmem:[%s192 + $0xdf8] sm:$0xff]
        %v692 = vld [vmem:[%s192 + $0xe00] sm:$0xff]
        %v693 = vld [vmem:[%s192 + $0xe08] sm:$0xff]
        %v694 = vld [vmem:[%s192 + $0xe10] sm:$0xff]
        %v695 = vld [vmem:[%s192 + $0xe18] sm:$0xff]
        %v696 = vld [vmem:[%s192 + $0xe20] sm:$0xff]
        %v697 = vld [vmem:[%s192 + $0xe28] sm:$0xff]
        %v698 = vld [vmem:[%s192 + $0xe30] sm:$0xff]
        %v699 = vld [vmem:[%s192 + $0xe38] sm:$0xff]
        %v700 = vld [vmem:[%s192 + $0xe40] sm:$0xff]
        %v701 = vld [vmem:[%s192 + $0xe48] sm:$0xff]
        %v702 = vld [vmem:[%s192 + $0xe50] sm:$0xff]
        %v703 = vld [vmem:[%s192 + $0xe58] sm:$0xff]
        %v704 = vld [vmem:[%s192 + $0xe60] sm:$0xff]
        %v705 = vld [vmem:[%s192 + $0xe68] sm:$0xff]
        %v706 = vld [vmem:[%s192 + $0xe70] sm:$0xff]
        %v707 = vld [vmem:[%s192 + $0xe78] sm:$0xff]
        %v708 = vld [vmem:[%s192 + $0xe80] sm:$0xff]
        %v709 = vld [vmem:[%s192 + $0xe88] sm:$0xff]
        %v710 = vld [vmem:[%s192 + $0xe90] sm:$0xff]
        %v711 = vld [vmem:[%s192 + $0xe98] sm:$0xff]
        %v712 = vld [vmem:[%s192 + $0xea0] sm:$0xff]
        %v713 = vld [vmem:[%s192 + $0xea8] sm:$0xff]
        %v714 = vld [vmem:[%s192 + $0xeb0] sm:$0xff]
        %v715 = vld [vmem:[%s192 + $0xeb8] sm:$0xff]
        %v716 = vld [vmem:[%s192 + $0xec0] sm:$0xff]
        %v717 = vld [vmem:[%s192 + $0xec8] sm:$0xff]
        %v718 = vld [vmem:[%s192 + $0xed0] sm:$0xff]
        %v719 = vld [vmem:[%s192 + $0xed8] sm:$0xff]
        %v720 = vld [vmem:[%s192 + $0xee0] sm:$0xff]
        %v721 = vld [vmem:[%s192 + $0xee8] sm:$0xff]
        %v722 = vld [vmem:[%s192 + $0xef0] sm:$0xff]
        %v723 = vld [vmem:[%s192 + $0xef8] sm:$0xff]
        %v724 = vld [vmem:[%s192 + $0xf00] sm:$0xff]
        %v725 = vld [vmem:[%s192 + $0xf08] sm:$0xff]
        %v726 = vld [vmem:[%s192 + $0xf10] sm:$0xff]
        %v727 = vld [vmem:[%s192 + $0xf18] sm:$0xff]
        %v728 = vld [vmem:[%s192 + $0xf20] sm:$0xff]
        %v729 = vld [vmem:[%s192 + $0xf28] sm:$0xff]
        %v730 = vld [vmem:[%s192 + $0xf30] sm:$0xff]
        %v731 = vld [vmem:[%s192 + $0xf38] sm:$0xff]
        %v732 = vld [vmem:[%s192 + $0xf40] sm:$0xff]
        %v733 = vld [vmem:[%s192 + $0xf48] sm:$0xff]
        %v734 = vld [vmem:[%s192 + $0xf50] sm:$0xff]
        %v735 = vld [vmem:[%s192 + $0xf58] sm:$0xff]
        %v736 = vld [vmem:[%s192 + $0xf60] sm:$0xff]
        %v737 = vld [vmem:[%s192 + $0xf68] sm:$0xff]
        %v738 = vld [vmem:[%s192 + $0xf70] sm:$0xff]
        %v739 = vld [vmem:[%s192 + $0xf78] sm:$0xff]
        %v740 = vld [vmem:[%s192 + $0xf80] sm:$0xff]
        %v741 = vld [vmem:[%s192 + $0xf88] sm:$0xff]
        %v742 = vld [vmem:[%s192 + $0xf90] sm:$0xff]
        %v743 = vld [vmem:[%s192 + $0xf98] sm:$0xff]
        %v744 = vld [vmem:[%s192 + $0xfa0] sm:$0xff]
        %v745 = vld [vmem:[%s192 + $0xfa8] sm:$0xff]
        %v746 = vld [vmem:[%s192 + $0xfb0] sm:$0xff]
        %v747 = vld [vmem:[%s192 + $0xfb8] sm:$0xff]
        %v748 = vld [vmem:[%s192 + $0xfc0] sm:$0xff]
        %v749 = vld [vmem:[%s192 + $0xfc8] sm:$0xff]
        %v750 = vld [vmem:[%s192 + $0xfd0] sm:$0xff]
        %v751 = vld [vmem:[%s192 + $0xfd8] sm:$0xff]
        %v752 = vld [vmem:[%s192 + $0xfe0] sm:$0xff]
        %v753 = vld [vmem:[%s192 + $0xfe8] sm:$0xff]
        %v754 = vld [vmem:[%s192 + $0xff0] sm:$0xff]
        %v755 = vld [vmem:[%s192 + $0xff8] sm:$0xff]
        %v756 = vld [vmem:[%s192 + $0x1000] sm:$0xff]
        %v757 = vld [vmem:[%s192 + $0x1008] sm:$0xff]
        %v758 = vld [vmem:[%s192 + $0x1010] sm:$0xff]
        %v759 = vld [vmem:[%s192 + $0x1018] sm:$0xff]
        %v760 = vld [vmem:[%s192 + $0x1020] sm:$0xff]
        %v761 = vld [vmem:[%s192 + $0x1028] sm:$0xff]
        %v762 = vld [vmem:[%s192 + $0x1030] sm:$0xff]
        %v763 = vld [vmem:[%s192 + $0x1038] sm:$0xff]
        %v764 = vld [vmem:[%s192 + $0x1040] sm:$0xff]
        %v765 = vld [vmem:[%s192 + $0x1048] sm:$0xff]
        %v766 = vld [vmem:[%s192 + $0x1050] sm:$0xff]
        %v767 = vld [vmem:[%s192 + $0x1058] sm:$0xff]
        %v768 = vld [vmem:[%s192 + $0x1060] sm:$0xff]
        %v769 = vld [vmem:[%s192 + $0x1068] sm:$0xff]
        %v770 = vld [vmem:[%s192 + $0x1070] sm:$0xff]
        %v771 = vld [vmem:[%s192 + $0x1078] sm:$0xff]
        %v772 = vld [vmem:[%s192 + $0x1080] sm:$0xff]
        %v773 = vld [vmem:[%s192 + $0x1088] sm:$0xff]
        %v774 = vld [vmem:[%s192 + $0x1090] sm:$0xff]
        %v775 = vld [vmem:[%s192 + $0x1098] sm:$0xff]
        %v776 = vld [vmem:[%s192 + $0x10a0] sm:$0xff]
        %v777 = vld [vmem:[%s192 + $0x10a8] sm:$0xff]
        %v778 = vld [vmem:[%s192 + $0x10b0] sm:$0xff]
        %v779 = vld [vmem:[%s192 + $0x10b8] sm:$0xff]
        %v780 = vld [vmem:[%s192 + $0x10c0] sm:$0xff]
        %v781 = vld [vmem:[%s192 + $0x10c8] sm:$0xff]
        %v782 = vld [vmem:[%s192 + $0x10d0] sm:$0xff]
        %v783 = vld [vmem:[%s192 + $0x10d8] sm:$0xff]
        %v784 = vld [vmem:[%s192 + $0x10e0] sm:$0xff]
        %v785 = vld [vmem:[%s192 + $0x10e8] sm:$0xff]
        %v786 = vld [vmem:[%s192 + $0x10f0] sm:$0xff]
        %v787 = vld [vmem:[%s192 + $0x10f8] sm:$0xff]
        %v788 = vld [vmem:[%s192 + $0x1100] sm:$0xff]
        %v789 = vld [vmem:[%s192 + $0x1108] sm:$0xff]
        %v790 = vld [vmem:[%s192 + $0x1110] sm:$0xff]
        %v791 = vld [vmem:[%s192 + $0x1118] sm:$0xff]
        %v792 = vld [vmem:[%s192 + $0x1120] sm:$0xff]
        %v793 = vld [vmem:[%s192 + $0x1128] sm:$0xff]
        %v794 = vld [vmem:[%s192 + $0x1130] sm:$0xff]
        %v795 = vld [vmem:[%s192 + $0x1138] sm:$0xff]
        %v796 = vld [vmem:[%s192 + $0x1140] sm:$0xff]
        %v797 = vld [vmem:[%s192 + $0x1148] sm:$0xff]
        %v798 = vld [vmem:[%s192 + $0x1150] sm:$0xff]
        %v799 = vld [vmem:[%s192 + $0x1158] sm:$0xff]
        %v800 = vld [vmem:[%s192 + $0x1160] sm:$0xff]
        %v801 = vld [vmem:[%s192 + $0x1168] sm:$0xff]
        %v802 = vld [vmem:[%s192 + $0x1170] sm:$0xff]
        %v803 = vld [vmem:[%s192 + $0x1178] sm:$0xff]
        %v804 = vld [vmem:[%s192 + $0x1180] sm:$0xff]
        %v805 = vld [vmem:[%s192 + $0x1188] sm:$0xff]
        %v806 = vld [vmem:[%s192 + $0x1190] sm:$0xff]
        %v807 = vld [vmem:[%s192 + $0x1198] sm:$0xff]
        %v808 = vld [vmem:[%s192 + $0x11a0] sm:$0xff]
        %v809 = vld [vmem:[%s192 + $0x11a8] sm:$0xff]
        %v810 = vld [vmem:[%s192 + $0x11b0] sm:$0xff]
        %v811 = vld [vmem:[%s192 + $0x11b8] sm:$0xff]
        %v812 = vld [vmem:[%s192 + $0x11c0] sm:$0xff]
        %v813 = vld [vmem:[%s192 + $0x11c8] sm:$0xff]
        %v814 = vld [vmem:[%s192 + $0x11d0] sm:$0xff]
        %v815 = vld [vmem:[%s192 + $0x11d8] sm:$0xff]
        %v816 = vld [vmem:[%s192 + $0x11e0] sm:$0xff]
        %v817 = vld [vmem:[%s192 + $0x11e8] sm:$0xff]
        %v818 = vld [vmem:[%s192 + $0x11f0] sm:$0xff]
        %v819 = vld [vmem:[%s192 + $0x11f8] sm:$0xff]
        %v820 = vld [vmem:[%s192 + $0x1200] sm:$0xff]
        %v821 = vld [vmem:[%s192 + $0x1208] sm:$0xff]
        %v822 = vld [vmem:[%s192 + $0x1210] sm:$0xff]
        %v823 = vld [vmem:[%s192 + $0x1218] sm:$0xff]
        %v824 = vld [vmem:[%s192 + $0x1220] sm:$0xff]
        %v825 = vld [vmem:[%s192 + $0x1228] sm:$0xff]
        %v826 = vld [vmem:[%s192 + $0x1230] sm:$0xff]
        %v827 = vld [vmem:[%s192 + $0x1238] sm:$0xff]
        %v828 = vld [vmem:[%s192 + $0x1240] sm:$0xff]
        %v829 = vld [vmem:[%s192 + $0x1248] sm:$0xff]
        %v830 = vld [vmem:[%s192 + $0x1250] sm:$0xff]
        %v831 = vld [vmem:[%s192 + $0x1258] sm:$0xff]
        %v832 = vld [vmem:[%s192 + $0x1260] sm:$0xff]
        %v833 = vld [vmem:[%s192 + $0x1268] sm:$0xff]
        %v834 = vld [vmem:[%s192 + $0x1270] sm:$0xff]
        %v835 = vld [vmem:[%s192 + $0x1278] sm:$0xff]
        %v836 = vld [vmem:[%s192 + $0x1280] sm:$0xff]
        %v837 = vld [vmem:[%s192 + $0x1288] sm:$0xff]
        %v838 = vld [vmem:[%s192 + $0x1290] sm:$0xff]
        %v839 = vld [vmem:[%s192 + $0x1298] sm:$0xff]
        %v840 = vld [vmem:[%s192 + $0x12a0] sm:$0xff]
        %v841 = vld [vmem:[%s192 + $0x12a8] sm:$0xff]
        %v842 = vld [vmem:[%s192 + $0x12b0] sm:$0xff]
        %v843 = vld [vmem:[%s192 + $0x12b8] sm:$0xff]
        %v844 = vld [vmem:[%s192 + $0x12c0] sm:$0xff]
        %v845 = vld [vmem:[%s192 + $0x12c8] sm:$0xff]
        %v846 = vld [vmem:[%s192 + $0x12d0] sm:$0xff]
        %v847 = vld [vmem:[%s192 + $0x12d8] sm:$0xff]
        %v848 = vld [vmem:[%s192 + $0x12e0] sm:$0xff]
        %v849 = vld [vmem:[%s192 + $0x12e8] sm:$0xff]
        %v850 = vld [vmem:[%s192 + $0x12f0] sm:$0xff]
        %v851 = vld [vmem:[%s192 + $0x12f8] sm:$0xff]
        %v852 = vld [vmem:[%s192 + $0x1300] sm:$0xff]
        %v853 = vld [vmem:[%s192 + $0x1308] sm:$0xff]
        %v854 = vld [vmem:[%s192 + $0x1310] sm:$0xff]
        %v855 = vld [vmem:[%s192 + $0x1318] sm:$0xff]
        %v856 = vld [vmem:[%s192 + $0x1320] sm:$0xff]
        %v857 = vld [vmem:[%s192 + $0x1328] sm:$0xff]
        %v858 = vld [vmem:[%s192 + $0x1330] sm:$0xff]
        %v859 = vld [vmem:[%s192 + $0x1338] sm:$0xff]
        %v860 = vld [vmem:[%s192 + $0x1340] sm:$0xff]
        %v861 = vld [vmem:[%s192 + $0x1348] sm:$0xff]
        %v862 = vld [vmem:[%s192 + $0x1350] sm:$0xff]
        %v863 = vld [vmem:[%s192 + $0x1358] sm:$0xff]
        %v864 = vld [vmem:[%s192 + $0x1360] sm:$0xff]
        %v865 = vld [vmem:[%s192 + $0x1368] sm:$0xff]
        %v866 = vld [vmem:[%s192 + $0x1370] sm:$0xff]
        %v867 = vld [vmem:[%s192 + $0x1378] sm:$0xff]
        %v868 = vld [vmem:[%s192 + $0x1380] sm:$0xff]
        %v869 = vld [vmem:[%s192 + $0x1388] sm:$0xff]
        %v870 = vld [vmem:[%s192 + $0x1390] sm:$0xff]
        %v871 = vld [vmem:[%s192 + $0x1398] sm:$0xff]
        %v872 = vld [vmem:[%s192 + $0x13a0] sm:$0xff]
        %v873 = vld [vmem:[%s192 + $0x13a8] sm:$0xff]
        %v874 = vld [vmem:[%s192 + $0x13b0] sm:$0xff]
        %v875 = vld [vmem:[%s192 + $0x13b8] sm:$0xff]
        %v876 = vld [vmem:[%s192 + $0x13c0] sm:$0xff]
        %v877 = vld [vmem:[%s192 + $0x13c8] sm:$0xff]
        %v878 = vld [vmem:[%s192 + $0x13d0] sm:$0xff]
        %v879 = vld [vmem:[%s192 + $0x13d8] sm:$0xff]
        %v880 = vld [vmem:[%s192 + $0x13e0] sm:$0xff]
        %v881 = vld [vmem:[%s192 + $0x13e8] sm:$0xff]
        %v882 = vld [vmem:[%s192 + $0x13f0] sm:$0xff]
        %v883 = vld [vmem:[%s192 + $0x13f8] sm:$0xff]
        %v884 = vld [vmem:[%s192 + $0x1400] sm:$0xff]
        %v885 = vld [vmem:[%s192 + $0x1408] sm:$0xff]
        %v886 = vld [vmem:[%s192 + $0x1410] sm:$0xff]
        %v887 = vld [vmem:[%s192 + $0x1418] sm:$0xff]
        %v888 = vld [vmem:[%s192 + $0x1420] sm:$0xff]
        %v889 = vld [vmem:[%s192 + $0x1428] sm:$0xff]
        %v890 = vld [vmem:[%s192 + $0x1430] sm:$0xff]
        %v891 = vld [vmem:[%s192 + $0x1438] sm:$0xff]
        %v892 = vld [vmem:[%s192 + $0x1440] sm:$0xff]
        %v893 = vld [vmem:[%s192 + $0x1448] sm:$0xff]
        %v894 = vld [vmem:[%s192 + $0x1450] sm:$0xff]
        %v895 = vld [vmem:[%s192 + $0x1458] sm:$0xff]
        %v896 = vld [vmem:[%s192 + $0x1460] sm:$0xff]
        %v897 = vld [vmem:[%s192 + $0x1468] sm:$0xff]
        %v898 = vld [vmem:[%s192 + $0x1470] sm:$0xff]
        %v899 = vld [vmem:[%s192 + $0x1478] sm:$0xff]
        %v900 = vld [vmem:[%s192 + $0x1480] sm:$0xff]
        %v901 = vld [vmem:[%s192 + $0x1488] sm:$0xff]
        %v902 = vld [vmem:[%s192 + $0x1490] sm:$0xff]
        %v903 = vld [vmem:[%s192 + $0x1498] sm:$0xff]
        %v904 = vld [vmem:[%s192 + $0x14a0] sm:$0xff]
        %v905 = vld [vmem:[%s192 + $0x14a8] sm:$0xff]
        %v906 = vld [vmem:[%s192 + $0x14b0] sm:$0xff]
        %v907 = vld [vmem:[%s192 + $0x14b8] sm:$0xff]
        %v908 = vld [vmem:[%s192 + $0x14c0] sm:$0xff]
        %v909 = vld [vmem:[%s192 + $0x14c8] sm:$0xff]
        %v910 = vld [vmem:[%s192 + $0x14d0] sm:$0xff]
        %v911 = vld [vmem:[%s192 + $0x14d8] sm:$0xff]
        %v912 = vld [vmem:[%s192 + $0x14e0] sm:$0xff]
        %v913 = vld [vmem:[%s192 + $0x14e8] sm:$0xff]
        %v914 = vld [vmem:[%s192 + $0x14f0] sm:$0xff]
        %v915 = vld [vmem:[%s192 + $0x14f8] sm:$0xff]
        %v916 = vld [vmem:[%s192 + $0x1500] sm:$0xff]
        %v917 = vld [vmem:[%s192 + $0x1508] sm:$0xff]
        %v918 = vld [vmem:[%s192 + $0x1510] sm:$0xff]
        %v919 = vld [vmem:[%s192 + $0x1518] sm:$0xff]
        %v920 = vld [vmem:[%s192 + $0x1520] sm:$0xff]
        %v921 = vld [vmem:[%s192 + $0x1528] sm:$0xff]
        %v922 = vld [vmem:[%s192 + $0x1530] sm:$0xff]
        %v923 = vld [vmem:[%s192 + $0x1538] sm:$0xff]
        %v924 = vld [vmem:[%s192 + $0x1540] sm:$0xff]
        %v925 = vld [vmem:[%s192 + $0x1548] sm:$0xff]
        %v926 = vld [vmem:[%s192 + $0x1550] sm:$0xff]
        %v927 = vld [vmem:[%s192 + $0x1558] sm:$0xff]
        %v928 = vld [vmem:[%s192 + $0x1560] sm:$0xff]
        %v929 = vld [vmem:[%s192 + $0x1568] sm:$0xff]
        %v930 = vld [vmem:[%s192 + $0x1570] sm:$0xff]
        %v931 = vld [vmem:[%s192 + $0x1578] sm:$0xff]
        %v932 = vld [vmem:[%s192 + $0x1580] sm:$0xff]
        %v933 = vld [vmem:[%s192 + $0x1588] sm:$0xff]
        %v934 = vld [vmem:[%s192 + $0x1590] sm:$0xff]
        %v935 = vld [vmem:[%s192 + $0x1598] sm:$0xff]
        %v936 = vld [vmem:[%s192 + $0x15a0] sm:$0xff]
        %v937 = vld [vmem:[%s192 + $0x15a8] sm:$0xff]
        %v938 = vld [vmem:[%s192 + $0x15b0] sm:$0xff]
        %v939 = vld [vmem:[%s192 + $0x15b8] sm:$0xff]
        %v940 = vld [vmem:[%s192 + $0x15c0] sm:$0xff]
        %v941 = vld [vmem:[%s192 + $0x15c8] sm:$0xff]
        %v942 = vld [vmem:[%s192 + $0x15d0] sm:$0xff]
        %v943 = vld [vmem:[%s192 + $0x15d8] sm:$0xff]
        %v944 = vld [vmem:[%s192 + $0x15e0] sm:$0xff]
        %v945 = vld [vmem:[%s192 + $0x15e8] sm:$0xff]
        %v946 = vld [vmem:[%s192 + $0x15f0] sm:$0xff]
        %v947 = vld [vmem:[%s192 + $0x15f8] sm:$0xff]
        %v948 = vld [vmem:[%s192 + $0x1600] sm:$0xff]
        %v949 = vld [vmem:[%s192 + $0x1608] sm:$0xff]
        %v950 = vld [vmem:[%s192 + $0x1610] sm:$0xff]
        %v951 = vld [vmem:[%s192 + $0x1618] sm:$0xff]
        %v952 = vld [vmem:[%s192 + $0x1620] sm:$0xff]
        %v953 = vld [vmem:[%s192 + $0x1628] sm:$0xff]
        %v954 = vld [vmem:[%s192 + $0x1630] sm:$0xff]
        %v955 = vld [vmem:[%s192 + $0x1638] sm:$0xff]
        %v956 = vld [vmem:[%s192 + $0x1640] sm:$0xff]
        %v957 = vld [vmem:[%s192 + $0x1648] sm:$0xff]
        %v958 = vld [vmem:[%s192 + $0x1650] sm:$0xff]
        %v959 = vld [vmem:[%s192 + $0x1658] sm:$0xff]
        %v960 = vld [vmem:[%s192 + $0x1660] sm:$0xff]
        %v961 = vld [vmem:[%s192 + $0x1668] sm:$0xff]
        %v962 = vld [vmem:[%s192 + $0x1670] sm:$0xff]
        %v963 = vld [vmem:[%s192 + $0x1678] sm:$0xff]
        %v964 = vld [vmem:[%s192 + $0x1680] sm:$0xff]
        %v965 = vld [vmem:[%s192 + $0x1688] sm:$0xff]
        %v966 = vld [vmem:[%s192 + $0x1690] sm:$0xff]
        %v967 = vld [vmem:[%s192 + $0x1698] sm:$0xff]
        %v968 = vld [vmem:[%s192 + $0x16a0] sm:$0xff]
        %v969 = vld [vmem:[%s192 + $0x16a8] sm:$0xff]
        %v970 = vld [vmem:[%s192 + $0x16b0] sm:$0xff]
        %v971 = vld [vmem:[%s192 + $0x16b8] sm:$0xff]
        %v972 = vld [vmem:[%s192 + $0x16c0] sm:$0xff]
        %v973 = vld [vmem:[%s192 + $0x16c8] sm:$0xff]
        %v974 = vld [vmem:[%s192 + $0x16d0] sm:$0xff]
        %v975 = vld [vmem:[%s192 + $0x16d8] sm:$0xff]
        %v976 = vld [vmem:[%s192 + $0x16e0] sm:$0xff]
        %v977 = vld [vmem:[%s192 + $0x16e8] sm:$0xff]
        %v978 = vld [vmem:[%s192 + $0x16f0] sm:$0xff]
        %v979 = vld [vmem:[%s192 + $0x16f8] sm:$0xff]
        %v980 = vld [vmem:[%s192 + $0x1700] sm:$0xff]
        %v981 = vld [vmem:[%s192 + $0x1708] sm:$0xff]
        %v982 = vld [vmem:[%s192 + $0x1710] sm:$0xff]
        %v983 = vld [vmem:[%s192 + $0x1718] sm:$0xff]
        %v984 = vld [vmem:[%s192 + $0x1720] sm:$0xff]
        %v985 = vld [vmem:[%s192 + $0x1728] sm:$0xff]
        %v986 = vld [vmem:[%s192 + $0x1730] sm:$0xff]
        %v987 = vld [vmem:[%s192 + $0x1738] sm:$0xff]
        %v988 = vld [vmem:[%s192 + $0x1740] sm:$0xff]
        %v989 = vld [vmem:[%s192 + $0x1748] sm:$0xff]
        %v990 = vld [vmem:[%s192 + $0x1750] sm:$0xff]
        %v991 = vld [vmem:[%s192 + $0x1758] sm:$0xff]
        %v992 = vld [vmem:[%s192 + $0x1760] sm:$0xff]
        %v993 = vld [vmem:[%s192 + $0x1768] sm:$0xff]
        %v994 = vld [vmem:[%s192 + $0x1770] sm:$0xff]
        %v995 = vld [vmem:[%s192 + $0x1778] sm:$0xff]
        %v996 = vld [vmem:[%s192 + $0x1780] sm:$0xff]
        %v997 = vld [vmem:[%s192 + $0x1788] sm:$0xff]
        %v998 = vld [vmem:[%s192 + $0x1790] sm:$0xff]
        %v999 = vld [vmem:[%s192 + $0x1798] sm:$0xff]
        %v1000 = vld [vmem:[%s192 + $0x17a0] sm:$0xff]
        %v1001 = vld [vmem:[%s192 + $0x17a8] sm:$0xff]
        %v1002 = vld [vmem:[%s192 + $0x17b0] sm:$0xff]
        %v1003 = vld [vmem:[%s192 + $0x17b8] sm:$0xff]
        %v1004 = vld [vmem:[%s192 + $0x17c0] sm:$0xff]
        %v1005 = vld [vmem:[%s192 + $0x17c8] sm:$0xff]
        %v1006 = vld [vmem:[%s192 + $0x17d0] sm:$0xff]
        %v1007 = vld [vmem:[%s192 + $0x17d8] sm:$0xff]
        %v1008 = vld [vmem:[%s192 + $0x17e0] sm:$0xff]
        %v1009 = vld [vmem:[%s192 + $0x17e8] sm:$0xff]
        %v1010 = vld [vmem:[%s192 + $0x17f0] sm:$0xff]
        %v1011 = vld [vmem:[%s192 + $0x17f8] sm:$0xff]
        %v1012 = vld [vmem:[%s192 + $0x1800] sm:$0xff]
        %v1013 = vld [vmem:[%s192 + $0x1808] sm:$0xff]
        %v1014 = vld [vmem:[%s192 + $0x1810] sm:$0xff]
        %v1015 = vld [vmem:[%s192 + $0x1818] sm:$0xff]
        %v1016 = vld [vmem:[%s192 + $0x1820] sm:$0xff]
        %v1017 = vld [vmem:[%s192 + $0x1828] sm:$0xff]
        %v1018 = vld [vmem:[%s192 + $0x1830] sm:$0xff]
        %v1019 = vld [vmem:[%s192 + $0x1838] sm:$0xff]
        %v1020 = vld [vmem:[%s192 + $0x1840] sm:$0xff]
        %v1021 = vld [vmem:[%s192 + $0x1848] sm:$0xff]
        %v1022 = vld [vmem:[%s192 + $0x1850] sm:$0xff]
        %v1023 = vld [vmem:[%s192 + $0x1858] sm:$0xff]
        %v1024 = vld [vmem:[%s192 + $0x1860] sm:$0xff]
        %v1025 = vld [vmem:[%s192 + $0x1868] sm:$0xff]
        %v1026 = vld [vmem:[%s192 + $0x1870] sm:$0xff]
        %v1027 = vld [vmem:[%s192 + $0x1878] sm:$0xff]
        %v1028 = vld [vmem:[%s192 + $0x1880] sm:$0xff]
        %v1029 = vld [vmem:[%s192 + $0x1888] sm:$0xff]
        %v1030 = vld [vmem:[%s192 + $0x1890] sm:$0xff]
        %v1031 = vld [vmem:[%s192 + $0x1898] sm:$0xff]
        %v1032 = vld [vmem:[%s192 + $0x18a0] sm:$0xff]
        %v1033 = vld [vmem:[%s192 + $0x18a8] sm:$0xff]
        %v1034 = vld [vmem:[%s192 + $0x18b0] sm:$0xff]
        %v1035 = vld [vmem:[%s192 + $0x18b8] sm:$0xff]
        %v1036 = vld [vmem:[%s192 + $0x18c0] sm:$0xff]
        %v1037 = vld [vmem:[%s192 + $0x18c8] sm:$0xff]
        %v1038 = vld [vmem:[%s192 + $0x18d0] sm:$0xff]
        %v1039 = vld [vmem:[%s192 + $0x18d8] sm:$0xff]
        %v1040 = vld [vmem:[%s192 + $0x18e0] sm:$0xff]
        %v1041 = vld [vmem:[%s192 + $0x18e8] sm:$0xff]
        %v1042 = vld [vmem:[%s192 + $0x18f0] sm:$0xff]
        %v1043 = vld [vmem:[%s192 + $0x18f8] sm:$0xff]
        %v1044 = vld [vmem:[%s192 + $0x1900] sm:$0xff]
        %v1045 = vld [vmem:[%s192 + $0x1908] sm:$0xff]
        %v1046 = vld [vmem:[%s192 + $0x1910] sm:$0xff]
        %v1047 = vld [vmem:[%s192 + $0x1918] sm:$0xff]
        %v1048 = vld [vmem:[%s192 + $0x1920] sm:$0xff]
        %v1049 = vld [vmem:[%s192 + $0x1928] sm:$0xff]
        %v1050 = vld [vmem:[%s192 + $0x1930] sm:$0xff]
        %v1051 = vld [vmem:[%s192 + $0x1938] sm:$0xff]
        %v1052 = vld [vmem:[%s192 + $0x1940] sm:$0xff]
        %v1053 = vld [vmem:[%s192 + $0x1948] sm:$0xff]
        %v1054 = vld [vmem:[%s192 + $0x1950] sm:$0xff]
        %v1055 = vld [vmem:[%s192 + $0x1958] sm:$0xff]
        %v1056 = vld [vmem:[%s192 + $0x1960] sm:$0xff]
        %v1057 = vld [vmem:[%s192 + $0x1968] sm:$0xff]
        %v1058 = vld [vmem:[%s192 + $0x1970] sm:$0xff]
        %v1059 = vld [vmem:[%s192 + $0x1978] sm:$0xff]
        %v1060 = vld [vmem:[%s192 + $0x1980] sm:$0xff]
        %v1061 = vld [vmem:[%s192 + $0x1988] sm:$0xff]
        %v1062 = vld [vmem:[%s192 + $0x1990] sm:$0xff]
        %v1063 = vld [vmem:[%s192 + $0x1998] sm:$0xff]
        %v1064 = vld [vmem:[%s192 + $0x19a0] sm:$0xff]
        %v1065 = vld [vmem:[%s192 + $0x19a8] sm:$0xff]
        %v1066 = vld [vmem:[%s192 + $0x19b0] sm:$0xff]
        %v1067 = vld [vmem:[%s192 + $0x19b8] sm:$0xff]
        %v1068 = vld [vmem:[%s192 + $0x19c0] sm:$0xff]
        %v1069 = vld [vmem:[%s192 + $0x19c8] sm:$0xff]
        %v1070 = vld [vmem:[%s192 + $0x19d0] sm:$0xff]
        %v1071 = vld [vmem:[%s192 + $0x19d8] sm:$0xff]
        %v1072 = vld [vmem:[%s192 + $0x19e0] sm:$0xff]
        %v1073 = vld [vmem:[%s192 + $0x19e8] sm:$0xff]
        %v1074 = vld [vmem:[%s192 + $0x19f0] sm:$0xff]
        %v1075 = vld [vmem:[%s192 + $0x19f8] sm:$0xff]
        %v1076 = vld [vmem:[%s192 + $0x1a00] sm:$0xff]
        %v1077 = vld [vmem:[%s192 + $0x1a08] sm:$0xff]
        %v1078 = vld [vmem:[%s192 + $0x1a10] sm:$0xff]
        %v1079 = vld [vmem:[%s192 + $0x1a18] sm:$0xff]
        %v1080 = vld [vmem:[%s192 + $0x1a20] sm:$0xff]
        %v1081 = vld [vmem:[%s192 + $0x1a28] sm:$0xff]
        %v1082 = vld [vmem:[%s192 + $0x1a30] sm:$0xff]
        %v1083 = vld [vmem:[%s192 + $0x1a38] sm:$0xff]
        %v1084 = vld [vmem:[%s192 + $0x1a40] sm:$0xff]
        %v1085 = vld [vmem:[%s192 + $0x1a48] sm:$0xff]
        %v1086 = vld [vmem:[%s192 + $0x1a50] sm:$0xff]
        %v1087 = vld [vmem:[%s192 + $0x1a58] sm:$0xff]
        %v1088 = vld [vmem:[%s192 + $0x1a60] sm:$0xff]
        %v1089 = vld [vmem:[%s192 + $0x1a68] sm:$0xff]
        %v1090 = vld [vmem:[%s192 + $0x1a70] sm:$0xff]
        %v1091 = vld [vmem:[%s192 + $0x1a78] sm:$0xff]
        %v1092 = vld [vmem:[%s192 + $0x1a80] sm:$0xff]
        %v1093 = vld [vmem:[%s192 + $0x1a88] sm:$0xff]
        %v1094 = vld [vmem:[%s192 + $0x1a90] sm:$0xff]
        %v1095 = vld [vmem:[%s192 + $0x1a98] sm:$0xff]
        %v1096 = vld [vmem:[%s192 + $0x1aa0] sm:$0xff]
        %v1097 = vld [vmem:[%s192 + $0x1aa8] sm:$0xff]
        %v1098 = vld [vmem:[%s192 + $0x1ab0] sm:$0xff]
        %v1099 = vld [vmem:[%s192 + $0x1ab8] sm:$0xff]
        %v1100 = vld [vmem:[%s192 + $0x1ac0] sm:$0xff]
        %v1101 = vld [vmem:[%s192 + $0x1ac8] sm:$0xff]
        %v1102 = vld [vmem:[%s192 + $0x1ad0] sm:$0xff]
        %v1103 = vld [vmem:[%s192 + $0x1ad8] sm:$0xff]
        %v1104 = vld [vmem:[%s192 + $0x1ae0] sm:$0xff]
        %v1105 = vld [vmem:[%s192 + $0x1ae8] sm:$0xff]
        %v1106 = vld [vmem:[%s192 + $0x1af0] sm:$0xff]
        %v1107 = vld [vmem:[%s192 + $0x1af8] sm:$0xff]
        %v1108 = vld [vmem:[%s192 + $0x1b00] sm:$0xff]
        %v1109 = vld [vmem:[%s192 + $0x1b08] sm:$0xff]
        %v1110 = vld [vmem:[%s192 + $0x1b10] sm:$0xff]
        %v1111 = vld [vmem:[%s192 + $0x1b18] sm:$0xff]
        %v1112 = vld [vmem:[%s192 + $0x1b20] sm:$0xff]
        %v1113 = vld [vmem:[%s192 + $0x1b28] sm:$0xff]
        %v1114 = vld [vmem:[%s192 + $0x1b30] sm:$0xff]
        %v1115 = vld [vmem:[%s192 + $0x1b38] sm:$0xff]
        %v1116 = vld [vmem:[%s192 + $0x1b40] sm:$0xff]
        %v1117 = vld [vmem:[%s192 + $0x1b48] sm:$0xff]
        %v1118 = vld [vmem:[%s192 + $0x1b50] sm:$0xff]
        %v1119 = vld [vmem:[%s192 + $0x1b58] sm:$0xff]
        %v1120 = vld [vmem:[%s192 + $0x1b60] sm:$0xff]
        %v1121 = vld [vmem:[%s192 + $0x1b68] sm:$0xff]
        %v1122 = vld [vmem:[%s192 + $0x1b70] sm:$0xff]
        %v1123 = vld [vmem:[%s192 + $0x1b78] sm:$0xff]
        %v1124 = vld [vmem:[%s192 + $0x1b80] sm:$0xff]
        %v1125 = vld [vmem:[%s192 + $0x1b88] sm:$0xff]
        %v1126 = vld [vmem:[%s192 + $0x1b90] sm:$0xff]
        %v1127 = vld [vmem:[%s192 + $0x1b98] sm:$0xff]
        %v1128 = vld [vmem:[%s192 + $0x1ba0] sm:$0xff]
        %v1129 = vld [vmem:[%s192 + $0x1ba8] sm:$0xff]
        %v1130 = vld [vmem:[%s192 + $0x1bb0] sm:$0xff]
        %v1131 = vld [vmem:[%s192 + $0x1bb8] sm:$0xff]
        %v1132 = vld [vmem:[%s192 + $0x1bc0] sm:$0xff]
        %v1133 = vld [vmem:[%s192 + $0x1bc8] sm:$0xff]
        %v1134 = vld [vmem:[%s192 + $0x1bd0] sm:$0xff]
        %v1135 = vld [vmem:[%s192 + $0x1bd8] sm:$0xff]
        %v1136 = vld [vmem:[%s192 + $0x1be0] sm:$0xff]
        %v1137 = vld [vmem:[%s192 + $0x1be8] sm:$0xff]
        %v1138 = vld [vmem:[%s192 + $0x1bf0] sm:$0xff]
        %v1139 = vld [vmem:[%s192 + $0x1bf8] sm:$0xff]
        %v1140 = vld [vmem:[%s192 + $0x1c00] sm:$0xff]
        %v1141 = vld [vmem:[%s192 + $0x1c08] sm:$0xff]
        %v1142 = vld [vmem:[%s192 + $0x1c10] sm:$0xff]
        %v1143 = vld [vmem:[%s192 + $0x1c18] sm:$0xff]
        %v1144 = vld [vmem:[%s192 + $0x1c20] sm:$0xff]
        %v1145 = vld [vmem:[%s192 + $0x1c28] sm:$0xff]
        %v1146 = vld [vmem:[%s192 + $0x1c30] sm:$0xff]
        %v1147 = vld [vmem:[%s192 + $0x1c38] sm:$0xff]
        %v1148 = vld [vmem:[%s192 + $0x1c40] sm:$0xff]
        %v1149 = vld [vmem:[%s192 + $0x1c48] sm:$0xff]
        %v1150 = vld [vmem:[%s192 + $0x1c50] sm:$0xff]
        %v1151 = vld [vmem:[%s192 + $0x1c58] sm:$0xff]
        %v1152 = vld [vmem:[%s192 + $0x1c60] sm:$0xff]
        %v1153 = vld [vmem:[%s192 + $0x1c68] sm:$0xff]
        %v1154 = vld [vmem:[%s192 + $0x1c70] sm:$0xff]
        %v1155 = vld [vmem:[%s192 + $0x1c78] sm:$0xff]
        %v1156 = vld [vmem:[%s192 + $0x1c80] sm:$0xff]
        %v1157 = vld [vmem:[%s192 + $0x1c88] sm:$0xff]
        %v1158 = vld [vmem:[%s192 + $0x1c90] sm:$0xff]
        %v1159 = vld [vmem:[%s192 + $0x1c98] sm:$0xff]
        %v1160 = vld [vmem:[%s192 + $0x1ca0] sm:$0xff]
        %v1161 = vld [vmem:[%s192 + $0x1ca8] sm:$0xff]
        %v1162 = vld [vmem:[%s192 + $0x1cb0] sm:$0xff]
        %v1163 = vld [vmem:[%s192 + $0x1cb8] sm:$0xff]
        %v1164 = vld [vmem:[%s192 + $0x1cc0] sm:$0xff]
        %v1165 = vld [vmem:[%s192 + $0x1cc8] sm:$0xff]
        %v1166 = vld [vmem:[%s192 + $0x1cd0] sm:$0xff]
        %v1167 = vld [vmem:[%s192 + $0x1cd8] sm:$0xff]
        %v1168 = vld [vmem:[%s192 + $0x1ce0] sm:$0xff]
        %v1169 = vld [vmem:[%s192 + $0x1ce8] sm:$0xff]
        %v1170 = vld [vmem:[%s192 + $0x1cf0] sm:$0xff]
        %v1171 = vld [vmem:[%s192 + $0x1cf8] sm:$0xff]
        %v1172 = vld [vmem:[%s192 + $0x1d00] sm:$0xff]
        %v1173 = vld [vmem:[%s192 + $0x1d08] sm:$0xff]
        %v1174 = vld [vmem:[%s192 + $0x1d10] sm:$0xff]
        %v1175 = vld [vmem:[%s192 + $0x1d18] sm:$0xff]
        %v1176 = vld [vmem:[%s192 + $0x1d20] sm:$0xff]
        %v1177 = vld [vmem:[%s192 + $0x1d28] sm:$0xff]
        %v1178 = vld [vmem:[%s192 + $0x1d30] sm:$0xff]
        %v1179 = vld [vmem:[%s192 + $0x1d38] sm:$0xff]
        %v1180 = vld [vmem:[%s192 + $0x1d40] sm:$0xff]
        %v1181 = vld [vmem:[%s192 + $0x1d48] sm:$0xff]
        %v1182 = vld [vmem:[%s192 + $0x1d50] sm:$0xff]
        %v1183 = vld [vmem:[%s192 + $0x1d58] sm:$0xff]
        %v1184 = vld [vmem:[%s192 + $0x1d60] sm:$0xff]
        %v1185 = vld [vmem:[%s192 + $0x1d68] sm:$0xff]
        %v1186 = vld [vmem:[%s192 + $0x1d70] sm:$0xff]
        %v1187 = vld [vmem:[%s192 + $0x1d78] sm:$0xff]
        %v1188 = vld [vmem:[%s192 + $0x1d80] sm:$0xff]
        %v1189 = vld [vmem:[%s192 + $0x1d88] sm:$0xff]
        %v1190 = vld [vmem:[%s192 + $0x1d90] sm:$0xff]
        %v1191 = vld [vmem:[%s192 + $0x1d98] sm:$0xff]
        %v1192 = vld [vmem:[%s192 + $0x1da0] sm:$0xff]
        %v1193 = vld [vmem:[%s192 + $0x1da8] sm:$0xff]
        %v1194 = vld [vmem:[%s192 + $0x1db0] sm:$0xff]
        %v1195 = vld [vmem:[%s192 + $0x1db8] sm:$0xff]
        %v1196 = vld [vmem:[%s192 + $0x1dc0] sm:$0xff]
        %v1197 = vld [vmem:[%s192 + $0x1dc8] sm:$0xff]
        %v1198 = vld [vmem:[%s192 + $0x1dd0] sm:$0xff]
        %v1199 = vld [vmem:[%s192 + $0x1dd8] sm:$0xff]
        %v1200 = vld [vmem:[%s192 + $0x1de0] sm:$0xff]
        %v1201 = vld [vmem:[%s192 + $0x1de8] sm:$0xff]
        %v1202 = vld [vmem:[%s192 + $0x1df0] sm:$0xff]
        %v1203 = vld [vmem:[%s192 + $0x1df8] sm:$0xff]
        %v1204 = vld [vmem:[%s192 + $0x1e00] sm:$0xff]
        %v1205 = vld [vmem:[%s192 + $0x1e08] sm:$0xff]
        %v1206 = vld [vmem:[%s192 + $0x1e10] sm:$0xff]
        %v1207 = vld [vmem:[%s192 + $0x1e18] sm:$0xff]
        %v1208 = vld [vmem:[%s192 + $0x1e20] sm:$0xff]
        %v1209 = vld [vmem:[%s192 + $0x1e28] sm:$0xff]
        %v1210 = vld [vmem:[%s192 + $0x1e30] sm:$0xff]
        %v1211 = vld [vmem:[%s192 + $0x1e38] sm:$0xff]
        %v1212 = vld [vmem:[%s192 + $0x1e40] sm:$0xff]
        %v1213 = vld [vmem:[%s192 + $0x1e48] sm:$0xff]
        %v1214 = vld [vmem:[%s192 + $0x1e50] sm:$0xff]
        %v1215 = vld [vmem:[%s192 + $0x1e58] sm:$0xff]
        %v1216 = vld [vmem:[%s192 + $0x1e60] sm:$0xff]
        %v1217 = vld [vmem:[%s192 + $0x1e68] sm:$0xff]
        %v1218 = vld [vmem:[%s192 + $0x1e70] sm:$0xff]
        %v1219 = vld [vmem:[%s192 + $0x1e78] sm:$0xff]
        %v1220 = vld [vmem:[%s192 + $0x1e80] sm:$0xff]
        %v1221 = vld [vmem:[%s192 + $0x1e88] sm:$0xff]
        %v1222 = vld [vmem:[%s192 + $0x1e90] sm:$0xff]
        %v1223 = vld [vmem:[%s192 + $0x1e98] sm:$0xff]
        %v1224 = vld [vmem:[%s192 + $0x1ea0] sm:$0xff]
        %v1225 = vld [vmem:[%s192 + $0x1ea8] sm:$0xff]
        %v1226 = vld [vmem:[%s192 + $0x1eb0] sm:$0xff]
        %v1227 = vld [vmem:[%s192 + $0x1eb8] sm:$0xff]
        %v1228 = vld [vmem:[%s192 + $0x1ec0] sm:$0xff]
        %v1229 = vld [vmem:[%s192 + $0x1ec8] sm:$0xff]
        %v1230 = vld [vmem:[%s192 + $0x1ed0] sm:$0xff]
        %v1231 = vld [vmem:[%s192 + $0x1ed8] sm:$0xff]
        %v1232 = vld [vmem:[%s192 + $0x1ee0] sm:$0xff]
        %v1233 = vld [vmem:[%s192 + $0x1ee8] sm:$0xff]
        %v1234 = vld [vmem:[%s192 + $0x1ef0] sm:$0xff]
        %v1235 = vld [vmem:[%s192 + $0x1ef8] sm:$0xff]
        %v1236 = vld [vmem:[%s192 + $0x1f00] sm:$0xff]
        %v1237 = vld [vmem:[%s192 + $0x1f08] sm:$0xff]
        %v1238 = vld [vmem:[%s192 + $0x1f10] sm:$0xff]
        %v1239 = vld [vmem:[%s192 + $0x1f18] sm:$0xff]
        %v1240 = vld [vmem:[%s192 + $0x1f20] sm:$0xff]
        %v1241 = vld [vmem:[%s192 + $0x1f28] sm:$0xff]
        %v1242 = vld [vmem:[%s192 + $0x1f30] sm:$0xff]
        %v1243 = vld [vmem:[%s192 + $0x1f38] sm:$0xff]
        %v1244 = vld [vmem:[%s192 + $0x1f40] sm:$0xff]
        %v1245 = vld [vmem:[%s192 + $0x1f48] sm:$0xff]
        %v1246 = vld [vmem:[%s192 + $0x1f50] sm:$0xff]
        %v1247 = vld [vmem:[%s192 + $0x1f58] sm:$0xff]
        %v1248 = vld [vmem:[%s192 + $0x1f60] sm:$0xff]
        %v1249 = vld [vmem:[%s192 + $0x1f68] sm:$0xff]
        %v1250 = vld [vmem:[%s192 + $0x1f70] sm:$0xff]
        %v1251 = vld [vmem:[%s192 + $0x1f78] sm:$0xff]
        %v1252 = vld [vmem:[%s192 + $0x1f80] sm:$0xff]
        %v1253 = vld [vmem:[%s192 + $0x1f88] sm:$0xff]
        %v1254 = vld [vmem:[%s192 + $0x1f90] sm:$0xff]
        %v1255 = vld [vmem:[%s192 + $0x1f98] sm:$0xff]
        %v1256 = vld [vmem:[%s192 + $0x1fa0] sm:$0xff]
        %v1257 = vld [vmem:[%s192 + $0x1fa8] sm:$0xff]
        %v1258 = vld [vmem:[%s192 + $0x1fb0] sm:$0xff]
        %v1259 = vld [vmem:[%s192 + $0x1fb8] sm:$0xff]
        %v1260 = vld [vmem:[%s192 + $0x1fc0] sm:$0xff]
        %v1261 = vld [vmem:[%s192 + $0x1fc8] sm:$0xff]
        %v1262 = vld [vmem:[%s192 + $0x1fd0] sm:$0xff]
        %v1263 = vld [vmem:[%s192 + $0x1fd8] sm:$0xff]
        %v1264 = vld [vmem:[%s192 + $0x1fe0] sm:$0xff]
        %v1265 = vld [vmem:[%s192 + $0x1fe8] sm:$0xff]
        %v1266 = vld [vmem:[%s192 + $0x1ff0] sm:$0xff]
        %v1267 = vld [vmem:[%s192 + $0x1ff8] sm:$0xff]
        %v1268 = vld [vmem:[%s192 + $0x2000] sm:$0xff]
        %v1269 = vld [vmem:[%s192 + $0x2008] sm:$0xff]
        %v1270 = vld [vmem:[%s192 + $0x2010] sm:$0xff]
        %v1271 = vld [vmem:[%s192 + $0x2018] sm:$0xff]
        %v1272 = vld [vmem:[%s192 + $0x2020] sm:$0xff]
        %v1273 = vld [vmem:[%s192 + $0x2028] sm:$0xff]
        %v1274 = vld [vmem:[%s192 + $0x2030] sm:$0xff]
        %v1275 = vld [vmem:[%s192 + $0x2038] sm:$0xff]
        %v1276 = vld [vmem:[%s192 + $0x2040] sm:$0xff]
        %v1277 = vld [vmem:[%s192 + $0x2048] sm:$0xff]
        %v1278 = vld [vmem:[%s192 + $0x2050] sm:$0xff]
        %v1279 = vld [vmem:[%s192 + $0x2058] sm:$0xff]
        %v1280 = vld [vmem:[%s192 + $0x2060] sm:$0xff]
        %v1281 = vld [vmem:[%s192 + $0x2068] sm:$0xff]
        %v1282 = vld [vmem:[%s192 + $0x2070] sm:$0xff]
        %v1283 = vld [vmem:[%s192 + $0x2078] sm:$0xff]
        %v1284 = vld [vmem:[%s192 + $0x2080] sm:$0xff]
        %v1285 = vld [vmem:[%s192 + $0x2088] sm:$0xff]
        %v1286 = vld [vmem:[%s192 + $0x2090] sm:$0xff]
        %v1287 = vld [vmem:[%s192 + $0x2098] sm:$0xff]
        %v1288 = vld [vmem:[%s192 + $0x20a0] sm:$0xff]
        %v1289 = vld [vmem:[%s192 + $0x20a8] sm:$0xff]
        %v1290 = vld [vmem:[%s192 + $0x20b0] sm:$0xff]
        %v1291 = vld [vmem:[%s192 + $0x20b8] sm:$0xff]
        %v1292 = vld [vmem:[%s192 + $0x20c0] sm:$0xff]
        %v1293 = vld [vmem:[%s192 + $0x20c8] sm:$0xff]
        %v1294 = vld [vmem:[%s192 + $0x20d0] sm:$0xff]
        %v1295 = vld [vmem:[%s192 + $0x20d8] sm:$0xff]
        %v1296 = vld [vmem:[%s192 + $0x20e0] sm:$0xff]
        %v1297 = vld [vmem:[%s192 + $0x20e8] sm:$0xff]
        %v1298 = vld [vmem:[%s192 + $0x20f0] sm:$0xff]
        %v1299 = vld [vmem:[%s192 + $0x20f8] sm:$0xff]
        %v1300 = vld [vmem:[%s192 + $0x2100] sm:$0xff]
        %v1301 = vld [vmem:[%s192 + $0x2108] sm:$0xff]
        %v1302 = vld [vmem:[%s192 + $0x2110] sm:$0xff]
        %v1303 = vld [vmem:[%s192 + $0x2118] sm:$0xff]
        %v1304 = vld [vmem:[%s192 + $0x2120] sm:$0xff]
        %v1305 = vld [vmem:[%s192 + $0x2128] sm:$0xff]
        %v1306 = vld [vmem:[%s192 + $0x2130] sm:$0xff]
        %v1307 = vld [vmem:[%s192 + $0x2138] sm:$0xff]
        %v1308 = vld [vmem:[%s192 + $0x2140] sm:$0xff]
        %v1309 = vld [vmem:[%s192 + $0x2148] sm:$0xff]
        %v1310 = vld [vmem:[%s192 + $0x2150] sm:$0xff]
        %v1311 = vld [vmem:[%s192 + $0x2158] sm:$0xff]
        %v1312 = vld [vmem:[%s192 + $0x2160] sm:$0xff]
        %v1313 = vld [vmem:[%s192 + $0x2168] sm:$0xff]
        %v1314 = vld [vmem:[%s192 + $0x2170] sm:$0xff]
        %v1315 = vld [vmem:[%s192 + $0x2178] sm:$0xff]
        %v1316 = vld [vmem:[%s192 + $0x2180] sm:$0xff]
        %v1317 = vld [vmem:[%s192 + $0x2188] sm:$0xff]
        %v1318 = vld [vmem:[%s192 + $0x2190] sm:$0xff]
        %v1319 = vld [vmem:[%s192 + $0x2198] sm:$0xff]
        %v1320 = vld [vmem:[%s192 + $0x21a0] sm:$0xff]
        %v1321 = vld [vmem:[%s192 + $0x21a8] sm:$0xff]
        %v1322 = vld [vmem:[%s192 + $0x21b0] sm:$0xff]
        %v1323 = vld [vmem:[%s192 + $0x21b8] sm:$0xff]
        %v1324 = vld [vmem:[%s192 + $0x21c0] sm:$0xff]
        %v1325 = vld [vmem:[%s192 + $0x21c8] sm:$0xff]
        %v1326 = vld [vmem:[%s192 + $0x21d0] sm:$0xff]
        %v1327 = vld [vmem:[%s192 + $0x21d8] sm:$0xff]
        %v1328 = vld [vmem:[%s192 + $0x21e0] sm:$0xff]
        %v1329 = vld [vmem:[%s192 + $0x21e8] sm:$0xff]
        %v1330 = vld [vmem:[%s192 + $0x21f0] sm:$0xff]
        %v1331 = vld [vmem:[%s192 + $0x21f8] sm:$0xff]
        %v1332 = vld [vmem:[%s192 + $0x2200] sm:$0xff]
        %v1333 = vld [vmem:[%s192 + $0x2208] sm:$0xff]
        %v1334 = vld [vmem:[%s192 + $0x2210] sm:$0xff]
        %v1335 = vld [vmem:[%s192 + $0x2218] sm:$0xff]
        %v1336 = vld [vmem:[%s192 + $0x2220] sm:$0xff]
        %v1337 = vld [vmem:[%s192 + $0x2228] sm:$0xff]
        %v1338 = vld [vmem:[%s192 + $0x2230] sm:$0xff]
        %v1339 = vld [vmem:[%s192 + $0x2238] sm:$0xff]
        %v1340 = vld [vmem:[%s192 + $0x2240] sm:$0xff]
        %v1341 = vld [vmem:[%s192 + $0x2248] sm:$0xff]
        %v1342 = vld [vmem:[%s192 + $0x2250] sm:$0xff]
        %v1343 = vld [vmem:[%s192 + $0x2258] sm:$0xff]
        %v1344 = vld [vmem:[%s192 + $0x2260] sm:$0xff]
        %v1345 = vld [vmem:[%s192 + $0x2268] sm:$0xff]
        %v1346 = vld [vmem:[%s192 + $0x2270] sm:$0xff]
        %v1347 = vld [vmem:[%s192 + $0x2278] sm:$0xff]
        %v1348 = vld [vmem:[%s192 + $0x2280] sm:$0xff]
        %v1349 = vld [vmem:[%s192 + $0x2288] sm:$0xff]
        %v1350 = vld [vmem:[%s192 + $0x2290] sm:$0xff]
        %v1351 = vld [vmem:[%s192 + $0x2298] sm:$0xff]
        %v1352 = vld [vmem:[%s192 + $0x22a0] sm:$0xff]
        %v1353 = vld [vmem:[%s192 + $0x22a8] sm:$0xff]
        %v1354 = vld [vmem:[%s192 + $0x22b0] sm:$0xff]
        %v1355 = vld [vmem:[%s192 + $0x22b8] sm:$0xff]
        %v1356 = vld [vmem:[%s192 + $0x22c0] sm:$0xff]
        %v1357 = vld [vmem:[%s192 + $0x22c8] sm:$0xff]
        %v1358 = vld [vmem:[%s192 + $0x22d0] sm:$0xff]
        %v1359 = vld [vmem:[%s192 + $0x22d8] sm:$0xff]
        %v1360 = vld [vmem:[%s192 + $0x22e0] sm:$0xff]
        %v1361 = vld [vmem:[%s192 + $0x22e8] sm:$0xff]
        %v1362 = vld [vmem:[%s192 + $0x22f0] sm:$0xff]
        %v1363 = vld [vmem:[%s192 + $0x22f8] sm:$0xff]
        %v1364 = vld [vmem:[%s192 + $0x2300] sm:$0xff]
        %v1365 = vld [vmem:[%s192 + $0x2308] sm:$0xff]
        %v1366 = vld [vmem:[%s192 + $0x2310] sm:$0xff]
        %v1367 = vld [vmem:[%s192 + $0x2318] sm:$0xff]
        %v1368 = vld [vmem:[%s192 + $0x2320] sm:$0xff]
        %v1369 = vld [vmem:[%s192 + $0x2328] sm:$0xff]
        %v1370 = vld [vmem:[%s192 + $0x2330] sm:$0xff]
        %v1371 = vld [vmem:[%s192 + $0x2338] sm:$0xff]
        %v1372 = vld [vmem:[%s192 + $0x2340] sm:$0xff]
        %v1373 = vld [vmem:[%s192 + $0x2348] sm:$0xff]
        %v1374 = vld [vmem:[%s192 + $0x2350] sm:$0xff]
        %v1375 = vld [vmem:[%s192 + $0x2358] sm:$0xff]
        %v1376 = vld [vmem:[%s192 + $0x2360] sm:$0xff]
        %v1377 = vld [vmem:[%s192 + $0x2368] sm:$0xff]
        %v1378 = vld [vmem:[%s192 + $0x2370] sm:$0xff]
        %v1379 = vld [vmem:[%s192 + $0x2378] sm:$0xff]
        %v1380 = vld [vmem:[%s192 + $0x2380] sm:$0xff]
        %v1381 = vld [vmem:[%s192 + $0x2388] sm:$0xff]
        %v1382 = vld [vmem:[%s192 + $0x2390] sm:$0xff]
        %v1383 = vld [vmem:[%s192 + $0x2398] sm:$0xff]
        %v1384 = vld [vmem:[%s192 + $0x23a0] sm:$0xff]
        %v1385 = vld [vmem:[%s192 + $0x23a8] sm:$0xff]
        %v1386 = vld [vmem:[%s192 + $0x23b0] sm:$0xff]
        %v1387 = vld [vmem:[%s192 + $0x23b8] sm:$0xff]
        %v1388 = vld [vmem:[%s192 + $0x23c0] sm:$0xff]
        %v1389 = vld [vmem:[%s192 + $0x23c8] sm:$0xff]
        %v1390 = vld [vmem:[%s192 + $0x23d0] sm:$0xff]
        %v1391 = vld [vmem:[%s192 + $0x23d8] sm:$0xff]
        %v1392 = vld [vmem:[%s192 + $0x23e0] sm:$0xff]
        %v1393 = vld [vmem:[%s192 + $0x23e8] sm:$0xff]
        %v1394 = vld [vmem:[%s192 + $0x23f0] sm:$0xff]
        %v1395 = vld [vmem:[%s192 + $0x23f8] sm:$0xff]
        %v1396 = vld [vmem:[%s192 + $0x2400] sm:$0xff]
        %v1397 = vld [vmem:[%s192 + $0x2408] sm:$0xff]
        %v1398 = vld [vmem:[%s192 + $0x2410] sm:$0xff]
        %v1399 = vld [vmem:[%s192 + $0x2418] sm:$0xff]
        %v1400 = vld [vmem:[%s192 + $0x2420] sm:$0xff]
        %v1401 = vld [vmem:[%s192 + $0x2428] sm:$0xff]
        %v1402 = vld [vmem:[%s192 + $0x2430] sm:$0xff]
        %v1403 = vld [vmem:[%s192 + $0x2438] sm:$0xff]
        %v1404 = vld [vmem:[%s192 + $0x2440] sm:$0xff]
        %v1405 = vld [vmem:[%s192 + $0x2448] sm:$0xff]
        %v1406 = vld [vmem:[%s192 + $0x2450] sm:$0xff]
        %v1407 = vld [vmem:[%s192 + $0x2458] sm:$0xff]
        %v1408 = vld [vmem:[%s192 + $0x2460] sm:$0xff]
        %v1409 = vld [vmem:[%s192 + $0x2468] sm:$0xff]
        %v1410 = vld [vmem:[%s192 + $0x2470] sm:$0xff]
        %v1411 = vld [vmem:[%s192 + $0x2478] sm:$0xff]
        %v1412 = vld [vmem:[%s192 + $0x2480] sm:$0xff]
        %v1413 = vld [vmem:[%s192 + $0x2488] sm:$0xff]
        %v1414 = vld [vmem:[%s192 + $0x2490] sm:$0xff]
        %v1415 = vld [vmem:[%s192 + $0x2498] sm:$0xff]
        %v1416 = vld [vmem:[%s192 + $0x24a0] sm:$0xff]
        %v1417 = vld [vmem:[%s192 + $0x24a8] sm:$0xff]
        %v1418 = vld [vmem:[%s192 + $0x24b0] sm:$0xff]
        %v1419 = vld [vmem:[%s192 + $0x24b8] sm:$0xff]
        %v1420 = vld [vmem:[%s192 + $0x24c0] sm:$0xff]
        %v1421 = vld [vmem:[%s192 + $0x24c8] sm:$0xff]
        %v1422 = vld [vmem:[%s192 + $0x24d0] sm:$0xff]
        %v1423 = vld [vmem:[%s192 + $0x24d8] sm:$0xff]
        %v1424 = vld [vmem:[%s192 + $0x24e0] sm:$0xff]
        %v1425 = vld [vmem:[%s192 + $0x24e8] sm:$0xff]
        %v1426 = vld [vmem:[%s192 + $0x24f0] sm:$0xff]
        %v1427 = vld [vmem:[%s192 + $0x24f8] sm:$0xff]
        %v1428 = vld [vmem:[%s192 + $0x2500] sm:$0xff]
        %v1429 = vld [vmem:[%s192 + $0x2508] sm:$0xff]
        %v1430 = vld [vmem:[%s192 + $0x2510] sm:$0xff]
        %v1431 = vld [vmem:[%s192 + $0x2518] sm:$0xff]
        %v1432 = vld [vmem:[%s192 + $0x2520] sm:$0xff]
        %v1433 = vld [vmem:[%s192 + $0x2528] sm:$0xff]
        %v1434 = vld [vmem:[%s192 + $0x2530] sm:$0xff]
        %v1435 = vld [vmem:[%s192 + $0x2538] sm:$0xff]
        %v1436 = vld [vmem:[%s192 + $0x2540] sm:$0xff]
        %v1437 = vld [vmem:[%s192 + $0x2548] sm:$0xff]
        %v1438 = vld [vmem:[%s192 + $0x2550] sm:$0xff]
        %v1439 = vld [vmem:[%s192 + $0x2558] sm:$0xff]
        %v1440 = vld [vmem:[%s192 + $0x2560] sm:$0xff]
        %v1441 = vld [vmem:[%s192 + $0x2568] sm:$0xff]
        %v1442 = vld [vmem:[%s192 + $0x2570] sm:$0xff]
        %v1443 = vld [vmem:[%s192 + $0x2578] sm:$0xff]
        %v1444 = vld [vmem:[%s192 + $0x2580] sm:$0xff]
        %v1445 = vld [vmem:[%s192 + $0x2588] sm:$0xff]
        %v1446 = vld [vmem:[%s192 + $0x2590] sm:$0xff]
        %v1447 = vld [vmem:[%s192 + $0x2598] sm:$0xff]
        %v1448 = vld [vmem:[%s192 + $0x25a0] sm:$0xff]
        %v1449 = vld [vmem:[%s192 + $0x25a8] sm:$0xff]
        %v1450 = vld [vmem:[%s192 + $0x25b0] sm:$0xff]
        %v1451 = vld [vmem:[%s192 + $0x25b8] sm:$0xff]
        %v1452 = vld [vmem:[%s192 + $0x25c0] sm:$0xff]
        %v1453 = vld [vmem:[%s192 + $0x25c8] sm:$0xff]
        %v1454 = vld [vmem:[%s192 + $0x25d0] sm:$0xff]
        %v1455 = vld [vmem:[%s192 + $0x25d8] sm:$0xff]
        %v1456 = vld [vmem:[%s192 + $0x25e0] sm:$0xff]
        %v1457 = vld [vmem:[%s192 + $0x25e8] sm:$0xff]
        %v1458 = vld [vmem:[%s192 + $0x25f0] sm:$0xff]
        %v1459 = vld [vmem:[%s192 + $0x25f8] sm:$0xff]
        %v1460 = vld [vmem:[%s192 + $0x2600] sm:$0xff]
        %v1461 = vld [vmem:[%s192 + $0x2608] sm:$0xff]
        %v1462 = vld [vmem:[%s192 + $0x2610] sm:$0xff]
        %v1463 = vld [vmem:[%s192 + $0x2618] sm:$0xff]
        %v1464 = vld [vmem:[%s192 + $0x2620] sm:$0xff]
        %v1465 = vld [vmem:[%s192 + $0x2628] sm:$0xff]
        %v1466 = vld [vmem:[%s192 + $0x2630] sm:$0xff]
        %v1467 = vld [vmem:[%s192 + $0x2638] sm:$0xff]
        %v1468 = vld [vmem:[%s192 + $0x2640] sm:$0xff]
        %v1469 = vld [vmem:[%s192 + $0x2648] sm:$0xff]
        %v1470 = vld [vmem:[%s192 + $0x2650] sm:$0xff]
        %v1471 = vld [vmem:[%s192 + $0x2658] sm:$0xff]
        %v1472 = vld [vmem:[%s192 + $0x2660] sm:$0xff]
        %v1473 = vld [vmem:[%s192 + $0x2668] sm:$0xff]
        %v1474 = vld [vmem:[%s192 + $0x2670] sm:$0xff]
        %v1475 = vld [vmem:[%s192 + $0x2678] sm:$0xff]
        %v1476 = vld [vmem:[%s192 + $0x2680] sm:$0xff]
        %v1477 = vld [vmem:[%s192 + $0x2688] sm:$0xff]
        %v1478 = vld [vmem:[%s192 + $0x2690] sm:$0xff]
        %v1479 = vld [vmem:[%s192 + $0x2698] sm:$0xff]
        %v1480 = vld [vmem:[%s192 + $0x26a0] sm:$0xff]
        %v1481 = vld [vmem:[%s192 + $0x26a8] sm:$0xff]
        %v1482 = vld [vmem:[%s192 + $0x26b0] sm:$0xff]
        %v1483 = vld [vmem:[%s192 + $0x26b8] sm:$0xff]
        %v1484 = vld [vmem:[%s192 + $0x26c0] sm:$0xff]
        %v1485 = vld [vmem:[%s192 + $0x26c8] sm:$0xff]
        %v1486 = vld [vmem:[%s192 + $0x26d0] sm:$0xff]
        %v1487 = vld [vmem:[%s192 + $0x26d8] sm:$0xff]
        %v1488 = vld [vmem:[%s192 + $0x26e0] sm:$0xff]
        %v1489 = vld [vmem:[%s192 + $0x26e8] sm:$0xff]
        %v1490 = vld [vmem:[%s192 + $0x26f0] sm:$0xff]
        %v1491 = vld [vmem:[%s192 + $0x26f8] sm:$0xff]
        %v1492 = vld [vmem:[%s192 + $0x2700] sm:$0xff]
        %v1493 = vld [vmem:[%s192 + $0x2708] sm:$0xff]
        %v1494 = vld [vmem:[%s192 + $0x2710] sm:$0xff]
        %v1495 = vld [vmem:[%s192 + $0x2718] sm:$0xff]
        %v1496 = vld [vmem:[%s192 + $0x2720] sm:$0xff]
        %v1497 = vld [vmem:[%s192 + $0x2728] sm:$0xff]
        %v1498 = vld [vmem:[%s192 + $0x2730] sm:$0xff]
        %v1499 = vld [vmem:[%s192 + $0x2738] sm:$0xff]
        %v1500 = vld [vmem:[%s192 + $0x2740] sm:$0xff]
        %v1501 = vld [vmem:[%s192 + $0x2748] sm:$0xff]
        %v1502 = vld [vmem:[%s192 + $0x2750] sm:$0xff]
        %v1503 = vld [vmem:[%s192 + $0x2758] sm:$0xff]
        %v1504 = vld [vmem:[%s192 + $0x2760] sm:$0xff]
        %v1505 = vld [vmem:[%s192 + $0x2768] sm:$0xff]
        %v1506 = vld [vmem:[%s192 + $0x2770] sm:$0xff]
        %v1507 = vld [vmem:[%s192 + $0x2778] sm:$0xff]
        %v1508 = vld [vmem:[%s192 + $0x2780] sm:$0xff]
        %v1509 = vld [vmem:[%s192 + $0x2788] sm:$0xff]
        %v1510 = vld [vmem:[%s192 + $0x2790] sm:$0xff]
        %v1511 = vld [vmem:[%s192 + $0x2798] sm:$0xff]
        %v1512 = vld [vmem:[%s192 + $0x27a0] sm:$0xff]
        %v1513 = vld [vmem:[%s192 + $0x27a8] sm:$0xff]
        %v1514 = vld [vmem:[%s192 + $0x27b0] sm:$0xff]
        %v1515 = vld [vmem:[%s192 + $0x27b8] sm:$0xff]
        %v1516 = vld [vmem:[%s192 + $0x27c0] sm:$0xff]
        %v1517 = vld [vmem:[%s192 + $0x27c8] sm:$0xff]
        %v1518 = vld [vmem:[%s192 + $0x27d0] sm:$0xff]
        %v1519 = vld [vmem:[%s192 + $0x27d8] sm:$0xff]
        %v1520 = vld [vmem:[%s192 + $0x27e0] sm:$0xff]
        %v1521 = vld [vmem:[%s192 + $0x27e8] sm:$0xff]
        %v1522 = vld [vmem:[%s192 + $0x27f0] sm:$0xff]
        %v1523 = vld [vmem:[%s192 + $0x27f8] sm:$0xff]
        %v1524 = vld [vmem:[%s192 + $0x2800] sm:$0xff]
        %v1525 = vld [vmem:[%s192 + $0x2808] sm:$0xff]
        %v1526 = vld [vmem:[%s192 + $0x2810] sm:$0xff]
        %v1527 = vld [vmem:[%s192 + $0x2818] sm:$0xff]
        %v1528 = vld [vmem:[%s192 + $0x2820] sm:$0xff]
        %v1529 = vld [vmem:[%s192 + $0x2828] sm:$0xff]
        %v1530 = vld [vmem:[%s192 + $0x2830] sm:$0xff]
        %v1531 = vld [vmem:[%s192 + $0x2838] sm:$0xff]
        %v1532 = vld [vmem:[%s192 + $0x2840] sm:$0xff]
        %v1533 = vld [vmem:[%s192 + $0x2848] sm:$0xff]
        %v1534 = vld [vmem:[%s192 + $0x2850] sm:$0xff]
        %v1535 = vld [vmem:[%s192 + $0x2858] sm:$0xff]
        %v1536 = vld [vmem:[%s192 + $0x2860] sm:$0xff]
        %v1537 = vld [vmem:[%s192 + $0x2868] sm:$0xff]
        %v1538 = vld [vmem:[%s192 + $0x2870] sm:$0xff]
        %v1539 = vld [vmem:[%s192 + $0x2878] sm:$0xff]
        %v1540 = vld [vmem:[%s192 + $0x2880] sm:$0xff]
        %v1541 = vld [vmem:[%s192 + $0x2888] sm:$0xff]
        %v1542 = vld [vmem:[%s192 + $0x2890] sm:$0xff]
        %v1543 = vld [vmem:[%s192 + $0x2898] sm:$0xff]
        %v1544 = vld [vmem:[%s192 + $0x28a0] sm:$0xff]
        %v1545 = vld [vmem:[%s192 + $0x28a8] sm:$0xff]
        %v1546 = vld [vmem:[%s192 + $0x28b0] sm:$0xff]
        %v1547 = vld [vmem:[%s192 + $0x28b8] sm:$0xff]
        %v1548 = vld [vmem:[%s192 + $0x28c0] sm:$0xff]
        %v1549 = vld [vmem:[%s192 + $0x28c8] sm:$0xff]
        %v1550 = vld [vmem:[%s192 + $0x28d0] sm:$0xff]
        %v1551 = vld [vmem:[%s192 + $0x28d8] sm:$0xff]
        %v1552 = vld [vmem:[%s192 + $0x28e0] sm:$0xff]
        %v1553 = vld [vmem:[%s192 + $0x28e8] sm:$0xff]
        %v1554 = vld [vmem:[%s192 + $0x28f0] sm:$0xff]
        %v1555 = vld [vmem:[%s192 + $0x28f8] sm:$0xff]
        %v1556 = vld [vmem:[%s192 + $0x2900] sm:$0xff]
        %v1557 = vld [vmem:[%s192 + $0x2908] sm:$0xff]
        %v1558 = vld [vmem:[%s192 + $0x2910] sm:$0xff]
        %v1559 = vld [vmem:[%s192 + $0x2918] sm:$0xff]
        %v1560 = vld [vmem:[%s192 + $0x2920] sm:$0xff]
        %v1561 = vld [vmem:[%s192 + $0x2928] sm:$0xff]
        %v1562 = vld [vmem:[%s192 + $0x2930] sm:$0xff]
        %v1563 = vld [vmem:[%s192 + $0x2938] sm:$0xff]
        %v1564 = vld [vmem:[%s192 + $0x2940] sm:$0xff]
        %v1565 = vld [vmem:[%s192 + $0x2948] sm:$0xff]
        %v1566 = vld [vmem:[%s192 + $0x2950] sm:$0xff]
        %v1567 = vld [vmem:[%s192 + $0x2958] sm:$0xff]
        %v1568 = vld [vmem:[%s192 + $0x2960] sm:$0xff]
        %v1569 = vld [vmem:[%s192 + $0x2968] sm:$0xff]
        %v1570 = vld [vmem:[%s192 + $0x2970] sm:$0xff]
        %v1571 = vld [vmem:[%s192 + $0x2978] sm:$0xff]
        %v1572 = vld [vmem:[%s192 + $0x2980] sm:$0xff]
        %v1573 = vld [vmem:[%s192 + $0x2988] sm:$0xff]
        %v1574 = vld [vmem:[%s192 + $0x2990] sm:$0xff]
        %v1575 = vld [vmem:[%s192 + $0x2998] sm:$0xff]
        %v1576 = vld [vmem:[%s192 + $0x29a0] sm:$0xff]
        %v1577 = vld [vmem:[%s192 + $0x29a8] sm:$0xff]
        %v1578 = vld [vmem:[%s192 + $0x29b0] sm:$0xff]
        %v1579 = vld [vmem:[%s192 + $0x29b8] sm:$0xff]
        %v1580 = vld [vmem:[%s192 + $0x29c0] sm:$0xff]
        %v1581 = vld [vmem:[%s192 + $0x29c8] sm:$0xff]
        %v1582 = vld [vmem:[%s192 + $0x29d0] sm:$0xff]
        %v1583 = vld [vmem:[%s192 + $0x29d8] sm:$0xff]
        %v1584 = vld [vmem:[%s192 + $0x29e0] sm:$0xff]
        %v1585 = vld [vmem:[%s192 + $0x29e8] sm:$0xff]
        %v1586 = vld [vmem:[%s192 + $0x29f0] sm:$0xff]
        %v1587 = vld [vmem:[%s192 + $0x29f8] sm:$0xff]
        %v1588 = vld [vmem:[%s192 + $0x2a00] sm:$0xff]
        %v1589 = vld [vmem:[%s192 + $0x2a08] sm:$0xff]
        %v1590 = vld [vmem:[%s192 + $0x2a10] sm:$0xff]
        %v1591 = vld [vmem:[%s192 + $0x2a18] sm:$0xff]
        %v1592 = vld [vmem:[%s192 + $0x2a20] sm:$0xff]
        %v1593 = vld [vmem:[%s192 + $0x2a28] sm:$0xff]
        %v1594 = vld [vmem:[%s192 + $0x2a30] sm:$0xff]
        %v1595 = vld [vmem:[%s192 + $0x2a38] sm:$0xff]
        %v1596 = vld [vmem:[%s192 + $0x2a40] sm:$0xff]
        %v1597 = vld [vmem:[%s192 + $0x2a48] sm:$0xff]
        %v1598 = vld [vmem:[%s192 + $0x2a50] sm:$0xff]
        %v1599 = vld [vmem:[%s192 + $0x2a58] sm:$0xff]
        %v1600 = vld [vmem:[%s192 + $0x2a60] sm:$0xff]
        %v1601 = vld [vmem:[%s192 + $0x2a68] sm:$0xff]
        %v1602 = vld [vmem:[%s192 + $0x2a70] sm:$0xff]
        %v1603 = vld [vmem:[%s192 + $0x2a78] sm:$0xff]
        %v1604 = vld [vmem:[%s192 + $0x2a80] sm:$0xff]
        %v1605 = vld [vmem:[%s192 + $0x2a88] sm:$0xff]
        %v1606 = vld [vmem:[%s192 + $0x2a90] sm:$0xff]
        %v1607 = vld [vmem:[%s192 + $0x2a98] sm:$0xff]
        %v1608 = vld [vmem:[%s192 + $0x2aa0] sm:$0xff]
        %v1609 = vld [vmem:[%s192 + $0x2aa8] sm:$0xff]
        %v1610 = vld [vmem:[%s192 + $0x2ab0] sm:$0xff]
        %v1611 = vld [vmem:[%s192 + $0x2ab8] sm:$0xff]
        %v1612 = vld [vmem:[%s192 + $0x2ac0] sm:$0xff]
        %v1613 = vld [vmem:[%s192 + $0x2ac8] sm:$0xff]
        %v1614 = vld [vmem:[%s192 + $0x2ad0] sm:$0xff]
        %v1615 = vld [vmem:[%s192 + $0x2ad8] sm:$0xff]
        %v1616 = vld [vmem:[%s192 + $0x2ae0] sm:$0xff]
        %v1617 = vld [vmem:[%s192 + $0x2ae8] sm:$0xff]
        %v1618 = vld [vmem:[%s192 + $0x2af0] sm:$0xff]
        %v1619 = vld [vmem:[%s192 + $0x2af8] sm:$0xff]
        %v1620 = vld [vmem:[%s192 + $0x2b00] sm:$0xff]
        %v1621 = vld [vmem:[%s192 + $0x2b08] sm:$0xff]
        %v1622 = vld [vmem:[%s192 + $0x2b10] sm:$0xff]
        %v1623 = vld [vmem:[%s192 + $0x2b18] sm:$0xff]
        %v1624 = vld [vmem:[%s192 + $0x2b20] sm:$0xff]
        %v1625 = vld [vmem:[%s192 + $0x2b28] sm:$0xff]
        %v1626 = vld [vmem:[%s192 + $0x2b30] sm:$0xff]
        %v1627 = vld [vmem:[%s192 + $0x2b38] sm:$0xff]
        %v1628 = vld [vmem:[%s192 + $0x2b40] sm:$0xff]
        %v1629 = vld [vmem:[%s192 + $0x2b48] sm:$0xff]
        %v1630 = vld [vmem:[%s192 + $0x2b50] sm:$0xff]
        %v1631 = vld [vmem:[%s192 + $0x2b58] sm:$0xff]
        %v1632 = vld [vmem:[%s192 + $0x2b60] sm:$0xff]
        %v1633 = vld [vmem:[%s192 + $0x2b68] sm:$0xff]
        %v1634 = vld [vmem:[%s192 + $0x2b70] sm:$0xff]
        %v1635 = vld [vmem:[%s192 + $0x2b78] sm:$0xff]
        %v1636 = vld [vmem:[%s192 + $0x2b80] sm:$0xff]
        %v1637 = vld [vmem:[%s192 + $0x2b88] sm:$0xff]
        %v1638 = vld [vmem:[%s192 + $0x2b90] sm:$0xff]
        %v1639 = vld [vmem:[%s192 + $0x2b98] sm:$0xff]
        %v1640 = vld [vmem:[%s192 + $0x2ba0] sm:$0xff]
        %v1641 = vld [vmem:[%s192 + $0x2ba8] sm:$0xff]
        %v1642 = vld [vmem:[%s192 + $0x2bb0] sm:$0xff]
        %v1643 = vld [vmem:[%s192 + $0x2bb8] sm:$0xff]
        %v1644 = vld [vmem:[%s192 + $0x2bc0] sm:$0xff]
        %v1645 = vld [vmem:[%s192 + $0x2bc8] sm:$0xff]
        %v1646 = vld [vmem:[%s192 + $0x2bd0] sm:$0xff]
        %v1647 = vld [vmem:[%s192 + $0x2bd8] sm:$0xff]
        %v1648 = vld [vmem:[%s192 + $0x2be0] sm:$0xff]
        %v1649 = vld [vmem:[%s192 + $0x2be8] sm:$0xff]
        %v1650 = vld [vmem:[%s192 + $0x2bf0] sm:$0xff]
        %v1651 = vld [vmem:[%s192 + $0x2bf8] sm:$0xff]
        %v1652 = vld [vmem:[%s192 + $0x2c00] sm:$0xff]
        %v1653 = vld [vmem:[%s192 + $0x2c08] sm:$0xff]
        %v1654 = vld [vmem:[%s192 + $0x2c10] sm:$0xff]
        %v1655 = vld [vmem:[%s192 + $0x2c18] sm:$0xff]
        %v1656 = vld [vmem:[%s192 + $0x2c20] sm:$0xff]
        %v1657 = vld [vmem:[%s192 + $0x2c28] sm:$0xff]
        %v1658 = vld [vmem:[%s192 + $0x2c30] sm:$0xff]
        %v1659 = vld [vmem:[%s192 + $0x2c38] sm:$0xff]
        %v1660 = vld [vmem:[%s192 + $0x2c40] sm:$0xff]
        %v1661 = vld [vmem:[%s192 + $0x2c48] sm:$0xff]
        %v1662 = vld [vmem:[%s192 + $0x2c50] sm:$0xff]
        %v1663 = vld [vmem:[%s192 + $0x2c58] sm:$0xff]
        %v1664 = vld [vmem:[%s192 + $0x2c60] sm:$0xff]
        %v1665 = vld [vmem:[%s192 + $0x2c68] sm:$0xff]
        %v1666 = vld [vmem:[%s192 + $0x2c70] sm:$0xff]
        %v1667 = vld [vmem:[%s192 + $0x2c78] sm:$0xff]
        %v1668 = vld [vmem:[%s192 + $0x2c80] sm:$0xff]
        %v1669 = vld [vmem:[%s192 + $0x2c88] sm:$0xff]
        %v1670 = vld [vmem:[%s192 + $0x2c90] sm:$0xff]
        %v1671 = vld [vmem:[%s192 + $0x2c98] sm:$0xff]
        %v1672 = vld [vmem:[%s192 + $0x2ca0] sm:$0xff]
        %v1673 = vld [vmem:[%s192 + $0x2ca8] sm:$0xff]
        %v1674 = vld [vmem:[%s192 + $0x2cb0] sm:$0xff]
        %v1675 = vld [vmem:[%s192 + $0x2cb8] sm:$0xff]
        %v1676 = vld [vmem:[%s192 + $0x2cc0] sm:$0xff]
        %v1677 = vld [vmem:[%s192 + $0x2cc8] sm:$0xff]
        %v1678 = vld [vmem:[%s192 + $0x2cd0] sm:$0xff]
        %v1679 = vld [vmem:[%s192 + $0x2cd8] sm:$0xff]
        %v1680 = vld [vmem:[%s192 + $0x2ce0] sm:$0xff]
        %v1681 = vld [vmem:[%s192 + $0x2ce8] sm:$0xff]
        %v1682 = vld [vmem:[%s192 + $0x2cf0] sm:$0xff]
        %v1683 = vld [vmem:[%s192 + $0x2cf8] sm:$0xff]
        %v1684 = vld [vmem:[%s192 + $0x2d00] sm:$0xff]
        %v1685 = vld [vmem:[%s192 + $0x2d08] sm:$0xff]
        %v1686 = vld [vmem:[%s192 + $0x2d10] sm:$0xff]
        %v1687 = vld [vmem:[%s192 + $0x2d18] sm:$0xff]
        %v1688 = vld [vmem:[%s192 + $0x2d20] sm:$0xff]
        %v1689 = vld [vmem:[%s192 + $0x2d28] sm:$0xff]
        %v1690 = vld [vmem:[%s192 + $0x2d30] sm:$0xff]
        %v1691 = vld [vmem:[%s192 + $0x2d38] sm:$0xff]
        %v1692 = vld [vmem:[%s192 + $0x2d40] sm:$0xff]
        %v1693 = vld [vmem:[%s192 + $0x2d48] sm:$0xff]
        %v1694 = vld [vmem:[%s192 + $0x2d50] sm:$0xff]
        %v1695 = vld [vmem:[%s192 + $0x2d58] sm:$0xff]
        %v1696 = vld [vmem:[%s192 + $0x2d60] sm:$0xff]
        %v1697 = vld [vmem:[%s192 + $0x2d68] sm:$0xff]
        %v1698 = vld [vmem:[%s192 + $0x2d70] sm:$0xff]
        %v1699 = vld [vmem:[%s192 + $0x2d78] sm:$0xff]
        %v1700 = vld [vmem:[%s192 + $0x2d80] sm:$0xff]
        %v1701 = vld [vmem:[%s192 + $0x2d88] sm:$0xff]
        %v1702 = vld [vmem:[%s192 + $0x2d90] sm:$0xff]
        %v1703 = vld [vmem:[%s192 + $0x2d98] sm:$0xff]
        %v1704 = vld [vmem:[%s192 + $0x2da0] sm:$0xff]
        %v1705 = vld [vmem:[%s192 + $0x2da8] sm:$0xff]
        %v1706 = vld [vmem:[%s192 + $0x2db0] sm:$0xff]
        %v1707 = vld [vmem:[%s192 + $0x2db8] sm:$0xff]
        %v1708 = vld [vmem:[%s192 + $0x2dc0] sm:$0xff]
        %v1709 = vld [vmem:[%s192 + $0x2dc8] sm:$0xff]
        %v1710 = vld [vmem:[%s192 + $0x2dd0] sm:$0xff]
        %v1711 = vld [vmem:[%s192 + $0x2dd8] sm:$0xff]
        %v1712 = vld [vmem:[%s192 + $0x2de0] sm:$0xff]
        %v1713 = vld [vmem:[%s192 + $0x2de8] sm:$0xff]
        %v1714 = vld [vmem:[%s192 + $0x2df0] sm:$0xff]
        %v1715 = vld [vmem:[%s192 + $0x2df8] sm:$0xff]
        %v1716 = vld [vmem:[%s192 + $0x2e00] sm:$0xff]
        %v1717 = vld [vmem:[%s192 + $0x2e08] sm:$0xff]
        %v1718 = vld [vmem:[%s192 + $0x2e10] sm:$0xff]
        %v1719 = vld [vmem:[%s192 + $0x2e18] sm:$0xff]
        %v1720 = vld [vmem:[%s192 + $0x2e20] sm:$0xff]
        %v1721 = vld [vmem:[%s192 + $0x2e28] sm:$0xff]
        %v1722 = vld [vmem:[%s192 + $0x2e30] sm:$0xff]
        %v1723 = vld [vmem:[%s192 + $0x2e38] sm:$0xff]
        %v1724 = vld [vmem:[%s192 + $0x2e40] sm:$0xff]
        %v1725 = vld [vmem:[%s192 + $0x2e48] sm:$0xff]
        %v1726 = vld [vmem:[%s192 + $0x2e50] sm:$0xff]
        %v1727 = vld [vmem:[%s192 + $0x2e58] sm:$0xff]
        %v1728 = vld [vmem:[%s192 + $0x2e60] sm:$0xff]
        %v1729 = vld [vmem:[%s192 + $0x2e68] sm:$0xff]
        %v1730 = vld [vmem:[%s192 + $0x2e70] sm:$0xff]
        %v1731 = vld [vmem:[%s192 + $0x2e78] sm:$0xff]
        %v1732 = vld [vmem:[%s192 + $0x2e80] sm:$0xff]
        %v1733 = vld [vmem:[%s192 + $0x2e88] sm:$0xff]
        %v1734 = vld [vmem:[%s192 + $0x2e90] sm:$0xff]
        %v1735 = vld [vmem:[%s192 + $0x2e98] sm:$0xff]
        %v1736 = vld [vmem:[%s192 + $0x2ea0] sm:$0xff]
        %v1737 = vld [vmem:[%s192 + $0x2ea8] sm:$0xff]
        %v1738 = vld [vmem:[%s192 + $0x2eb0] sm:$0xff]
        %v1739 = vld [vmem:[%s192 + $0x2eb8] sm:$0xff]
        %v1740 = vld [vmem:[%s192 + $0x2ec0] sm:$0xff]
        %v1741 = vld [vmem:[%s192 + $0x2ec8] sm:$0xff]
        %v1742 = vld [vmem:[%s192 + $0x2ed0] sm:$0xff]
        %v1743 = vld [vmem:[%s192 + $0x2ed8] sm:$0xff]
        %v1744 = vld [vmem:[%s192 + $0x2ee0] sm:$0xff]
        %v1745 = vld [vmem:[%s192 + $0x2ee8] sm:$0xff]
        %v1746 = vld [vmem:[%s192 + $0x2ef0] sm:$0xff]
        %v1747 = vld [vmem:[%s192 + $0x2ef8] sm:$0xff]
        %v1748 = vld [vmem:[%s192 + $0x2f00] sm:$0xff]
        %v1749 = vld [vmem:[%s192 + $0x2f08] sm:$0xff]
        %v1750 = vld [vmem:[%s192 + $0x2f10] sm:$0xff]
        %v1751 = vld [vmem:[%s192 + $0x2f18] sm:$0xff]
        %v1752 = vld [vmem:[%s192 + $0x2f20] sm:$0xff]
        %v1753 = vld [vmem:[%s192 + $0x2f28] sm:$0xff]
        %v1754 = vld [vmem:[%s192 + $0x2f30] sm:$0xff]
        %v1755 = vld [vmem:[%s192 + $0x2f38] sm:$0xff]
        %v1756 = vld [vmem:[%s192 + $0x2f40] sm:$0xff]
        %v1757 = vld [vmem:[%s192 + $0x2f48] sm:$0xff]
        %v1758 = vld [vmem:[%s192 + $0x2f50] sm:$0xff]
        %v1759 = vld [vmem:[%s192 + $0x2f58] sm:$0xff]
        %v1760 = vld [vmem:[%s192 + $0x2f60] sm:$0xff]
        %v1761 = vld [vmem:[%s192 + $0x2f68] sm:$0xff]
        %v1762 = vld [vmem:[%s192 + $0x2f70] sm:$0xff]
        %v1763 = vld [vmem:[%s192 + $0x2f78] sm:$0xff]
        %v1764 = vld [vmem:[%s192 + $0x2f80] sm:$0xff]
        %v1765 = vld [vmem:[%s192 + $0x2f88] sm:$0xff]
        %v1766 = vld [vmem:[%s192 + $0x2f90] sm:$0xff]
        %v1767 = vld [vmem:[%s192 + $0x2f98] sm:$0xff]
        %v1768 = vld [vmem:[%s192 + $0x2fa0] sm:$0xff]
        %v1769 = vld [vmem:[%s192 + $0x2fa8] sm:$0xff]
        %v1770 = vld [vmem:[%s192 + $0x2fb0] sm:$0xff]
        %v1771 = vld [vmem:[%s192 + $0x2fb8] sm:$0xff]
        %v1772 = vld [vmem:[%s192 + $0x2fc0] sm:$0xff]
        %v1773 = vld [vmem:[%s192 + $0x2fc8] sm:$0xff]
        %v1774 = vld [vmem:[%s192 + $0x2fd0] sm:$0xff]
        %v1775 = vld [vmem:[%s192 + $0x2fd8] sm:$0xff]
        %v1776 = vld [vmem:[%s192 + $0x2fe0] sm:$0xff]
        %v1777 = vld [vmem:[%s192 + $0x2fe8] sm:$0xff]
        %v1778 = vld [vmem:[%s192 + $0x2ff0] sm:$0xff]
        %v1779 = vld [vmem:[%s192 + $0x2ff8] sm:$0xff]
        %v1780 = vld [vmem:[%s192 + $0x3000] sm:$0xff]
        %v1781 = vld [vmem:[%s192 + $0x3008] sm:$0xff]
        %v1782 = vld [vmem:[%s192 + $0x3010] sm:$0xff]
        %v1783 = vld [vmem:[%s192 + $0x3018] sm:$0xff]
        %v1784 = vld [vmem:[%s192 + $0x3020] sm:$0xff]
        %v1785 = vld [vmem:[%s192 + $0x3028] sm:$0xff]
        %v1786 = vld [vmem:[%s192 + $0x3030] sm:$0xff]
        %v1787 = vld [vmem:[%s192 + $0x3038] sm:$0xff]
        %v1788 = vld [vmem:[%s192 + $0x3040] sm:$0xff]
        %v1789 = vld [vmem:[%s192 + $0x3048] sm:$0xff]
        %v1790 = vld [vmem:[%s192 + $0x3050] sm:$0xff]
        %v1791 = vld [vmem:[%s192 + $0x3058] sm:$0xff]
        %v1792 = vld [vmem:[%s192 + $0x3060] sm:$0xff]
        %v1793 = vld [vmem:[%s192 + $0x3068] sm:$0xff]
        %v1794 = vld [vmem:[%s192 + $0x3070] sm:$0xff]
        %v1795 = vld [vmem:[%s192 + $0x3078] sm:$0xff]
        %v1796 = vld [vmem:[%s192 + $0x3080] sm:$0xff]
        %v1797 = vld [vmem:[%s192 + $0x3088] sm:$0xff]
        %v1798 = vld [vmem:[%s192 + $0x3090] sm:$0xff]
        %v1799 = vld [vmem:[%s192 + $0x3098] sm:$0xff]
        %v1800 = vld [vmem:[%s192 + $0x30a0] sm:$0xff]
        %v1801 = vld [vmem:[%s192 + $0x30a8] sm:$0xff]
        %v1802 = vld [vmem:[%s192 + $0x30b0] sm:$0xff]
        %v1803 = vld [vmem:[%s192 + $0x30b8] sm:$0xff]
        %v1804 = vld [vmem:[%s192 + $0x30c0] sm:$0xff]
        %v1805 = vld [vmem:[%s192 + $0x30c8] sm:$0xff]
        %v1806 = vld [vmem:[%s192 + $0x30d0] sm:$0xff]
        %v1807 = vld [vmem:[%s192 + $0x30d8] sm:$0xff]
        %v1808 = vld [vmem:[%s192 + $0x30e0] sm:$0xff]
        %v1809 = vld [vmem:[%s192 + $0x30e8] sm:$0xff]
        %v1810 = vld [vmem:[%s192 + $0x30f0] sm:$0xff]
        %v1811 = vld [vmem:[%s192 + $0x30f8] sm:$0xff]
        %v1812 = vld [vmem:[%s192 + $0x3100] sm:$0xff]
        %v1813 = vld [vmem:[%s192 + $0x3108] sm:$0xff]
        %v1814 = vld [vmem:[%s192 + $0x3110] sm:$0xff]
        %v1815 = vld [vmem:[%s192 + $0x3118] sm:$0xff]
        %v1816 = vld [vmem:[%s192 + $0x3120] sm:$0xff]
        %v1817 = vld [vmem:[%s192 + $0x3128] sm:$0xff]
        %v1818 = vld [vmem:[%s192 + $0x3130] sm:$0xff]
        %v1819 = vld [vmem:[%s192 + $0x3138] sm:$0xff]
        %v1820 = vld [vmem:[%s192 + $0x3140] sm:$0xff]
        %v1821 = vld [vmem:[%s192 + $0x3148] sm:$0xff]
        %v1822 = vld [vmem:[%s192 + $0x3150] sm:$0xff]
        %v1823 = vld [vmem:[%s192 + $0x3158] sm:$0xff]
        %v1824 = vld [vmem:[%s192 + $0x3160] sm:$0xff]
        %v1825 = vld [vmem:[%s192 + $0x3168] sm:$0xff]
        %v1826 = vld [vmem:[%s192 + $0x3170] sm:$0xff]
        %v1827 = vld [vmem:[%s192 + $0x3178] sm:$0xff]
        %v1828 = vld [vmem:[%s192 + $0x3180] sm:$0xff]
        %v1829 = vld [vmem:[%s192 + $0x3188] sm:$0xff]
        %v1830 = vld [vmem:[%s192 + $0x3190] sm:$0xff]
        %v1831 = vld [vmem:[%s192 + $0x3198] sm:$0xff]
        %v1832 = vld [vmem:[%s192 + $0x31a0] sm:$0xff]
        %v1833 = vld [vmem:[%s192 + $0x31a8] sm:$0xff]
        %v1834 = vld [vmem:[%s192 + $0x31b0] sm:$0xff]
        %v1835 = vld [vmem:[%s192 + $0x31b8] sm:$0xff]
        %v1836 = vld [vmem:[%s192 + $0x31c0] sm:$0xff]
        %v1837 = vld [vmem:[%s192 + $0x31c8] sm:$0xff]
        %v1838 = vld [vmem:[%s192 + $0x31d0] sm:$0xff]
        %v1839 = vld [vmem:[%s192 + $0x31d8] sm:$0xff]
        %v1840 = vld [vmem:[%s192 + $0x31e0] sm:$0xff]
        %v1841 = vld [vmem:[%s192 + $0x31e8] sm:$0xff]
        %v1842 = vld [vmem:[%s192 + $0x31f0] sm:$0xff]
        %v1843 = vld [vmem:[%s192 + $0x31f8] sm:$0xff]
        %v1844 = vld [vmem:[%s192 + $0x3200] sm:$0xff]
        %v1845 = vld [vmem:[%s192 + $0x3208] sm:$0xff]
        %v1846 = vld [vmem:[%s192 + $0x3210] sm:$0xff]
        %v1847 = vld [vmem:[%s192 + $0x3218] sm:$0xff]
        %v1848 = vld [vmem:[%s192 + $0x3220] sm:$0xff]
        %v1849 = vld [vmem:[%s192 + $0x3228] sm:$0xff]
        %v1850 = vld [vmem:[%s192 + $0x3230] sm:$0xff]
        %v1851 = vld [vmem:[%s192 + $0x3238] sm:$0xff]
        %v1852 = vld [vmem:[%s192 + $0x3240] sm:$0xff]
        %v1853 = vld [vmem:[%s192 + $0x3248] sm:$0xff]
        %v1854 = vld [vmem:[%s192 + $0x3250] sm:$0xff]
        %v1855 = vld [vmem:[%s192 + $0x3258] sm:$0xff]
        %v1856 = vld [vmem:[%s192 + $0x3260] sm:$0xff]
        %v1857 = vld [vmem:[%s192 + $0x3268] sm:$0xff]
        %v1858 = vld [vmem:[%s192 + $0x3270] sm:$0xff]
        %v1859 = vld [vmem:[%s192 + $0x3278] sm:$0xff]
        %v1860 = vld [vmem:[%s192 + $0x3280] sm:$0xff]
        %v1861 = vld [vmem:[%s192 + $0x3288] sm:$0xff]
        %v1862 = vld [vmem:[%s192 + $0x3290] sm:$0xff]
        %v1863 = vld [vmem:[%s192 + $0x3298] sm:$0xff]
        %v1864 = vld [vmem:[%s192 + $0x32a0] sm:$0xff]
        %v1865 = vld [vmem:[%s192 + $0x32a8] sm:$0xff]
        %v1866 = vld [vmem:[%s192 + $0x32b0] sm:$0xff]
        %v1867 = vld [vmem:[%s192 + $0x32b8] sm:$0xff]
        %v1868 = vld [vmem:[%s192 + $0x32c0] sm:$0xff]
        %v1869 = vld [vmem:[%s192 + $0x32c8] sm:$0xff]
        %v1870 = vld [vmem:[%s192 + $0x32d0] sm:$0xff]
        %v1871 = vld [vmem:[%s192 + $0x32d8] sm:$0xff]
        %v1872 = vld [vmem:[%s192 + $0x32e0] sm:$0xff]
        %v1873 = vld [vmem:[%s192 + $0x32e8] sm:$0xff]
        %v1874 = vld [vmem:[%s192 + $0x32f0] sm:$0xff]
        %v1875 = vld [vmem:[%s192 + $0x32f8] sm:$0xff]
        %v1876 = vld [vmem:[%s192 + $0x3300] sm:$0xff]
        %v1877 = vld [vmem:[%s192 + $0x3308] sm:$0xff]
        %v1878 = vld [vmem:[%s192 + $0x3310] sm:$0xff]
        %v1879 = vld [vmem:[%s192 + $0x3318] sm:$0xff]
        %v1880 = vld [vmem:[%s192 + $0x3320] sm:$0xff]
        %v1881 = vld [vmem:[%s192 + $0x3328] sm:$0xff]
        %v1882 = vld [vmem:[%s192 + $0x3330] sm:$0xff]
        %v1883 = vld [vmem:[%s192 + $0x3338] sm:$0xff]
        %v1884 = vld [vmem:[%s192 + $0x3340] sm:$0xff]
        %v1885 = vld [vmem:[%s192 + $0x3348] sm:$0xff]
        %v1886 = vld [vmem:[%s192 + $0x3350] sm:$0xff]
        %v1887 = vld [vmem:[%s192 + $0x3358] sm:$0xff]
        %v1888 = vld [vmem:[%s192 + $0x3360] sm:$0xff]
        %v1889 = vld [vmem:[%s192 + $0x3368] sm:$0xff]
        %v1890 = vld [vmem:[%s192 + $0x3370] sm:$0xff]
        %v1891 = vld [vmem:[%s192 + $0x3378] sm:$0xff]
        %v1892 = vld [vmem:[%s192 + $0x3380] sm:$0xff]
        %v1893 = vld [vmem:[%s192 + $0x3388] sm:$0xff]
        %v1894 = vld [vmem:[%s192 + $0x3390] sm:$0xff]
        %v1895 = vld [vmem:[%s192 + $0x3398] sm:$0xff]
        %v1896 = vld [vmem:[%s192 + $0x33a0] sm:$0xff]
        %v1897 = vld [vmem:[%s192 + $0x33a8] sm:$0xff]
        %v1898 = vld [vmem:[%s192 + $0x33b0] sm:$0xff]
        %v1899 = vld [vmem:[%s192 + $0x33b8] sm:$0xff]
        %v1900 = vld [vmem:[%s192 + $0x33c0] sm:$0xff]
        %v1901 = vld [vmem:[%s192 + $0x33c8] sm:$0xff]
        %v1902 = vld [vmem:[%s192 + $0x33d0] sm:$0xff]
        %v1903 = vld [vmem:[%s192 + $0x33d8] sm:$0xff]
        %v1904 = vld [vmem:[%s192 + $0x33e0] sm:$0xff]
        %v1905 = vld [vmem:[%s192 + $0x33e8] sm:$0xff]
        %v1906 = vld [vmem:[%s192 + $0x33f0] sm:$0xff]
        %v1907 = vld [vmem:[%s192 + $0x33f8] sm:$0xff]
        %v1908 = vld [vmem:[%s192 + $0x3400] sm:$0xff]
        %v1909 = vld [vmem:[%s192 + $0x3408] sm:$0xff]
        %v1910 = vld [vmem:[%s192 + $0x3410] sm:$0xff]
        %v1911 = vld [vmem:[%s192 + $0x3418] sm:$0xff]
        %v1912 = vld [vmem:[%s192 + $0x3420] sm:$0xff]
        %v1913 = vld [vmem:[%s192 + $0x3428] sm:$0xff]
        %v1914 = vld [vmem:[%s192 + $0x3430] sm:$0xff]
        %v1915 = vld [vmem:[%s192 + $0x3438] sm:$0xff]
        %v1916 = vld [vmem:[%s192 + $0x3440] sm:$0xff]
        %v1917 = vld [vmem:[%s192 + $0x3448] sm:$0xff]
        %v1918 = vld [vmem:[%s192 + $0x3450] sm:$0xff]
        %v1919 = vld [vmem:[%s192 + $0x3458] sm:$0xff]
        %v1920 = vld [vmem:[%s192 + $0x3460] sm:$0xff]
        %v1921 = vld [vmem:[%s192 + $0x3468] sm:$0xff]
        %v1922 = vld [vmem:[%s192 + $0x3470] sm:$0xff]
        %v1923 = vld [vmem:[%s192 + $0x3478] sm:$0xff]
        %v1924 = vld [vmem:[%s192 + $0x3480] sm:$0xff]
        %v1925 = vld [vmem:[%s192 + $0x3488] sm:$0xff]
        %v1926 = vld [vmem:[%s192 + $0x3490] sm:$0xff]
        %v1927 = vld [vmem:[%s192 + $0x3498] sm:$0xff]
        %v1928 = vld [vmem:[%s192 + $0x34a0] sm:$0xff]
        %v1929 = vld [vmem:[%s192 + $0x34a8] sm:$0xff]
        %v1930 = vld [vmem:[%s192 + $0x34b0] sm:$0xff]
        %v1931 = vld [vmem:[%s192 + $0x34b8] sm:$0xff]
        %v1932 = vld [vmem:[%s192 + $0x34c0] sm:$0xff]
        %v1933 = vld [vmem:[%s192 + $0x34c8] sm:$0xff]
        %v1934 = vld [vmem:[%s192 + $0x34d0] sm:$0xff]
        %v1935 = vld [vmem:[%s192 + $0x34d8] sm:$0xff]
        %v1936 = vld [vmem:[%s192 + $0x34e0] sm:$0xff]
        %v1937 = vld [vmem:[%s192 + $0x34e8] sm:$0xff]
        %v1938 = vld [vmem:[%s192 + $0x34f0] sm:$0xff]
        %v1939 = vld [vmem:[%s192 + $0x34f8] sm:$0xff]
        %v1940 = vld [vmem:[%s192 + $0x3500] sm:$0xff]
        %v1941 = vld [vmem:[%s192 + $0x3508] sm:$0xff]
        %v1942 = vld [vmem:[%s192 + $0x3510] sm:$0xff]
        %v1943 = vld [vmem:[%s192 + $0x3518] sm:$0xff]
        %v1944 = vld [vmem:[%s192 + $0x3520] sm:$0xff]
        %v1945 = vld [vmem:[%s192 + $0x3528] sm:$0xff]
        %v1946 = vld [vmem:[%s192 + $0x3530] sm:$0xff]
        %v1947 = vld [vmem:[%s192 + $0x3538] sm:$0xff]
        %v1948 = vld [vmem:[%s192 + $0x3540] sm:$0xff]
        %v1949 = vld [vmem:[%s192 + $0x3548] sm:$0xff]
        %v1950 = vld [vmem:[%s192 + $0x3550] sm:$0xff]
        %v1951 = vld [vmem:[%s192 + $0x3558] sm:$0xff]
        %v1952 = vld [vmem:[%s192 + $0x3560] sm:$0xff]
        %v1953 = vld [vmem:[%s192 + $0x3568] sm:$0xff]
        %v1954 = vld [vmem:[%s192 + $0x3570] sm:$0xff]
        %v1955 = vld [vmem:[%s192 + $0x3578] sm:$0xff]
        %v1956 = vld [vmem:[%s192 + $0x3580] sm:$0xff]
        %v1957 = vld [vmem:[%s192 + $0x3588] sm:$0xff]
        %v1958 = vld [vmem:[%s192 + $0x3590] sm:$0xff]
        %v1959 = vld [vmem:[%s192 + $0x3598] sm:$0xff]
        %v1960 = vld [vmem:[%s192 + $0x35a0] sm:$0xff]
        %v1961 = vld [vmem:[%s192 + $0x35a8] sm:$0xff]
        %v1962 = vld [vmem:[%s192 + $0x35b0] sm:$0xff]
        %v1963 = vld [vmem:[%s192 + $0x35b8] sm:$0xff]
        %v1964 = vld [vmem:[%s192 + $0x35c0] sm:$0xff]
        %v1965 = vld [vmem:[%s192 + $0x35c8] sm:$0xff]
        %v1966 = vld [vmem:[%s192 + $0x35d0] sm:$0xff]
        %v1967 = vld [vmem:[%s192 + $0x35d8] sm:$0xff]
        %v1968 = vld [vmem:[%s192 + $0x35e0] sm:$0xff]
        %v1969 = vld [vmem:[%s192 + $0x35e8] sm:$0xff]
        %v1970 = vld [vmem:[%s192 + $0x35f0] sm:$0xff]
        %v1971 = vld [vmem:[%s192 + $0x35f8] sm:$0xff]
        %v1972 = vld [vmem:[%s192 + $0x3600] sm:$0xff]
        %v1973 = vld [vmem:[%s192 + $0x3608] sm:$0xff]
        %v1974 = vld [vmem:[%s192 + $0x3610] sm:$0xff]
        %v1975 = vld [vmem:[%s192 + $0x3618] sm:$0xff]
        %v1976 = vld [vmem:[%s192 + $0x3620] sm:$0xff]
        %v1977 = vld [vmem:[%s192 + $0x3628] sm:$0xff]
        %v1978 = vld [vmem:[%s192 + $0x3630] sm:$0xff]
        %v1979 = vld [vmem:[%s192 + $0x3638] sm:$0xff]
        %v1980 = vld [vmem:[%s192 + $0x3640] sm:$0xff]
        %v1981 = vld [vmem:[%s192 + $0x3648] sm:$0xff]
        %v1982 = vld [vmem:[%s192 + $0x3650] sm:$0xff]
        %v1983 = vld [vmem:[%s192 + $0x3658] sm:$0xff]
        %v1984 = vld [vmem:[%s192 + $0x3660] sm:$0xff]
        %v1985 = vld [vmem:[%s192 + $0x3668] sm:$0xff]
        %v1986 = vld [vmem:[%s192 + $0x3670] sm:$0xff]
        %v1987 = vld [vmem:[%s192 + $0x3678] sm:$0xff]
        %v1988 = vld [vmem:[%s192 + $0x3680] sm:$0xff]
        %v1989 = vld [vmem:[%s192 + $0x3688] sm:$0xff]
        %v1990 = vld [vmem:[%s192 + $0x3690] sm:$0xff]
        %v1991 = vld [vmem:[%s192 + $0x3698] sm:$0xff]
        %v1992 = vld [vmem:[%s192 + $0x36a0] sm:$0xff]
        %v1993 = vld [vmem:[%s192 + $0x36a8] sm:$0xff]
        %v1994 = vld [vmem:[%s192 + $0x36b0] sm:$0xff]
        %v1995 = vld [vmem:[%s192 + $0x36b8] sm:$0xff]
        %v1996 = vld [vmem:[%s192 + $0x36c0] sm:$0xff]
        %v1997 = vld [vmem:[%s192 + $0x36c8] sm:$0xff]
        %v1998 = vld [vmem:[%s192 + $0x36d0] sm:$0xff]
        %v1999 = vld [vmem:[%s192 + $0x36d8] sm:$0xff]
        %v2000 = vld [vmem:[%s192 + $0x36e0] sm:$0xff]
        %v2001 = vld [vmem:[%s192 + $0x36e8] sm:$0xff]
        %v2002 = vld [vmem:[%s192 + $0x36f0] sm:$0xff]
        %v2003 = vld [vmem:[%s192 + $0x36f8] sm:$0xff]
        %v2004 = vld [vmem:[%s192 + $0x3700] sm:$0xff]
        %v2005 = vld [vmem:[%s192 + $0x3708] sm:$0xff]
        %v2006 = vld [vmem:[%s192 + $0x3710] sm:$0xff]
        %v2007 = vld [vmem:[%s192 + $0x3718] sm:$0xff]
        %v2008 = vld [vmem:[%s192 + $0x3720] sm:$0xff]
        %v2009 = vld [vmem:[%s192 + $0x3728] sm:$0xff]
        %v2010 = vld [vmem:[%s192 + $0x3730] sm:$0xff]
        %v2011 = vld [vmem:[%s192 + $0x3738] sm:$0xff]
        %v2012 = vld [vmem:[%s192 + $0x3740] sm:$0xff]
        %v2013 = vld [vmem:[%s192 + $0x3748] sm:$0xff]
        %v2014 = vld [vmem:[%s192 + $0x3750] sm:$0xff]
        %v2015 = vld [vmem:[%s192 + $0x3758] sm:$0xff]
        %v2016 = vld [vmem:[%s192 + $0x3760] sm:$0xff]
        %v2017 = vld [vmem:[%s192 + $0x3768] sm:$0xff]
        %v2018 = vld [vmem:[%s192 + $0x3770] sm:$0xff]
        %v2019 = vld [vmem:[%s192 + $0x3778] sm:$0xff]
        %v2020 = vld [vmem:[%s192 + $0x3780] sm:$0xff]
        %v2021 = vld [vmem:[%s192 + $0x3788] sm:$0xff]
        %v2022 = vld [vmem:[%s192 + $0x3790] sm:$0xff]
        %v2023 = vld [vmem:[%s192 + $0x3798] sm:$0xff]
        %v2024 = vld [vmem:[%s192 + $0x37a0] sm:$0xff]
        %v2025 = vld [vmem:[%s192 + $0x37a8] sm:$0xff]
        %v2026 = vld [vmem:[%s192 + $0x37b0] sm:$0xff]
        %v2027 = vld [vmem:[%s192 + $0x37b8] sm:$0xff]
        %v2028 = vld [vmem:[%s192 + $0x37c0] sm:$0xff]
        %v2029 = vld [vmem:[%s192 + $0x37c8] sm:$0xff]
        %v2030 = vld [vmem:[%s192 + $0x37d0] sm:$0xff]
        %v2031 = vld [vmem:[%s192 + $0x37d8] sm:$0xff]
        %v2032 = vld [vmem:[%s192 + $0x37e0] sm:$0xff]
        %v2033 = vld [vmem:[%s192 + $0x37e8] sm:$0xff]
        %v2034 = vld [vmem:[%s192 + $0x37f0] sm:$0xff]
        %v2035 = vld [vmem:[%s192 + $0x37f8] sm:$0xff]
        %v2036 = vld [vmem:[%s192 + $0x3800] sm:$0xff]
        %v2037 = vld [vmem:[%s192 + $0x3808] sm:$0xff]
        %v2038 = vld [vmem:[%s192 + $0x3810] sm:$0xff]
        %v2039 = vld [vmem:[%s192 + $0x3818] sm:$0xff]
        %v2040 = vld [vmem:[%s192 + $0x3820] sm:$0xff]
        %v2041 = vld [vmem:[%s192 + $0x3828] sm:$0xff]
        %v2042 = vld [vmem:[%s192 + $0x3830] sm:$0xff]
        %v2043 = vld [vmem:[%s192 + $0x3838] sm:$0xff]
        %v2044 = vld [vmem:[%s192 + $0x3840] sm:$0xff]
        %v2045 = vld [vmem:[%s192 + $0x3848] sm:$0xff]
        %v2046 = vld [vmem:[%s192 + $0x3850] sm:$0xff]
        %v2047 = vld [vmem:[%s192 + $0x3858] sm:$0xff]
        %v2048 = vld [vmem:[%s192 + $0x3860] sm:$0xff]
        %v2049 = vld [vmem:[%s192 + $0x3868] sm:$0xff]
        %v2050 = vld [vmem:[%s192 + $0x3870] sm:$0xff]
        %v2051 = vld [vmem:[%s192 + $0x3878] sm:$0xff]
        %v2052 = vld [vmem:[%s192 + $0x3880] sm:$0xff]
        %v2053 = vld [vmem:[%s192 + $0x3888] sm:$0xff]
        %v2054 = vld [vmem:[%s192 + $0x3890] sm:$0xff]
        %v2055 = vld [vmem:[%s192 + $0x3898] sm:$0xff]
        %v2056 = vld [vmem:[%s192 + $0x38a0] sm:$0xff]
        %v2057 = vld [vmem:[%s192 + $0x38a8] sm:$0xff]
        %v2058 = vld [vmem:[%s192 + $0x38b0] sm:$0xff]
        %v2059 = vld [vmem:[%s192 + $0x38b8] sm:$0xff]
        %v2060 = vld [vmem:[%s192 + $0x38c0] sm:$0xff]
        %v2061 = vld [vmem:[%s192 + $0x38c8] sm:$0xff]
        %v2062 = vld [vmem:[%s192 + $0x38d0] sm:$0xff]
        %v2063 = vld [vmem:[%s192 + $0x38d8] sm:$0xff]
        %v2064 = vld [vmem:[%s192 + $0x38e0] sm:$0xff]
        %v2065 = vld [vmem:[%s192 + $0x38e8] sm:$0xff]
        %v2066 = vld [vmem:[%s192 + $0x38f0] sm:$0xff]
        %v2067 = vld [vmem:[%s192 + $0x38f8] sm:$0xff]
        %v2068 = vld [vmem:[%s192 + $0x3900] sm:$0xff]
        %v2069 = vld [vmem:[%s192 + $0x3908] sm:$0xff]
        %v2070 = vld [vmem:[%s192 + $0x3910] sm:$0xff]
        %v2071 = vld [vmem:[%s192 + $0x3918] sm:$0xff]
        %v2072 = vld [vmem:[%s192 + $0x3920] sm:$0xff]
        %v2073 = vld [vmem:[%s192 + $0x3928] sm:$0xff]
        %v2074 = vld [vmem:[%s192 + $0x3930] sm:$0xff]
        %v2075 = vld [vmem:[%s192 + $0x3938] sm:$0xff]
        %v2076 = vld [vmem:[%s192 + $0x3940] sm:$0xff]
        %v2077 = vld [vmem:[%s192 + $0x3948] sm:$0xff]
        %v2078 = vld [vmem:[%s192 + $0x3950] sm:$0xff]
        %v2079 = vld [vmem:[%s192 + $0x3958] sm:$0xff]
        %v2080 = vld [vmem:[%s192 + $0x3960] sm:$0xff]
        %v2081 = vld [vmem:[%s192 + $0x3968] sm:$0xff]
        %v2082 = vld [vmem:[%s192 + $0x3970] sm:$0xff]
        %v2083 = vld [vmem:[%s192 + $0x3978] sm:$0xff]
        %v2084 = vld [vmem:[%s192 + $0x3980] sm:$0xff]
        %v2085 = vld [vmem:[%s192 + $0x3988] sm:$0xff]
        %v2086 = vld [vmem:[%s192 + $0x3990] sm:$0xff]
        %v2087 = vld [vmem:[%s192 + $0x3998] sm:$0xff]
        %v2088 = vld [vmem:[%s192 + $0x39a0] sm:$0xff]
        %v2089 = vld [vmem:[%s192 + $0x39a8] sm:$0xff]
        %v2090 = vld [vmem:[%s192 + $0x39b0] sm:$0xff]
        %v2091 = vld [vmem:[%s192 + $0x39b8] sm:$0xff]
        %v2092 = vld [vmem:[%s192 + $0x39c0] sm:$0xff]
        %v2093 = vld [vmem:[%s192 + $0x39c8] sm:$0xff]
        %v2094 = vld [vmem:[%s192 + $0x39d0] sm:$0xff]
        %v2095 = vld [vmem:[%s192 + $0x39d8] sm:$0xff]
        %v2096 = vld [vmem:[%s192 + $0x39e0] sm:$0xff]
        %v2097 = vld [vmem:[%s192 + $0x39e8] sm:$0xff]
        %v2098 = vld [vmem:[%s192 + $0x39f0] sm:$0xff]
        %v2099 = vld [vmem:[%s192 + $0x39f8] sm:$0xff]
        %v2100 = vld [vmem:[%s192 + $0x3a00] sm:$0xff]
        %v2101 = vld [vmem:[%s192 + $0x3a08] sm:$0xff]
        %v2102 = vld [vmem:[%s192 + $0x3a10] sm:$0xff]
        %v2103 = vld [vmem:[%s192 + $0x3a18] sm:$0xff]
        %v2104 = vld [vmem:[%s192 + $0x3a20] sm:$0xff]
        %v2105 = vld [vmem:[%s192 + $0x3a28] sm:$0xff]
        %v2106 = vld [vmem:[%s192 + $0x3a30] sm:$0xff]
        %v2107 = vld [vmem:[%s192 + $0x3a38] sm:$0xff]
        %v2108 = vld [vmem:[%s192 + $0x3a40] sm:$0xff]
        %v2109 = vld [vmem:[%s192 + $0x3a48] sm:$0xff]
        %v2110 = vld [vmem:[%s192 + $0x3a50] sm:$0xff]
        %v2111 = vld [vmem:[%s192 + $0x3a58] sm:$0xff]
        %v2112 = vld [vmem:[%s192 + $0x3a60] sm:$0xff]
        %v2113 = vld [vmem:[%s192 + $0x3a68] sm:$0xff]
        %v2114 = vld [vmem:[%s192 + $0x3a70] sm:$0xff]
        %v2115 = vld [vmem:[%s192 + $0x3a78] sm:$0xff]
        %v2116 = vld [vmem:[%s192 + $0x3a80] sm:$0xff]
        %v2117 = vld [vmem:[%s192 + $0x3a88] sm:$0xff]
        %v2118 = vld [vmem:[%s192 + $0x3a90] sm:$0xff]
        %v2119 = vld [vmem:[%s192 + $0x3a98] sm:$0xff]
        %v2120 = vld [vmem:[%s192 + $0x3aa0] sm:$0xff]
        %v2121 = vld [vmem:[%s192 + $0x3aa8] sm:$0xff]
        %v2122 = vld [vmem:[%s192 + $0x3ab0] sm:$0xff]
        %v2123 = vld [vmem:[%s192 + $0x3ab8] sm:$0xff]
        %v2124 = vld [vmem:[%s192 + $0x3ac0] sm:$0xff]
        %v2125 = vld [vmem:[%s192 + $0x3ac8] sm:$0xff]
        %v2126 = vld [vmem:[%s192 + $0x3ad0] sm:$0xff]
        %v2127 = vld [vmem:[%s192 + $0x3ad8] sm:$0xff]
        %v2128 = vld [vmem:[%s192 + $0x3ae0] sm:$0xff]
        %v2129 = vld [vmem:[%s192 + $0x3ae8] sm:$0xff]
        %v2130 = vld [vmem:[%s192 + $0x3af0] sm:$0xff]
        %v2131 = vld [vmem:[%s192 + $0x3af8] sm:$0xff]
        %v2132 = vld [vmem:[%s192 + $0x3b00] sm:$0xff]
        %v2133 = vld [vmem:[%s192 + $0x3b08] sm:$0xff]
        %v2134 = vld [vmem:[%s192 + $0x3b10] sm:$0xff]
        %v2135 = vld [vmem:[%s192 + $0x3b18] sm:$0xff]
        %v2136 = vld [vmem:[%s192 + $0x3b20] sm:$0xff]
        %v2137 = vld [vmem:[%s192 + $0x3b28] sm:$0xff]
        %v2138 = vld [vmem:[%s192 + $0x3b30] sm:$0xff]
        %v2139 = vld [vmem:[%s192 + $0x3b38] sm:$0xff]
        %v2140 = vld [vmem:[%s192 + $0x3b40] sm:$0xff]
        %v2141 = vld [vmem:[%s192 + $0x3b48] sm:$0xff]
        %v2142 = vld [vmem:[%s192 + $0x3b50] sm:$0xff]
        %v2143 = vld [vmem:[%s192 + $0x3b58] sm:$0xff]
        %v2144 = vld [vmem:[%s192 + $0x3b60] sm:$0xff]
        %v2145 = vld [vmem:[%s192 + $0x3b68] sm:$0xff]
        %v2146 = vld [vmem:[%s192 + $0x3b70] sm:$0xff]
        %v2147 = vld [vmem:[%s192 + $0x3b78] sm:$0xff]
        %v2148 = vld [vmem:[%s192 + $0x3b80] sm:$0xff]
        %v2149 = vld [vmem:[%s192 + $0x3b88] sm:$0xff]
        %v2150 = vld [vmem:[%s192 + $0x3b90] sm:$0xff]
        %v2151 = vld [vmem:[%s192 + $0x3b98] sm:$0xff]
        %v2152 = vld [vmem:[%s192 + $0x3ba0] sm:$0xff]
        %v2153 = vld [vmem:[%s192 + $0x3ba8] sm:$0xff]
        %v2154 = vld [vmem:[%s192 + $0x3bb0] sm:$0xff]
        %v2155 = vld [vmem:[%s192 + $0x3bb8] sm:$0xff]
        %v2156 = vld [vmem:[%s192 + $0x3bc0] sm:$0xff]
        %v2157 = vld [vmem:[%s192 + $0x3bc8] sm:$0xff]
        %v2158 = vld [vmem:[%s192 + $0x3bd0] sm:$0xff]
        %v2159 = vld [vmem:[%s192 + $0x3bd8] sm:$0xff]
        %v2160 = vld [vmem:[%s192 + $0x3be0] sm:$0xff]
        %v2161 = vld [vmem:[%s192 + $0x3be8] sm:$0xff]
        %v2162 = vld [vmem:[%s192 + $0x3bf0] sm:$0xff]
        %v2163 = vld [vmem:[%s192 + $0x3bf8] sm:$0xff]
        %v2164 = vld [vmem:[%s192 + $0x3c00] sm:$0xff]
        %v2165 = vld [vmem:[%s192 + $0x3c08] sm:$0xff]
        %v2166 = vld [vmem:[%s192 + $0x3c10] sm:$0xff]
        %v2167 = vld [vmem:[%s192 + $0x3c18] sm:$0xff]
        %v2168 = vld [vmem:[%s192 + $0x3c20] sm:$0xff]
        %v2169 = vld [vmem:[%s192 + $0x3c28] sm:$0xff]
        %v2170 = vld [vmem:[%s192 + $0x3c30] sm:$0xff]
        %v2171 = vld [vmem:[%s192 + $0x3c38] sm:$0xff]
        %v2172 = vld [vmem:[%s192 + $0x3c40] sm:$0xff]
        %v2173 = vld [vmem:[%s192 + $0x3c48] sm:$0xff]
        %v2174 = vld [vmem:[%s192 + $0x3c50] sm:$0xff]
        %v2175 = vld [vmem:[%s192 + $0x3c58] sm:$0xff]
        %v2176 = vld [vmem:[%s192 + $0x3c60] sm:$0xff]
        %v2177 = vld [vmem:[%s192 + $0x3c68] sm:$0xff]
        %v2178 = vld [vmem:[%s192 + $0x3c70] sm:$0xff]
        %v2179 = vld [vmem:[%s192 + $0x3c78] sm:$0xff]
        %v2180 = vld [vmem:[%s192 + $0x3c80] sm:$0xff]
        %v2181 = vld [vmem:[%s192 + $0x3c88] sm:$0xff]
        %v2182 = vld [vmem:[%s192 + $0x3c90] sm:$0xff]
        %v2183 = vld [vmem:[%s192 + $0x3c98] sm:$0xff]
        %v2184 = vld [vmem:[%s192 + $0x3ca0] sm:$0xff]
        %v2185 = vld [vmem:[%s192 + $0x3ca8] sm:$0xff]
        %v2186 = vld [vmem:[%s192 + $0x3cb0] sm:$0xff]
        %v2187 = vld [vmem:[%s192 + $0x3cb8] sm:$0xff]
        %v2188 = vld [vmem:[%s192 + $0x3cc0] sm:$0xff]
        %v2189 = vld [vmem:[%s192 + $0x3cc8] sm:$0xff]
        %v2190 = vld [vmem:[%s192 + $0x3cd0] sm:$0xff]
        %v2191 = vld [vmem:[%s192 + $0x3cd8] sm:$0xff]
        %v2192 = vld [vmem:[%s192 + $0x3ce0] sm:$0xff]
        %v2193 = vld [vmem:[%s192 + $0x3ce8] sm:$0xff]
        %v2194 = vld [vmem:[%s192 + $0x3cf0] sm:$0xff]
        %v2195 = vld [vmem:[%s192 + $0x3cf8] sm:$0xff]
        %v2196 = vld [vmem:[%s192 + $0x3d00] sm:$0xff]
        %v2197 = vld [vmem:[%s192 + $0x3d08] sm:$0xff]
        %v2198 = vld [vmem:[%s192 + $0x3d10] sm:$0xff]
        %v2199 = vld [vmem:[%s192 + $0x3d18] sm:$0xff]
        %v2200 = vld [vmem:[%s192 + $0x3d20] sm:$0xff]
        %v2201 = vld [vmem:[%s192 + $0x3d28] sm:$0xff]
        %v2202 = vld [vmem:[%s192 + $0x3d30] sm:$0xff]
        %v2203 = vld [vmem:[%s192 + $0x3d38] sm:$0xff]
        %v2204 = vld [vmem:[%s192 + $0x3d40] sm:$0xff]
        %v2205 = vld [vmem:[%s192 + $0x3d48] sm:$0xff]
        %v2206 = vld [vmem:[%s192 + $0x3d50] sm:$0xff]
        %v2207 = vld [vmem:[%s192 + $0x3d58] sm:$0xff]
        %v2208 = vld [vmem:[%s192 + $0x3d60] sm:$0xff]
        %v2209 = vld [vmem:[%s192 + $0x3d68] sm:$0xff]
        %v2210 = vld [vmem:[%s192 + $0x3d70] sm:$0xff]
        %v2211 = vld [vmem:[%s192 + $0x3d78] sm:$0xff]
        %v2212 = vld [vmem:[%s192 + $0x3d80] sm:$0xff]
        %v2213 = vld [vmem:[%s192 + $0x3d88] sm:$0xff]
        %v2214 = vld [vmem:[%s192 + $0x3d90] sm:$0xff]
        %v2215 = vld [vmem:[%s192 + $0x3d98] sm:$0xff]
        %v2216 = vld [vmem:[%s192 + $0x3da0] sm:$0xff]
        %v2217 = vld [vmem:[%s192 + $0x3da8] sm:$0xff]
        %v2218 = vld [vmem:[%s192 + $0x3db0] sm:$0xff]
        %v2219 = vld [vmem:[%s192 + $0x3db8] sm:$0xff]
        %v2220 = vld [vmem:[%s192 + $0x3dc0] sm:$0xff]
        %v2221 = vld [vmem:[%s192 + $0x3dc8] sm:$0xff]
        %v2222 = vld [vmem:[%s192 + $0x3dd0] sm:$0xff]
        %v2223 = vld [vmem:[%s192 + $0x3dd8] sm:$0xff]
        %v2224 = vld [vmem:[%s192 + $0x3de0] sm:$0xff]
        %v2225 = vld [vmem:[%s192 + $0x3de8] sm:$0xff]
        %v2226 = vld [vmem:[%s192 + $0x3df0] sm:$0xff]
        %v2227 = vld [vmem:[%s192 + $0x3df8] sm:$0xff]
        %v2228 = vld [vmem:[%s192 + $0x3e00] sm:$0xff]
        %v2229 = vld [vmem:[%s192 + $0x3e08] sm:$0xff]
        %v2230 = vld [vmem:[%s192 + $0x3e10] sm:$0xff]
        %v2231 = vld [vmem:[%s192 + $0x3e18] sm:$0xff]
        %v2232 = vld [vmem:[%s192 + $0x3e20] sm:$0xff]
        %v2233 = vld [vmem:[%s192 + $0x3e28] sm:$0xff]
        %v2234 = vld [vmem:[%s192 + $0x3e30] sm:$0xff]
        %v2235 = vld [vmem:[%s192 + $0x3e38] sm:$0xff]
        %v2236 = vld [vmem:[%s192 + $0x3e40] sm:$0xff]
        %v2237 = vld [vmem:[%s192 + $0x3e48] sm:$0xff]
        %v2238 = vld [vmem:[%s192 + $0x3e50] sm:$0xff]
        %v2239 = vld [vmem:[%s192 + $0x3e58] sm:$0xff]
        %v2240 = vld [vmem:[%s192 + $0x3e60] sm:$0xff]
        %v2241 = vld [vmem:[%s192 + $0x3e68] sm:$0xff]
        %v2242 = vld [vmem:[%s192 + $0x3e70] sm:$0xff]
        %v2243 = vld [vmem:[%s192 + $0x3e78] sm:$0xff]
        %v2244 = vld [vmem:[%s192 + $0x3e80] sm:$0xff]
        %v2245 = vld [vmem:[%s192 + $0x3e88] sm:$0xff]
        %v2246 = vld [vmem:[%s192 + $0x3e90] sm:$0xff]
        %v2247 = vld [vmem:[%s192 + $0x3e98] sm:$0xff]
        %v2248 = vld [vmem:[%s192 + $0x3ea0] sm:$0xff]
        %v2249 = vld [vmem:[%s192 + $0x3ea8] sm:$0xff]
        %v2250 = vld [vmem:[%s192 + $0x3eb0] sm:$0xff]
        %v2251 = vld [vmem:[%s192 + $0x3eb8] sm:$0xff]
        %v2252 = vld [vmem:[%s192 + $0x3ec0] sm:$0xff]
        %v2253 = vld [vmem:[%s192 + $0x3ec8] sm:$0xff]
        %v2254 = vld [vmem:[%s192 + $0x3ed0] sm:$0xff]
        %v2255 = vld [vmem:[%s192 + $0x3ed8] sm:$0xff]
        %v2256 = vld [vmem:[%s192 + $0x3ee0] sm:$0xff]
        %v2257 = vld [vmem:[%s192 + $0x3ee8] sm:$0xff]
        %v2258 = vld [vmem:[%s192 + $0x3ef0] sm:$0xff]
        %v2259 = vld [vmem:[%s192 + $0x3ef8] sm:$0xff]
        %v2260 = vld [vmem:[%s192 + $0x3f00] sm:$0xff]
        %v2261 = vld [vmem:[%s192 + $0x3f08] sm:$0xff]
        %v2262 = vld [vmem:[%s192 + $0x3f10] sm:$0xff]
        %v2263 = vld [vmem:[%s192 + $0x3f18] sm:$0xff]
        %v2264 = vld [vmem:[%s192 + $0x3f20] sm:$0xff]
        %v2265 = vld [vmem:[%s192 + $0x3f28] sm:$0xff]
        %v2266 = vld [vmem:[%s192 + $0x3f30] sm:$0xff]
        %v2267 = vld [vmem:[%s192 + $0x3f38] sm:$0xff]
        %v2268 = vld [vmem:[%s192 + $0x3f40] sm:$0xff]
        %v2269 = vld [vmem:[%s192 + $0x3f48] sm:$0xff]
        %v2270 = vld [vmem:[%s192 + $0x3f50] sm:$0xff]
        %v2271 = vld [vmem:[%s192 + $0x3f58] sm:$0xff]
        %v2272 = vld [vmem:[%s192 + $0x3f60] sm:$0xff]
        %v2273 = vld [vmem:[%s192 + $0x3f68] sm:$0xff]
        %v2274 = vld [vmem:[%s192 + $0x3f70] sm:$0xff]
        %v2275 = vld [vmem:[%s192 + $0x3f78] sm:$0xff]
        %v2276 = vld [vmem:[%s192 + $0x3f80] sm:$0xff]
        %v2277 = vld [vmem:[%s192 + $0x3f88] sm:$0xff]
        %v2278 = vld [vmem:[%s192 + $0x3f90] sm:$0xff]
        %v2279 = vld [vmem:[%s192 + $0x3f98] sm:$0xff]
        %v2280 = vld [vmem:[%s192 + $0x3fa0] sm:$0xff]
        %v2281 = vld [vmem:[%s192 + $0x3fa8] sm:$0xff]
        %v2282 = vld [vmem:[%s192 + $0x3fb0] sm:$0xff]
        %v2283 = vld [vmem:[%s192 + $0x3fb8] sm:$0xff]
        %v2284 = vld [vmem:[%s192 + $0x3fc0] sm:$0xff]
        %v2285 = vld [vmem:[%s192 + $0x3fc8] sm:$0xff]
        %v2286 = vld [vmem:[%s192 + $0x3fd0] sm:$0xff]
        %v2287 = vld [vmem:[%s192 + $0x3fd8] sm:$0xff]
        %v2288 = vld [vmem:[%s192 + $0x3fe0] sm:$0xff]
        %v2289 = vld [vmem:[%s192 + $0x3fe8] sm:$0xff]
        %v2290 = vld [vmem:[%s192 + $0x3ff0] sm:$0xff]
        %v2291 = vld [vmem:[%s192 + $0x3ff8] sm:$0xff]
        %v2292 = vld [vmem:[%s192 + $0x4000] sm:$0xff]
        %v2293 = vld [vmem:[%s192 + $0x4008] sm:$0xff]
        %v2294 = vld [vmem:[%s192 + $0x4010] sm:$0xff]
        %v2295 = vld [vmem:[%s192 + $0x4018] sm:$0xff]
        %v2296 = vld [vmem:[%s192 + $0x4020] sm:$0xff]
        %v2297 = vld [vmem:[%s192 + $0x4028] sm:$0xff]
        %v2298 = vld [vmem:[%s192 + $0x4030] sm:$0xff]
        %v2299 = vld [vmem:[%s192 + $0x4038] sm:$0xff]
        %v2300 = vld [vmem:[%s192 + $0x4040] sm:$0xff]
        %v2301 = vld [vmem:[%s192 + $0x4048] sm:$0xff]
        %v2302 = vld [vmem:[%s192 + $0x4050] sm:$0xff]
        %v2303 = vld [vmem:[%s192 + $0x4058] sm:$0xff]
        %v2304 = vld [vmem:[%s192 + $0x4060] sm:$0xff]
        %v2305 = vld [vmem:[%s192 + $0x4068] sm:$0xff]
        %v2306 = vld [vmem:[%s192 + $0x4070] sm:$0xff]
        %v2307 = vld [vmem:[%s192 + $0x4078] sm:$0xff]
        %v2308 = vld [vmem:[%s192 + $0x4080] sm:$0xff]
        %v2309 = vld [vmem:[%s192 + $0x4088] sm:$0xff]
        %v2310 = vld [vmem:[%s192 + $0x4090] sm:$0xff]
        %v2311 = vld [vmem:[%s192 + $0x4098] sm:$0xff]
        %v2312 = vld [vmem:[%s192 + $0x40a0] sm:$0xff]
        %v2313 = vld [vmem:[%s192 + $0x40a8] sm:$0xff]
        %v2314 = vld [vmem:[%s192 + $0x40b0] sm:$0xff]
        %v2315 = vld [vmem:[%s192 + $0x40b8] sm:$0xff]
        %v2316 = vld [vmem:[%s192 + $0x40c0] sm:$0xff]
        %v2317 = vld [vmem:[%s192 + $0x40c8] sm:$0xff]
        %v2318 = vld [vmem:[%s192 + $0x40d0] sm:$0xff]
        %v2319 = vld [vmem:[%s192 + $0x40d8] sm:$0xff]
        %v2320 = vld [vmem:[%s192 + $0x40e0] sm:$0xff]
        %v2321 = vld [vmem:[%s192 + $0x40e8] sm:$0xff]
        %v2322 = vld [vmem:[%s192 + $0x40f0] sm:$0xff]
        %v2323 = vld [vmem:[%s192 + $0x40f8] sm:$0xff]
        %v2324 = vld [vmem:[%s192 + $0x4100] sm:$0xff]
        %v2325 = vld [vmem:[%s192 + $0x4108] sm:$0xff]
        %v2326 = vld [vmem:[%s192 + $0x4110] sm:$0xff]
        %v2327 = vld [vmem:[%s192 + $0x4118] sm:$0xff]
        %v2328 = vld [vmem:[%s192 + $0x4120] sm:$0xff]
        %v2329 = vld [vmem:[%s192 + $0x4128] sm:$0xff]
        %v2330 = vld [vmem:[%s192 + $0x4130] sm:$0xff]
        %v2331 = vld [vmem:[%s192 + $0x4138] sm:$0xff]
        %v2332 = vld [vmem:[%s192 + $0x4140] sm:$0xff]
        %v2333 = vld [vmem:[%s192 + $0x4148] sm:$0xff]
        %v2334 = vld [vmem:[%s192 + $0x4150] sm:$0xff]
        %v2335 = vld [vmem:[%s192 + $0x4158] sm:$0xff]
        %v2336 = vld [vmem:[%s192 + $0x4160] sm:$0xff]
        %v2337 = vld [vmem:[%s192 + $0x4168] sm:$0xff]
        %v2338 = vld [vmem:[%s192 + $0x4170] sm:$0xff]
        %v2339 = vld [vmem:[%s192 + $0x4178] sm:$0xff]
        %v2340 = vld [vmem:[%s192 + $0x4180] sm:$0xff]
        %v2341 = vld [vmem:[%s192 + $0x4188] sm:$0xff]
        %v2342 = vld [vmem:[%s192 + $0x4190] sm:$0xff]
        %v2343 = vld [vmem:[%s192 + $0x4198] sm:$0xff]
        %v2344 = vld [vmem:[%s192 + $0x41a0] sm:$0xff]
        %v2345 = vld [vmem:[%s192 + $0x41a8] sm:$0xff]
        %v2346 = vld [vmem:[%s192 + $0x41b0] sm:$0xff]
        %v2347 = vld [vmem:[%s192 + $0x41b8] sm:$0xff]
        %v2348 = vld [vmem:[%s192 + $0x41c0] sm:$0xff]
        %v2349 = vld [vmem:[%s192 + $0x41c8] sm:$0xff]
        %v2350 = vld [vmem:[%s192 + $0x41d0] sm:$0xff]
        %v2351 = vld [vmem:[%s192 + $0x41d8] sm:$0xff]
        %v2352 = vld [vmem:[%s192 + $0x41e0] sm:$0xff]
        %v2353 = vld [vmem:[%s192 + $0x41e8] sm:$0xff]
        %v2354 = vld [vmem:[%s192 + $0x41f0] sm:$0xff]
        %v2355 = vld [vmem:[%s192 + $0x41f8] sm:$0xff]
        %v2356 = vld [vmem:[%s192 + $0x4200] sm:$0xff]
        %v2357 = vld [vmem:[%s192 + $0x4208] sm:$0xff]
        %v2358 = vld [vmem:[%s192 + $0x4210] sm:$0xff]
        %v2359 = vld [vmem:[%s192 + $0x4218] sm:$0xff]
        %v2360 = vld [vmem:[%s192 + $0x4220] sm:$0xff]
        %v2361 = vld [vmem:[%s192 + $0x4228] sm:$0xff]
        %v2362 = vld [vmem:[%s192 + $0x4230] sm:$0xff]
        %v2363 = vld [vmem:[%s192 + $0x4238] sm:$0xff]
        %v2364 = vld [vmem:[%s192 + $0x4240] sm:$0xff]
        %v2365 = vld [vmem:[%s192 + $0x4248] sm:$0xff]
        %v2366 = vld [vmem:[%s192 + $0x4250] sm:$0xff]
        %v2367 = vld [vmem:[%s192 + $0x4258] sm:$0xff]
        %v2368 = vld [vmem:[%s192 + $0x4260] sm:$0xff]
        %v2369 = vld [vmem:[%s192 + $0x4268] sm:$0xff]
        %v2370 = vld [vmem:[%s192 + $0x4270] sm:$0xff]
        %v2371 = vld [vmem:[%s192 + $0x4278] sm:$0xff]
        %v2372 = vld [vmem:[%s192 + $0x4280] sm:$0xff]
        %v2373 = vld [vmem:[%s192 + $0x4288] sm:$0xff]
        %v2374 = vld [vmem:[%s192 + $0x4290] sm:$0xff]
        %v2375 = vld [vmem:[%s192 + $0x4298] sm:$0xff]
        %v2376 = vld [vmem:[%s192 + $0x42a0] sm:$0xff]
        %v2377 = vld [vmem:[%s192 + $0x42a8] sm:$0xff]
        %v2378 = vld [vmem:[%s192 + $0x42b0] sm:$0xff]
        %v2379 = vld [vmem:[%s192 + $0x42b8] sm:$0xff]
        %v2380 = vld [vmem:[%s192 + $0x42c0] sm:$0xff]
        %v2381 = vld [vmem:[%s192 + $0x42c8] sm:$0xff]
        %v2382 = vld [vmem:[%s192 + $0x42d0] sm:$0xff]
        %v2383 = vld [vmem:[%s192 + $0x42d8] sm:$0xff]
        %v2384 = vld [vmem:[%s192 + $0x42e0] sm:$0xff]
        %v2385 = vld [vmem:[%s192 + $0x42e8] sm:$0xff]
        %v2386 = vld [vmem:[%s192 + $0x42f0] sm:$0xff]
        %v2387 = vld [vmem:[%s192 + $0x42f8] sm:$0xff]
        %v2388 = vld [vmem:[%s192 + $0x4300] sm:$0xff]
        %v2389 = vld [vmem:[%s192 + $0x4308] sm:$0xff]
        %v2390 = vld [vmem:[%s192 + $0x4310] sm:$0xff]
        %v2391 = vld [vmem:[%s192 + $0x4318] sm:$0xff]
        %v2392 = vld [vmem:[%s192 + $0x4320] sm:$0xff]
        %v2393 = vld [vmem:[%s192 + $0x4328] sm:$0xff]
        %v2394 = vld [vmem:[%s192 + $0x4330] sm:$0xff]
        %v2395 = vld [vmem:[%s192 + $0x4338] sm:$0xff]
        %v2396 = vld [vmem:[%s192 + $0x4340] sm:$0xff]
        %v2397 = vld [vmem:[%s192 + $0x4348] sm:$0xff]
        %v2398 = vld [vmem:[%s192 + $0x4350] sm:$0xff]
        %v2399 = vld [vmem:[%s192 + $0x4358] sm:$0xff]
        %v2400 = vld [vmem:[%s192 + $0x4360] sm:$0xff]
        %v2401 = vld [vmem:[%s192 + $0x4368] sm:$0xff]
        %v2402 = vld [vmem:[%s192 + $0x4370] sm:$0xff]
        %v2403 = vld [vmem:[%s192 + $0x4378] sm:$0xff]
        %v2404 = vld [vmem:[%s192 + $0x4380] sm:$0xff]
        %v2405 = vld [vmem:[%s192 + $0x4388] sm:$0xff]
        %v2406 = vld [vmem:[%s192 + $0x4390] sm:$0xff]
        %v2407 = vld [vmem:[%s192 + $0x4398] sm:$0xff]
        %v2408 = vld [vmem:[%s192 + $0x43a0] sm:$0xff]
        %v2409 = vld [vmem:[%s192 + $0x43a8] sm:$0xff]
        %v2410 = vld [vmem:[%s192 + $0x43b0] sm:$0xff]
        %v2411 = vld [vmem:[%s192 + $0x43b8] sm:$0xff]
        %v2412 = vld [vmem:[%s192 + $0x43c0] sm:$0xff]
        %v2413 = vld [vmem:[%s192 + $0x43c8] sm:$0xff]
        %v2414 = vld [vmem:[%s192 + $0x43d0] sm:$0xff]
        %v2415 = vld [vmem:[%s192 + $0x43d8] sm:$0xff]
        %v2416 = vld [vmem:[%s192 + $0x43e0] sm:$0xff]
        %v2417 = vld [vmem:[%s192 + $0x43e8] sm:$0xff]
        %v2418 = vld [vmem:[%s192 + $0x43f0] sm:$0xff]
        %v2419 = vld [vmem:[%s192 + $0x43f8] sm:$0xff]
        %v2420 = vld [vmem:[%s192 + $0x4400] sm:$0xff]
        %v2421 = vld [vmem:[%s192 + $0x4408] sm:$0xff]
        %v2422 = vld [vmem:[%s192 + $0x4410] sm:$0xff]
        %v2423 = vld [vmem:[%s192 + $0x4418] sm:$0xff]
        %v2424 = vld [vmem:[%s192 + $0x4420] sm:$0xff]
        %v2425 = vld [vmem:[%s192 + $0x4428] sm:$0xff]
        %v2426 = vld [vmem:[%s192 + $0x4430] sm:$0xff]
        %v2427 = vld [vmem:[%s192 + $0x4438] sm:$0xff]
        %v2428 = vld [vmem:[%s192 + $0x4440] sm:$0xff]
        %v2429 = vld [vmem:[%s192 + $0x4448] sm:$0xff]
        %v2430 = vld [vmem:[%s192 + $0x4450] sm:$0xff]
        %v2431 = vld [vmem:[%s192 + $0x4458] sm:$0xff]
        %v2432 = vld [vmem:[%s192 + $0x4460] sm:$0xff]
        %v2433 = vld [vmem:[%s192 + $0x4468] sm:$0xff]
        %v2434 = vld [vmem:[%s192 + $0x4470] sm:$0xff]
        %v2435 = vld [vmem:[%s192 + $0x4478] sm:$0xff]
        %v2436 = vld [vmem:[%s192 + $0x4480] sm:$0xff]
        %v2437 = vld [vmem:[%s192 + $0x4488] sm:$0xff]
        %v2438 = vld [vmem:[%s192 + $0x4490] sm:$0xff]
        %v2439 = vld [vmem:[%s192 + $0x4498] sm:$0xff]
        %v2440 = vld [vmem:[%s192 + $0x44a0] sm:$0xff]
        %v2441 = vld [vmem:[%s192 + $0x44a8] sm:$0xff]
        %v2442 = vld [vmem:[%s192 + $0x44b0] sm:$0xff]
        %v2443 = vld [vmem:[%s192 + $0x44b8] sm:$0xff]
        %v2444 = vld [vmem:[%s192 + $0x44c0] sm:$0xff]
        %v2445 = vld [vmem:[%s192 + $0x44c8] sm:$0xff]
        %v2446 = vld [vmem:[%s192 + $0x44d0] sm:$0xff]
        %v2447 = vld [vmem:[%s192 + $0x44d8] sm:$0xff]
        %v2448 = vld [vmem:[%s192 + $0x44e0] sm:$0xff]
        %v2449 = vld [vmem:[%s192 + $0x44e8] sm:$0xff]
        %v2450 = vld [vmem:[%s192 + $0x44f0] sm:$0xff]
        %v2451 = vld [vmem:[%s192 + $0x44f8] sm:$0xff]
        %v2452 = vld [vmem:[%s192 + $0x4500] sm:$0xff]
        %v2453 = vld [vmem:[%s192 + $0x4508] sm:$0xff]
        %v2454 = vld [vmem:[%s192 + $0x4510] sm:$0xff]
        %v2455 = vld [vmem:[%s192 + $0x4518] sm:$0xff]
        %v2456 = vld [vmem:[%s192 + $0x4520] sm:$0xff]
        %v2457 = vld [vmem:[%s192 + $0x4528] sm:$0xff]
        %v2458 = vld [vmem:[%s192 + $0x4530] sm:$0xff]
        %v2459 = vld [vmem:[%s192 + $0x4538] sm:$0xff]
        %v2460 = vld [vmem:[%s192 + $0x4540] sm:$0xff]
        %v2461 = vld [vmem:[%s192 + $0x4548] sm:$0xff]
        %v2462 = vld [vmem:[%s192 + $0x4550] sm:$0xff]
        %v2463 = vld [vmem:[%s192 + $0x4558] sm:$0xff]
        %v2464 = vld [vmem:[%s192 + $0x4560] sm:$0xff]
        %v2465 = vld [vmem:[%s192 + $0x4568] sm:$0xff]
        %v2466 = vld [vmem:[%s192 + $0x4570] sm:$0xff]
        %v2467 = vld [vmem:[%s192 + $0x4578] sm:$0xff]
        %v2468 = vld [vmem:[%s192 + $0x4580] sm:$0xff]
        %v2469 = vld [vmem:[%s192 + $0x4588] sm:$0xff]
        %v2470 = vld [vmem:[%s192 + $0x4590] sm:$0xff]
        %v2471 = vld [vmem:[%s192 + $0x4598] sm:$0xff]
        %v2472 = vld [vmem:[%s192 + $0x45a0] sm:$0xff]
        %v2473 = vld [vmem:[%s192 + $0x45a8] sm:$0xff]
        %v2474 = vld [vmem:[%s192 + $0x45b0] sm:$0xff]
        %v2475 = vld [vmem:[%s192 + $0x45b8] sm:$0xff]
        %v2476 = vld [vmem:[%s192 + $0x45c0] sm:$0xff]
        %v2477 = vld [vmem:[%s192 + $0x45c8] sm:$0xff]
        %v2478 = vld [vmem:[%s192 + $0x45d0] sm:$0xff]
        %v2479 = vld [vmem:[%s192 + $0x45d8] sm:$0xff]
        %v2480 = vld [vmem:[%s192 + $0x45e0] sm:$0xff]
        %v2481 = vld [vmem:[%s192 + $0x45e8] sm:$0xff]
        %v2482 = vld [vmem:[%s192 + $0x45f0] sm:$0xff]
        %v2483 = vld [vmem:[%s192 + $0x45f8] sm:$0xff]
        %v2484 = vld [vmem:[%s192 + $0x4600] sm:$0xff]
        %v2485 = vld [vmem:[%s192 + $0x4608] sm:$0xff]
        %v2486 = vld [vmem:[%s192 + $0x4610] sm:$0xff]
        %v2487 = vld [vmem:[%s192 + $0x4618] sm:$0xff]
        %v2488 = vld [vmem:[%s192 + $0x4620] sm:$0xff]
        %v2489 = vld [vmem:[%s192 + $0x4628] sm:$0xff]
        %v2490 = vld [vmem:[%s192 + $0x4630] sm:$0xff]
        %v2491 = vld [vmem:[%s192 + $0x4638] sm:$0xff]
        %v2492 = vld [vmem:[%s192 + $0x4640] sm:$0xff]
        %v2493 = vld [vmem:[%s192 + $0x4648] sm:$0xff]
        %v2494 = vld [vmem:[%s192 + $0x4650] sm:$0xff]
        %v2495 = vld [vmem:[%s192 + $0x4658] sm:$0xff]
        %v2496 = vld [vmem:[%s192 + $0x4660] sm:$0xff]
        %v2497 = vld [vmem:[%s192 + $0x4668] sm:$0xff]
        %v2498 = vld [vmem:[%s192 + $0x4670] sm:$0xff]
        %v2499 = vld [vmem:[%s192 + $0x4678] sm:$0xff]
        %v2500 = vld [vmem:[%s192 + $0x4680] sm:$0xff]
        %v2501 = vld [vmem:[%s192 + $0x4688] sm:$0xff]
        %v2502 = vld [vmem:[%s192 + $0x4690] sm:$0xff]
        %v2503 = vld [vmem:[%s192 + $0x4698] sm:$0xff]
        %v2504 = vld [vmem:[%s192 + $0x46a0] sm:$0xff]
        %v2505 = vld [vmem:[%s192 + $0x46a8] sm:$0xff]
        %v2506 = vld [vmem:[%s192 + $0x46b0] sm:$0xff]
        %v2507 = vld [vmem:[%s192 + $0x46b8] sm:$0xff]
        %v2508 = vld [vmem:[%s192 + $0x46c0] sm:$0xff]
        %v2509 = vld [vmem:[%s192 + $0x46c8] sm:$0xff]
        %v2510 = vld [vmem:[%s192 + $0x46d0] sm:$0xff]
        %v2511 = vld [vmem:[%s192 + $0x46d8] sm:$0xff]
        %v2512 = vld [vmem:[%s192 + $0x46e0] sm:$0xff]
        %v2513 = vld [vmem:[%s192 + $0x46e8] sm:$0xff]
        %v2514 = vld [vmem:[%s192 + $0x46f0] sm:$0xff]
        %v2515 = vld [vmem:[%s192 + $0x46f8] sm:$0xff]
        %v2516 = vld [vmem:[%s192 + $0x4700] sm:$0xff]
        %v2517 = vld [vmem:[%s192 + $0x4708] sm:$0xff]
        %v2518 = vld [vmem:[%s192 + $0x4710] sm:$0xff]
        %v2519 = vld [vmem:[%s192 + $0x4718] sm:$0xff]
        %v2520 = vld [vmem:[%s192 + $0x4720] sm:$0xff]
        %v2521 = vld [vmem:[%s192 + $0x4728] sm:$0xff]
        %v2522 = vld [vmem:[%s192 + $0x4730] sm:$0xff]
        %v2523 = vld [vmem:[%s192 + $0x4738] sm:$0xff]
        %v2524 = vld [vmem:[%s192 + $0x4740] sm:$0xff]
        %v2525 = vld [vmem:[%s192 + $0x4748] sm:$0xff]
        %v2526 = vld [vmem:[%s192 + $0x4750] sm:$0xff]
        %v2527 = vld [vmem:[%s192 + $0x4758] sm:$0xff]
        %v2528 = vld [vmem:[%s192 + $0x4760] sm:$0xff]
        %v2529 = vld [vmem:[%s192 + $0x4768] sm:$0xff]
        %v2530 = vld [vmem:[%s192 + $0x4770] sm:$0xff]
        %v2531 = vld [vmem:[%s192 + $0x4778] sm:$0xff]
        %v2532 = vld [vmem:[%s192 + $0x4780] sm:$0xff]
        %v2533 = vld [vmem:[%s192 + $0x4788] sm:$0xff]
        %v2534 = vld [vmem:[%s192 + $0x4790] sm:$0xff]
        %v2535 = vld [vmem:[%s192 + $0x4798] sm:$0xff]
        %v2536 = vld [vmem:[%s192 + $0x47a0] sm:$0xff]
        %v2537 = vld [vmem:[%s192 + $0x47a8] sm:$0xff]
        %v2538 = vld [vmem:[%s192 + $0x47b0] sm:$0xff]
        %v2539 = vld [vmem:[%s192 + $0x47b8] sm:$0xff]
        %v2540 = vld [vmem:[%s192 + $0x47c0] sm:$0xff]
        %v2541 = vld [vmem:[%s192 + $0x47c8] sm:$0xff]
        %v2542 = vld [vmem:[%s192 + $0x47d0] sm:$0xff]
        %v2543 = vld [vmem:[%s192 + $0x47d8] sm:$0xff]
        %v2544 = vld [vmem:[%s192 + $0x47e0] sm:$0xff]
        %v2545 = vld [vmem:[%s192 + $0x47e8] sm:$0xff]
        %v2546 = vld [vmem:[%s192 + $0x47f0] sm:$0xff]
        %v2547 = vld [vmem:[%s192 + $0x47f8] sm:$0xff]
        %v2548 = vld [vmem:[%s192 + $0x4800] sm:$0xff]
        %v2549 = vld [vmem:[%s192 + $0x4808] sm:$0xff]
        %v2550 = vld [vmem:[%s192 + $0x4810] sm:$0xff]
        %v2551 = vld [vmem:[%s192 + $0x4818] sm:$0xff]
        %v2552 = vld [vmem:[%s192 + $0x4820] sm:$0xff]
        %v2553 = vld [vmem:[%s192 + $0x4828] sm:$0xff]
        %v2554 = vld [vmem:[%s192 + $0x4830] sm:$0xff]
        %v2555 = vld [vmem:[%s192 + $0x4838] sm:$0xff]
        %v2556 = vld [vmem:[%s192 + $0x4840] sm:$0xff]
        %v2557 = vld [vmem:[%s192 + $0x4848] sm:$0xff]
        %v2558 = vld [vmem:[%s192 + $0x4850] sm:$0xff]
        %v2559 = vld [vmem:[%s192 + $0x4858] sm:$0xff]
        %v2560 = vld [vmem:[%s192 + $0x4860] sm:$0xff]
        %v2561 = vld [vmem:[%s192 + $0x4868] sm:$0xff]
        %v2562 = vld [vmem:[%s192 + $0x4870] sm:$0xff]
        %v2563 = vld [vmem:[%s192 + $0x4878] sm:$0xff]
        %v2564 = vld [vmem:[%s192 + $0x4880] sm:$0xff]
        %v2565 = vld [vmem:[%s192 + $0x4888] sm:$0xff]
        %v2566 = vld [vmem:[%s192 + $0x4890] sm:$0xff]
        %v2567 = vld [vmem:[%s192 + $0x4898] sm:$0xff]
        %v2568 = vld [vmem:[%s192 + $0x48a0] sm:$0xff]
        %v2569 = vld [vmem:[%s192 + $0x48a8] sm:$0xff]
        %v2570 = vld [vmem:[%s192 + $0x48b0] sm:$0xff]
        %v2571 = vld [vmem:[%s192 + $0x48b8] sm:$0xff]
        %v2572 = vld [vmem:[%s192 + $0x48c0] sm:$0xff]
        %v2573 = vld [vmem:[%s192 + $0x48c8] sm:$0xff]
        %v2574 = vld [vmem:[%s192 + $0x48d0] sm:$0xff]
        %v2575 = vld [vmem:[%s192 + $0x48d8] sm:$0xff]
        %v2576 = vld [vmem:[%s192 + $0x48e0] sm:$0xff]
        %v2577 = vld [vmem:[%s192 + $0x48e8] sm:$0xff]
        %v2578 = vld [vmem:[%s192 + $0x48f0] sm:$0xff]
        %v2579 = vld [vmem:[%s192 + $0x48f8] sm:$0xff]
        %v2580 = vld [vmem:[%s192 + $0x4900] sm:$0xff]
        %v2581 = vld [vmem:[%s192 + $0x4908] sm:$0xff]
        %v2582 = vld [vmem:[%s192 + $0x4910] sm:$0xff]
        %v2583 = vld [vmem:[%s192 + $0x4918] sm:$0xff]
        %v2584 = vld [vmem:[%s192 + $0x4920] sm:$0xff]
        %v2585 = vld [vmem:[%s192 + $0x4928] sm:$0xff]
        %v2586 = vld [vmem:[%s192 + $0x4930] sm:$0xff]
        %v2587 = vld [vmem:[%s192 + $0x4938] sm:$0xff]
        %v2588 = vld [vmem:[%s192 + $0x4940] sm:$0xff]
        %v2589 = vld [vmem:[%s192 + $0x4948] sm:$0xff]
        %v2590 = vld [vmem:[%s192 + $0x4950] sm:$0xff]
        %v2591 = vld [vmem:[%s192 + $0x4958] sm:$0xff]
        %v2592 = vld [vmem:[%s192 + $0x4960] sm:$0xff]
        %v2593 = vld [vmem:[%s192 + $0x4968] sm:$0xff]
        %v2594 = vld [vmem:[%s192 + $0x4970] sm:$0xff]
        %v2595 = vld [vmem:[%s192 + $0x4978] sm:$0xff]
        %v2596 = vld [vmem:[%s192 + $0x4980] sm:$0xff]
        %v2597 = vld [vmem:[%s192 + $0x4988] sm:$0xff]
        %v2598 = vld [vmem:[%s192 + $0x4990] sm:$0xff]
        %v2599 = vld [vmem:[%s192 + $0x4998] sm:$0xff]
        %v2600 = vld [vmem:[%s192 + $0x49a0] sm:$0xff]
        %v2601 = vld [vmem:[%s192 + $0x49a8] sm:$0xff]
        %v2602 = vld [vmem:[%s192 + $0x49b0] sm:$0xff]
        %v2603 = vld [vmem:[%s192 + $0x49b8] sm:$0xff]
        %v2604 = vld [vmem:[%s192 + $0x49c0] sm:$0xff]
        %v2605 = vld [vmem:[%s192 + $0x49c8] sm:$0xff]
        %v2606 = vld [vmem:[%s192 + $0x49d0] sm:$0xff]
        %v2607 = vld [vmem:[%s192 + $0x49d8] sm:$0xff]
        %v2608 = vld [vmem:[%s192 + $0x49e0] sm:$0xff]
        %v2609 = vld [vmem:[%s192 + $0x49e8] sm:$0xff]
        %v2610 = vld [vmem:[%s192 + $0x49f0] sm:$0xff]
        %v2611 = vld [vmem:[%s192 + $0x49f8] sm:$0xff]
        %v2612 = vld [vmem:[%s192 + $0x4a00] sm:$0xff]
        %v2613 = vld [vmem:[%s192 + $0x4a08] sm:$0xff]
        %v2614 = vld [vmem:[%s192 + $0x4a10] sm:$0xff]
        %v2615 = vld [vmem:[%s192 + $0x4a18] sm:$0xff]
        %v2616 = vld [vmem:[%s192 + $0x4a20] sm:$0xff]
        %v2617 = vld [vmem:[%s192 + $0x4a28] sm:$0xff]
        %v2618 = vld [vmem:[%s192 + $0x4a30] sm:$0xff]
        %v2619 = vld [vmem:[%s192 + $0x4a38] sm:$0xff]
        %v2620 = vld [vmem:[%s192 + $0x4a40] sm:$0xff]
        %v2621 = vld [vmem:[%s192 + $0x4a48] sm:$0xff]
        %v2622 = vld [vmem:[%s192 + $0x4a50] sm:$0xff]
        %v2623 = vld [vmem:[%s192 + $0x4a58] sm:$0xff]
        %v2624 = vld [vmem:[%s192 + $0x4a60] sm:$0xff]
        %v2625 = vld [vmem:[%s192 + $0x4a68] sm:$0xff]
        %v2626 = vld [vmem:[%s192 + $0x4a70] sm:$0xff]
        %v2627 = vld [vmem:[%s192 + $0x4a78] sm:$0xff]
        %v2628 = vld [vmem:[%s192 + $0x4a80] sm:$0xff]
        %v2629 = vld [vmem:[%s192 + $0x4a88] sm:$0xff]
        %v2630 = vld [vmem:[%s192 + $0x4a90] sm:$0xff]
        %v2631 = vld [vmem:[%s192 + $0x4a98] sm:$0xff]
        %v2632 = vld [vmem:[%s192 + $0x4aa0] sm:$0xff]
        %v2633 = vld [vmem:[%s192 + $0x4aa8] sm:$0xff]
        %v2634 = vld [vmem:[%s192 + $0x4ab0] sm:$0xff]
        %v2635 = vld [vmem:[%s192 + $0x4ab8] sm:$0xff]
        %v2636 = vld [vmem:[%s192 + $0x4ac0] sm:$0xff]
        %v2637 = vld [vmem:[%s192 + $0x4ac8] sm:$0xff]
        %v2638 = vld [vmem:[%s192 + $0x4ad0] sm:$0xff]
        %v2639 = vld [vmem:[%s192 + $0x4ad8] sm:$0xff]
        %v2640 = vld [vmem:[%s192 + $0x4ae0] sm:$0xff]
        %v2641 = vld [vmem:[%s192 + $0x4ae8] sm:$0xff]
        %v2642 = vld [vmem:[%s192 + $0x4af0] sm:$0xff]
        %v2643 = vld [vmem:[%s192 + $0x4af8] sm:$0xff]
        %v2644 = vld [vmem:[%s192 + $0x4b00] sm:$0xff]
        %v2645 = vld [vmem:[%s192 + $0x4b08] sm:$0xff]
        %v2646 = vld [vmem:[%s192 + $0x4b10] sm:$0xff]
        %v2647 = vld [vmem:[%s192 + $0x4b18] sm:$0xff]
        %v2648 = vld [vmem:[%s192 + $0x4b20] sm:$0xff]
        %v2649 = vld [vmem:[%s192 + $0x4b28] sm:$0xff]
        %v2650 = vld [vmem:[%s192 + $0x4b30] sm:$0xff]
        %v2651 = vld [vmem:[%s192 + $0x4b38] sm:$0xff]
        %v2652 = vld [vmem:[%s192 + $0x4b40] sm:$0xff]
        %v2653 = vld [vmem:[%s192 + $0x4b48] sm:$0xff]
        %v2654 = vld [vmem:[%s192 + $0x4b50] sm:$0xff]
        %v2655 = vld [vmem:[%s192 + $0x4b58] sm:$0xff]
        %v2656 = vld [vmem:[%s192 + $0x4b60] sm:$0xff]
        %v2657 = vld [vmem:[%s192 + $0x4b68] sm:$0xff]
        %v2658 = vld [vmem:[%s192 + $0x4b70] sm:$0xff]
        %v2659 = vld [vmem:[%s192 + $0x4b78] sm:$0xff]
        %v2660 = vld [vmem:[%s192 + $0x4b80] sm:$0xff]
        %v2661 = vld [vmem:[%s192 + $0x4b88] sm:$0xff]
        %v2662 = vld [vmem:[%s192 + $0x4b90] sm:$0xff]
        %v2663 = vld [vmem:[%s192 + $0x4b98] sm:$0xff]
        %v2664 = vld [vmem:[%s192 + $0x4ba0] sm:$0xff]
        %v2665 = vld [vmem:[%s192 + $0x4ba8] sm:$0xff]
        %v2666 = vld [vmem:[%s192 + $0x4bb0] sm:$0xff]
        %v2667 = vld [vmem:[%s192 + $0x4bb8] sm:$0xff]
        %v2668 = vld [vmem:[%s192 + $0x4bc0] sm:$0xff]
        %v2669 = vld [vmem:[%s192 + $0x4bc8] sm:$0xff]
        %v2670 = vld [vmem:[%s192 + $0x4bd0] sm:$0xff]
        %v2671 = vld [vmem:[%s192 + $0x4bd8] sm:$0xff]
        %v2672 = vld [vmem:[%s192 + $0x4be0] sm:$0xff]
        %v2673 = vld [vmem:[%s192 + $0x4be8] sm:$0xff]
        %v2674 = vld [vmem:[%s192 + $0x4bf0] sm:$0xff]
        %v2675 = vld [vmem:[%s192 + $0x4bf8] sm:$0xff]
        %v2676 = vld [vmem:[%s192 + $0x4c00] sm:$0xff]
        %v2677 = vld [vmem:[%s192 + $0x4c08] sm:$0xff]
        %v2678 = vld [vmem:[%s192 + $0x4c10] sm:$0xff]
        %v2679 = vld [vmem:[%s192 + $0x4c18] sm:$0xff]
        %v2680 = vld [vmem:[%s192 + $0x4c20] sm:$0xff]
        %v2681 = vld [vmem:[%s192 + $0x4c28] sm:$0xff]
        %v2682 = vld [vmem:[%s192 + $0x4c30] sm:$0xff]
        %v2683 = vld [vmem:[%s192 + $0x4c38] sm:$0xff]
        %v2684 = vld [vmem:[%s192 + $0x4c40] sm:$0xff]
        %v2685 = vld [vmem:[%s192 + $0x4c48] sm:$0xff]
        %v2686 = vld [vmem:[%s192 + $0x4c50] sm:$0xff]
        %v2687 = vld [vmem:[%s192 + $0x4c58] sm:$0xff]
        %v2688 = vld [vmem:[%s192 + $0x4c60] sm:$0xff]
        %v2689 = vld [vmem:[%s192 + $0x4c68] sm:$0xff]
        %v2690 = vld [vmem:[%s192 + $0x4c70] sm:$0xff]
        %v2691 = vld [vmem:[%s192 + $0x4c78] sm:$0xff]
        %v2692 = vld [vmem:[%s192 + $0x4c80] sm:$0xff]
        %v2693 = vld [vmem:[%s192 + $0x4c88] sm:$0xff]
        %v2694 = vld [vmem:[%s192 + $0x4c90] sm:$0xff]
        %v2695 = vld [vmem:[%s192 + $0x4c98] sm:$0xff]
        %v2696 = vld [vmem:[%s192 + $0x4ca0] sm:$0xff]
        %v2697 = vld [vmem:[%s192 + $0x4ca8] sm:$0xff]
        %v2698 = vld [vmem:[%s192 + $0x4cb0] sm:$0xff]
        %v2699 = vld [vmem:[%s192 + $0x4cb8] sm:$0xff]
        %v2700 = vld [vmem:[%s192 + $0x4cc0] sm:$0xff]
        %v2701 = vld [vmem:[%s192 + $0x4cc8] sm:$0xff]
        %v2702 = vld [vmem:[%s192 + $0x4cd0] sm:$0xff]
        %v2703 = vld [vmem:[%s192 + $0x4cd8] sm:$0xff]
        %v2704 = vld [vmem:[%s192 + $0x4ce0] sm:$0xff]
        %v2705 = vld [vmem:[%s192 + $0x4ce8] sm:$0xff]
        %v2706 = vld [vmem:[%s192 + $0x4cf0] sm:$0xff]
        %v2707 = vld [vmem:[%s192 + $0x4cf8] sm:$0xff]
        %v2708 = vld [vmem:[%s192 + $0x4d00] sm:$0xff]
        %v2709 = vld [vmem:[%s192 + $0x4d08] sm:$0xff]
        %v2710 = vld [vmem:[%s192 + $0x4d10] sm:$0xff]
        %v2711 = vld [vmem:[%s192 + $0x4d18] sm:$0xff]
        %v2712 = vld [vmem:[%s192 + $0x4d20] sm:$0xff]
        %v2713 = vld [vmem:[%s192 + $0x4d28] sm:$0xff]
        %v2714 = vld [vmem:[%s192 + $0x4d30] sm:$0xff]
        %v2715 = vld [vmem:[%s192 + $0x4d38] sm:$0xff]
        %v2716 = vld [vmem:[%s192 + $0x4d40] sm:$0xff]
        %v2717 = vld [vmem:[%s192 + $0x4d48] sm:$0xff]
        %v2718 = vld [vmem:[%s192 + $0x4d50] sm:$0xff]
        %v2719 = vld [vmem:[%s192 + $0x4d58] sm:$0xff]
        %v2720 = vld [vmem:[%s192 + $0x4d60] sm:$0xff]
        %v2721 = vld [vmem:[%s192 + $0x4d68] sm:$0xff]
        %v2722 = vld [vmem:[%s192 + $0x4d70] sm:$0xff]
        %v2723 = vld [vmem:[%s192 + $0x4d78] sm:$0xff]
        %v2724 = vld [vmem:[%s192 + $0x4d80] sm:$0xff]
        %v2725 = vld [vmem:[%s192 + $0x4d88] sm:$0xff]
        %v2726 = vld [vmem:[%s192 + $0x4d90] sm:$0xff]
        %v2727 = vld [vmem:[%s192 + $0x4d98] sm:$0xff]
        %v2728 = vld [vmem:[%s192 + $0x4da0] sm:$0xff]
        %v2729 = vld [vmem:[%s192 + $0x4da8] sm:$0xff]
        %v2730 = vld [vmem:[%s192 + $0x4db0] sm:$0xff]
        %v2731 = vld [vmem:[%s192 + $0x4db8] sm:$0xff]
        %v2732 = vld [vmem:[%s192 + $0x4dc0] sm:$0xff]
        %v2733 = vld [vmem:[%s192 + $0x4dc8] sm:$0xff]
        %v2734 = vld [vmem:[%s192 + $0x4dd0] sm:$0xff]
        %v2735 = vld [vmem:[%s192 + $0x4dd8] sm:$0xff]
        %v2736 = vld [vmem:[%s192 + $0x4de0] sm:$0xff]
        %v2737 = vld [vmem:[%s192 + $0x4de8] sm:$0xff]
        %v2738 = vld [vmem:[%s192 + $0x4df0] sm:$0xff]
        %v2739 = vld [vmem:[%s192 + $0x4df8] sm:$0xff]
        %v2740 = vld [vmem:[%s192 + $0x4e00] sm:$0xff]
        %v2741 = vld [vmem:[%s192 + $0x4e08] sm:$0xff]
        %v2742 = vld [vmem:[%s192 + $0x4e10] sm:$0xff]
        %v2743 = vld [vmem:[%s192 + $0x4e18] sm:$0xff]
        %v2744 = vld [vmem:[%s192 + $0x4e20] sm:$0xff]
        %v2745 = vld [vmem:[%s192 + $0x4e28] sm:$0xff]
        %v2746 = vld [vmem:[%s192 + $0x4e30] sm:$0xff]
        %v2747 = vld [vmem:[%s192 + $0x4e38] sm:$0xff]
        %v2748 = vld [vmem:[%s192 + $0x4e40] sm:$0xff]
        %v2749 = vld [vmem:[%s192 + $0x4e48] sm:$0xff]
        %v2750 = vld [vmem:[%s192 + $0x4e50] sm:$0xff]
        %v2751 = vld [vmem:[%s192 + $0x4e58] sm:$0xff]
        %v2752 = vld [vmem:[%s192 + $0x4e60] sm:$0xff]
        %v2753 = vld [vmem:[%s192 + $0x4e68] sm:$0xff]
        %v2754 = vld [vmem:[%s192 + $0x4e70] sm:$0xff]
        %v2755 = vld [vmem:[%s192 + $0x4e78] sm:$0xff]
        %v2756 = vld [vmem:[%s192 + $0x4e80] sm:$0xff]
        %v2757 = vld [vmem:[%s192 + $0x4e88] sm:$0xff]
        %v2758 = vld [vmem:[%s192 + $0x4e90] sm:$0xff]
        %v2759 = vld [vmem:[%s192 + $0x4e98] sm:$0xff]
        %v2760 = vld [vmem:[%s192 + $0x4ea0] sm:$0xff]
        %v2761 = vld [vmem:[%s192 + $0x4ea8] sm:$0xff]
        %v2762 = vld [vmem:[%s192 + $0x4eb0] sm:$0xff]
        %v2763 = vld [vmem:[%s192 + $0x4eb8] sm:$0xff]
        %v2764 = vld [vmem:[%s192 + $0x4ec0] sm:$0xff]
        %v2765 = vld [vmem:[%s192 + $0x4ec8] sm:$0xff]
        %v2766 = vld [vmem:[%s192 + $0x4ed0] sm:$0xff]
        %v2767 = vld [vmem:[%s192 + $0x4ed8] sm:$0xff]
        %v2768 = vld [vmem:[%s192 + $0x4ee0] sm:$0xff]
        %v2769 = vld [vmem:[%s192 + $0x4ee8] sm:$0xff]
        %v2770 = vld [vmem:[%s192 + $0x4ef0] sm:$0xff]
        %v2771 = vld [vmem:[%s192 + $0x4ef8] sm:$0xff]
        %v2772 = vld [vmem:[%s192 + $0x4f00] sm:$0xff]
        %v2773 = vld [vmem:[%s192 + $0x4f08] sm:$0xff]
        %v2774 = vld [vmem:[%s192 + $0x4f10] sm:$0xff]
        %v2775 = vld [vmem:[%s192 + $0x4f18] sm:$0xff]
        %v2776 = vld [vmem:[%s192 + $0x4f20] sm:$0xff]
        %v2777 = vld [vmem:[%s192 + $0x4f28] sm:$0xff]
        %v2778 = vld [vmem:[%s192 + $0x4f30] sm:$0xff]
        %v2779 = vld [vmem:[%s192 + $0x4f38] sm:$0xff]
        %v2780 = vld [vmem:[%s192 + $0x4f40] sm:$0xff]
        %v2781 = vld [vmem:[%s192 + $0x4f48] sm:$0xff]
        %v2782 = vld [vmem:[%s192 + $0x4f50] sm:$0xff]
        %v2783 = vld [vmem:[%s192 + $0x4f58] sm:$0xff]
        %v2784 = vld [vmem:[%s192 + $0x4f60] sm:$0xff]
        %v2785 = vld [vmem:[%s192 + $0x4f68] sm:$0xff]
        %v2786 = vld [vmem:[%s192 + $0x4f70] sm:$0xff]
        %v2787 = vld [vmem:[%s192 + $0x4f78] sm:$0xff]
        %v2788 = vld [vmem:[%s192 + $0x4f80] sm:$0xff]
        %v2789 = vld [vmem:[%s192 + $0x4f88] sm:$0xff]
        %v2790 = vld [vmem:[%s192 + $0x4f90] sm:$0xff]
        %v2791 = vld [vmem:[%s192 + $0x4f98] sm:$0xff]
        %v2792 = vld [vmem:[%s192 + $0x4fa0] sm:$0xff]
        %v2793 = vld [vmem:[%s192 + $0x4fa8] sm:$0xff]
        %v2794 = vld [vmem:[%s192 + $0x4fb0] sm:$0xff]
        %v2795 = vld [vmem:[%s192 + $0x4fb8] sm:$0xff]
        %v2796 = vld [vmem:[%s192 + $0x4fc0] sm:$0xff]
        %v2797 = vld [vmem:[%s192 + $0x4fc8] sm:$0xff]
        %v2798 = vld [vmem:[%s192 + $0x4fd0] sm:$0xff]
        %v2799 = vld [vmem:[%s192 + $0x4fd8] sm:$0xff]
        %v2800 = vld [vmem:[%s192 + $0x4fe0] sm:$0xff]
        %v2801 = vld [vmem:[%s192 + $0x4fe8] sm:$0xff]
        %v2802 = vld [vmem:[%s192 + $0x4ff0] sm:$0xff]
        %v2803 = vld [vmem:[%s192 + $0x4ff8] sm:$0xff]
        %v2804 = vld [vmem:[%s192 + $0x5000] sm:$0xff]
        %v2805 = vld [vmem:[%s192 + $0x5008] sm:$0xff]
        %v2806 = vld [vmem:[%s192 + $0x5010] sm:$0xff]
        %v2807 = vld [vmem:[%s192 + $0x5018] sm:$0xff]
        %v2808 = vld [vmem:[%s192 + $0x5020] sm:$0xff]
        %v2809 = vld [vmem:[%s192 + $0x5028] sm:$0xff]
        %v2810 = vld [vmem:[%s192 + $0x5030] sm:$0xff]
        %v2811 = vld [vmem:[%s192 + $0x5038] sm:$0xff]
        %v2812 = vld [vmem:[%s192 + $0x5040] sm:$0xff]
        %v2813 = vld [vmem:[%s192 + $0x5048] sm:$0xff]
        %v2814 = vld [vmem:[%s192 + $0x5050] sm:$0xff]
        %v2815 = vld [vmem:[%s192 + $0x5058] sm:$0xff]
        %v2816 = vld [vmem:[%s192 + $0x5060] sm:$0xff]
        %v2817 = vld [vmem:[%s192 + $0x5068] sm:$0xff]
        %v2818 = vld [vmem:[%s192 + $0x5070] sm:$0xff]
        %v2819 = vld [vmem:[%s192 + $0x5078] sm:$0xff]
        %v2820 = vld [vmem:[%s192 + $0x5080] sm:$0xff]
        %v2821 = vld [vmem:[%s192 + $0x5088] sm:$0xff]
        %v2822 = vld [vmem:[%s192 + $0x5090] sm:$0xff]
        %v2823 = vld [vmem:[%s192 + $0x5098] sm:$0xff]
        %v2824 = vld [vmem:[%s192 + $0x50a0] sm:$0xff]
        %v2825 = vld [vmem:[%s192 + $0x50a8] sm:$0xff]
        %v2826 = vld [vmem:[%s192 + $0x50b0] sm:$0xff]
        %v2827 = vld [vmem:[%s192 + $0x50b8] sm:$0xff]
        %v2828 = vld [vmem:[%s192 + $0x50c0] sm:$0xff]
        %v2829 = vld [vmem:[%s192 + $0x50c8] sm:$0xff]
        %v2830 = vld [vmem:[%s192 + $0x50d0] sm:$0xff]
        %v2831 = vld [vmem:[%s192 + $0x50d8] sm:$0xff]
        %v2832 = vld [vmem:[%s192 + $0x50e0] sm:$0xff]
        %v2833 = vld [vmem:[%s192 + $0x50e8] sm:$0xff]
        %v2834 = vld [vmem:[%s192 + $0x50f0] sm:$0xff]
        %v2835 = vld [vmem:[%s192 + $0x50f8] sm:$0xff]
        %v2836 = vld [vmem:[%s192 + $0x5100] sm:$0xff]
        %v2837 = vld [vmem:[%s192 + $0x5108] sm:$0xff]
        %v2838 = vld [vmem:[%s192 + $0x5110] sm:$0xff]
        %v2839 = vld [vmem:[%s192 + $0x5118] sm:$0xff]
        %v2840 = vld [vmem:[%s192 + $0x5120] sm:$0xff]
        %v2841 = vld [vmem:[%s192 + $0x5128] sm:$0xff]
        %v2842 = vld [vmem:[%s192 + $0x5130] sm:$0xff]
        %v2843 = vld [vmem:[%s192 + $0x5138] sm:$0xff]
        %v2844 = vld [vmem:[%s192 + $0x5140] sm:$0xff]
        %v2845 = vld [vmem:[%s192 + $0x5148] sm:$0xff]
        %v2846 = vld [vmem:[%s192 + $0x5150] sm:$0xff]
        %v2847 = vld [vmem:[%s192 + $0x5158] sm:$0xff]
        %v2848 = vld [vmem:[%s192 + $0x5160] sm:$0xff]
        %v2849 = vld [vmem:[%s192 + $0x5168] sm:$0xff]
        %v2850 = vld [vmem:[%s192 + $0x5170] sm:$0xff]
        %v2851 = vld [vmem:[%s192 + $0x5178] sm:$0xff]
        %v2852 = vld [vmem:[%s192 + $0x5180] sm:$0xff]
        %v2853 = vld [vmem:[%s192 + $0x5188] sm:$0xff]
        %v2854 = vld [vmem:[%s192 + $0x5190] sm:$0xff]
        %v2855 = vld [vmem:[%s192 + $0x5198] sm:$0xff]
        %v2856 = vld [vmem:[%s192 + $0x51a0] sm:$0xff]
        %v2857 = vld [vmem:[%s192 + $0x51a8] sm:$0xff]
        %v2858 = vld [vmem:[%s192 + $0x51b0] sm:$0xff]
        %v2859 = vld [vmem:[%s192 + $0x51b8] sm:$0xff]
        %v2860 = vld [vmem:[%s192 + $0x51c0] sm:$0xff]
        %v2861 = vld [vmem:[%s192 + $0x51c8] sm:$0xff]
        %v2862 = vld [vmem:[%s192 + $0x51d0] sm:$0xff]
        %v2863 = vld [vmem:[%s192 + $0x51d8] sm:$0xff]
        %v2864 = vld [vmem:[%s192 + $0x51e0] sm:$0xff]
        %v2865 = vld [vmem:[%s192 + $0x51e8] sm:$0xff]
        %v2866 = vld [vmem:[%s192 + $0x51f0] sm:$0xff]
        %v2867 = vld [vmem:[%s192 + $0x51f8] sm:$0xff]
        %v2868 = vld [vmem:[%s192 + $0x5200] sm:$0xff]
        %v2869 = vld [vmem:[%s192 + $0x5208] sm:$0xff]
        %v2870 = vld [vmem:[%s192 + $0x5210] sm:$0xff]
        %v2871 = vld [vmem:[%s192 + $0x5218] sm:$0xff]
        %v2872 = vld [vmem:[%s192 + $0x5220] sm:$0xff]
        %v2873 = vld [vmem:[%s192 + $0x5228] sm:$0xff]
        %v2874 = vld [vmem:[%s192 + $0x5230] sm:$0xff]
        %v2875 = vld [vmem:[%s192 + $0x5238] sm:$0xff]
        %v2876 = vld [vmem:[%s192 + $0x5240] sm:$0xff]
        %v2877 = vld [vmem:[%s192 + $0x5248] sm:$0xff]
        %v2878 = vld [vmem:[%s192 + $0x5250] sm:$0xff]
        %v2879 = vld [vmem:[%s192 + $0x5258] sm:$0xff]
        %v2880 = vld [vmem:[%s192 + $0x5260] sm:$0xff]
        %v2881 = vld [vmem:[%s192 + $0x5268] sm:$0xff]
        %v2882 = vld [vmem:[%s192 + $0x5270] sm:$0xff]
        %v2883 = vld [vmem:[%s192 + $0x5278] sm:$0xff]
        %v2884 = vld [vmem:[%s192 + $0x5280] sm:$0xff]
        %v2885 = vld [vmem:[%s192 + $0x5288] sm:$0xff]
        %v2886 = vld [vmem:[%s192 + $0x5290] sm:$0xff]
        %v2887 = vld [vmem:[%s192 + $0x5298] sm:$0xff]
        %v2888 = vld [vmem:[%s192 + $0x52a0] sm:$0xff]
        %v2889 = vld [vmem:[%s192 + $0x52a8] sm:$0xff]
        %v2890 = vld [vmem:[%s192 + $0x52b0] sm:$0xff]
        %v2891 = vld [vmem:[%s192 + $0x52b8] sm:$0xff]
        %v2892 = vld [vmem:[%s192 + $0x52c0] sm:$0xff]
        %v2893 = vld [vmem:[%s192 + $0x52c8] sm:$0xff]
        %v2894 = vld [vmem:[%s192 + $0x52d0] sm:$0xff]
        %v2895 = vld [vmem:[%s192 + $0x52d8] sm:$0xff]
        %v2896 = vld [vmem:[%s192 + $0x52e0] sm:$0xff]
        %v2897 = vld [vmem:[%s192 + $0x52e8] sm:$0xff]
        %v2898 = vld [vmem:[%s192 + $0x52f0] sm:$0xff]
        %v2899 = vld [vmem:[%s192 + $0x52f8] sm:$0xff]
        %v2900 = vld [vmem:[%s192 + $0x5300] sm:$0xff]
        %v2901 = vld [vmem:[%s192 + $0x5308] sm:$0xff]
        %v2902 = vld [vmem:[%s192 + $0x5310] sm:$0xff]
        %v2903 = vld [vmem:[%s192 + $0x5318] sm:$0xff]
        %v2904 = vld [vmem:[%s192 + $0x5320] sm:$0xff]
        %v2905 = vld [vmem:[%s192 + $0x5328] sm:$0xff]
        %v2906 = vld [vmem:[%s192 + $0x5330] sm:$0xff]
        %v2907 = vld [vmem:[%s192 + $0x5338] sm:$0xff]
        %v2908 = vld [vmem:[%s192 + $0x5340] sm:$0xff]
        %v2909 = vld [vmem:[%s192 + $0x5348] sm:$0xff]
        %v2910 = vld [vmem:[%s192 + $0x5350] sm:$0xff]
        %v2911 = vld [vmem:[%s192 + $0x5358] sm:$0xff]
        %v2912 = vld [vmem:[%s192 + $0x5360] sm:$0xff]
        %v2913 = vld [vmem:[%s192 + $0x5368] sm:$0xff]
        %v2914 = vld [vmem:[%s192 + $0x5370] sm:$0xff]
        %v2915 = vld [vmem:[%s192 + $0x5378] sm:$0xff]
        %v2916 = vld [vmem:[%s192 + $0x5380] sm:$0xff]
        %v2917 = vld [vmem:[%s192 + $0x5388] sm:$0xff]
        %v2918 = vld [vmem:[%s192 + $0x5390] sm:$0xff]
        %v2919 = vld [vmem:[%s192 + $0x5398] sm:$0xff]
        %v2920 = vld [vmem:[%s192 + $0x53a0] sm:$0xff]
        %v2921 = vld [vmem:[%s192 + $0x53a8] sm:$0xff]
        %v2922 = vld [vmem:[%s192 + $0x53b0] sm:$0xff]
        %v2923 = vld [vmem:[%s192 + $0x53b8] sm:$0xff]
        %v2924 = vld [vmem:[%s192 + $0x53c0] sm:$0xff]
        %v2925 = vld [vmem:[%s192 + $0x53c8] sm:$0xff]
        %v2926 = vld [vmem:[%s192 + $0x53d0] sm:$0xff]
        %v2927 = vld [vmem:[%s192 + $0x53d8] sm:$0xff]
        %v2928 = vld [vmem:[%s192 + $0x53e0] sm:$0xff]
        %v2929 = vld [vmem:[%s192 + $0x53e8] sm:$0xff]
        %v2930 = vld [vmem:[%s192 + $0x53f0] sm:$0xff]
        %v2931 = vld [vmem:[%s192 + $0x53f8] sm:$0xff]
        %2953 = vst [vmem:[#allocation1] ss:$4 sm:$0xff] %v223
        %s2954 = scalar_lea.vmem [#allocation1], 32
        %2955 = vst [vmem:[%s2954] ss:$4 sm:$0xff] %v224
        %v2956 = vld.sshfl [vmem:[#allocation1] sm:$0xff pattern:$0x73625140]
        %v2957 = vld.sshfl [vmem:[#allocation1 + $0x8] sm:$0xff pattern:$0x73625140]
        %v2958 = vld.sshfl [vmem:[#allocation1 + $0x10] sm:$0xff pattern:$0x73625140]
        %v2959 = vld.sshfl [vmem:[#allocation1 + $0x18] sm:$0xff pattern:$0x73625140]
        %v2960 = vld.sshfl [vmem:[#allocation1 + $0x20] sm:$0xff pattern:$0x73625140]
        %v2961 = vld.sshfl [vmem:[#allocation1 + $0x28] sm:$0xff pattern:$0x73625140]
        %v2962 = vld.sshfl [vmem:[#allocation1 + $0x30] sm:$0xff pattern:$0x73625140]
        %v2963 = vld.sshfl [vmem:[#allocation1 + $0x38] sm:$0xff pattern:$0x73625140]
        %2964 = vst [vmem:[#allocation1] ss:$4 sm:$0xff] %v225
        %2965 = vst [vmem:[%s2954] ss:$4 sm:$0xff] %v226
        %v2966 = vld.sshfl [vmem:[#allocation1] sm:$0xff pattern:$0x73625140]
        %v2967 = vld.sshfl [vmem:[#allocation1 + $0x8] sm:$0xff pattern:$0x73625140]
        %v2968 = vld.sshfl [vmem:[#allocation1 + $0x10] sm:$0xff pattern:$0x73625140]
        %v2969 = vld.sshfl [vmem:[#allocation1 + $0x18] sm:$0xff pattern:$0x73625140]
        %v2970 = vld.sshfl [vmem:[#allocation1 + $0x20] sm:$0xff pattern:$0x73625140]
        %v2971 = vld.sshfl [vmem:[#allocation1 + $0x28] sm:$0xff pattern:$0x73625140]
        %v2972 = vld.sshfl [vmem:[#allocation1 + $0x30] sm:$0xff pattern:$0x73625140]
        %v2973 = vld.sshfl [vmem:[#allocation1 + $0x38] sm:$0xff pattern:$0x73625140]
        %2974 = vst [vmem:[#allocation1] ss:$4 sm:$0xff] %v227
        %2975 = vst [vmem:[%s2954] ss:$4 sm:$0xff] %v228
        %v2976 = vld.sshfl [vmem:[#allocation1] sm:$0xff pattern:$0x73625140]
        %v2977 = vld.sshfl [vmem:[#allocation1 + $0x8] sm:$0xff pattern:$0x73625140]
        %v2978 = vld.sshfl [vmem:[#allocation1 + $0x10] sm:$0xff pattern:$0x73625140]
        %v2979 = vld.sshfl [vmem:[#allocation1 + $0x18] sm:$0xff pattern:$0x73625140]
        %v2980 = vld.sshfl [vmem:[#allocation1 + $0x20] sm:$0xff pattern:$0x73625140]
        %v2981 = vld.sshfl [vmem:[#allocation1 + $0x28] sm:$0xff pattern:$0x73625140]
        %v2982 = vld.sshfl [vmem:[#allocation1 + $0x30] sm:$0xff pattern:$0x73625140]
        %v2983 = vld.sshfl [vmem:[#allocation1 + $0x38] sm:$0xff pattern:$0x73625140]
        %2984 = vst [vmem:[#allocation1] ss:$4 sm:$0xff] %v229
        %2985 = vst [vmem:[%s2954] ss:$4 sm:$0xff] %v230
        %v2986 = vld.sshfl [vmem:[#allocation1] sm:$0xff pattern:$0x73625140]
        %v2987 = vld.sshfl [vmem:[#allocation1 + $0x8] sm:$0xff pattern:$0x73625140]
        %v2988 = vld.sshfl [vmem:[#allocation1 + $0x10] sm:$0xff pattern:$0x73625140]
        %v2989 = vld.sshfl [vmem:[#allocation1 + $0x18] sm:$0xff pattern:$0x73625140]
        %v2990 = vld.sshfl [vmem:[#allocation1 + $0x20] sm:$0xff pattern:$0x73625140]
        %v2991 = vld.sshfl [vmem:[#allocation1 + $0x28] sm:$0xff pattern:$0x73625140]
        %v2992 = vld.sshfl [vmem:[#allocation1 + $0x30] sm:$0xff pattern:$0x73625140]
        %v2993 = vld.sshfl [vmem:[#allocation1 + $0x38] sm:$0xff pattern:$0x73625140]
        %2994 = vst [vmem:[#allocation1] ss:$4 sm:$0xff] %v231
        %2995 = vst [vmem:[%s2954] ss:$4 sm:$0xff] %v232
        %v2996 = vld.sshfl [vmem:[#allocation1] sm:$0xff pattern:$0x73625140]
        %v2997 = vld.sshfl [vmem:[#allocation1 + $0x8] sm:$0xff pattern:$0x73625140]
        %v2998 = vld.sshfl [vmem:[#allocation1 + $0x10] sm:$0xff pattern:$0x73625140]
        %v2999 = vld.sshfl [vmem:[#allocation1 + $0x18] sm:$0xff pattern:$0x73625140]
        %v3000 = vld.sshfl [vmem:[#allocation1 + $0x20] sm:$0xff pattern:$0x73625140]
        %v3001 = vld.sshfl [vmem:[#allocation1 + $0x28] sm:$0xff pattern:$0x73625140]
        %v3002 = vld.sshfl [vmem:[#allocation1 + $0x30] sm:$0xff pattern:$0x73625140]
        %v3003 = vld.sshfl [vmem:[#allocation1 + $0x38] sm:$0xff pattern:$0x73625140]
        %3004 = vst [vmem:[#allocation1] ss:$4 sm:$0xff] %v233
        %3005 = vst [vmem:[%s2954] ss:$4 sm:$0xff] %v234
        %v3006 = vld.sshfl [vmem:[#allocation1] sm:$0xff pattern:$0x73625140]
        %v3007 = vld.sshfl [vmem:[#allocation1 + $0x8] sm:$0xff pattern:$0x73625140]
        %v3008 = vld.sshfl [vmem:[#allocation1 + $0x10] sm:$0xff pattern:$0x73625140]
        %v3009 = vld.sshfl [vmem:[#allocation1 + $0x18] sm:$0xff pattern:$0x73625140]
        %v3010 = vld.sshfl [vmem:[#allocation1 + $0x20] sm:$0xff pattern:$0x73625140]
        %v3011 = vld.sshfl [vmem:[#allocation1 + $0x28] sm:$0xff pattern:$0x73625140]
        %v3012 = vld.sshfl [vmem:[#allocation1 + $0x30] sm:$0xff pattern:$0x73625140]
        %v3013 = vld.sshfl [vmem:[#allocation1 + $0x38] sm:$0xff pattern:$0x73625140]
        %3014 = vst [vmem:[#allocation1] ss:$4 sm:$0xff] %v235
        %3015 = vst [vmem:[%s2954] ss:$4 sm:$0xff] %v236
        %v3016 = vld.sshfl [vmem:[#allocation1] sm:$0xff pattern:$0x73625140]
        %v3017 = vld.sshfl [vmem:[#allocation1 + $0x8] sm:$0xff pattern:$0x73625140]
        %v3018 = vld.sshfl [vmem:[#allocation1 + $0x10] sm:$0xff pattern:$0x73625140]
        %v3019 = vld.sshfl [vmem:[#allocation1 + $0x18] sm:$0xff pattern:$0x73625140]
        %v3020 = vld.sshfl [vmem:[#allocation1 + $0x20] sm:$0xff pattern:$0x73625140]
        %v3021 = vld.sshfl [vmem:[#allocation1 + $0x28] sm:$0xff pattern:$0x73625140]
        %v3022 = vld.sshfl [vmem:[#allocation1 + $0x30] sm:$0xff pattern:$0x73625140]
        %v3023 = vld.sshfl [vmem:[#allocation1 + $0x38] sm:$0xff pattern:$0x73625140]
        %3024 = vst [vmem:[#allocation1] ss:$4 sm:$0xff] %v237
        %3025 = vst [vmem:[%s2954] ss:$4 sm:$0xff] %v238
        %v3026 = vld.sshfl [vmem:[#allocation1] sm:$0xff pattern:$0x73625140]
        %v3027 = vld.sshfl [vmem:[#allocation1 + $0x8] sm:$0xff pattern:$0x73625140]
        %v3028 = vld.sshfl [vmem:[#allocation1 + $0x10] sm:$0xff pattern:$0x73625140]
        %v3029 = vld.sshfl [vmem:[#allocation1 + $0x18] sm:$0xff pattern:$0x73625140]
        %v3030 = vld.sshfl [vmem:[#allocation1 + $0x20] sm:$0xff pattern:$0x73625140]
        %v3031 = vld.sshfl [vmem:[#allocation1 + $0x28] sm:$0xff pattern:$0x73625140]
        %v3032 = vld.sshfl [vmem:[#allocation1 + $0x30] sm:$0xff pattern:$0x73625140]
        %v3033 = vld.sshfl [vmem:[#allocation1 + $0x38] sm:$0xff pattern:$0x73625140]
        %3034 = vst [vmem:[#allocation1] ss:$4 sm:$0xff] %v239
        %3035 = vst [vmem:[%s2954] ss:$4 sm:$0xff] %v240
        %v3036 = vld.sshfl [vmem:[#allocation1] sm:$0xff pattern:$0x73625140]
        %v3037 = vld.sshfl [vmem:[#allocation1 + $0x8] sm:$0xff pattern:$0x73625140]
        %v3038 = vld.sshfl [vmem:[#allocation1 + $0x10] sm:$0xff pattern:$0x73625140]
        %v3039 = vld.sshfl [vmem:[#allocation1 + $0x18] sm:$0xff pattern:$0x73625140]
        %v3040 = vld.sshfl [vmem:[#allocation1 + $0x20] sm:$0xff pattern:$0x73625140]
        %v3041 = vld.sshfl [vmem:[#allocation1 + $0x28] sm:$0xff pattern:$0x73625140]
        %v3042 = vld.sshfl [vmem:[#allocation1 + $0x30] sm:$0xff pattern:$0x73625140]
        %v3043 = vld.sshfl [vmem:[#allocation1 + $0x38] sm:$0xff pattern:$0x73625140]
        %3044 = vst [vmem:[#allocation1] ss:$4 sm:$0xff] %v241
        %3045 = vst [vmem:[%s2954] ss:$4 sm:$0xff] %v242
        %v3046 = vld.sshfl [vmem:[#allocation1] sm:$0xff pattern:$0x73625140]
        %v3047 = vld.sshfl [vmem:[#allocation1 + $0x8] sm:$0xff pattern:$0x73625140]
        %v3048 = vld.sshfl [vmem:[#allocation1 + $0x10] sm:$0xff pattern:$0x73625140]
        %v3049 = vld.sshfl [vmem:[#allocation1 + $0x18] sm:$0xff pattern:$0x73625140]
        %v3050 = vld.sshfl [vmem:[#allocation1 + $0x20] sm:$0xff pattern:$0x73625140]
        %v3051 = vld.sshfl [vmem:[#allocation1 + $0x28] sm:$0xff pattern:$0x73625140]
        %v3052 = vld.sshfl [vmem:[#allocation1 + $0x30] sm:$0xff pattern:$0x73625140]
        %v3053 = vld.sshfl [vmem:[#allocation1 + $0x38] sm:$0xff pattern:$0x73625140]
        %3054 = vst [vmem:[#allocation1] ss:$4 sm:$0xff] %v243
        %v3055 = vld.sshfl [vmem:[#allocation1] sm:$0xff pattern:$0x73625140]
        %v3056 = vld.sshfl [vmem:[#allocation1 + $0x8] sm:$0xff pattern:$0x73625140]
        %v3057 = vld.sshfl [vmem:[#allocation1 + $0x10] sm:$0xff pattern:$0x73625140]
        %v3058 = vld.sshfl [vmem:[#allocation1 + $0x18] sm:$0xff pattern:$0x73625140]
        %3143 = vmatpush.msra.mxu0 %v274
        %3144 = vmatpush.msra.mxu0 %v272
        %3145 = vmatpush.msra.mxu0 %v270
        %3146 = vmatpush.msra.mxu0 %v268
        %3147 = vmatpush.msra.mxu0 %v266
        %3148 = vmatpush.msra.mxu0 %v264
        %3149 = vmatpush.msra.mxu0 %v262
        %3150 = vmatpush.msra.mxu0 %v260
        %3151 = vmatpush.msra.mxu0 %v258
        %3152 = vmatpush.msra.mxu0 %v256
        %3153 = vmatpush.msra.mxu0 %v254
        %3154 = vmatpush.msra.mxu0 %v252
        %3155 = vmatpush.msra.mxu0 %v250
        %3156 = vmatpush.msra.mxu0 %v248
        %3157 = vmatpush.msra.mxu0 %v246
        %3158 = vmatpush.msra.mxu0 %v244
        %3159 = vmatmul.f32.gmra.mxu0 %v2956
        %v3160 = vpop.f32.mrf.mxu0
        %v3161 = vadd.f32 0.0, %v3160
        %3162 = vdwg.mxu0
        %3163 = vmatpush.msra.mxu0 %v306
        %3164 = vmatpush.msra.mxu0 %v304
        %3165 = vmatpush.msra.mxu0 %v302
        %3166 = vmatpush.msra.mxu0 %v300
        %3167 = vmatpush.msra.mxu0 %v298
        %3168 = vmatpush.msra.mxu0 %v296
        %3169 = vmatpush.msra.mxu0 %v294
        %3170 = vmatpush.msra.mxu0 %v292
        %3171 = vmatpush.msra.mxu0 %v290
        %3172 = vmatpush.msra.mxu0 %v288
        %3173 = vmatpush.msra.mxu0 %v286
        %3174 = vmatpush.msra.mxu0 %v284
        %3175 = vmatpush.msra.mxu0 %v282
        %3176 = vmatpush.msra.mxu0 %v280
        %3177 = vmatpush.msra.mxu0 %v278
        %3178 = vmatpush.msra.mxu0 %v276
        %3179 = vmatmul.f32.gmra.mxu0 %v2957
        %v3180 = vpop.f32.mrf.mxu0
        %v3181 = vadd.f32 %v3161, %v3180
        %3182 = vdwg.mxu0
        %3183 = vmatpush.msra.mxu0 %v338
        %3184 = vmatpush.msra.mxu0 %v336
        %3185 = vmatpush.msra.mxu0 %v334
        %3186 = vmatpush.msra.mxu0 %v332
        %3187 = vmatpush.msra.mxu0 %v330
        %3188 = vmatpush.msra.mxu0 %v328
        %3189 = vmatpush.msra.mxu0 %v326
        %3190 = vmatpush.msra.mxu0 %v324
        %3191 = vmatpush.msra.mxu0 %v322
        %3192 = vmatpush.msra.mxu0 %v320
        %3193 = vmatpush.msra.mxu0 %v318
        %3194 = vmatpush.msra.mxu0 %v316
        %3195 = vmatpush.msra.mxu0 %v314
        %3196 = vmatpush.msra.mxu0 %v312
        %3197 = vmatpush.msra.mxu0 %v310
        %3198 = vmatpush.msra.mxu0 %v308
        %3199 = vmatmul.f32.gmra.mxu0 %v2958
        %v3200 = vpop.f32.mrf.mxu0
        %v3201 = vadd.f32 %v3181, %v3200
        %3202 = vdwg.mxu0
        %3203 = vmatpush.msra.mxu0 %v370
        %3204 = vmatpush.msra.mxu0 %v368
        %3205 = vmatpush.msra.mxu0 %v366
        %3206 = vmatpush.msra.mxu0 %v364
        %3207 = vmatpush.msra.mxu0 %v362
        %3208 = vmatpush.msra.mxu0 %v360
        %3209 = vmatpush.msra.mxu0 %v358
        %3210 = vmatpush.msra.mxu0 %v356
        %3211 = vmatpush.msra.mxu0 %v354
        %3212 = vmatpush.msra.mxu0 %v352
        %3213 = vmatpush.msra.mxu0 %v350
        %3214 = vmatpush.msra.mxu0 %v348
        %3215 = vmatpush.msra.mxu0 %v346
        %3216 = vmatpush.msra.mxu0 %v344
        %3217 = vmatpush.msra.mxu0 %v342
        %3218 = vmatpush.msra.mxu0 %v340
        %3219 = vmatmul.f32.gmra.mxu0 %v2959
        %v3220 = vpop.f32.mrf.mxu0
        %v3221 = vadd.f32 %v3201, %v3220
        %3222 = vdwg.mxu0
        %3223 = vmatpush.msra.mxu0 %v402
        %3224 = vmatpush.msra.mxu0 %v400
        %3225 = vmatpush.msra.mxu0 %v398
        %3226 = vmatpush.msra.mxu0 %v396
        %3227 = vmatpush.msra.mxu0 %v394
        %3228 = vmatpush.msra.mxu0 %v392
        %3229 = vmatpush.msra.mxu0 %v390
        %3230 = vmatpush.msra.mxu0 %v388
        %3231 = vmatpush.msra.mxu0 %v386
        %3232 = vmatpush.msra.mxu0 %v384
        %3233 = vmatpush.msra.mxu0 %v382
        %3234 = vmatpush.msra.mxu0 %v380
        %3235 = vmatpush.msra.mxu0 %v378
        %3236 = vmatpush.msra.mxu0 %v376
        %3237 = vmatpush.msra.mxu0 %v374
        %3238 = vmatpush.msra.mxu0 %v372
        %3239 = vmatmul.f32.gmra.mxu0 %v2960
        %v3240 = vpop.f32.mrf.mxu0
        %v3241 = vadd.f32 %v3221, %v3240
        %3242 = vdwg.mxu0
        %3243 = vmatpush.msra.mxu0 %v434
        %3244 = vmatpush.msra.mxu0 %v432
        %3245 = vmatpush.msra.mxu0 %v430
        %3246 = vmatpush.msra.mxu0 %v428
        %3247 = vmatpush.msra.mxu0 %v426
        %3248 = vmatpush.msra.mxu0 %v424
        %3249 = vmatpush.msra.mxu0 %v422
        %3250 = vmatpush.msra.mxu0 %v420
        %3251 = vmatpush.msra.mxu0 %v418
        %3252 = vmatpush.msra.mxu0 %v416
        %3253 = vmatpush.msra.mxu0 %v414
        %3254 = vmatpush.msra.mxu0 %v412
        %3255 = vmatpush.msra.mxu0 %v410
        %3256 = vmatpush.msra.mxu0 %v408
        %3257 = vmatpush.msra.mxu0 %v406
        %3258 = vmatpush.msra.mxu0 %v404
        %3259 = vmatmul.f32.gmra.mxu0 %v2961
        %v3260 = vpop.f32.mrf.mxu0
        %v3261 = vadd.f32 %v3241, %v3260
        %3262 = vdwg.mxu0
        %3263 = vmatpush.msra.mxu0 %v466
        %3264 = vmatpush.msra.mxu0 %v464
        %3265 = vmatpush.msra.mxu0 %v462
        %3266 = vmatpush.msra.mxu0 %v460
        %3267 = vmatpush.msra.mxu0 %v458
        %3268 = vmatpush.msra.mxu0 %v456
        %3269 = vmatpush.msra.mxu0 %v454
        %3270 = vmatpush.msra.mxu0 %v452
        %3271 = vmatpush.msra.mxu0 %v450
        %3272 = vmatpush.msra.mxu0 %v448
        %3273 = vmatpush.msra.mxu0 %v446
        %3274 = vmatpush.msra.mxu0 %v444
        %3275 = vmatpush.msra.mxu0 %v442
        %3276 = vmatpush.msra.mxu0 %v440
        %3277 = vmatpush.msra.mxu0 %v438
        %3278 = vmatpush.msra.mxu0 %v436
        %3279 = vmatmul.f32.gmra.mxu0 %v2962
        %v3280 = vpop.f32.mrf.mxu0
        %v3281 = vadd.f32 %v3261, %v3280
        %3282 = vdwg.mxu0
        %3283 = vmatpush.msra.mxu0 %v498
        %3284 = vmatpush.msra.mxu0 %v496
        %3285 = vmatpush.msra.mxu0 %v494
        %3286 = vmatpush.msra.mxu0 %v492
        %3287 = vmatpush.msra.mxu0 %v490
        %3288 = vmatpush.msra.mxu0 %v488
        %3289 = vmatpush.msra.mxu0 %v486
        %3290 = vmatpush.msra.mxu0 %v484
        %3291 = vmatpush.msra.mxu0 %v482
        %3292 = vmatpush.msra.mxu0 %v480
        %3293 = vmatpush.msra.mxu0 %v478
        %3294 = vmatpush.msra.mxu0 %v476
        %3295 = vmatpush.msra.mxu0 %v474
        %3296 = vmatpush.msra.mxu0 %v472
        %3297 = vmatpush.msra.mxu0 %v470
        %3298 = vmatpush.msra.mxu0 %v468
        %3299 = vmatmul.f32.gmra.mxu0 %v2963
        %v3300 = vpop.f32.mrf.mxu0
        %v3301 = vadd.f32 %v3281, %v3300
        %3302 = vdwg.mxu0
        %3303 = vmatpush.msra.mxu0 %v530
        %3304 = vmatpush.msra.mxu0 %v528
        %3305 = vmatpush.msra.mxu0 %v526
        %3306 = vmatpush.msra.mxu0 %v524
        %3307 = vmatpush.msra.mxu0 %v522
        %3308 = vmatpush.msra.mxu0 %v520
        %3309 = vmatpush.msra.mxu0 %v518
        %3310 = vmatpush.msra.mxu0 %v516
        %3311 = vmatpush.msra.mxu0 %v514
        %3312 = vmatpush.msra.mxu0 %v512
        %3313 = vmatpush.msra.mxu0 %v510
        %3314 = vmatpush.msra.mxu0 %v508
        %3315 = vmatpush.msra.mxu0 %v506
        %3316 = vmatpush.msra.mxu0 %v504
        %3317 = vmatpush.msra.mxu0 %v502
        %3318 = vmatpush.msra.mxu0 %v500
        %3319 = vmatmul.f32.gmra.mxu0 %v2966
        %v3320 = vpop.f32.mrf.mxu0
        %v3321 = vadd.f32 %v3301, %v3320
        %3322 = vdwg.mxu0
        %3323 = vmatpush.msra.mxu0 %v562
        %3324 = vmatpush.msra.mxu0 %v560
        %3325 = vmatpush.msra.mxu0 %v558
        %3326 = vmatpush.msra.mxu0 %v556
        %3327 = vmatpush.msra.mxu0 %v554
        %3328 = vmatpush.msra.mxu0 %v552
        %3329 = vmatpush.msra.mxu0 %v550
        %3330 = vmatpush.msra.mxu0 %v548
        %3331 = vmatpush.msra.mxu0 %v546
        %3332 = vmatpush.msra.mxu0 %v544
        %3333 = vmatpush.msra.mxu0 %v542
        %3334 = vmatpush.msra.mxu0 %v540
        %3335 = vmatpush.msra.mxu0 %v538
        %3336 = vmatpush.msra.mxu0 %v536
        %3337 = vmatpush.msra.mxu0 %v534
        %3338 = vmatpush.msra.mxu0 %v532
        %3339 = vmatmul.f32.gmra.mxu0 %v2967
        %v3340 = vpop.f32.mrf.mxu0
        %v3341 = vadd.f32 %v3321, %v3340
        %3342 = vdwg.mxu0
        %3343 = vmatpush.msra.mxu0 %v594
        %3344 = vmatpush.msra.mxu0 %v592
        %3345 = vmatpush.msra.mxu0 %v590
        %3346 = vmatpush.msra.mxu0 %v588
        %3347 = vmatpush.msra.mxu0 %v586
        %3348 = vmatpush.msra.mxu0 %v584
        %3349 = vmatpush.msra.mxu0 %v582
        %3350 = vmatpush.msra.mxu0 %v580
        %3351 = vmatpush.msra.mxu0 %v578
        %3352 = vmatpush.msra.mxu0 %v576
        %3353 = vmatpush.msra.mxu0 %v574
        %3354 = vmatpush.msra.mxu0 %v572
        %3355 = vmatpush.msra.mxu0 %v570
        %3356 = vmatpush.msra.mxu0 %v568
        %3357 = vmatpush.msra.mxu0 %v566
        %3358 = vmatpush.msra.mxu0 %v564
        %3359 = vmatmul.f32.gmra.mxu0 %v2968
        %v3360 = vpop.f32.mrf.mxu0
        %v3361 = vadd.f32 %v3341, %v3360
        %3362 = vdwg.mxu0
        %3363 = vmatpush.msra.mxu0 %v626
        %3364 = vmatpush.msra.mxu0 %v624
        %3365 = vmatpush.msra.mxu0 %v622
        %3366 = vmatpush.msra.mxu0 %v620
        %3367 = vmatpush.msra.mxu0 %v618
        %3368 = vmatpush.msra.mxu0 %v616
        %3369 = vmatpush.msra.mxu0 %v614
        %3370 = vmatpush.msra.mxu0 %v612
        %3371 = vmatpush.msra.mxu0 %v610
        %3372 = vmatpush.msra.mxu0 %v608
        %3373 = vmatpush.msra.mxu0 %v606
        %3374 = vmatpush.msra.mxu0 %v604
        %3375 = vmatpush.msra.mxu0 %v602
        %3376 = vmatpush.msra.mxu0 %v600
        %3377 = vmatpush.msra.mxu0 %v598
        %3378 = vmatpush.msra.mxu0 %v596
        %3379 = vmatmul.f32.gmra.mxu0 %v2969
        %v3380 = vpop.f32.mrf.mxu0
        %v3381 = vadd.f32 %v3361, %v3380
        %3382 = vdwg.mxu0
        %3383 = vmatpush.msra.mxu0 %v658
        %3384 = vmatpush.msra.mxu0 %v656
        %3385 = vmatpush.msra.mxu0 %v654
        %3386 = vmatpush.msra.mxu0 %v652
        %3387 = vmatpush.msra.mxu0 %v650
        %3388 = vmatpush.msra.mxu0 %v648
        %3389 = vmatpush.msra.mxu0 %v646
        %3390 = vmatpush.msra.mxu0 %v644
        %3391 = vmatpush.msra.mxu0 %v642
        %3392 = vmatpush.msra.mxu0 %v640
        %3393 = vmatpush.msra.mxu0 %v638
        %3394 = vmatpush.msra.mxu0 %v636
        %3395 = vmatpush.msra.mxu0 %v634
        %3396 = vmatpush.msra.mxu0 %v632
        %3397 = vmatpush.msra.mxu0 %v630
        %3398 = vmatpush.msra.mxu0 %v628
        %3399 = vmatmul.f32.gmra.mxu0 %v2970
        %v3400 = vpop.f32.mrf.mxu0
        %v3401 = vadd.f32 %v3381, %v3400
        %3402 = vdwg.mxu0
        %3403 = vmatpush.msra.mxu0 %v690
        %3404 = vmatpush.msra.mxu0 %v688
        %3405 = vmatpush.msra.mxu0 %v686
        %3406 = vmatpush.msra.mxu0 %v684
        %3407 = vmatpush.msra.mxu0 %v682
        %3408 = vmatpush.msra.mxu0 %v680
        %3409 = vmatpush.msra.mxu0 %v678
        %3410 = vmatpush.msra.mxu0 %v676
        %3411 = vmatpush.msra.mxu0 %v674
        %3412 = vmatpush.msra.mxu0 %v672
        %3413 = vmatpush.msra.mxu0 %v670
        %3414 = vmatpush.msra.mxu0 %v668
        %3415 = vmatpush.msra.mxu0 %v666
        %3416 = vmatpush.msra.mxu0 %v664
        %3417 = vmatpush.msra.mxu0 %v662
        %3418 = vmatpush.msra.mxu0 %v660
        %3419 = vmatmul.f32.gmra.mxu0 %v2971
        %v3420 = vpop.f32.mrf.mxu0
        %v3421 = vadd.f32 %v3401, %v3420
        %3422 = vdwg.mxu0
        %3423 = vmatpush.msra.mxu0 %v722
        %3424 = vmatpush.msra.mxu0 %v720
        %3425 = vmatpush.msra.mxu0 %v718
        %3426 = vmatpush.msra.mxu0 %v716
        %3427 = vmatpush.msra.mxu0 %v714
        %3428 = vmatpush.msra.mxu0 %v712
        %3429 = vmatpush.msra.mxu0 %v710
        %3430 = vmatpush.msra.mxu0 %v708
        %3431 = vmatpush.msra.mxu0 %v706
        %3432 = vmatpush.msra.mxu0 %v704
        %3433 = vmatpush.msra.mxu0 %v702
        %3434 = vmatpush.msra.mxu0 %v700
        %3435 = vmatpush.msra.mxu0 %v698
        %3436 = vmatpush.msra.mxu0 %v696
        %3437 = vmatpush.msra.mxu0 %v694
        %3438 = vmatpush.msra.mxu0 %v692
        %3439 = vmatmul.f32.gmra.mxu0 %v2972
        %v3440 = vpop.f32.mrf.mxu0
        %v3441 = vadd.f32 %v3421, %v3440
        %3442 = vdwg.mxu0
        %3443 = vmatpush.msra.mxu0 %v754
        %3444 = vmatpush.msra.mxu0 %v752
        %3445 = vmatpush.msra.mxu0 %v750
        %3446 = vmatpush.msra.mxu0 %v748
        %3447 = vmatpush.msra.mxu0 %v746
        %3448 = vmatpush.msra.mxu0 %v744
        %3449 = vmatpush.msra.mxu0 %v742
        %3450 = vmatpush.msra.mxu0 %v740
        %3451 = vmatpush.msra.mxu0 %v738
        %3452 = vmatpush.msra.mxu0 %v736
        %3453 = vmatpush.msra.mxu0 %v734
        %3454 = vmatpush.msra.mxu0 %v732
        %3455 = vmatpush.msra.mxu0 %v730
        %3456 = vmatpush.msra.mxu0 %v728
        %3457 = vmatpush.msra.mxu0 %v726
        %3458 = vmatpush.msra.mxu0 %v724
        %3459 = vmatmul.f32.gmra.mxu0 %v2973
        %v3460 = vpop.f32.mrf.mxu0
        %v3461 = vadd.f32 %v3441, %v3460
        %3462 = vdwg.mxu0
        %3463 = vmatpush.msra.mxu0 %v786
        %3464 = vmatpush.msra.mxu0 %v784
        %3465 = vmatpush.msra.mxu0 %v782
        %3466 = vmatpush.msra.mxu0 %v780
        %3467 = vmatpush.msra.mxu0 %v778
        %3468 = vmatpush.msra.mxu0 %v776
        %3469 = vmatpush.msra.mxu0 %v774
        %3470 = vmatpush.msra.mxu0 %v772
        %3471 = vmatpush.msra.mxu0 %v770
        %3472 = vmatpush.msra.mxu0 %v768
        %3473 = vmatpush.msra.mxu0 %v766
        %3474 = vmatpush.msra.mxu0 %v764
        %3475 = vmatpush.msra.mxu0 %v762
        %3476 = vmatpush.msra.mxu0 %v760
        %3477 = vmatpush.msra.mxu0 %v758
        %3478 = vmatpush.msra.mxu0 %v756
        %3479 = vmatmul.f32.gmra.mxu0 %v2976
        %v3480 = vpop.f32.mrf.mxu0
        %v3481 = vadd.f32 %v3461, %v3480
        %3482 = vdwg.mxu0
        %3483 = vmatpush.msra.mxu0 %v818
        %3484 = vmatpush.msra.mxu0 %v816
        %3485 = vmatpush.msra.mxu0 %v814
        %3486 = vmatpush.msra.mxu0 %v812
        %3487 = vmatpush.msra.mxu0 %v810
        %3488 = vmatpush.msra.mxu0 %v808
        %3489 = vmatpush.msra.mxu0 %v806
        %3490 = vmatpush.msra.mxu0 %v804
        %3491 = vmatpush.msra.mxu0 %v802
        %3492 = vmatpush.msra.mxu0 %v800
        %3493 = vmatpush.msra.mxu0 %v798
        %3494 = vmatpush.msra.mxu0 %v796
        %3495 = vmatpush.msra.mxu0 %v794
        %3496 = vmatpush.msra.mxu0 %v792
        %3497 = vmatpush.msra.mxu0 %v790
        %3498 = vmatpush.msra.mxu0 %v788
        %3499 = vmatmul.f32.gmra.mxu0 %v2977
        %v3500 = vpop.f32.mrf.mxu0
        %v3501 = vadd.f32 %v3481, %v3500
        %3502 = vdwg.mxu0
        %3503 = vmatpush.msra.mxu0 %v850
        %3504 = vmatpush.msra.mxu0 %v848
        %3505 = vmatpush.msra.mxu0 %v846
        %3506 = vmatpush.msra.mxu0 %v844
        %3507 = vmatpush.msra.mxu0 %v842
        %3508 = vmatpush.msra.mxu0 %v840
        %3509 = vmatpush.msra.mxu0 %v838
        %3510 = vmatpush.msra.mxu0 %v836
        %3511 = vmatpush.msra.mxu0 %v834
        %3512 = vmatpush.msra.mxu0 %v832
        %3513 = vmatpush.msra.mxu0 %v830
        %3514 = vmatpush.msra.mxu0 %v828
        %3515 = vmatpush.msra.mxu0 %v826
        %3516 = vmatpush.msra.mxu0 %v824
        %3517 = vmatpush.msra.mxu0 %v822
        %3518 = vmatpush.msra.mxu0 %v820
        %3519 = vmatmul.f32.gmra.mxu0 %v2978
        %v3520 = vpop.f32.mrf.mxu0
        %v3521 = vadd.f32 %v3501, %v3520
        %3522 = vdwg.mxu0
        %3523 = vmatpush.msra.mxu0 %v882
        %3524 = vmatpush.msra.mxu0 %v880
        %3525 = vmatpush.msra.mxu0 %v878
        %3526 = vmatpush.msra.mxu0 %v876
        %3527 = vmatpush.msra.mxu0 %v874
        %3528 = vmatpush.msra.mxu0 %v872
        %3529 = vmatpush.msra.mxu0 %v870
        %3530 = vmatpush.msra.mxu0 %v868
        %3531 = vmatpush.msra.mxu0 %v866
        %3532 = vmatpush.msra.mxu0 %v864
        %3533 = vmatpush.msra.mxu0 %v862
        %3534 = vmatpush.msra.mxu0 %v860
        %3535 = vmatpush.msra.mxu0 %v858
        %3536 = vmatpush.msra.mxu0 %v856
        %3537 = vmatpush.msra.mxu0 %v854
        %3538 = vmatpush.msra.mxu0 %v852
        %3539 = vmatmul.f32.gmra.mxu0 %v2979
        %v3540 = vpop.f32.mrf.mxu0
        %v3541 = vadd.f32 %v3521, %v3540
        %3542 = vdwg.mxu0
        %3543 = vmatpush.msra.mxu0 %v914
        %3544 = vmatpush.msra.mxu0 %v912
        %3545 = vmatpush.msra.mxu0 %v910
        %3546 = vmatpush.msra.mxu0 %v908
        %3547 = vmatpush.msra.mxu0 %v906
        %3548 = vmatpush.msra.mxu0 %v904
        %3549 = vmatpush.msra.mxu0 %v902
        %3550 = vmatpush.msra.mxu0 %v900
        %3551 = vmatpush.msra.mxu0 %v898
        %3552 = vmatpush.msra.mxu0 %v896
        %3553 = vmatpush.msra.mxu0 %v894
        %3554 = vmatpush.msra.mxu0 %v892
        %3555 = vmatpush.msra.mxu0 %v890
        %3556 = vmatpush.msra.mxu0 %v888
        %3557 = vmatpush.msra.mxu0 %v886
        %3558 = vmatpush.msra.mxu0 %v884
        %3559 = vmatmul.f32.gmra.mxu0 %v2980
        %v3560 = vpop.f32.mrf.mxu0
        %v3561 = vadd.f32 %v3541, %v3560
        %3562 = vdwg.mxu0
        %3563 = vmatpush.msra.mxu0 %v946
        %3564 = vmatpush.msra.mxu0 %v944
        %3565 = vmatpush.msra.mxu0 %v942
        %3566 = vmatpush.msra.mxu0 %v940
        %3567 = vmatpush.msra.mxu0 %v938
        %3568 = vmatpush.msra.mxu0 %v936
        %3569 = vmatpush.msra.mxu0 %v934
        %3570 = vmatpush.msra.mxu0 %v932
        %3571 = vmatpush.msra.mxu0 %v930
        %3572 = vmatpush.msra.mxu0 %v928
        %3573 = vmatpush.msra.mxu0 %v926
        %3574 = vmatpush.msra.mxu0 %v924
        %3575 = vmatpush.msra.mxu0 %v922
        %3576 = vmatpush.msra.mxu0 %v920
        %3577 = vmatpush.msra.mxu0 %v918
        %3578 = vmatpush.msra.mxu0 %v916
        %3579 = vmatmul.f32.gmra.mxu0 %v2981
        %v3580 = vpop.f32.mrf.mxu0
        %v3581 = vadd.f32 %v3561, %v3580
        %3582 = vdwg.mxu0
        %3583 = vmatpush.msra.mxu0 %v978
        %3584 = vmatpush.msra.mxu0 %v976
        %3585 = vmatpush.msra.mxu0 %v974
        %3586 = vmatpush.msra.mxu0 %v972
        %3587 = vmatpush.msra.mxu0 %v970
        %3588 = vmatpush.msra.mxu0 %v968
        %3589 = vmatpush.msra.mxu0 %v966
        %3590 = vmatpush.msra.mxu0 %v964
        %3591 = vmatpush.msra.mxu0 %v962
        %3592 = vmatpush.msra.mxu0 %v960
        %3593 = vmatpush.msra.mxu0 %v958
        %3594 = vmatpush.msra.mxu0 %v956
        %3595 = vmatpush.msra.mxu0 %v954
        %3596 = vmatpush.msra.mxu0 %v952
        %3597 = vmatpush.msra.mxu0 %v950
        %3598 = vmatpush.msra.mxu0 %v948
        %3599 = vmatmul.f32.gmra.mxu0 %v2982
        %v3600 = vpop.f32.mrf.mxu0
        %v3601 = vadd.f32 %v3581, %v3600
        %3602 = vdwg.mxu0
        %3603 = vmatpush.msra.mxu0 %v1010
        %3604 = vmatpush.msra.mxu0 %v1008
        %3605 = vmatpush.msra.mxu0 %v1006
        %3606 = vmatpush.msra.mxu0 %v1004
        %3607 = vmatpush.msra.mxu0 %v1002
        %3608 = vmatpush.msra.mxu0 %v1000
        %3609 = vmatpush.msra.mxu0 %v998
        %3610 = vmatpush.msra.mxu0 %v996
        %3611 = vmatpush.msra.mxu0 %v994
        %3612 = vmatpush.msra.mxu0 %v992
        %3613 = vmatpush.msra.mxu0 %v990
        %3614 = vmatpush.msra.mxu0 %v988
        %3615 = vmatpush.msra.mxu0 %v986
        %3616 = vmatpush.msra.mxu0 %v984
        %3617 = vmatpush.msra.mxu0 %v982
        %3618 = vmatpush.msra.mxu0 %v980
        %3619 = vmatmul.f32.gmra.mxu0 %v2983
        %v3620 = vpop.f32.mrf.mxu0
        %v3621 = vadd.f32 %v3601, %v3620
        %3622 = vdwg.mxu0
        %3623 = vmatpush.msra.mxu0 %v1042
        %3624 = vmatpush.msra.mxu0 %v1040
        %3625 = vmatpush.msra.mxu0 %v1038
        %3626 = vmatpush.msra.mxu0 %v1036
        %3627 = vmatpush.msra.mxu0 %v1034
        %3628 = vmatpush.msra.mxu0 %v1032
        %3629 = vmatpush.msra.mxu0 %v1030
        %3630 = vmatpush.msra.mxu0 %v1028
        %3631 = vmatpush.msra.mxu0 %v1026
        %3632 = vmatpush.msra.mxu0 %v1024
        %3633 = vmatpush.msra.mxu0 %v1022
        %3634 = vmatpush.msra.mxu0 %v1020
        %3635 = vmatpush.msra.mxu0 %v1018
        %3636 = vmatpush.msra.mxu0 %v1016
        %3637 = vmatpush.msra.mxu0 %v1014
        %3638 = vmatpush.msra.mxu0 %v1012
        %3639 = vmatmul.f32.gmra.mxu0 %v2986
        %v3640 = vpop.f32.mrf.mxu0
        %v3641 = vadd.f32 %v3621, %v3640
        %3642 = vdwg.mxu0
        %3643 = vmatpush.msra.mxu0 %v1074
        %3644 = vmatpush.msra.mxu0 %v1072
        %3645 = vmatpush.msra.mxu0 %v1070
        %3646 = vmatpush.msra.mxu0 %v1068
        %3647 = vmatpush.msra.mxu0 %v1066
        %3648 = vmatpush.msra.mxu0 %v1064
        %3649 = vmatpush.msra.mxu0 %v1062
        %3650 = vmatpush.msra.mxu0 %v1060
        %3651 = vmatpush.msra.mxu0 %v1058
        %3652 = vmatpush.msra.mxu0 %v1056
        %3653 = vmatpush.msra.mxu0 %v1054
        %3654 = vmatpush.msra.mxu0 %v1052
        %3655 = vmatpush.msra.mxu0 %v1050
        %3656 = vmatpush.msra.mxu0 %v1048
        %3657 = vmatpush.msra.mxu0 %v1046
        %3658 = vmatpush.msra.mxu0 %v1044
        %3659 = vmatmul.f32.gmra.mxu0 %v2987
        %v3660 = vpop.f32.mrf.mxu0
        %v3661 = vadd.f32 %v3641, %v3660
        %3662 = vdwg.mxu0
        %3663 = vmatpush.msra.mxu0 %v1106
        %3664 = vmatpush.msra.mxu0 %v1104
        %3665 = vmatpush.msra.mxu0 %v1102
        %3666 = vmatpush.msra.mxu0 %v1100
        %3667 = vmatpush.msra.mxu0 %v1098
        %3668 = vmatpush.msra.mxu0 %v1096
        %3669 = vmatpush.msra.mxu0 %v1094
        %3670 = vmatpush.msra.mxu0 %v1092
        %3671 = vmatpush.msra.mxu0 %v1090
        %3672 = vmatpush.msra.mxu0 %v1088
        %3673 = vmatpush.msra.mxu0 %v1086
        %3674 = vmatpush.msra.mxu0 %v1084
        %3675 = vmatpush.msra.mxu0 %v1082
        %3676 = vmatpush.msra.mxu0 %v1080
        %3677 = vmatpush.msra.mxu0 %v1078
        %3678 = vmatpush.msra.mxu0 %v1076
        %3679 = vmatmul.f32.gmra.mxu0 %v2988
        %v3680 = vpop.f32.mrf.mxu0
        %v3681 = vadd.f32 %v3661, %v3680
        %3682 = vdwg.mxu0
        %3683 = vmatpush.msra.mxu0 %v1138
        %3684 = vmatpush.msra.mxu0 %v1136
        %3685 = vmatpush.msra.mxu0 %v1134
        %3686 = vmatpush.msra.mxu0 %v1132
        %3687 = vmatpush.msra.mxu0 %v1130
        %3688 = vmatpush.msra.mxu0 %v1128
        %3689 = vmatpush.msra.mxu0 %v1126
        %3690 = vmatpush.msra.mxu0 %v1124
        %3691 = vmatpush.msra.mxu0 %v1122
        %3692 = vmatpush.msra.mxu0 %v1120
        %3693 = vmatpush.msra.mxu0 %v1118
        %3694 = vmatpush.msra.mxu0 %v1116
        %3695 = vmatpush.msra.mxu0 %v1114
        %3696 = vmatpush.msra.mxu0 %v1112
        %3697 = vmatpush.msra.mxu0 %v1110
        %3698 = vmatpush.msra.mxu0 %v1108
        %3699 = vmatmul.f32.gmra.mxu0 %v2989
        %v3700 = vpop.f32.mrf.mxu0
        %v3701 = vadd.f32 %v3681, %v3700
        %3702 = vdwg.mxu0
        %3703 = vmatpush.msra.mxu0 %v1170
        %3704 = vmatpush.msra.mxu0 %v1168
        %3705 = vmatpush.msra.mxu0 %v1166
        %3706 = vmatpush.msra.mxu0 %v1164
        %3707 = vmatpush.msra.mxu0 %v1162
        %3708 = vmatpush.msra.mxu0 %v1160
        %3709 = vmatpush.msra.mxu0 %v1158
        %3710 = vmatpush.msra.mxu0 %v1156
        %3711 = vmatpush.msra.mxu0 %v1154
        %3712 = vmatpush.msra.mxu0 %v1152
        %3713 = vmatpush.msra.mxu0 %v1150
        %3714 = vmatpush.msra.mxu0 %v1148
        %3715 = vmatpush.msra.mxu0 %v1146
        %3716 = vmatpush.msra.mxu0 %v1144
        %3717 = vmatpush.msra.mxu0 %v1142
        %3718 = vmatpush.msra.mxu0 %v1140
        %3719 = vmatmul.f32.gmra.mxu0 %v2990
        %v3720 = vpop.f32.mrf.mxu0
        %v3721 = vadd.f32 %v3701, %v3720
        %3722 = vdwg.mxu0
        %3723 = vmatpush.msra.mxu0 %v1202
        %3724 = vmatpush.msra.mxu0 %v1200
        %3725 = vmatpush.msra.mxu0 %v1198
        %3726 = vmatpush.msra.mxu0 %v1196
        %3727 = vmatpush.msra.mxu0 %v1194
        %3728 = vmatpush.msra.mxu0 %v1192
        %3729 = vmatpush.msra.mxu0 %v1190
        %3730 = vmatpush.msra.mxu0 %v1188
        %3731 = vmatpush.msra.mxu0 %v1186
        %3732 = vmatpush.msra.mxu0 %v1184
        %3733 = vmatpush.msra.mxu0 %v1182
        %3734 = vmatpush.msra.mxu0 %v1180
        %3735 = vmatpush.msra.mxu0 %v1178
        %3736 = vmatpush.msra.mxu0 %v1176
        %3737 = vmatpush.msra.mxu0 %v1174
        %3738 = vmatpush.msra.mxu0 %v1172
        %3739 = vmatmul.f32.gmra.mxu0 %v2991
        %v3740 = vpop.f32.mrf.mxu0
        %v3741 = vadd.f32 %v3721, %v3740
        %3742 = vdwg.mxu0
        %3743 = vmatpush.msra.mxu0 %v1234
        %3744 = vmatpush.msra.mxu0 %v1232
        %3745 = vmatpush.msra.mxu0 %v1230
        %3746 = vmatpush.msra.mxu0 %v1228
        %3747 = vmatpush.msra.mxu0 %v1226
        %3748 = vmatpush.msra.mxu0 %v1224
        %3749 = vmatpush.msra.mxu0 %v1222
        %3750 = vmatpush.msra.mxu0 %v1220
        %3751 = vmatpush.msra.mxu0 %v1218
        %3752 = vmatpush.msra.mxu0 %v1216
        %3753 = vmatpush.msra.mxu0 %v1214
        %3754 = vmatpush.msra.mxu0 %v1212
        %3755 = vmatpush.msra.mxu0 %v1210
        %3756 = vmatpush.msra.mxu0 %v1208
        %3757 = vmatpush.msra.mxu0 %v1206
        %3758 = vmatpush.msra.mxu0 %v1204
        %3759 = vmatmul.f32.gmra.mxu0 %v2992
        %v3760 = vpop.f32.mrf.mxu0
        %v3761 = vadd.f32 %v3741, %v3760
        %3762 = vdwg.mxu0
        %3763 = vmatpush.msra.mxu0 %v1266
        %3764 = vmatpush.msra.mxu0 %v1264
        %3765 = vmatpush.msra.mxu0 %v1262
        %3766 = vmatpush.msra.mxu0 %v1260
        %3767 = vmatpush.msra.mxu0 %v1258
        %3768 = vmatpush.msra.mxu0 %v1256
        %3769 = vmatpush.msra.mxu0 %v1254
        %3770 = vmatpush.msra.mxu0 %v1252
        %3771 = vmatpush.msra.mxu0 %v1250
        %3772 = vmatpush.msra.mxu0 %v1248
        %3773 = vmatpush.msra.mxu0 %v1246
        %3774 = vmatpush.msra.mxu0 %v1244
        %3775 = vmatpush.msra.mxu0 %v1242
        %3776 = vmatpush.msra.mxu0 %v1240
        %3777 = vmatpush.msra.mxu0 %v1238
        %3778 = vmatpush.msra.mxu0 %v1236
        %3779 = vmatmul.f32.gmra.mxu0 %v2993
        %v3780 = vpop.f32.mrf.mxu0
        %v3781 = vadd.f32 %v3761, %v3780
        %3782 = vdwg.mxu0
        %3783 = vmatpush.msra.mxu0 %v1298
        %3784 = vmatpush.msra.mxu0 %v1296
        %3785 = vmatpush.msra.mxu0 %v1294
        %3786 = vmatpush.msra.mxu0 %v1292
        %3787 = vmatpush.msra.mxu0 %v1290
        %3788 = vmatpush.msra.mxu0 %v1288
        %3789 = vmatpush.msra.mxu0 %v1286
        %3790 = vmatpush.msra.mxu0 %v1284
        %3791 = vmatpush.msra.mxu0 %v1282
        %3792 = vmatpush.msra.mxu0 %v1280
        %3793 = vmatpush.msra.mxu0 %v1278
        %3794 = vmatpush.msra.mxu0 %v1276
        %3795 = vmatpush.msra.mxu0 %v1274
        %3796 = vmatpush.msra.mxu0 %v1272
        %3797 = vmatpush.msra.mxu0 %v1270
        %3798 = vmatpush.msra.mxu0 %v1268
        %3799 = vmatmul.f32.gmra.mxu0 %v2996
        %v3800 = vpop.f32.mrf.mxu0
        %v3801 = vadd.f32 %v3781, %v3800
        %3802 = vdwg.mxu0
        %3803 = vmatpush.msra.mxu0 %v1330
        %3804 = vmatpush.msra.mxu0 %v1328
        %3805 = vmatpush.msra.mxu0 %v1326
        %3806 = vmatpush.msra.mxu0 %v1324
        %3807 = vmatpush.msra.mxu0 %v1322
        %3808 = vmatpush.msra.mxu0 %v1320
        %3809 = vmatpush.msra.mxu0 %v1318
        %3810 = vmatpush.msra.mxu0 %v1316
        %3811 = vmatpush.msra.mxu0 %v1314
        %3812 = vmatpush.msra.mxu0 %v1312
        %3813 = vmatpush.msra.mxu0 %v1310
        %3814 = vmatpush.msra.mxu0 %v1308
        %3815 = vmatpush.msra.mxu0 %v1306
        %3816 = vmatpush.msra.mxu0 %v1304
        %3817 = vmatpush.msra.mxu0 %v1302
        %3818 = vmatpush.msra.mxu0 %v1300
        %3819 = vmatmul.f32.gmra.mxu0 %v2997
        %v3820 = vpop.f32.mrf.mxu0
        %v3821 = vadd.f32 %v3801, %v3820
        %3822 = vdwg.mxu0
        %3823 = vmatpush.msra.mxu0 %v1362
        %3824 = vmatpush.msra.mxu0 %v1360
        %3825 = vmatpush.msra.mxu0 %v1358
        %3826 = vmatpush.msra.mxu0 %v1356
        %3827 = vmatpush.msra.mxu0 %v1354
        %3828 = vmatpush.msra.mxu0 %v1352
        %3829 = vmatpush.msra.mxu0 %v1350
        %3830 = vmatpush.msra.mxu0 %v1348
        %3831 = vmatpush.msra.mxu0 %v1346
        %3832 = vmatpush.msra.mxu0 %v1344
        %3833 = vmatpush.msra.mxu0 %v1342
        %3834 = vmatpush.msra.mxu0 %v1340
        %3835 = vmatpush.msra.mxu0 %v1338
        %3836 = vmatpush.msra.mxu0 %v1336
        %3837 = vmatpush.msra.mxu0 %v1334
        %3838 = vmatpush.msra.mxu0 %v1332
        %3839 = vmatmul.f32.gmra.mxu0 %v2998
        %v3840 = vpop.f32.mrf.mxu0
        %v3841 = vadd.f32 %v3821, %v3840
        %3842 = vdwg.mxu0
        %3843 = vmatpush.msra.mxu0 %v1394
        %3844 = vmatpush.msra.mxu0 %v1392
        %3845 = vmatpush.msra.mxu0 %v1390
        %3846 = vmatpush.msra.mxu0 %v1388
        %3847 = vmatpush.msra.mxu0 %v1386
        %3848 = vmatpush.msra.mxu0 %v1384
        %3849 = vmatpush.msra.mxu0 %v1382
        %3850 = vmatpush.msra.mxu0 %v1380
        %3851 = vmatpush.msra.mxu0 %v1378
        %3852 = vmatpush.msra.mxu0 %v1376
        %3853 = vmatpush.msra.mxu0 %v1374
        %3854 = vmatpush.msra.mxu0 %v1372
        %3855 = vmatpush.msra.mxu0 %v1370
        %3856 = vmatpush.msra.mxu0 %v1368
        %3857 = vmatpush.msra.mxu0 %v1366
        %3858 = vmatpush.msra.mxu0 %v1364
        %3859 = vmatmul.f32.gmra.mxu0 %v2999
        %v3860 = vpop.f32.mrf.mxu0
        %v3861 = vadd.f32 %v3841, %v3860
        %3862 = vdwg.mxu0
        %3863 = vmatpush.msra.mxu0 %v1426
        %3864 = vmatpush.msra.mxu0 %v1424
        %3865 = vmatpush.msra.mxu0 %v1422
        %3866 = vmatpush.msra.mxu0 %v1420
        %3867 = vmatpush.msra.mxu0 %v1418
        %3868 = vmatpush.msra.mxu0 %v1416
        %3869 = vmatpush.msra.mxu0 %v1414
        %3870 = vmatpush.msra.mxu0 %v1412
        %3871 = vmatpush.msra.mxu0 %v1410
        %3872 = vmatpush.msra.mxu0 %v1408
        %3873 = vmatpush.msra.mxu0 %v1406
        %3874 = vmatpush.msra.mxu0 %v1404
        %3875 = vmatpush.msra.mxu0 %v1402
        %3876 = vmatpush.msra.mxu0 %v1400
        %3877 = vmatpush.msra.mxu0 %v1398
        %3878 = vmatpush.msra.mxu0 %v1396
        %3879 = vmatmul.f32.gmra.mxu0 %v3000
        %v3880 = vpop.f32.mrf.mxu0
        %v3881 = vadd.f32 %v3861, %v3880
        %3882 = vdwg.mxu0
        %3883 = vmatpush.msra.mxu0 %v1458
        %3884 = vmatpush.msra.mxu0 %v1456
        %3885 = vmatpush.msra.mxu0 %v1454
        %3886 = vmatpush.msra.mxu0 %v1452
        %3887 = vmatpush.msra.mxu0 %v1450
        %3888 = vmatpush.msra.mxu0 %v1448
        %3889 = vmatpush.msra.mxu0 %v1446
        %3890 = vmatpush.msra.mxu0 %v1444
        %3891 = vmatpush.msra.mxu0 %v1442
        %3892 = vmatpush.msra.mxu0 %v1440
        %3893 = vmatpush.msra.mxu0 %v1438
        %3894 = vmatpush.msra.mxu0 %v1436
        %3895 = vmatpush.msra.mxu0 %v1434
        %3896 = vmatpush.msra.mxu0 %v1432
        %3897 = vmatpush.msra.mxu0 %v1430
        %3898 = vmatpush.msra.mxu0 %v1428
        %3899 = vmatmul.f32.gmra.mxu0 %v3001
        %v3900 = vpop.f32.mrf.mxu0
        %v3901 = vadd.f32 %v3881, %v3900
        %3902 = vdwg.mxu0
        %3903 = vmatpush.msra.mxu0 %v1490
        %3904 = vmatpush.msra.mxu0 %v1488
        %3905 = vmatpush.msra.mxu0 %v1486
        %3906 = vmatpush.msra.mxu0 %v1484
        %3907 = vmatpush.msra.mxu0 %v1482
        %3908 = vmatpush.msra.mxu0 %v1480
        %3909 = vmatpush.msra.mxu0 %v1478
        %3910 = vmatpush.msra.mxu0 %v1476
        %3911 = vmatpush.msra.mxu0 %v1474
        %3912 = vmatpush.msra.mxu0 %v1472
        %3913 = vmatpush.msra.mxu0 %v1470
        %3914 = vmatpush.msra.mxu0 %v1468
        %3915 = vmatpush.msra.mxu0 %v1466
        %3916 = vmatpush.msra.mxu0 %v1464
        %3917 = vmatpush.msra.mxu0 %v1462
        %3918 = vmatpush.msra.mxu0 %v1460
        %3919 = vmatmul.f32.gmra.mxu0 %v3002
        %v3920 = vpop.f32.mrf.mxu0
        %v3921 = vadd.f32 %v3901, %v3920
        %3922 = vdwg.mxu0
        %3923 = vmatpush.msra.mxu0 %v1522
        %3924 = vmatpush.msra.mxu0 %v1520
        %3925 = vmatpush.msra.mxu0 %v1518
        %3926 = vmatpush.msra.mxu0 %v1516
        %3927 = vmatpush.msra.mxu0 %v1514
        %3928 = vmatpush.msra.mxu0 %v1512
        %3929 = vmatpush.msra.mxu0 %v1510
        %3930 = vmatpush.msra.mxu0 %v1508
        %3931 = vmatpush.msra.mxu0 %v1506
        %3932 = vmatpush.msra.mxu0 %v1504
        %3933 = vmatpush.msra.mxu0 %v1502
        %3934 = vmatpush.msra.mxu0 %v1500
        %3935 = vmatpush.msra.mxu0 %v1498
        %3936 = vmatpush.msra.mxu0 %v1496
        %3937 = vmatpush.msra.mxu0 %v1494
        %3938 = vmatpush.msra.mxu0 %v1492
        %3939 = vmatmul.f32.gmra.mxu0 %v3003
        %v3940 = vpop.f32.mrf.mxu0
        %v3941 = vadd.f32 %v3921, %v3940
        %3942 = vdwg.mxu0
        %3943 = vmatpush.msra.mxu0 %v1554
        %3944 = vmatpush.msra.mxu0 %v1552
        %3945 = vmatpush.msra.mxu0 %v1550
        %3946 = vmatpush.msra.mxu0 %v1548
        %3947 = vmatpush.msra.mxu0 %v1546
        %3948 = vmatpush.msra.mxu0 %v1544
        %3949 = vmatpush.msra.mxu0 %v1542
        %3950 = vmatpush.msra.mxu0 %v1540
        %3951 = vmatpush.msra.mxu0 %v1538
        %3952 = vmatpush.msra.mxu0 %v1536
        %3953 = vmatpush.msra.mxu0 %v1534
        %3954 = vmatpush.msra.mxu0 %v1532
        %3955 = vmatpush.msra.mxu0 %v1530
        %3956 = vmatpush.msra.mxu0 %v1528
        %3957 = vmatpush.msra.mxu0 %v1526
        %3958 = vmatpush.msra.mxu0 %v1524
        %3959 = vmatmul.f32.gmra.mxu0 %v3006
        %v3960 = vpop.f32.mrf.mxu0
        %v3961 = vadd.f32 %v3941, %v3960
        %3962 = vdwg.mxu0
        %3963 = vmatpush.msra.mxu0 %v1586
        %3964 = vmatpush.msra.mxu0 %v1584
        %3965 = vmatpush.msra.mxu0 %v1582
        %3966 = vmatpush.msra.mxu0 %v1580
        %3967 = vmatpush.msra.mxu0 %v1578
        %3968 = vmatpush.msra.mxu0 %v1576
        %3969 = vmatpush.msra.mxu0 %v1574
        %3970 = vmatpush.msra.mxu0 %v1572
        %3971 = vmatpush.msra.mxu0 %v1570
        %3972 = vmatpush.msra.mxu0 %v1568
        %3973 = vmatpush.msra.mxu0 %v1566
        %3974 = vmatpush.msra.mxu0 %v1564
        %3975 = vmatpush.msra.mxu0 %v1562
        %3976 = vmatpush.msra.mxu0 %v1560
        %3977 = vmatpush.msra.mxu0 %v1558
        %3978 = vmatpush.msra.mxu0 %v1556
        %3979 = vmatmul.f32.gmra.mxu0 %v3007
        %v3980 = vpop.f32.mrf.mxu0
        %v3981 = vadd.f32 %v3961, %v3980
        %3982 = vdwg.mxu0
        %3983 = vmatpush.msra.mxu0 %v1618
        %3984 = vmatpush.msra.mxu0 %v1616
        %3985 = vmatpush.msra.mxu0 %v1614
        %3986 = vmatpush.msra.mxu0 %v1612
        %3987 = vmatpush.msra.mxu0 %v1610
        %3988 = vmatpush.msra.mxu0 %v1608
        %3989 = vmatpush.msra.mxu0 %v1606
        %3990 = vmatpush.msra.mxu0 %v1604
        %3991 = vmatpush.msra.mxu0 %v1602
        %3992 = vmatpush.msra.mxu0 %v1600
        %3993 = vmatpush.msra.mxu0 %v1598
        %3994 = vmatpush.msra.mxu0 %v1596
        %3995 = vmatpush.msra.mxu0 %v1594
        %3996 = vmatpush.msra.mxu0 %v1592
        %3997 = vmatpush.msra.mxu0 %v1590
        %3998 = vmatpush.msra.mxu0 %v1588
        %3999 = vmatmul.f32.gmra.mxu0 %v3008
        %v4000 = vpop.f32.mrf.mxu0
        %v4001 = vadd.f32 %v3981, %v4000
        %4002 = vdwg.mxu0
        %4003 = vmatpush.msra.mxu0 %v1650
        %4004 = vmatpush.msra.mxu0 %v1648
        %4005 = vmatpush.msra.mxu0 %v1646
        %4006 = vmatpush.msra.mxu0 %v1644
        %4007 = vmatpush.msra.mxu0 %v1642
        %4008 = vmatpush.msra.mxu0 %v1640
        %4009 = vmatpush.msra.mxu0 %v1638
        %4010 = vmatpush.msra.mxu0 %v1636
        %4011 = vmatpush.msra.mxu0 %v1634
        %4012 = vmatpush.msra.mxu0 %v1632
        %4013 = vmatpush.msra.mxu0 %v1630
        %4014 = vmatpush.msra.mxu0 %v1628
        %4015 = vmatpush.msra.mxu0 %v1626
        %4016 = vmatpush.msra.mxu0 %v1624
        %4017 = vmatpush.msra.mxu0 %v1622
        %4018 = vmatpush.msra.mxu0 %v1620
        %4019 = vmatmul.f32.gmra.mxu0 %v3009
        %v4020 = vpop.f32.mrf.mxu0
        %v4021 = vadd.f32 %v4001, %v4020
        %4022 = vdwg.mxu0
        %4023 = vmatpush.msra.mxu0 %v1682
        %4024 = vmatpush.msra.mxu0 %v1680
        %4025 = vmatpush.msra.mxu0 %v1678
        %4026 = vmatpush.msra.mxu0 %v1676
        %4027 = vmatpush.msra.mxu0 %v1674
        %4028 = vmatpush.msra.mxu0 %v1672
        %4029 = vmatpush.msra.mxu0 %v1670
        %4030 = vmatpush.msra.mxu0 %v1668
        %4031 = vmatpush.msra.mxu0 %v1666
        %4032 = vmatpush.msra.mxu0 %v1664
        %4033 = vmatpush.msra.mxu0 %v1662
        %4034 = vmatpush.msra.mxu0 %v1660
        %4035 = vmatpush.msra.mxu0 %v1658
        %4036 = vmatpush.msra.mxu0 %v1656
        %4037 = vmatpush.msra.mxu0 %v1654
        %4038 = vmatpush.msra.mxu0 %v1652
        %4039 = vmatmul.f32.gmra.mxu0 %v3010
        %v4040 = vpop.f32.mrf.mxu0
        %v4041 = vadd.f32 %v4021, %v4040
        %4042 = vdwg.mxu0
        %4043 = vmatpush.msra.mxu0 %v1714
        %4044 = vmatpush.msra.mxu0 %v1712
        %4045 = vmatpush.msra.mxu0 %v1710
        %4046 = vmatpush.msra.mxu0 %v1708
        %4047 = vmatpush.msra.mxu0 %v1706
        %4048 = vmatpush.msra.mxu0 %v1704
        %4049 = vmatpush.msra.mxu0 %v1702
        %4050 = vmatpush.msra.mxu0 %v1700
        %4051 = vmatpush.msra.mxu0 %v1698
        %4052 = vmatpush.msra.mxu0 %v1696
        %4053 = vmatpush.msra.mxu0 %v1694
        %4054 = vmatpush.msra.mxu0 %v1692
        %4055 = vmatpush.msra.mxu0 %v1690
        %4056 = vmatpush.msra.mxu0 %v1688
        %4057 = vmatpush.msra.mxu0 %v1686
        %4058 = vmatpush.msra.mxu0 %v1684
        %4059 = vmatmul.f32.gmra.mxu0 %v3011
        %v4060 = vpop.f32.mrf.mxu0
        %v4061 = vadd.f32 %v4041, %v4060
        %4062 = vdwg.mxu0
        %4063 = vmatpush.msra.mxu0 %v1746
        %4064 = vmatpush.msra.mxu0 %v1744
        %4065 = vmatpush.msra.mxu0 %v1742
        %4066 = vmatpush.msra.mxu0 %v1740
        %4067 = vmatpush.msra.mxu0 %v1738
        %4068 = vmatpush.msra.mxu0 %v1736
        %4069 = vmatpush.msra.mxu0 %v1734
        %4070 = vmatpush.msra.mxu0 %v1732
        %4071 = vmatpush.msra.mxu0 %v1730
        %4072 = vmatpush.msra.mxu0 %v1728
        %4073 = vmatpush.msra.mxu0 %v1726
        %4074 = vmatpush.msra.mxu0 %v1724
        %4075 = vmatpush.msra.mxu0 %v1722
        %4076 = vmatpush.msra.mxu0 %v1720
        %4077 = vmatpush.msra.mxu0 %v1718
        %4078 = vmatpush.msra.mxu0 %v1716
        %4079 = vmatmul.f32.gmra.mxu0 %v3012
        %v4080 = vpop.f32.mrf.mxu0
        %v4081 = vadd.f32 %v4061, %v4080
        %4082 = vdwg.mxu0
        %4083 = vmatpush.msra.mxu0 %v1778
        %4084 = vmatpush.msra.mxu0 %v1776
        %4085 = vmatpush.msra.mxu0 %v1774
        %4086 = vmatpush.msra.mxu0 %v1772
        %4087 = vmatpush.msra.mxu0 %v1770
        %4088 = vmatpush.msra.mxu0 %v1768
        %4089 = vmatpush.msra.mxu0 %v1766
        %4090 = vmatpush.msra.mxu0 %v1764
        %4091 = vmatpush.msra.mxu0 %v1762
        %4092 = vmatpush.msra.mxu0 %v1760
        %4093 = vmatpush.msra.mxu0 %v1758
        %4094 = vmatpush.msra.mxu0 %v1756
        %4095 = vmatpush.msra.mxu0 %v1754
        %4096 = vmatpush.msra.mxu0 %v1752
        %4097 = vmatpush.msra.mxu0 %v1750
        %4098 = vmatpush.msra.mxu0 %v1748
        %4099 = vmatmul.f32.gmra.mxu0 %v3013
        %v4100 = vpop.f32.mrf.mxu0
        %v4101 = vadd.f32 %v4081, %v4100
        %4102 = vdwg.mxu0
        %4103 = vmatpush.msra.mxu0 %v1810
        %4104 = vmatpush.msra.mxu0 %v1808
        %4105 = vmatpush.msra.mxu0 %v1806
        %4106 = vmatpush.msra.mxu0 %v1804
        %4107 = vmatpush.msra.mxu0 %v1802
        %4108 = vmatpush.msra.mxu0 %v1800
        %4109 = vmatpush.msra.mxu0 %v1798
        %4110 = vmatpush.msra.mxu0 %v1796
        %4111 = vmatpush.msra.mxu0 %v1794
        %4112 = vmatpush.msra.mxu0 %v1792
        %4113 = vmatpush.msra.mxu0 %v1790
        %4114 = vmatpush.msra.mxu0 %v1788
        %4115 = vmatpush.msra.mxu0 %v1786
        %4116 = vmatpush.msra.mxu0 %v1784
        %4117 = vmatpush.msra.mxu0 %v1782
        %4118 = vmatpush.msra.mxu0 %v1780
        %4119 = vmatmul.f32.gmra.mxu0 %v3016
        %v4120 = vpop.f32.mrf.mxu0
        %v4121 = vadd.f32 %v4101, %v4120
        %4122 = vdwg.mxu0
        %4123 = vmatpush.msra.mxu0 %v1842
        %4124 = vmatpush.msra.mxu0 %v1840
        %4125 = vmatpush.msra.mxu0 %v1838
        %4126 = vmatpush.msra.mxu0 %v1836
        %4127 = vmatpush.msra.mxu0 %v1834
        %4128 = vmatpush.msra.mxu0 %v1832
        %4129 = vmatpush.msra.mxu0 %v1830
        %4130 = vmatpush.msra.mxu0 %v1828
        %4131 = vmatpush.msra.mxu0 %v1826
        %4132 = vmatpush.msra.mxu0 %v1824
        %4133 = vmatpush.msra.mxu0 %v1822
        %4134 = vmatpush.msra.mxu0 %v1820
        %4135 = vmatpush.msra.mxu0 %v1818
        %4136 = vmatpush.msra.mxu0 %v1816
        %4137 = vmatpush.msra.mxu0 %v1814
        %4138 = vmatpush.msra.mxu0 %v1812
        %4139 = vmatmul.f32.gmra.mxu0 %v3017
        %v4140 = vpop.f32.mrf.mxu0
        %v4141 = vadd.f32 %v4121, %v4140
        %4142 = vdwg.mxu0
        %4143 = vmatpush.msra.mxu0 %v1874
        %4144 = vmatpush.msra.mxu0 %v1872
        %4145 = vmatpush.msra.mxu0 %v1870
        %4146 = vmatpush.msra.mxu0 %v1868
        %4147 = vmatpush.msra.mxu0 %v1866
        %4148 = vmatpush.msra.mxu0 %v1864
        %4149 = vmatpush.msra.mxu0 %v1862
        %4150 = vmatpush.msra.mxu0 %v1860
        %4151 = vmatpush.msra.mxu0 %v1858
        %4152 = vmatpush.msra.mxu0 %v1856
        %4153 = vmatpush.msra.mxu0 %v1854
        %4154 = vmatpush.msra.mxu0 %v1852
        %4155 = vmatpush.msra.mxu0 %v1850
        %4156 = vmatpush.msra.mxu0 %v1848
        %4157 = vmatpush.msra.mxu0 %v1846
        %4158 = vmatpush.msra.mxu0 %v1844
        %4159 = vmatmul.f32.gmra.mxu0 %v3018
        %v4160 = vpop.f32.mrf.mxu0
        %v4161 = vadd.f32 %v4141, %v4160
        %4162 = vdwg.mxu0
        %4163 = vmatpush.msra.mxu0 %v1906
        %4164 = vmatpush.msra.mxu0 %v1904
        %4165 = vmatpush.msra.mxu0 %v1902
        %4166 = vmatpush.msra.mxu0 %v1900
        %4167 = vmatpush.msra.mxu0 %v1898
        %4168 = vmatpush.msra.mxu0 %v1896
        %4169 = vmatpush.msra.mxu0 %v1894
        %4170 = vmatpush.msra.mxu0 %v1892
        %4171 = vmatpush.msra.mxu0 %v1890
        %4172 = vmatpush.msra.mxu0 %v1888
        %4173 = vmatpush.msra.mxu0 %v1886
        %4174 = vmatpush.msra.mxu0 %v1884
        %4175 = vmatpush.msra.mxu0 %v1882
        %4176 = vmatpush.msra.mxu0 %v1880
        %4177 = vmatpush.msra.mxu0 %v1878
        %4178 = vmatpush.msra.mxu0 %v1876
        %4179 = vmatmul.f32.gmra.mxu0 %v3019
        %v4180 = vpop.f32.mrf.mxu0
        %v4181 = vadd.f32 %v4161, %v4180
        %4182 = vdwg.mxu0
        %4183 = vmatpush.msra.mxu0 %v1938
        %4184 = vmatpush.msra.mxu0 %v1936
        %4185 = vmatpush.msra.mxu0 %v1934
        %4186 = vmatpush.msra.mxu0 %v1932
        %4187 = vmatpush.msra.mxu0 %v1930
        %4188 = vmatpush.msra.mxu0 %v1928
        %4189 = vmatpush.msra.mxu0 %v1926
        %4190 = vmatpush.msra.mxu0 %v1924
        %4191 = vmatpush.msra.mxu0 %v1922
        %4192 = vmatpush.msra.mxu0 %v1920
        %4193 = vmatpush.msra.mxu0 %v1918
        %4194 = vmatpush.msra.mxu0 %v1916
        %4195 = vmatpush.msra.mxu0 %v1914
        %4196 = vmatpush.msra.mxu0 %v1912
        %4197 = vmatpush.msra.mxu0 %v1910
        %4198 = vmatpush.msra.mxu0 %v1908
        %4199 = vmatmul.f32.gmra.mxu0 %v3020
        %v4200 = vpop.f32.mrf.mxu0
        %v4201 = vadd.f32 %v4181, %v4200
        %4202 = vdwg.mxu0
        %4203 = vmatpush.msra.mxu0 %v1970
        %4204 = vmatpush.msra.mxu0 %v1968
        %4205 = vmatpush.msra.mxu0 %v1966
        %4206 = vmatpush.msra.mxu0 %v1964
        %4207 = vmatpush.msra.mxu0 %v1962
        %4208 = vmatpush.msra.mxu0 %v1960
        %4209 = vmatpush.msra.mxu0 %v1958
        %4210 = vmatpush.msra.mxu0 %v1956
        %4211 = vmatpush.msra.mxu0 %v1954
        %4212 = vmatpush.msra.mxu0 %v1952
        %4213 = vmatpush.msra.mxu0 %v1950
        %4214 = vmatpush.msra.mxu0 %v1948
        %4215 = vmatpush.msra.mxu0 %v1946
        %4216 = vmatpush.msra.mxu0 %v1944
        %4217 = vmatpush.msra.mxu0 %v1942
        %4218 = vmatpush.msra.mxu0 %v1940
        %4219 = vmatmul.f32.gmra.mxu0 %v3021
        %v4220 = vpop.f32.mrf.mxu0
        %v4221 = vadd.f32 %v4201, %v4220
        %4222 = vdwg.mxu0
        %4223 = vmatpush.msra.mxu0 %v2002
        %4224 = vmatpush.msra.mxu0 %v2000
        %4225 = vmatpush.msra.mxu0 %v1998
        %4226 = vmatpush.msra.mxu0 %v1996
        %4227 = vmatpush.msra.mxu0 %v1994
        %4228 = vmatpush.msra.mxu0 %v1992
        %4229 = vmatpush.msra.mxu0 %v1990
        %4230 = vmatpush.msra.mxu0 %v1988
        %4231 = vmatpush.msra.mxu0 %v1986
        %4232 = vmatpush.msra.mxu0 %v1984
        %4233 = vmatpush.msra.mxu0 %v1982
        %4234 = vmatpush.msra.mxu0 %v1980
        %4235 = vmatpush.msra.mxu0 %v1978
        %4236 = vmatpush.msra.mxu0 %v1976
        %4237 = vmatpush.msra.mxu0 %v1974
        %4238 = vmatpush.msra.mxu0 %v1972
        %4239 = vmatmul.f32.gmra.mxu0 %v3022
        %v4240 = vpop.f32.mrf.mxu0
        %v4241 = vadd.f32 %v4221, %v4240
        %4242 = vdwg.mxu0
        %4243 = vmatpush.msra.mxu0 %v2034
        %4244 = vmatpush.msra.mxu0 %v2032
        %4245 = vmatpush.msra.mxu0 %v2030
        %4246 = vmatpush.msra.mxu0 %v2028
        %4247 = vmatpush.msra.mxu0 %v2026
        %4248 = vmatpush.msra.mxu0 %v2024
        %4249 = vmatpush.msra.mxu0 %v2022
        %4250 = vmatpush.msra.mxu0 %v2020
        %4251 = vmatpush.msra.mxu0 %v2018
        %4252 = vmatpush.msra.mxu0 %v2016
        %4253 = vmatpush.msra.mxu0 %v2014
        %4254 = vmatpush.msra.mxu0 %v2012
        %4255 = vmatpush.msra.mxu0 %v2010
        %4256 = vmatpush.msra.mxu0 %v2008
        %4257 = vmatpush.msra.mxu0 %v2006
        %4258 = vmatpush.msra.mxu0 %v2004
        %4259 = vmatmul.f32.gmra.mxu0 %v3023
        %v4260 = vpop.f32.mrf.mxu0
        %v4261 = vadd.f32 %v4241, %v4260
        %4262 = vdwg.mxu0
        %4263 = vmatpush.msra.mxu0 %v2066
        %4264 = vmatpush.msra.mxu0 %v2064
        %4265 = vmatpush.msra.mxu0 %v2062
        %4266 = vmatpush.msra.mxu0 %v2060
        %4267 = vmatpush.msra.mxu0 %v2058
        %4268 = vmatpush.msra.mxu0 %v2056
        %4269 = vmatpush.msra.mxu0 %v2054
        %4270 = vmatpush.msra.mxu0 %v2052
        %4271 = vmatpush.msra.mxu0 %v2050
        %4272 = vmatpush.msra.mxu0 %v2048
        %4273 = vmatpush.msra.mxu0 %v2046
        %4274 = vmatpush.msra.mxu0 %v2044
        %4275 = vmatpush.msra.mxu0 %v2042
        %4276 = vmatpush.msra.mxu0 %v2040
        %4277 = vmatpush.msra.mxu0 %v2038
        %4278 = vmatpush.msra.mxu0 %v2036
        %4279 = vmatmul.f32.gmra.mxu0 %v3026
        %v4280 = vpop.f32.mrf.mxu0
        %v4281 = vadd.f32 %v4261, %v4280
        %4282 = vdwg.mxu0
        %4283 = vmatpush.msra.mxu0 %v2098
        %4284 = vmatpush.msra.mxu0 %v2096
        %4285 = vmatpush.msra.mxu0 %v2094
        %4286 = vmatpush.msra.mxu0 %v2092
        %4287 = vmatpush.msra.mxu0 %v2090
        %4288 = vmatpush.msra.mxu0 %v2088
        %4289 = vmatpush.msra.mxu0 %v2086
        %4290 = vmatpush.msra.mxu0 %v2084
        %4291 = vmatpush.msra.mxu0 %v2082
        %4292 = vmatpush.msra.mxu0 %v2080
        %4293 = vmatpush.msra.mxu0 %v2078
        %4294 = vmatpush.msra.mxu0 %v2076
        %4295 = vmatpush.msra.mxu0 %v2074
        %4296 = vmatpush.msra.mxu0 %v2072
        %4297 = vmatpush.msra.mxu0 %v2070
        %4298 = vmatpush.msra.mxu0 %v2068
        %4299 = vmatmul.f32.gmra.mxu0 %v3027
        %v4300 = vpop.f32.mrf.mxu0
        %v4301 = vadd.f32 %v4281, %v4300
        %4302 = vdwg.mxu0
        %4303 = vmatpush.msra.mxu0 %v2130
        %4304 = vmatpush.msra.mxu0 %v2128
        %4305 = vmatpush.msra.mxu0 %v2126
        %4306 = vmatpush.msra.mxu0 %v2124
        %4307 = vmatpush.msra.mxu0 %v2122
        %4308 = vmatpush.msra.mxu0 %v2120
        %4309 = vmatpush.msra.mxu0 %v2118
        %4310 = vmatpush.msra.mxu0 %v2116
        %4311 = vmatpush.msra.mxu0 %v2114
        %4312 = vmatpush.msra.mxu0 %v2112
        %4313 = vmatpush.msra.mxu0 %v2110
        %4314 = vmatpush.msra.mxu0 %v2108
        %4315 = vmatpush.msra.mxu0 %v2106
        %4316 = vmatpush.msra.mxu0 %v2104
        %4317 = vmatpush.msra.mxu0 %v2102
        %4318 = vmatpush.msra.mxu0 %v2100
        %4319 = vmatmul.f32.gmra.mxu0 %v3028
        %v4320 = vpop.f32.mrf.mxu0
        %v4321 = vadd.f32 %v4301, %v4320
        %4322 = vdwg.mxu0
        %4323 = vmatpush.msra.mxu0 %v2162
        %4324 = vmatpush.msra.mxu0 %v2160
        %4325 = vmatpush.msra.mxu0 %v2158
        %4326 = vmatpush.msra.mxu0 %v2156
        %4327 = vmatpush.msra.mxu0 %v2154
        %4328 = vmatpush.msra.mxu0 %v2152
        %4329 = vmatpush.msra.mxu0 %v2150
        %4330 = vmatpush.msra.mxu0 %v2148
        %4331 = vmatpush.msra.mxu0 %v2146
        %4332 = vmatpush.msra.mxu0 %v2144
        %4333 = vmatpush.msra.mxu0 %v2142
        %4334 = vmatpush.msra.mxu0 %v2140
        %4335 = vmatpush.msra.mxu0 %v2138
        %4336 = vmatpush.msra.mxu0 %v2136
        %4337 = vmatpush.msra.mxu0 %v2134
        %4338 = vmatpush.msra.mxu0 %v2132
        %4339 = vmatmul.f32.gmra.mxu0 %v3029
        %v4340 = vpop.f32.mrf.mxu0
        %v4341 = vadd.f32 %v4321, %v4340
        %4342 = vdwg.mxu0
        %4343 = vmatpush.msra.mxu0 %v2194
        %4344 = vmatpush.msra.mxu0 %v2192
        %4345 = vmatpush.msra.mxu0 %v2190
        %4346 = vmatpush.msra.mxu0 %v2188
        %4347 = vmatpush.msra.mxu0 %v2186
        %4348 = vmatpush.msra.mxu0 %v2184
        %4349 = vmatpush.msra.mxu0 %v2182
        %4350 = vmatpush.msra.mxu0 %v2180
        %4351 = vmatpush.msra.mxu0 %v2178
        %4352 = vmatpush.msra.mxu0 %v2176
        %4353 = vmatpush.msra.mxu0 %v2174
        %4354 = vmatpush.msra.mxu0 %v2172
        %4355 = vmatpush.msra.mxu0 %v2170
        %4356 = vmatpush.msra.mxu0 %v2168
        %4357 = vmatpush.msra.mxu0 %v2166
        %4358 = vmatpush.msra.mxu0 %v2164
        %4359 = vmatmul.f32.gmra.mxu0 %v3030
        %v4360 = vpop.f32.mrf.mxu0
        %v4361 = vadd.f32 %v4341, %v4360
        %4362 = vdwg.mxu0
        %4363 = vmatpush.msra.mxu0 %v2226
        %4364 = vmatpush.msra.mxu0 %v2224
        %4365 = vmatpush.msra.mxu0 %v2222
        %4366 = vmatpush.msra.mxu0 %v2220
        %4367 = vmatpush.msra.mxu0 %v2218
        %4368 = vmatpush.msra.mxu0 %v2216
        %4369 = vmatpush.msra.mxu0 %v2214
        %4370 = vmatpush.msra.mxu0 %v2212
        %4371 = vmatpush.msra.mxu0 %v2210
        %4372 = vmatpush.msra.mxu0 %v2208
        %4373 = vmatpush.msra.mxu0 %v2206
        %4374 = vmatpush.msra.mxu0 %v2204
        %4375 = vmatpush.msra.mxu0 %v2202
        %4376 = vmatpush.msra.mxu0 %v2200
        %4377 = vmatpush.msra.mxu0 %v2198
        %4378 = vmatpush.msra.mxu0 %v2196
        %4379 = vmatmul.f32.gmra.mxu0 %v3031
        %v4380 = vpop.f32.mrf.mxu0
        %v4381 = vadd.f32 %v4361, %v4380
        %4382 = vdwg.mxu0
        %4383 = vmatpush.msra.mxu0 %v2258
        %4384 = vmatpush.msra.mxu0 %v2256
        %4385 = vmatpush.msra.mxu0 %v2254
        %4386 = vmatpush.msra.mxu0 %v2252
        %4387 = vmatpush.msra.mxu0 %v2250
        %4388 = vmatpush.msra.mxu0 %v2248
        %4389 = vmatpush.msra.mxu0 %v2246
        %4390 = vmatpush.msra.mxu0 %v2244
        %4391 = vmatpush.msra.mxu0 %v2242
        %4392 = vmatpush.msra.mxu0 %v2240
        %4393 = vmatpush.msra.mxu0 %v2238
        %4394 = vmatpush.msra.mxu0 %v2236
        %4395 = vmatpush.msra.mxu0 %v2234
        %4396 = vmatpush.msra.mxu0 %v2232
        %4397 = vmatpush.msra.mxu0 %v2230
        %4398 = vmatpush.msra.mxu0 %v2228
        %4399 = vmatmul.f32.gmra.mxu0 %v3032
        %v4400 = vpop.f32.mrf.mxu0
        %v4401 = vadd.f32 %v4381, %v4400
        %4402 = vdwg.mxu0
        %4403 = vmatpush.msra.mxu0 %v2290
        %4404 = vmatpush.msra.mxu0 %v2288
        %4405 = vmatpush.msra.mxu0 %v2286
        %4406 = vmatpush.msra.mxu0 %v2284
        %4407 = vmatpush.msra.mxu0 %v2282
        %4408 = vmatpush.msra.mxu0 %v2280
        %4409 = vmatpush.msra.mxu0 %v2278
        %4410 = vmatpush.msra.mxu0 %v2276
        %4411 = vmatpush.msra.mxu0 %v2274
        %4412 = vmatpush.msra.mxu0 %v2272
        %4413 = vmatpush.msra.mxu0 %v2270
        %4414 = vmatpush.msra.mxu0 %v2268
        %4415 = vmatpush.msra.mxu0 %v2266
        %4416 = vmatpush.msra.mxu0 %v2264
        %4417 = vmatpush.msra.mxu0 %v2262
        %4418 = vmatpush.msra.mxu0 %v2260
        %4419 = vmatmul.f32.gmra.mxu0 %v3033
        %v4420 = vpop.f32.mrf.mxu0
        %v4421 = vadd.f32 %v4401, %v4420
        %4422 = vdwg.mxu0
        %4423 = vmatpush.msra.mxu0 %v2322
        %4424 = vmatpush.msra.mxu0 %v2320
        %4425 = vmatpush.msra.mxu0 %v2318
        %4426 = vmatpush.msra.mxu0 %v2316
        %4427 = vmatpush.msra.mxu0 %v2314
        %4428 = vmatpush.msra.mxu0 %v2312
        %4429 = vmatpush.msra.mxu0 %v2310
        %4430 = vmatpush.msra.mxu0 %v2308
        %4431 = vmatpush.msra.mxu0 %v2306
        %4432 = vmatpush.msra.mxu0 %v2304
        %4433 = vmatpush.msra.mxu0 %v2302
        %4434 = vmatpush.msra.mxu0 %v2300
        %4435 = vmatpush.msra.mxu0 %v2298
        %4436 = vmatpush.msra.mxu0 %v2296
        %4437 = vmatpush.msra.mxu0 %v2294
        %4438 = vmatpush.msra.mxu0 %v2292
        %4439 = vmatmul.f32.gmra.mxu0 %v3036
        %v4440 = vpop.f32.mrf.mxu0
        %v4441 = vadd.f32 %v4421, %v4440
        %4442 = vdwg.mxu0
        %4443 = vmatpush.msra.mxu0 %v2354
        %4444 = vmatpush.msra.mxu0 %v2352
        %4445 = vmatpush.msra.mxu0 %v2350
        %4446 = vmatpush.msra.mxu0 %v2348
        %4447 = vmatpush.msra.mxu0 %v2346
        %4448 = vmatpush.msra.mxu0 %v2344
        %4449 = vmatpush.msra.mxu0 %v2342
        %4450 = vmatpush.msra.mxu0 %v2340
        %4451 = vmatpush.msra.mxu0 %v2338
        %4452 = vmatpush.msra.mxu0 %v2336
        %4453 = vmatpush.msra.mxu0 %v2334
        %4454 = vmatpush.msra.mxu0 %v2332
        %4455 = vmatpush.msra.mxu0 %v2330
        %4456 = vmatpush.msra.mxu0 %v2328
        %4457 = vmatpush.msra.mxu0 %v2326
        %4458 = vmatpush.msra.mxu0 %v2324
        %4459 = vmatmul.f32.gmra.mxu0 %v3037
        %v4460 = vpop.f32.mrf.mxu0
        %v4461 = vadd.f32 %v4441, %v4460
        %4462 = vdwg.mxu0
        %4463 = vmatpush.msra.mxu0 %v2386
        %4464 = vmatpush.msra.mxu0 %v2384
        %4465 = vmatpush.msra.mxu0 %v2382
        %4466 = vmatpush.msra.mxu0 %v2380
        %4467 = vmatpush.msra.mxu0 %v2378
        %4468 = vmatpush.msra.mxu0 %v2376
        %4469 = vmatpush.msra.mxu0 %v2374
        %4470 = vmatpush.msra.mxu0 %v2372
        %4471 = vmatpush.msra.mxu0 %v2370
        %4472 = vmatpush.msra.mxu0 %v2368
        %4473 = vmatpush.msra.mxu0 %v2366
        %4474 = vmatpush.msra.mxu0 %v2364
        %4475 = vmatpush.msra.mxu0 %v2362
        %4476 = vmatpush.msra.mxu0 %v2360
        %4477 = vmatpush.msra.mxu0 %v2358
        %4478 = vmatpush.msra.mxu0 %v2356
        %4479 = vmatmul.f32.gmra.mxu0 %v3038
        %v4480 = vpop.f32.mrf.mxu0
        %v4481 = vadd.f32 %v4461, %v4480
        %4482 = vdwg.mxu0
        %4483 = vmatpush.msra.mxu0 %v2418
        %4484 = vmatpush.msra.mxu0 %v2416
        %4485 = vmatpush.msra.mxu0 %v2414
        %4486 = vmatpush.msra.mxu0 %v2412
        %4487 = vmatpush.msra.mxu0 %v2410
        %4488 = vmatpush.msra.mxu0 %v2408
        %4489 = vmatpush.msra.mxu0 %v2406
        %4490 = vmatpush.msra.mxu0 %v2404
        %4491 = vmatpush.msra.mxu0 %v2402
        %4492 = vmatpush.msra.mxu0 %v2400
        %4493 = vmatpush.msra.mxu0 %v2398
        %4494 = vmatpush.msra.mxu0 %v2396
        %4495 = vmatpush.msra.mxu0 %v2394
        %4496 = vmatpush.msra.mxu0 %v2392
        %4497 = vmatpush.msra.mxu0 %v2390
        %4498 = vmatpush.msra.mxu0 %v2388
        %4499 = vmatmul.f32.gmra.mxu0 %v3039
        %v4500 = vpop.f32.mrf.mxu0
        %v4501 = vadd.f32 %v4481, %v4500
        %4502 = vdwg.mxu0
        %4503 = vmatpush.msra.mxu0 %v2450
        %4504 = vmatpush.msra.mxu0 %v2448
        %4505 = vmatpush.msra.mxu0 %v2446
        %4506 = vmatpush.msra.mxu0 %v2444
        %4507 = vmatpush.msra.mxu0 %v2442
        %4508 = vmatpush.msra.mxu0 %v2440
        %4509 = vmatpush.msra.mxu0 %v2438
        %4510 = vmatpush.msra.mxu0 %v2436
        %4511 = vmatpush.msra.mxu0 %v2434
        %4512 = vmatpush.msra.mxu0 %v2432
        %4513 = vmatpush.msra.mxu0 %v2430
        %4514 = vmatpush.msra.mxu0 %v2428
        %4515 = vmatpush.msra.mxu0 %v2426
        %4516 = vmatpush.msra.mxu0 %v2424
        %4517 = vmatpush.msra.mxu0 %v2422
        %4518 = vmatpush.msra.mxu0 %v2420
        %4519 = vmatmul.f32.gmra.mxu0 %v3040
        %v4520 = vpop.f32.mrf.mxu0
        %v4521 = vadd.f32 %v4501, %v4520
        %4522 = vdwg.mxu0
        %4523 = vmatpush.msra.mxu0 %v2482
        %4524 = vmatpush.msra.mxu0 %v2480
        %4525 = vmatpush.msra.mxu0 %v2478
        %4526 = vmatpush.msra.mxu0 %v2476
        %4527 = vmatpush.msra.mxu0 %v2474
        %4528 = vmatpush.msra.mxu0 %v2472
        %4529 = vmatpush.msra.mxu0 %v2470
        %4530 = vmatpush.msra.mxu0 %v2468
        %4531 = vmatpush.msra.mxu0 %v2466
        %4532 = vmatpush.msra.mxu0 %v2464
        %4533 = vmatpush.msra.mxu0 %v2462
        %4534 = vmatpush.msra.mxu0 %v2460
        %4535 = vmatpush.msra.mxu0 %v2458
        %4536 = vmatpush.msra.mxu0 %v2456
        %4537 = vmatpush.msra.mxu0 %v2454
        %4538 = vmatpush.msra.mxu0 %v2452
        %4539 = vmatmul.f32.gmra.mxu0 %v3041
        %v4540 = vpop.f32.mrf.mxu0
        %v4541 = vadd.f32 %v4521, %v4540
        %4542 = vdwg.mxu0
        %4543 = vmatpush.msra.mxu0 %v2514
        %4544 = vmatpush.msra.mxu0 %v2512
        %4545 = vmatpush.msra.mxu0 %v2510
        %4546 = vmatpush.msra.mxu0 %v2508
        %4547 = vmatpush.msra.mxu0 %v2506
        %4548 = vmatpush.msra.mxu0 %v2504
        %4549 = vmatpush.msra.mxu0 %v2502
        %4550 = vmatpush.msra.mxu0 %v2500
        %4551 = vmatpush.msra.mxu0 %v2498
        %4552 = vmatpush.msra.mxu0 %v2496
        %4553 = vmatpush.msra.mxu0 %v2494
        %4554 = vmatpush.msra.mxu0 %v2492
        %4555 = vmatpush.msra.mxu0 %v2490
        %4556 = vmatpush.msra.mxu0 %v2488
        %4557 = vmatpush.msra.mxu0 %v2486
        %4558 = vmatpush.msra.mxu0 %v2484
        %4559 = vmatmul.f32.gmra.mxu0 %v3042
        %v4560 = vpop.f32.mrf.mxu0
        %v4561 = vadd.f32 %v4541, %v4560
        %4562 = vdwg.mxu0
        %4563 = vmatpush.msra.mxu0 %v2546
        %4564 = vmatpush.msra.mxu0 %v2544
        %4565 = vmatpush.msra.mxu0 %v2542
        %4566 = vmatpush.msra.mxu0 %v2540
        %4567 = vmatpush.msra.mxu0 %v2538
        %4568 = vmatpush.msra.mxu0 %v2536
        %4569 = vmatpush.msra.mxu0 %v2534
        %4570 = vmatpush.msra.mxu0 %v2532
        %4571 = vmatpush.msra.mxu0 %v2530
        %4572 = vmatpush.msra.mxu0 %v2528
        %4573 = vmatpush.msra.mxu0 %v2526
        %4574 = vmatpush.msra.mxu0 %v2524
        %4575 = vmatpush.msra.mxu0 %v2522
        %4576 = vmatpush.msra.mxu0 %v2520
        %4577 = vmatpush.msra.mxu0 %v2518
        %4578 = vmatpush.msra.mxu0 %v2516
        %4579 = vmatmul.f32.gmra.mxu0 %v3043
        %v4580 = vpop.f32.mrf.mxu0
        %v4581 = vadd.f32 %v4561, %v4580
        %4582 = vdwg.mxu0
        %4583 = vmatpush.msra.mxu0 %v2578
        %4584 = vmatpush.msra.mxu0 %v2576
        %4585 = vmatpush.msra.mxu0 %v2574
        %4586 = vmatpush.msra.mxu0 %v2572
        %4587 = vmatpush.msra.mxu0 %v2570
        %4588 = vmatpush.msra.mxu0 %v2568
        %4589 = vmatpush.msra.mxu0 %v2566
        %4590 = vmatpush.msra.mxu0 %v2564
        %4591 = vmatpush.msra.mxu0 %v2562
        %4592 = vmatpush.msra.mxu0 %v2560
        %4593 = vmatpush.msra.mxu0 %v2558
        %4594 = vmatpush.msra.mxu0 %v2556
        %4595 = vmatpush.msra.mxu0 %v2554
        %4596 = vmatpush.msra.mxu0 %v2552
        %4597 = vmatpush.msra.mxu0 %v2550
        %4598 = vmatpush.msra.mxu0 %v2548
        %4599 = vmatmul.f32.gmra.mxu0 %v3046
        %v4600 = vpop.f32.mrf.mxu0
        %v4601 = vadd.f32 %v4581, %v4600
        %4602 = vdwg.mxu0
        %4603 = vmatpush.msra.mxu0 %v2610
        %4604 = vmatpush.msra.mxu0 %v2608
        %4605 = vmatpush.msra.mxu0 %v2606
        %4606 = vmatpush.msra.mxu0 %v2604
        %4607 = vmatpush.msra.mxu0 %v2602
        %4608 = vmatpush.msra.mxu0 %v2600
        %4609 = vmatpush.msra.mxu0 %v2598
        %4610 = vmatpush.msra.mxu0 %v2596
        %4611 = vmatpush.msra.mxu0 %v2594
        %4612 = vmatpush.msra.mxu0 %v2592
        %4613 = vmatpush.msra.mxu0 %v2590
        %4614 = vmatpush.msra.mxu0 %v2588
        %4615 = vmatpush.msra.mxu0 %v2586
        %4616 = vmatpush.msra.mxu0 %v2584
        %4617 = vmatpush.msra.mxu0 %v2582
        %4618 = vmatpush.msra.mxu0 %v2580
        %4619 = vmatmul.f32.gmra.mxu0 %v3047
        %v4620 = vpop.f32.mrf.mxu0
        %v4621 = vadd.f32 %v4601, %v4620
        %4622 = vdwg.mxu0
        %4623 = vmatpush.msra.mxu0 %v2642
        %4624 = vmatpush.msra.mxu0 %v2640
        %4625 = vmatpush.msra.mxu0 %v2638
        %4626 = vmatpush.msra.mxu0 %v2636
        %4627 = vmatpush.msra.mxu0 %v2634
        %4628 = vmatpush.msra.mxu0 %v2632
        %4629 = vmatpush.msra.mxu0 %v2630
        %4630 = vmatpush.msra.mxu0 %v2628
        %4631 = vmatpush.msra.mxu0 %v2626
        %4632 = vmatpush.msra.mxu0 %v2624
        %4633 = vmatpush.msra.mxu0 %v2622
        %4634 = vmatpush.msra.mxu0 %v2620
        %4635 = vmatpush.msra.mxu0 %v2618
        %4636 = vmatpush.msra.mxu0 %v2616
        %4637 = vmatpush.msra.mxu0 %v2614
        %4638 = vmatpush.msra.mxu0 %v2612
        %4639 = vmatmul.f32.gmra.mxu0 %v3048
        %v4640 = vpop.f32.mrf.mxu0
        %v4641 = vadd.f32 %v4621, %v4640
        %4642 = vdwg.mxu0
        %4643 = vmatpush.msra.mxu0 %v2674
        %4644 = vmatpush.msra.mxu0 %v2672
        %4645 = vmatpush.msra.mxu0 %v2670
        %4646 = vmatpush.msra.mxu0 %v2668
        %4647 = vmatpush.msra.mxu0 %v2666
        %4648 = vmatpush.msra.mxu0 %v2664
        %4649 = vmatpush.msra.mxu0 %v2662
        %4650 = vmatpush.msra.mxu0 %v2660
        %4651 = vmatpush.msra.mxu0 %v2658
        %4652 = vmatpush.msra.mxu0 %v2656
        %4653 = vmatpush.msra.mxu0 %v2654
        %4654 = vmatpush.msra.mxu0 %v2652
        %4655 = vmatpush.msra.mxu0 %v2650
        %4656 = vmatpush.msra.mxu0 %v2648
        %4657 = vmatpush.msra.mxu0 %v2646
        %4658 = vmatpush.msra.mxu0 %v2644
        %4659 = vmatmul.f32.gmra.mxu0 %v3049
        %v4660 = vpop.f32.mrf.mxu0
        %v4661 = vadd.f32 %v4641, %v4660
        %4662 = vdwg.mxu0
        %4663 = vmatpush.msra.mxu0 %v2706
        %4664 = vmatpush.msra.mxu0 %v2704
        %4665 = vmatpush.msra.mxu0 %v2702
        %4666 = vmatpush.msra.mxu0 %v2700
        %4667 = vmatpush.msra.mxu0 %v2698
        %4668 = vmatpush.msra.mxu0 %v2696
        %4669 = vmatpush.msra.mxu0 %v2694
        %4670 = vmatpush.msra.mxu0 %v2692
        %4671 = vmatpush.msra.mxu0 %v2690
        %4672 = vmatpush.msra.mxu0 %v2688
        %4673 = vmatpush.msra.mxu0 %v2686
        %4674 = vmatpush.msra.mxu0 %v2684
        %4675 = vmatpush.msra.mxu0 %v2682
        %4676 = vmatpush.msra.mxu0 %v2680
        %4677 = vmatpush.msra.mxu0 %v2678
        %4678 = vmatpush.msra.mxu0 %v2676
        %4679 = vmatmul.f32.gmra.mxu0 %v3050
        %v4680 = vpop.f32.mrf.mxu0
        %v4681 = vadd.f32 %v4661, %v4680
        %4682 = vdwg.mxu0
        %4683 = vmatpush.msra.mxu0 %v2738
        %4684 = vmatpush.msra.mxu0 %v2736
        %4685 = vmatpush.msra.mxu0 %v2734
        %4686 = vmatpush.msra.mxu0 %v2732
        %4687 = vmatpush.msra.mxu0 %v2730
        %4688 = vmatpush.msra.mxu0 %v2728
        %4689 = vmatpush.msra.mxu0 %v2726
        %4690 = vmatpush.msra.mxu0 %v2724
        %4691 = vmatpush.msra.mxu0 %v2722
        %4692 = vmatpush.msra.mxu0 %v2720
        %4693 = vmatpush.msra.mxu0 %v2718
        %4694 = vmatpush.msra.mxu0 %v2716
        %4695 = vmatpush.msra.mxu0 %v2714
        %4696 = vmatpush.msra.mxu0 %v2712
        %4697 = vmatpush.msra.mxu0 %v2710
        %4698 = vmatpush.msra.mxu0 %v2708
        %4699 = vmatmul.f32.gmra.mxu0 %v3051
        %v4700 = vpop.f32.mrf.mxu0
        %v4701 = vadd.f32 %v4681, %v4700
        %4702 = vdwg.mxu0
        %4703 = vmatpush.msra.mxu0 %v2770
        %4704 = vmatpush.msra.mxu0 %v2768
        %4705 = vmatpush.msra.mxu0 %v2766
        %4706 = vmatpush.msra.mxu0 %v2764
        %4707 = vmatpush.msra.mxu0 %v2762
        %4708 = vmatpush.msra.mxu0 %v2760
        %4709 = vmatpush.msra.mxu0 %v2758
        %4710 = vmatpush.msra.mxu0 %v2756
        %4711 = vmatpush.msra.mxu0 %v2754
        %4712 = vmatpush.msra.mxu0 %v2752
        %4713 = vmatpush.msra.mxu0 %v2750
        %4714 = vmatpush.msra.mxu0 %v2748
        %4715 = vmatpush.msra.mxu0 %v2746
        %4716 = vmatpush.msra.mxu0 %v2744
        %4717 = vmatpush.msra.mxu0 %v2742
        %4718 = vmatpush.msra.mxu0 %v2740
        %4719 = vmatmul.f32.gmra.mxu0 %v3052
        %v4720 = vpop.f32.mrf.mxu0
        %v4721 = vadd.f32 %v4701, %v4720
        %4722 = vdwg.mxu0
        %4723 = vmatpush.msra.mxu0 %v2802
        %4724 = vmatpush.msra.mxu0 %v2800
        %4725 = vmatpush.msra.mxu0 %v2798
        %4726 = vmatpush.msra.mxu0 %v2796
        %4727 = vmatpush.msra.mxu0 %v2794
        %4728 = vmatpush.msra.mxu0 %v2792
        %4729 = vmatpush.msra.mxu0 %v2790
        %4730 = vmatpush.msra.mxu0 %v2788
        %4731 = vmatpush.msra.mxu0 %v2786
        %4732 = vmatpush.msra.mxu0 %v2784
        %4733 = vmatpush.msra.mxu0 %v2782
        %4734 = vmatpush.msra.mxu0 %v2780
        %4735 = vmatpush.msra.mxu0 %v2778
        %4736 = vmatpush.msra.mxu0 %v2776
        %4737 = vmatpush.msra.mxu0 %v2774
        %4738 = vmatpush.msra.mxu0 %v2772
        %4739 = vmatmul.f32.gmra.mxu0 %v3053
        %v4740 = vpop.f32.mrf.mxu0
        %v4741 = vadd.f32 %v4721, %v4740
        %4742 = vdwg.mxu0
        %4743 = vmatpush.msra.mxu0 %v2834
        %4744 = vmatpush.msra.mxu0 %v2832
        %4745 = vmatpush.msra.mxu0 %v2830
        %4746 = vmatpush.msra.mxu0 %v2828
        %4747 = vmatpush.msra.mxu0 %v2826
        %4748 = vmatpush.msra.mxu0 %v2824
        %4749 = vmatpush.msra.mxu0 %v2822
        %4750 = vmatpush.msra.mxu0 %v2820
        %4751 = vmatpush.msra.mxu0 %v2818
        %4752 = vmatpush.msra.mxu0 %v2816
        %4753 = vmatpush.msra.mxu0 %v2814
        %4754 = vmatpush.msra.mxu0 %v2812
        %4755 = vmatpush.msra.mxu0 %v2810
        %4756 = vmatpush.msra.mxu0 %v2808
        %4757 = vmatpush.msra.mxu0 %v2806
        %4758 = vmatpush.msra.mxu0 %v2804
        %4759 = vmatmul.f32.gmra.mxu0 %v3055
        %v4760 = vpop.f32.mrf.mxu0
        %v4761 = vadd.f32 %v4741, %v4760
        %4762 = vdwg.mxu0
        %4763 = vmatpush.msra.mxu0 %v2866
        %4764 = vmatpush.msra.mxu0 %v2864
        %4765 = vmatpush.msra.mxu0 %v2862
        %4766 = vmatpush.msra.mxu0 %v2860
        %4767 = vmatpush.msra.mxu0 %v2858
        %4768 = vmatpush.msra.mxu0 %v2856
        %4769 = vmatpush.msra.mxu0 %v2854
        %4770 = vmatpush.msra.mxu0 %v2852
        %4771 = vmatpush.msra.mxu0 %v2850
        %4772 = vmatpush.msra.mxu0 %v2848
        %4773 = vmatpush.msra.mxu0 %v2846
        %4774 = vmatpush.msra.mxu0 %v2844
        %4775 = vmatpush.msra.mxu0 %v2842
        %4776 = vmatpush.msra.mxu0 %v2840
        %4777 = vmatpush.msra.mxu0 %v2838
        %4778 = vmatpush.msra.mxu0 %v2836
        %4779 = vmatmul.f32.gmra.mxu0 %v3056
        %v4780 = vpop.f32.mrf.mxu0
        %v4781 = vadd.f32 %v4761, %v4780
        %4782 = vdwg.mxu0
        %4783 = vmatpush.msra.mxu0 %v2898
        %4784 = vmatpush.msra.mxu0 %v2896
        %4785 = vmatpush.msra.mxu0 %v2894
        %4786 = vmatpush.msra.mxu0 %v2892
        %4787 = vmatpush.msra.mxu0 %v2890
        %4788 = vmatpush.msra.mxu0 %v2888
        %4789 = vmatpush.msra.mxu0 %v2886
        %4790 = vmatpush.msra.mxu0 %v2884
        %4791 = vmatpush.msra.mxu0 %v2882
        %4792 = vmatpush.msra.mxu0 %v2880
        %4793 = vmatpush.msra.mxu0 %v2878
        %4794 = vmatpush.msra.mxu0 %v2876
        %4795 = vmatpush.msra.mxu0 %v2874
        %4796 = vmatpush.msra.mxu0 %v2872
        %4797 = vmatpush.msra.mxu0 %v2870
        %4798 = vmatpush.msra.mxu0 %v2868
        %4799 = vmatmul.f32.gmra.mxu0 %v3057
        %v4800 = vpop.f32.mrf.mxu0
        %v4801 = vadd.f32 %v4781, %v4800
        %4802 = vdwg.mxu0
        %4803 = vmatpush.msra.mxu0 %v2930
        %4804 = vmatpush.msra.mxu0 %v2928
        %4805 = vmatpush.msra.mxu0 %v2926
        %4806 = vmatpush.msra.mxu0 %v2924
        %4807 = vmatpush.msra.mxu0 %v2922
        %4808 = vmatpush.msra.mxu0 %v2920
        %4809 = vmatpush.msra.mxu0 %v2918
        %4810 = vmatpush.msra.mxu0 %v2916
        %4811 = vmatpush.msra.mxu0 %v2914
        %4812 = vmatpush.msra.mxu0 %v2912
        %4813 = vmatpush.msra.mxu0 %v2910
        %4814 = vmatpush.msra.mxu0 %v2908
        %4815 = vmatpush.msra.mxu0 %v2906
        %4816 = vmatpush.msra.mxu0 %v2904
        %4817 = vmatpush.msra.mxu0 %v2902
        %4818 = vmatpush.msra.mxu0 %v2900
        %4819 = vmatmul.f32.gmra.mxu0 %v3058
        %v4820 = vpop.f32.mrf.mxu0
        %v4821 = vadd.f32 %v4801, %v4820
        %4822 = vdwg.mxu0
        %4823 = vmatpush.msra.mxu0 %v275
        %4824 = vmatpush.msra.mxu0 %v273
        %4825 = vmatpush.msra.mxu0 %v271
        %4826 = vmatpush.msra.mxu0 %v269
        %4827 = vmatpush.msra.mxu0 %v267
        %4828 = vmatpush.msra.mxu0 %v265
        %4829 = vmatpush.msra.mxu0 %v263
        %4830 = vmatpush.msra.mxu0 %v261
        %4831 = vmatpush.msra.mxu0 %v259
        %4832 = vmatpush.msra.mxu0 %v257
        %4833 = vmatpush.msra.mxu0 %v255
        %4834 = vmatpush.msra.mxu0 %v253
        %4835 = vmatpush.msra.mxu0 %v251
        %4836 = vmatpush.msra.mxu0 %v249
        %4837 = vmatpush.msra.mxu0 %v247
        %4838 = vmatpush.msra.mxu0 %v245
        %4839 = vmatmul.f32.gmra.mxu0 %v2956
        %v4840 = vpop.f32.mrf.mxu0
        %v4841 = vadd.f32 0.0, %v4840
        %4842 = vdwg.mxu0
        %4843 = vmatpush.msra.mxu0 %v307
        %4844 = vmatpush.msra.mxu0 %v305
        %4845 = vmatpush.msra.mxu0 %v303
        %4846 = vmatpush.msra.mxu0 %v301
        %4847 = vmatpush.msra.mxu0 %v299
        %4848 = vmatpush.msra.mxu0 %v297
        %4849 = vmatpush.msra.mxu0 %v295
        %4850 = vmatpush.msra.mxu0 %v293
        %4851 = vmatpush.msra.mxu0 %v291
        %4852 = vmatpush.msra.mxu0 %v289
        %4853 = vmatpush.msra.mxu0 %v287
        %4854 = vmatpush.msra.mxu0 %v285
        %4855 = vmatpush.msra.mxu0 %v283
        %4856 = vmatpush.msra.mxu0 %v281
        %4857 = vmatpush.msra.mxu0 %v279
        %4858 = vmatpush.msra.mxu0 %v277
        %4859 = vmatmul.f32.gmra.mxu0 %v2957
        %v4860 = vpop.f32.mrf.mxu0
        %v4861 = vadd.f32 %v4841, %v4860
        %4862 = vdwg.mxu0
        %4863 = vmatpush.msra.mxu0 %v339
        %4864 = vmatpush.msra.mxu0 %v337
        %4865 = vmatpush.msra.mxu0 %v335
        %4866 = vmatpush.msra.mxu0 %v333
        %4867 = vmatpush.msra.mxu0 %v331
        %4868 = vmatpush.msra.mxu0 %v329
        %4869 = vmatpush.msra.mxu0 %v327
        %4870 = vmatpush.msra.mxu0 %v325
        %4871 = vmatpush.msra.mxu0 %v323
        %4872 = vmatpush.msra.mxu0 %v321
        %4873 = vmatpush.msra.mxu0 %v319
        %4874 = vmatpush.msra.mxu0 %v317
        %4875 = vmatpush.msra.mxu0 %v315
        %4876 = vmatpush.msra.mxu0 %v313
        %4877 = vmatpush.msra.mxu0 %v311
        %4878 = vmatpush.msra.mxu0 %v309
        %4879 = vmatmul.f32.gmra.mxu0 %v2958
        %v4880 = vpop.f32.mrf.mxu0
        %v4881 = vadd.f32 %v4861, %v4880
        %4882 = vdwg.mxu0
        %4883 = vmatpush.msra.mxu0 %v371
        %4884 = vmatpush.msra.mxu0 %v369
        %4885 = vmatpush.msra.mxu0 %v367
        %4886 = vmatpush.msra.mxu0 %v365
        %4887 = vmatpush.msra.mxu0 %v363
        %4888 = vmatpush.msra.mxu0 %v361
        %4889 = vmatpush.msra.mxu0 %v359
        %4890 = vmatpush.msra.mxu0 %v357
        %4891 = vmatpush.msra.mxu0 %v355
        %4892 = vmatpush.msra.mxu0 %v353
        %4893 = vmatpush.msra.mxu0 %v351
        %4894 = vmatpush.msra.mxu0 %v349
        %4895 = vmatpush.msra.mxu0 %v347
        %4896 = vmatpush.msra.mxu0 %v345
        %4897 = vmatpush.msra.mxu0 %v343
        %4898 = vmatpush.msra.mxu0 %v341
        %4899 = vmatmul.f32.gmra.mxu0 %v2959
        %v4900 = vpop.f32.mrf.mxu0
        %v4901 = vadd.f32 %v4881, %v4900
        %4902 = vdwg.mxu0
        %4903 = vmatpush.msra.mxu0 %v403
        %4904 = vmatpush.msra.mxu0 %v401
        %4905 = vmatpush.msra.mxu0 %v399
        %4906 = vmatpush.msra.mxu0 %v397
        %4907 = vmatpush.msra.mxu0 %v395
        %4908 = vmatpush.msra.mxu0 %v393
        %4909 = vmatpush.msra.mxu0 %v391
        %4910 = vmatpush.msra.mxu0 %v389
        %4911 = vmatpush.msra.mxu0 %v387
        %4912 = vmatpush.msra.mxu0 %v385
        %4913 = vmatpush.msra.mxu0 %v383
        %4914 = vmatpush.msra.mxu0 %v381
        %4915 = vmatpush.msra.mxu0 %v379
        %4916 = vmatpush.msra.mxu0 %v377
        %4917 = vmatpush.msra.mxu0 %v375
        %4918 = vmatpush.msra.mxu0 %v373
        %4919 = vmatmul.f32.gmra.mxu0 %v2960
        %v4920 = vpop.f32.mrf.mxu0
        %v4921 = vadd.f32 %v4901, %v4920
        %4922 = vdwg.mxu0
        %4923 = vmatpush.msra.mxu0 %v435
        %4924 = vmatpush.msra.mxu0 %v433
        %4925 = vmatpush.msra.mxu0 %v431
        %4926 = vmatpush.msra.mxu0 %v429
        %4927 = vmatpush.msra.mxu0 %v427
        %4928 = vmatpush.msra.mxu0 %v425
        %4929 = vmatpush.msra.mxu0 %v423
        %4930 = vmatpush.msra.mxu0 %v421
        %4931 = vmatpush.msra.mxu0 %v419
        %4932 = vmatpush.msra.mxu0 %v417
        %4933 = vmatpush.msra.mxu0 %v415
        %4934 = vmatpush.msra.mxu0 %v413
        %4935 = vmatpush.msra.mxu0 %v411
        %4936 = vmatpush.msra.mxu0 %v409
        %4937 = vmatpush.msra.mxu0 %v407
        %4938 = vmatpush.msra.mxu0 %v405
        %4939 = vmatmul.f32.gmra.mxu0 %v2961
        %v4940 = vpop.f32.mrf.mxu0
        %v4941 = vadd.f32 %v4921, %v4940
        %4942 = vdwg.mxu0
        %4943 = vmatpush.msra.mxu0 %v467
        %4944 = vmatpush.msra.mxu0 %v465
        %4945 = vmatpush.msra.mxu0 %v463
        %4946 = vmatpush.msra.mxu0 %v461
        %4947 = vmatpush.msra.mxu0 %v459
        %4948 = vmatpush.msra.mxu0 %v457
        %4949 = vmatpush.msra.mxu0 %v455
        %4950 = vmatpush.msra.mxu0 %v453
        %4951 = vmatpush.msra.mxu0 %v451
        %4952 = vmatpush.msra.mxu0 %v449
        %4953 = vmatpush.msra.mxu0 %v447
        %4954 = vmatpush.msra.mxu0 %v445
        %4955 = vmatpush.msra.mxu0 %v443
        %4956 = vmatpush.msra.mxu0 %v441
        %4957 = vmatpush.msra.mxu0 %v439
        %4958 = vmatpush.msra.mxu0 %v437
        %4959 = vmatmul.f32.gmra.mxu0 %v2962
        %v4960 = vpop.f32.mrf.mxu0
        %v4961 = vadd.f32 %v4941, %v4960
        %4962 = vdwg.mxu0
        %4963 = vmatpush.msra.mxu0 %v499
        %4964 = vmatpush.msra.mxu0 %v497
        %4965 = vmatpush.msra.mxu0 %v495
        %4966 = vmatpush.msra.mxu0 %v493
        %4967 = vmatpush.msra.mxu0 %v491
        %4968 = vmatpush.msra.mxu0 %v489
        %4969 = vmatpush.msra.mxu0 %v487
        %4970 = vmatpush.msra.mxu0 %v485
        %4971 = vmatpush.msra.mxu0 %v483
        %4972 = vmatpush.msra.mxu0 %v481
        %4973 = vmatpush.msra.mxu0 %v479
        %4974 = vmatpush.msra.mxu0 %v477
        %4975 = vmatpush.msra.mxu0 %v475
        %4976 = vmatpush.msra.mxu0 %v473
        %4977 = vmatpush.msra.mxu0 %v471
        %4978 = vmatpush.msra.mxu0 %v469
        %4979 = vmatmul.f32.gmra.mxu0 %v2963
        %v4980 = vpop.f32.mrf.mxu0
        %v4981 = vadd.f32 %v4961, %v4980
        %4982 = vdwg.mxu0
        %4983 = vmatpush.msra.mxu0 %v531
        %4984 = vmatpush.msra.mxu0 %v529
        %4985 = vmatpush.msra.mxu0 %v527
        %4986 = vmatpush.msra.mxu0 %v525
        %4987 = vmatpush.msra.mxu0 %v523
        %4988 = vmatpush.msra.mxu0 %v521
        %4989 = vmatpush.msra.mxu0 %v519
        %4990 = vmatpush.msra.mxu0 %v517
        %4991 = vmatpush.msra.mxu0 %v515
        %4992 = vmatpush.msra.mxu0 %v513
        %4993 = vmatpush.msra.mxu0 %v511
        %4994 = vmatpush.msra.mxu0 %v509
        %4995 = vmatpush.msra.mxu0 %v507
        %4996 = vmatpush.msra.mxu0 %v505
        %4997 = vmatpush.msra.mxu0 %v503
        %4998 = vmatpush.msra.mxu0 %v501
        %4999 = vmatmul.f32.gmra.mxu0 %v2966
        %v5000 = vpop.f32.mrf.mxu0
        %v5001 = vadd.f32 %v4981, %v5000
        %5002 = vdwg.mxu0
        %5003 = vmatpush.msra.mxu0 %v563
        %5004 = vmatpush.msra.mxu0 %v561
        %5005 = vmatpush.msra.mxu0 %v559
        %5006 = vmatpush.msra.mxu0 %v557
        %5007 = vmatpush.msra.mxu0 %v555
        %5008 = vmatpush.msra.mxu0 %v553
        %5009 = vmatpush.msra.mxu0 %v551
        %5010 = vmatpush.msra.mxu0 %v549
        %5011 = vmatpush.msra.mxu0 %v547
        %5012 = vmatpush.msra.mxu0 %v545
        %5013 = vmatpush.msra.mxu0 %v543
        %5014 = vmatpush.msra.mxu0 %v541
        %5015 = vmatpush.msra.mxu0 %v539
        %5016 = vmatpush.msra.mxu0 %v537
        %5017 = vmatpush.msra.mxu0 %v535
        %5018 = vmatpush.msra.mxu0 %v533
        %5019 = vmatmul.f32.gmra.mxu0 %v2967
        %v5020 = vpop.f32.mrf.mxu0
        %v5021 = vadd.f32 %v5001, %v5020
        %5022 = vdwg.mxu0
        %5023 = vmatpush.msra.mxu0 %v595
        %5024 = vmatpush.msra.mxu0 %v593
        %5025 = vmatpush.msra.mxu0 %v591
        %5026 = vmatpush.msra.mxu0 %v589
        %5027 = vmatpush.msra.mxu0 %v587
        %5028 = vmatpush.msra.mxu0 %v585
        %5029 = vmatpush.msra.mxu0 %v583
        %5030 = vmatpush.msra.mxu0 %v581
        %5031 = vmatpush.msra.mxu0 %v579
        %5032 = vmatpush.msra.mxu0 %v577
        %5033 = vmatpush.msra.mxu0 %v575
        %5034 = vmatpush.msra.mxu0 %v573
        %5035 = vmatpush.msra.mxu0 %v571
        %5036 = vmatpush.msra.mxu0 %v569
        %5037 = vmatpush.msra.mxu0 %v567
        %5038 = vmatpush.msra.mxu0 %v565
        %5039 = vmatmul.f32.gmra.mxu0 %v2968
        %v5040 = vpop.f32.mrf.mxu0
        %v5041 = vadd.f32 %v5021, %v5040
        %5042 = vdwg.mxu0
        %5043 = vmatpush.msra.mxu0 %v627
        %5044 = vmatpush.msra.mxu0 %v625
        %5045 = vmatpush.msra.mxu0 %v623
        %5046 = vmatpush.msra.mxu0 %v621
        %5047 = vmatpush.msra.mxu0 %v619
        %5048 = vmatpush.msra.mxu0 %v617
        %5049 = vmatpush.msra.mxu0 %v615
        %5050 = vmatpush.msra.mxu0 %v613
        %5051 = vmatpush.msra.mxu0 %v611
        %5052 = vmatpush.msra.mxu0 %v609
        %5053 = vmatpush.msra.mxu0 %v607
        %5054 = vmatpush.msra.mxu0 %v605
        %5055 = vmatpush.msra.mxu0 %v603
        %5056 = vmatpush.msra.mxu0 %v601
        %5057 = vmatpush.msra.mxu0 %v599
        %5058 = vmatpush.msra.mxu0 %v597
        %5059 = vmatmul.f32.gmra.mxu0 %v2969
        %v5060 = vpop.f32.mrf.mxu0
        %v5061 = vadd.f32 %v5041, %v5060
        %5062 = vdwg.mxu0
        %5063 = vmatpush.msra.mxu0 %v659
        %5064 = vmatpush.msra.mxu0 %v657
        %5065 = vmatpush.msra.mxu0 %v655
        %5066 = vmatpush.msra.mxu0 %v653
        %5067 = vmatpush.msra.mxu0 %v651
        %5068 = vmatpush.msra.mxu0 %v649
        %5069 = vmatpush.msra.mxu0 %v647
        %5070 = vmatpush.msra.mxu0 %v645
        %5071 = vmatpush.msra.mxu0 %v643
        %5072 = vmatpush.msra.mxu0 %v641
        %5073 = vmatpush.msra.mxu0 %v639
        %5074 = vmatpush.msra.mxu0 %v637
        %5075 = vmatpush.msra.mxu0 %v635
        %5076 = vmatpush.msra.mxu0 %v633
        %5077 = vmatpush.msra.mxu0 %v631
        %5078 = vmatpush.msra.mxu0 %v629
        %5079 = vmatmul.f32.gmra.mxu0 %v2970
        %v5080 = vpop.f32.mrf.mxu0
        %v5081 = vadd.f32 %v5061, %v5080
        %5082 = vdwg.mxu0
        %5083 = vmatpush.msra.mxu0 %v691
        %5084 = vmatpush.msra.mxu0 %v689
        %5085 = vmatpush.msra.mxu0 %v687
        %5086 = vmatpush.msra.mxu0 %v685
        %5087 = vmatpush.msra.mxu0 %v683
        %5088 = vmatpush.msra.mxu0 %v681
        %5089 = vmatpush.msra.mxu0 %v679
        %5090 = vmatpush.msra.mxu0 %v677
        %5091 = vmatpush.msra.mxu0 %v675
        %5092 = vmatpush.msra.mxu0 %v673
        %5093 = vmatpush.msra.mxu0 %v671
        %5094 = vmatpush.msra.mxu0 %v669
        %5095 = vmatpush.msra.mxu0 %v667
        %5096 = vmatpush.msra.mxu0 %v665
        %5097 = vmatpush.msra.mxu0 %v663
        %5098 = vmatpush.msra.mxu0 %v661
        %5099 = vmatmul.f32.gmra.mxu0 %v2971
        %v5100 = vpop.f32.mrf.mxu0
        %v5101 = vadd.f32 %v5081, %v5100
        %5102 = vdwg.mxu0
        %5103 = vmatpush.msra.mxu0 %v723
        %5104 = vmatpush.msra.mxu0 %v721
        %5105 = vmatpush.msra.mxu0 %v719
        %5106 = vmatpush.msra.mxu0 %v717
        %5107 = vmatpush.msra.mxu0 %v715
        %5108 = vmatpush.msra.mxu0 %v713
        %5109 = vmatpush.msra.mxu0 %v711
        %5110 = vmatpush.msra.mxu0 %v709
        %5111 = vmatpush.msra.mxu0 %v707
        %5112 = vmatpush.msra.mxu0 %v705
        %5113 = vmatpush.msra.mxu0 %v703
        %5114 = vmatpush.msra.mxu0 %v701
        %5115 = vmatpush.msra.mxu0 %v699
        %5116 = vmatpush.msra.mxu0 %v697
        %5117 = vmatpush.msra.mxu0 %v695
        %5118 = vmatpush.msra.mxu0 %v693
        %5119 = vmatmul.f32.gmra.mxu0 %v2972
        %v5120 = vpop.f32.mrf.mxu0
        %v5121 = vadd.f32 %v5101, %v5120
        %5122 = vdwg.mxu0
        %5123 = vmatpush.msra.mxu0 %v755
        %5124 = vmatpush.msra.mxu0 %v753
        %5125 = vmatpush.msra.mxu0 %v751
        %5126 = vmatpush.msra.mxu0 %v749
        %5127 = vmatpush.msra.mxu0 %v747
        %5128 = vmatpush.msra.mxu0 %v745
        %5129 = vmatpush.msra.mxu0 %v743
        %5130 = vmatpush.msra.mxu0 %v741
        %5131 = vmatpush.msra.mxu0 %v739
        %5132 = vmatpush.msra.mxu0 %v737
        %5133 = vmatpush.msra.mxu0 %v735
        %5134 = vmatpush.msra.mxu0 %v733
        %5135 = vmatpush.msra.mxu0 %v731
        %5136 = vmatpush.msra.mxu0 %v729
        %5137 = vmatpush.msra.mxu0 %v727
        %5138 = vmatpush.msra.mxu0 %v725
        %5139 = vmatmul.f32.gmra.mxu0 %v2973
        %v5140 = vpop.f32.mrf.mxu0
        %v5141 = vadd.f32 %v5121, %v5140
        %5142 = vdwg.mxu0
        %5143 = vmatpush.msra.mxu0 %v787
        %5144 = vmatpush.msra.mxu0 %v785
        %5145 = vmatpush.msra.mxu0 %v783
        %5146 = vmatpush.msra.mxu0 %v781
        %5147 = vmatpush.msra.mxu0 %v779
        %5148 = vmatpush.msra.mxu0 %v777
        %5149 = vmatpush.msra.mxu0 %v775
        %5150 = vmatpush.msra.mxu0 %v773
        %5151 = vmatpush.msra.mxu0 %v771
        %5152 = vmatpush.msra.mxu0 %v769
        %5153 = vmatpush.msra.mxu0 %v767
        %5154 = vmatpush.msra.mxu0 %v765
        %5155 = vmatpush.msra.mxu0 %v763
        %5156 = vmatpush.msra.mxu0 %v761
        %5157 = vmatpush.msra.mxu0 %v759
        %5158 = vmatpush.msra.mxu0 %v757
        %5159 = vmatmul.f32.gmra.mxu0 %v2976
        %v5160 = vpop.f32.mrf.mxu0
        %v5161 = vadd.f32 %v5141, %v5160
        %5162 = vdwg.mxu0
        %5163 = vmatpush.msra.mxu0 %v819
        %5164 = vmatpush.msra.mxu0 %v817
        %5165 = vmatpush.msra.mxu0 %v815
        %5166 = vmatpush.msra.mxu0 %v813
        %5167 = vmatpush.msra.mxu0 %v811
        %5168 = vmatpush.msra.mxu0 %v809
        %5169 = vmatpush.msra.mxu0 %v807
        %5170 = vmatpush.msra.mxu0 %v805
        %5171 = vmatpush.msra.mxu0 %v803
        %5172 = vmatpush.msra.mxu0 %v801
        %5173 = vmatpush.msra.mxu0 %v799
        %5174 = vmatpush.msra.mxu0 %v797
        %5175 = vmatpush.msra.mxu0 %v795
        %5176 = vmatpush.msra.mxu0 %v793
        %5177 = vmatpush.msra.mxu0 %v791
        %5178 = vmatpush.msra.mxu0 %v789
        %5179 = vmatmul.f32.gmra.mxu0 %v2977
        %v5180 = vpop.f32.mrf.mxu0
        %v5181 = vadd.f32 %v5161, %v5180
        %5182 = vdwg.mxu0
        %5183 = vmatpush.msra.mxu0 %v851
        %5184 = vmatpush.msra.mxu0 %v849
        %5185 = vmatpush.msra.mxu0 %v847
        %5186 = vmatpush.msra.mxu0 %v845
        %5187 = vmatpush.msra.mxu0 %v843
        %5188 = vmatpush.msra.mxu0 %v841
        %5189 = vmatpush.msra.mxu0 %v839
        %5190 = vmatpush.msra.mxu0 %v837
        %5191 = vmatpush.msra.mxu0 %v835
        %5192 = vmatpush.msra.mxu0 %v833
        %5193 = vmatpush.msra.mxu0 %v831
        %5194 = vmatpush.msra.mxu0 %v829
        %5195 = vmatpush.msra.mxu0 %v827
        %5196 = vmatpush.msra.mxu0 %v825
        %5197 = vmatpush.msra.mxu0 %v823
        %5198 = vmatpush.msra.mxu0 %v821
        %5199 = vmatmul.f32.gmra.mxu0 %v2978
        %v5200 = vpop.f32.mrf.mxu0
        %v5201 = vadd.f32 %v5181, %v5200
        %5202 = vdwg.mxu0
        %5203 = vmatpush.msra.mxu0 %v883
        %5204 = vmatpush.msra.mxu0 %v881
        %5205 = vmatpush.msra.mxu0 %v879
        %5206 = vmatpush.msra.mxu0 %v877
        %5207 = vmatpush.msra.mxu0 %v875
        %5208 = vmatpush.msra.mxu0 %v873
        %5209 = vmatpush.msra.mxu0 %v871
        %5210 = vmatpush.msra.mxu0 %v869
        %5211 = vmatpush.msra.mxu0 %v867
        %5212 = vmatpush.msra.mxu0 %v865
        %5213 = vmatpush.msra.mxu0 %v863
        %5214 = vmatpush.msra.mxu0 %v861
        %5215 = vmatpush.msra.mxu0 %v859
        %5216 = vmatpush.msra.mxu0 %v857
        %5217 = vmatpush.msra.mxu0 %v855
        %5218 = vmatpush.msra.mxu0 %v853
        %5219 = vmatmul.f32.gmra.mxu0 %v2979
        %v5220 = vpop.f32.mrf.mxu0
        %v5221 = vadd.f32 %v5201, %v5220
        %5222 = vdwg.mxu0
        %5223 = vmatpush.msra.mxu0 %v915
        %5224 = vmatpush.msra.mxu0 %v913
        %5225 = vmatpush.msra.mxu0 %v911
        %5226 = vmatpush.msra.mxu0 %v909
        %5227 = vmatpush.msra.mxu0 %v907
        %5228 = vmatpush.msra.mxu0 %v905
        %5229 = vmatpush.msra.mxu0 %v903
        %5230 = vmatpush.msra.mxu0 %v901
        %5231 = vmatpush.msra.mxu0 %v899
        %5232 = vmatpush.msra.mxu0 %v897
        %5233 = vmatpush.msra.mxu0 %v895
        %5234 = vmatpush.msra.mxu0 %v893
        %5235 = vmatpush.msra.mxu0 %v891
        %5236 = vmatpush.msra.mxu0 %v889
        %5237 = vmatpush.msra.mxu0 %v887
        %5238 = vmatpush.msra.mxu0 %v885
        %5239 = vmatmul.f32.gmra.mxu0 %v2980
        %v5240 = vpop.f32.mrf.mxu0
        %v5241 = vadd.f32 %v5221, %v5240
        %5242 = vdwg.mxu0
        %5243 = vmatpush.msra.mxu0 %v947
        %5244 = vmatpush.msra.mxu0 %v945
        %5245 = vmatpush.msra.mxu0 %v943
        %5246 = vmatpush.msra.mxu0 %v941
        %5247 = vmatpush.msra.mxu0 %v939
        %5248 = vmatpush.msra.mxu0 %v937
        %5249 = vmatpush.msra.mxu0 %v935
        %5250 = vmatpush.msra.mxu0 %v933
        %5251 = vmatpush.msra.mxu0 %v931
        %5252 = vmatpush.msra.mxu0 %v929
        %5253 = vmatpush.msra.mxu0 %v927
        %5254 = vmatpush.msra.mxu0 %v925
        %5255 = vmatpush.msra.mxu0 %v923
        %5256 = vmatpush.msra.mxu0 %v921
        %5257 = vmatpush.msra.mxu0 %v919
        %5258 = vmatpush.msra.mxu0 %v917
        %5259 = vmatmul.f32.gmra.mxu0 %v2981
        %v5260 = vpop.f32.mrf.mxu0
        %v5261 = vadd.f32 %v5241, %v5260
        %5262 = vdwg.mxu0
        %5263 = vmatpush.msra.mxu0 %v979
        %5264 = vmatpush.msra.mxu0 %v977
        %5265 = vmatpush.msra.mxu0 %v975
        %5266 = vmatpush.msra.mxu0 %v973
        %5267 = vmatpush.msra.mxu0 %v971
        %5268 = vmatpush.msra.mxu0 %v969
        %5269 = vmatpush.msra.mxu0 %v967
        %5270 = vmatpush.msra.mxu0 %v965
        %5271 = vmatpush.msra.mxu0 %v963
        %5272 = vmatpush.msra.mxu0 %v961
        %5273 = vmatpush.msra.mxu0 %v959
        %5274 = vmatpush.msra.mxu0 %v957
        %5275 = vmatpush.msra.mxu0 %v955
        %5276 = vmatpush.msra.mxu0 %v953
        %5277 = vmatpush.msra.mxu0 %v951
        %5278 = vmatpush.msra.mxu0 %v949
        %5279 = vmatmul.f32.gmra.mxu0 %v2982
        %v5280 = vpop.f32.mrf.mxu0
        %v5281 = vadd.f32 %v5261, %v5280
        %5282 = vdwg.mxu0
        %5283 = vmatpush.msra.mxu0 %v1011
        %5284 = vmatpush.msra.mxu0 %v1009
        %5285 = vmatpush.msra.mxu0 %v1007
        %5286 = vmatpush.msra.mxu0 %v1005
        %5287 = vmatpush.msra.mxu0 %v1003
        %5288 = vmatpush.msra.mxu0 %v1001
        %5289 = vmatpush.msra.mxu0 %v999
        %5290 = vmatpush.msra.mxu0 %v997
        %5291 = vmatpush.msra.mxu0 %v995
        %5292 = vmatpush.msra.mxu0 %v993
        %5293 = vmatpush.msra.mxu0 %v991
        %5294 = vmatpush.msra.mxu0 %v989
        %5295 = vmatpush.msra.mxu0 %v987
        %5296 = vmatpush.msra.mxu0 %v985
        %5297 = vmatpush.msra.mxu0 %v983
        %5298 = vmatpush.msra.mxu0 %v981
        %5299 = vmatmul.f32.gmra.mxu0 %v2983
        %v5300 = vpop.f32.mrf.mxu0
        %v5301 = vadd.f32 %v5281, %v5300
        %5302 = vdwg.mxu0
        %5303 = vmatpush.msra.mxu0 %v1043
        %5304 = vmatpush.msra.mxu0 %v1041
        %5305 = vmatpush.msra.mxu0 %v1039
        %5306 = vmatpush.msra.mxu0 %v1037
        %5307 = vmatpush.msra.mxu0 %v1035
        %5308 = vmatpush.msra.mxu0 %v1033
        %5309 = vmatpush.msra.mxu0 %v1031
        %5310 = vmatpush.msra.mxu0 %v1029
        %5311 = vmatpush.msra.mxu0 %v1027
        %5312 = vmatpush.msra.mxu0 %v1025
        %5313 = vmatpush.msra.mxu0 %v1023
        %5314 = vmatpush.msra.mxu0 %v1021
        %5315 = vmatpush.msra.mxu0 %v1019
        %5316 = vmatpush.msra.mxu0 %v1017
        %5317 = vmatpush.msra.mxu0 %v1015
        %5318 = vmatpush.msra.mxu0 %v1013
        %5319 = vmatmul.f32.gmra.mxu0 %v2986
        %v5320 = vpop.f32.mrf.mxu0
        %v5321 = vadd.f32 %v5301, %v5320
        %5322 = vdwg.mxu0
        %5323 = vmatpush.msra.mxu0 %v1075
        %5324 = vmatpush.msra.mxu0 %v1073
        %5325 = vmatpush.msra.mxu0 %v1071
        %5326 = vmatpush.msra.mxu0 %v1069
        %5327 = vmatpush.msra.mxu0 %v1067
        %5328 = vmatpush.msra.mxu0 %v1065
        %5329 = vmatpush.msra.mxu0 %v1063
        %5330 = vmatpush.msra.mxu0 %v1061
        %5331 = vmatpush.msra.mxu0 %v1059
        %5332 = vmatpush.msra.mxu0 %v1057
        %5333 = vmatpush.msra.mxu0 %v1055
        %5334 = vmatpush.msra.mxu0 %v1053
        %5335 = vmatpush.msra.mxu0 %v1051
        %5336 = vmatpush.msra.mxu0 %v1049
        %5337 = vmatpush.msra.mxu0 %v1047
        %5338 = vmatpush.msra.mxu0 %v1045
        %5339 = vmatmul.f32.gmra.mxu0 %v2987
        %v5340 = vpop.f32.mrf.mxu0
        %v5341 = vadd.f32 %v5321, %v5340
        %5342 = vdwg.mxu0
        %5343 = vmatpush.msra.mxu0 %v1107
        %5344 = vmatpush.msra.mxu0 %v1105
        %5345 = vmatpush.msra.mxu0 %v1103
        %5346 = vmatpush.msra.mxu0 %v1101
        %5347 = vmatpush.msra.mxu0 %v1099
        %5348 = vmatpush.msra.mxu0 %v1097
        %5349 = vmatpush.msra.mxu0 %v1095
        %5350 = vmatpush.msra.mxu0 %v1093
        %5351 = vmatpush.msra.mxu0 %v1091
        %5352 = vmatpush.msra.mxu0 %v1089
        %5353 = vmatpush.msra.mxu0 %v1087
        %5354 = vmatpush.msra.mxu0 %v1085
        %5355 = vmatpush.msra.mxu0 %v1083
        %5356 = vmatpush.msra.mxu0 %v1081
        %5357 = vmatpush.msra.mxu0 %v1079
        %5358 = vmatpush.msra.mxu0 %v1077
        %5359 = vmatmul.f32.gmra.mxu0 %v2988
        %v5360 = vpop.f32.mrf.mxu0
        %v5361 = vadd.f32 %v5341, %v5360
        %5362 = vdwg.mxu0
        %5363 = vmatpush.msra.mxu0 %v1139
        %5364 = vmatpush.msra.mxu0 %v1137
        %5365 = vmatpush.msra.mxu0 %v1135
        %5366 = vmatpush.msra.mxu0 %v1133
        %5367 = vmatpush.msra.mxu0 %v1131
        %5368 = vmatpush.msra.mxu0 %v1129
        %5369 = vmatpush.msra.mxu0 %v1127
        %5370 = vmatpush.msra.mxu0 %v1125
        %5371 = vmatpush.msra.mxu0 %v1123
        %5372 = vmatpush.msra.mxu0 %v1121
        %5373 = vmatpush.msra.mxu0 %v1119
        %5374 = vmatpush.msra.mxu0 %v1117
        %5375 = vmatpush.msra.mxu0 %v1115
        %5376 = vmatpush.msra.mxu0 %v1113
        %5377 = vmatpush.msra.mxu0 %v1111
        %5378 = vmatpush.msra.mxu0 %v1109
        %5379 = vmatmul.f32.gmra.mxu0 %v2989
        %v5380 = vpop.f32.mrf.mxu0
        %v5381 = vadd.f32 %v5361, %v5380
        %5382 = vdwg.mxu0
        %5383 = vmatpush.msra.mxu0 %v1171
        %5384 = vmatpush.msra.mxu0 %v1169
        %5385 = vmatpush.msra.mxu0 %v1167
        %5386 = vmatpush.msra.mxu0 %v1165
        %5387 = vmatpush.msra.mxu0 %v1163
        %5388 = vmatpush.msra.mxu0 %v1161
        %5389 = vmatpush.msra.mxu0 %v1159
        %5390 = vmatpush.msra.mxu0 %v1157
        %5391 = vmatpush.msra.mxu0 %v1155
        %5392 = vmatpush.msra.mxu0 %v1153
        %5393 = vmatpush.msra.mxu0 %v1151
        %5394 = vmatpush.msra.mxu0 %v1149
        %5395 = vmatpush.msra.mxu0 %v1147
        %5396 = vmatpush.msra.mxu0 %v1145
        %5397 = vmatpush.msra.mxu0 %v1143
        %5398 = vmatpush.msra.mxu0 %v1141
        %5399 = vmatmul.f32.gmra.mxu0 %v2990
        %v5400 = vpop.f32.mrf.mxu0
        %v5401 = vadd.f32 %v5381, %v5400
        %5402 = vdwg.mxu0
        %5403 = vmatpush.msra.mxu0 %v1203
        %5404 = vmatpush.msra.mxu0 %v1201
        %5405 = vmatpush.msra.mxu0 %v1199
        %5406 = vmatpush.msra.mxu0 %v1197
        %5407 = vmatpush.msra.mxu0 %v1195
        %5408 = vmatpush.msra.mxu0 %v1193
        %5409 = vmatpush.msra.mxu0 %v1191
        %5410 = vmatpush.msra.mxu0 %v1189
        %5411 = vmatpush.msra.mxu0 %v1187
        %5412 = vmatpush.msra.mxu0 %v1185
        %5413 = vmatpush.msra.mxu0 %v1183
        %5414 = vmatpush.msra.mxu0 %v1181
        %5415 = vmatpush.msra.mxu0 %v1179
        %5416 = vmatpush.msra.mxu0 %v1177
        %5417 = vmatpush.msra.mxu0 %v1175
        %5418 = vmatpush.msra.mxu0 %v1173
        %5419 = vmatmul.f32.gmra.mxu0 %v2991
        %v5420 = vpop.f32.mrf.mxu0
        %v5421 = vadd.f32 %v5401, %v5420
        %5422 = vdwg.mxu0
        %5423 = vmatpush.msra.mxu0 %v1235
        %5424 = vmatpush.msra.mxu0 %v1233
        %5425 = vmatpush.msra.mxu0 %v1231
        %5426 = vmatpush.msra.mxu0 %v1229
        %5427 = vmatpush.msra.mxu0 %v1227
        %5428 = vmatpush.msra.mxu0 %v1225
        %5429 = vmatpush.msra.mxu0 %v1223
        %5430 = vmatpush.msra.mxu0 %v1221
        %5431 = vmatpush.msra.mxu0 %v1219
        %5432 = vmatpush.msra.mxu0 %v1217
        %5433 = vmatpush.msra.mxu0 %v1215
        %5434 = vmatpush.msra.mxu0 %v1213
        %5435 = vmatpush.msra.mxu0 %v1211
        %5436 = vmatpush.msra.mxu0 %v1209
        %5437 = vmatpush.msra.mxu0 %v1207
        %5438 = vmatpush.msra.mxu0 %v1205
        %5439 = vmatmul.f32.gmra.mxu0 %v2992
        %v5440 = vpop.f32.mrf.mxu0
        %v5441 = vadd.f32 %v5421, %v5440
        %5442 = vdwg.mxu0
        %5443 = vmatpush.msra.mxu0 %v1267
        %5444 = vmatpush.msra.mxu0 %v1265
        %5445 = vmatpush.msra.mxu0 %v1263
        %5446 = vmatpush.msra.mxu0 %v1261
        %5447 = vmatpush.msra.mxu0 %v1259
        %5448 = vmatpush.msra.mxu0 %v1257
        %5449 = vmatpush.msra.mxu0 %v1255
        %5450 = vmatpush.msra.mxu0 %v1253
        %5451 = vmatpush.msra.mxu0 %v1251
        %5452 = vmatpush.msra.mxu0 %v1249
        %5453 = vmatpush.msra.mxu0 %v1247
        %5454 = vmatpush.msra.mxu0 %v1245
        %5455 = vmatpush.msra.mxu0 %v1243
        %5456 = vmatpush.msra.mxu0 %v1241
        %5457 = vmatpush.msra.mxu0 %v1239
        %5458 = vmatpush.msra.mxu0 %v1237
        %5459 = vmatmul.f32.gmra.mxu0 %v2993
        %v5460 = vpop.f32.mrf.mxu0
        %v5461 = vadd.f32 %v5441, %v5460
        %5462 = vdwg.mxu0
        %5463 = vmatpush.msra.mxu0 %v1299
        %5464 = vmatpush.msra.mxu0 %v1297
        %5465 = vmatpush.msra.mxu0 %v1295
        %5466 = vmatpush.msra.mxu0 %v1293
        %5467 = vmatpush.msra.mxu0 %v1291
        %5468 = vmatpush.msra.mxu0 %v1289
        %5469 = vmatpush.msra.mxu0 %v1287
        %5470 = vmatpush.msra.mxu0 %v1285
        %5471 = vmatpush.msra.mxu0 %v1283
        %5472 = vmatpush.msra.mxu0 %v1281
        %5473 = vmatpush.msra.mxu0 %v1279
        %5474 = vmatpush.msra.mxu0 %v1277
        %5475 = vmatpush.msra.mxu0 %v1275
        %5476 = vmatpush.msra.mxu0 %v1273
        %5477 = vmatpush.msra.mxu0 %v1271
        %5478 = vmatpush.msra.mxu0 %v1269
        %5479 = vmatmul.f32.gmra.mxu0 %v2996
        %v5480 = vpop.f32.mrf.mxu0
        %v5481 = vadd.f32 %v5461, %v5480
        %5482 = vdwg.mxu0
        %5483 = vmatpush.msra.mxu0 %v1331
        %5484 = vmatpush.msra.mxu0 %v1329
        %5485 = vmatpush.msra.mxu0 %v1327
        %5486 = vmatpush.msra.mxu0 %v1325
        %5487 = vmatpush.msra.mxu0 %v1323
        %5488 = vmatpush.msra.mxu0 %v1321
        %5489 = vmatpush.msra.mxu0 %v1319
        %5490 = vmatpush.msra.mxu0 %v1317
        %5491 = vmatpush.msra.mxu0 %v1315
        %5492 = vmatpush.msra.mxu0 %v1313
        %5493 = vmatpush.msra.mxu0 %v1311
        %5494 = vmatpush.msra.mxu0 %v1309
        %5495 = vmatpush.msra.mxu0 %v1307
        %5496 = vmatpush.msra.mxu0 %v1305
        %5497 = vmatpush.msra.mxu0 %v1303
        %5498 = vmatpush.msra.mxu0 %v1301
        %5499 = vmatmul.f32.gmra.mxu0 %v2997
        %v5500 = vpop.f32.mrf.mxu0
        %v5501 = vadd.f32 %v5481, %v5500
        %5502 = vdwg.mxu0
        %5503 = vmatpush.msra.mxu0 %v1363
        %5504 = vmatpush.msra.mxu0 %v1361
        %5505 = vmatpush.msra.mxu0 %v1359
        %5506 = vmatpush.msra.mxu0 %v1357
        %5507 = vmatpush.msra.mxu0 %v1355
        %5508 = vmatpush.msra.mxu0 %v1353
        %5509 = vmatpush.msra.mxu0 %v1351
        %5510 = vmatpush.msra.mxu0 %v1349
        %5511 = vmatpush.msra.mxu0 %v1347
        %5512 = vmatpush.msra.mxu0 %v1345
        %5513 = vmatpush.msra.mxu0 %v1343
        %5514 = vmatpush.msra.mxu0 %v1341
        %5515 = vmatpush.msra.mxu0 %v1339
        %5516 = vmatpush.msra.mxu0 %v1337
        %5517 = vmatpush.msra.mxu0 %v1335
        %5518 = vmatpush.msra.mxu0 %v1333
        %5519 = vmatmul.f32.gmra.mxu0 %v2998
        %v5520 = vpop.f32.mrf.mxu0
        %v5521 = vadd.f32 %v5501, %v5520
        %5522 = vdwg.mxu0
        %5523 = vmatpush.msra.mxu0 %v1395
        %5524 = vmatpush.msra.mxu0 %v1393
        %5525 = vmatpush.msra.mxu0 %v1391
        %5526 = vmatpush.msra.mxu0 %v1389
        %5527 = vmatpush.msra.mxu0 %v1387
        %5528 = vmatpush.msra.mxu0 %v1385
        %5529 = vmatpush.msra.mxu0 %v1383
        %5530 = vmatpush.msra.mxu0 %v1381
        %5531 = vmatpush.msra.mxu0 %v1379
        %5532 = vmatpush.msra.mxu0 %v1377
        %5533 = vmatpush.msra.mxu0 %v1375
        %5534 = vmatpush.msra.mxu0 %v1373
        %5535 = vmatpush.msra.mxu0 %v1371
        %5536 = vmatpush.msra.mxu0 %v1369
        %5537 = vmatpush.msra.mxu0 %v1367
        %5538 = vmatpush.msra.mxu0 %v1365
        %5539 = vmatmul.f32.gmra.mxu0 %v2999
        %v5540 = vpop.f32.mrf.mxu0
        %v5541 = vadd.f32 %v5521, %v5540
        %5542 = vdwg.mxu0
        %5543 = vmatpush.msra.mxu0 %v1427
        %5544 = vmatpush.msra.mxu0 %v1425
        %5545 = vmatpush.msra.mxu0 %v1423
        %5546 = vmatpush.msra.mxu0 %v1421
        %5547 = vmatpush.msra.mxu0 %v1419
        %5548 = vmatpush.msra.mxu0 %v1417
        %5549 = vmatpush.msra.mxu0 %v1415
        %5550 = vmatpush.msra.mxu0 %v1413
        %5551 = vmatpush.msra.mxu0 %v1411
        %5552 = vmatpush.msra.mxu0 %v1409
        %5553 = vmatpush.msra.mxu0 %v1407
        %5554 = vmatpush.msra.mxu0 %v1405
        %5555 = vmatpush.msra.mxu0 %v1403
        %5556 = vmatpush.msra.mxu0 %v1401
        %5557 = vmatpush.msra.mxu0 %v1399
        %5558 = vmatpush.msra.mxu0 %v1397
        %5559 = vmatmul.f32.gmra.mxu0 %v3000
        %v5560 = vpop.f32.mrf.mxu0
        %v5561 = vadd.f32 %v5541, %v5560
        %5562 = vdwg.mxu0
        %5563 = vmatpush.msra.mxu0 %v1459
        %5564 = vmatpush.msra.mxu0 %v1457
        %5565 = vmatpush.msra.mxu0 %v1455
        %5566 = vmatpush.msra.mxu0 %v1453
        %5567 = vmatpush.msra.mxu0 %v1451
        %5568 = vmatpush.msra.mxu0 %v1449
        %5569 = vmatpush.msra.mxu0 %v1447
        %5570 = vmatpush.msra.mxu0 %v1445
        %5571 = vmatpush.msra.mxu0 %v1443
        %5572 = vmatpush.msra.mxu0 %v1441
        %5573 = vmatpush.msra.mxu0 %v1439
        %5574 = vmatpush.msra.mxu0 %v1437
        %5575 = vmatpush.msra.mxu0 %v1435
        %5576 = vmatpush.msra.mxu0 %v1433
        %5577 = vmatpush.msra.mxu0 %v1431
        %5578 = vmatpush.msra.mxu0 %v1429
        %5579 = vmatmul.f32.gmra.mxu0 %v3001
        %v5580 = vpop.f32.mrf.mxu0
        %v5581 = vadd.f32 %v5561, %v5580
        %5582 = vdwg.mxu0
        %5583 = vmatpush.msra.mxu0 %v1491
        %5584 = vmatpush.msra.mxu0 %v1489
        %5585 = vmatpush.msra.mxu0 %v1487
        %5586 = vmatpush.msra.mxu0 %v1485
        %5587 = vmatpush.msra.mxu0 %v1483
        %5588 = vmatpush.msra.mxu0 %v1481
        %5589 = vmatpush.msra.mxu0 %v1479
        %5590 = vmatpush.msra.mxu0 %v1477
        %5591 = vmatpush.msra.mxu0 %v1475
        %5592 = vmatpush.msra.mxu0 %v1473
        %5593 = vmatpush.msra.mxu0 %v1471
        %5594 = vmatpush.msra.mxu0 %v1469
        %5595 = vmatpush.msra.mxu0 %v1467
        %5596 = vmatpush.msra.mxu0 %v1465
        %5597 = vmatpush.msra.mxu0 %v1463
        %5598 = vmatpush.msra.mxu0 %v1461
        %5599 = vmatmul.f32.gmra.mxu0 %v3002
        %v5600 = vpop.f32.mrf.mxu0
        %v5601 = vadd.f32 %v5581, %v5600
        %5602 = vdwg.mxu0
        %5603 = vmatpush.msra.mxu0 %v1523
        %5604 = vmatpush.msra.mxu0 %v1521
        %5605 = vmatpush.msra.mxu0 %v1519
        %5606 = vmatpush.msra.mxu0 %v1517
        %5607 = vmatpush.msra.mxu0 %v1515
        %5608 = vmatpush.msra.mxu0 %v1513
        %5609 = vmatpush.msra.mxu0 %v1511
        %5610 = vmatpush.msra.mxu0 %v1509
        %5611 = vmatpush.msra.mxu0 %v1507
        %5612 = vmatpush.msra.mxu0 %v1505
        %5613 = vmatpush.msra.mxu0 %v1503
        %5614 = vmatpush.msra.mxu0 %v1501
        %5615 = vmatpush.msra.mxu0 %v1499
        %5616 = vmatpush.msra.mxu0 %v1497
        %5617 = vmatpush.msra.mxu0 %v1495
        %5618 = vmatpush.msra.mxu0 %v1493
        %5619 = vmatmul.f32.gmra.mxu0 %v3003
        %v5620 = vpop.f32.mrf.mxu0
        %v5621 = vadd.f32 %v5601, %v5620
        %5622 = vdwg.mxu0
        %5623 = vmatpush.msra.mxu0 %v1555
        %5624 = vmatpush.msra.mxu0 %v1553
        %5625 = vmatpush.msra.mxu0 %v1551
        %5626 = vmatpush.msra.mxu0 %v1549
        %5627 = vmatpush.msra.mxu0 %v1547
        %5628 = vmatpush.msra.mxu0 %v1545
        %5629 = vmatpush.msra.mxu0 %v1543
        %5630 = vmatpush.msra.mxu0 %v1541
        %5631 = vmatpush.msra.mxu0 %v1539
        %5632 = vmatpush.msra.mxu0 %v1537
        %5633 = vmatpush.msra.mxu0 %v1535
        %5634 = vmatpush.msra.mxu0 %v1533
        %5635 = vmatpush.msra.mxu0 %v1531
        %5636 = vmatpush.msra.mxu0 %v1529
        %5637 = vmatpush.msra.mxu0 %v1527
        %5638 = vmatpush.msra.mxu0 %v1525
        %5639 = vmatmul.f32.gmra.mxu0 %v3006
        %v5640 = vpop.f32.mrf.mxu0
        %v5641 = vadd.f32 %v5621, %v5640
        %5642 = vdwg.mxu0
        %5643 = vmatpush.msra.mxu0 %v1587
        %5644 = vmatpush.msra.mxu0 %v1585
        %5645 = vmatpush.msra.mxu0 %v1583
        %5646 = vmatpush.msra.mxu0 %v1581
        %5647 = vmatpush.msra.mxu0 %v1579
        %5648 = vmatpush.msra.mxu0 %v1577
        %5649 = vmatpush.msra.mxu0 %v1575
        %5650 = vmatpush.msra.mxu0 %v1573
        %5651 = vmatpush.msra.mxu0 %v1571
        %5652 = vmatpush.msra.mxu0 %v1569
        %5653 = vmatpush.msra.mxu0 %v1567
        %5654 = vmatpush.msra.mxu0 %v1565
        %5655 = vmatpush.msra.mxu0 %v1563
        %5656 = vmatpush.msra.mxu0 %v1561
        %5657 = vmatpush.msra.mxu0 %v1559
        %5658 = vmatpush.msra.mxu0 %v1557
        %5659 = vmatmul.f32.gmra.mxu0 %v3007
        %v5660 = vpop.f32.mrf.mxu0
        %v5661 = vadd.f32 %v5641, %v5660
        %5662 = vdwg.mxu0
        %5663 = vmatpush.msra.mxu0 %v1619
        %5664 = vmatpush.msra.mxu0 %v1617
        %5665 = vmatpush.msra.mxu0 %v1615
        %5666 = vmatpush.msra.mxu0 %v1613
        %5667 = vmatpush.msra.mxu0 %v1611
        %5668 = vmatpush.msra.mxu0 %v1609
        %5669 = vmatpush.msra.mxu0 %v1607
        %5670 = vmatpush.msra.mxu0 %v1605
        %5671 = vmatpush.msra.mxu0 %v1603
        %5672 = vmatpush.msra.mxu0 %v1601
        %5673 = vmatpush.msra.mxu0 %v1599
        %5674 = vmatpush.msra.mxu0 %v1597
        %5675 = vmatpush.msra.mxu0 %v1595
        %5676 = vmatpush.msra.mxu0 %v1593
        %5677 = vmatpush.msra.mxu0 %v1591
        %5678 = vmatpush.msra.mxu0 %v1589
        %5679 = vmatmul.f32.gmra.mxu0 %v3008
        %v5680 = vpop.f32.mrf.mxu0
        %v5681 = vadd.f32 %v5661, %v5680
        %5682 = vdwg.mxu0
        %5683 = vmatpush.msra.mxu0 %v1651
        %5684 = vmatpush.msra.mxu0 %v1649
        %5685 = vmatpush.msra.mxu0 %v1647
        %5686 = vmatpush.msra.mxu0 %v1645
        %5687 = vmatpush.msra.mxu0 %v1643
        %5688 = vmatpush.msra.mxu0 %v1641
        %5689 = vmatpush.msra.mxu0 %v1639
        %5690 = vmatpush.msra.mxu0 %v1637
        %5691 = vmatpush.msra.mxu0 %v1635
        %5692 = vmatpush.msra.mxu0 %v1633
        %5693 = vmatpush.msra.mxu0 %v1631
        %5694 = vmatpush.msra.mxu0 %v1629
        %5695 = vmatpush.msra.mxu0 %v1627
        %5696 = vmatpush.msra.mxu0 %v1625
        %5697 = vmatpush.msra.mxu0 %v1623
        %5698 = vmatpush.msra.mxu0 %v1621
        %5699 = vmatmul.f32.gmra.mxu0 %v3009
        %v5700 = vpop.f32.mrf.mxu0
        %v5701 = vadd.f32 %v5681, %v5700
        %5702 = vdwg.mxu0
        %5703 = vmatpush.msra.mxu0 %v1683
        %5704 = vmatpush.msra.mxu0 %v1681
        %5705 = vmatpush.msra.mxu0 %v1679
        %5706 = vmatpush.msra.mxu0 %v1677
        %5707 = vmatpush.msra.mxu0 %v1675
        %5708 = vmatpush.msra.mxu0 %v1673
        %5709 = vmatpush.msra.mxu0 %v1671
        %5710 = vmatpush.msra.mxu0 %v1669
        %5711 = vmatpush.msra.mxu0 %v1667
        %5712 = vmatpush.msra.mxu0 %v1665
        %5713 = vmatpush.msra.mxu0 %v1663
        %5714 = vmatpush.msra.mxu0 %v1661
        %5715 = vmatpush.msra.mxu0 %v1659
        %5716 = vmatpush.msra.mxu0 %v1657
        %5717 = vmatpush.msra.mxu0 %v1655
        %5718 = vmatpush.msra.mxu0 %v1653
        %5719 = vmatmul.f32.gmra.mxu0 %v3010
        %v5720 = vpop.f32.mrf.mxu0
        %v5721 = vadd.f32 %v5701, %v5720
        %5722 = vdwg.mxu0
        %5723 = vmatpush.msra.mxu0 %v1715
        %5724 = vmatpush.msra.mxu0 %v1713
        %5725 = vmatpush.msra.mxu0 %v1711
        %5726 = vmatpush.msra.mxu0 %v1709
        %5727 = vmatpush.msra.mxu0 %v1707
        %5728 = vmatpush.msra.mxu0 %v1705
        %5729 = vmatpush.msra.mxu0 %v1703
        %5730 = vmatpush.msra.mxu0 %v1701
        %5731 = vmatpush.msra.mxu0 %v1699
        %5732 = vmatpush.msra.mxu0 %v1697
        %5733 = vmatpush.msra.mxu0 %v1695
        %5734 = vmatpush.msra.mxu0 %v1693
        %5735 = vmatpush.msra.mxu0 %v1691
        %5736 = vmatpush.msra.mxu0 %v1689
        %5737 = vmatpush.msra.mxu0 %v1687
        %5738 = vmatpush.msra.mxu0 %v1685
        %5739 = vmatmul.f32.gmra.mxu0 %v3011
        %v5740 = vpop.f32.mrf.mxu0
        %v5741 = vadd.f32 %v5721, %v5740
        %5742 = vdwg.mxu0
        %5743 = vmatpush.msra.mxu0 %v1747
        %5744 = vmatpush.msra.mxu0 %v1745
        %5745 = vmatpush.msra.mxu0 %v1743
        %5746 = vmatpush.msra.mxu0 %v1741
        %5747 = vmatpush.msra.mxu0 %v1739
        %5748 = vmatpush.msra.mxu0 %v1737
        %5749 = vmatpush.msra.mxu0 %v1735
        %5750 = vmatpush.msra.mxu0 %v1733
        %5751 = vmatpush.msra.mxu0 %v1731
        %5752 = vmatpush.msra.mxu0 %v1729
        %5753 = vmatpush.msra.mxu0 %v1727
        %5754 = vmatpush.msra.mxu0 %v1725
        %5755 = vmatpush.msra.mxu0 %v1723
        %5756 = vmatpush.msra.mxu0 %v1721
        %5757 = vmatpush.msra.mxu0 %v1719
        %5758 = vmatpush.msra.mxu0 %v1717
        %5759 = vmatmul.f32.gmra.mxu0 %v3012
        %v5760 = vpop.f32.mrf.mxu0
        %v5761 = vadd.f32 %v5741, %v5760
        %5762 = vdwg.mxu0
        %5763 = vmatpush.msra.mxu0 %v1779
        %5764 = vmatpush.msra.mxu0 %v1777
        %5765 = vmatpush.msra.mxu0 %v1775
        %5766 = vmatpush.msra.mxu0 %v1773
        %5767 = vmatpush.msra.mxu0 %v1771
        %5768 = vmatpush.msra.mxu0 %v1769
        %5769 = vmatpush.msra.mxu0 %v1767
        %5770 = vmatpush.msra.mxu0 %v1765
        %5771 = vmatpush.msra.mxu0 %v1763
        %5772 = vmatpush.msra.mxu0 %v1761
        %5773 = vmatpush.msra.mxu0 %v1759
        %5774 = vmatpush.msra.mxu0 %v1757
        %5775 = vmatpush.msra.mxu0 %v1755
        %5776 = vmatpush.msra.mxu0 %v1753
        %5777 = vmatpush.msra.mxu0 %v1751
        %5778 = vmatpush.msra.mxu0 %v1749
        %5779 = vmatmul.f32.gmra.mxu0 %v3013
        %v5780 = vpop.f32.mrf.mxu0
        %v5781 = vadd.f32 %v5761, %v5780
        %5782 = vdwg.mxu0
        %5783 = vmatpush.msra.mxu0 %v1811
        %5784 = vmatpush.msra.mxu0 %v1809
        %5785 = vmatpush.msra.mxu0 %v1807
        %5786 = vmatpush.msra.mxu0 %v1805
        %5787 = vmatpush.msra.mxu0 %v1803
        %5788 = vmatpush.msra.mxu0 %v1801
        %5789 = vmatpush.msra.mxu0 %v1799
        %5790 = vmatpush.msra.mxu0 %v1797
        %5791 = vmatpush.msra.mxu0 %v1795
        %5792 = vmatpush.msra.mxu0 %v1793
        %5793 = vmatpush.msra.mxu0 %v1791
        %5794 = vmatpush.msra.mxu0 %v1789
        %5795 = vmatpush.msra.mxu0 %v1787
        %5796 = vmatpush.msra.mxu0 %v1785
        %5797 = vmatpush.msra.mxu0 %v1783
        %5798 = vmatpush.msra.mxu0 %v1781
        %5799 = vmatmul.f32.gmra.mxu0 %v3016
        %v5800 = vpop.f32.mrf.mxu0
        %v5801 = vadd.f32 %v5781, %v5800
        %5802 = vdwg.mxu0
        %5803 = vmatpush.msra.mxu0 %v1843
        %5804 = vmatpush.msra.mxu0 %v1841
        %5805 = vmatpush.msra.mxu0 %v1839
        %5806 = vmatpush.msra.mxu0 %v1837
        %5807 = vmatpush.msra.mxu0 %v1835
        %5808 = vmatpush.msra.mxu0 %v1833
        %5809 = vmatpush.msra.mxu0 %v1831
        %5810 = vmatpush.msra.mxu0 %v1829
        %5811 = vmatpush.msra.mxu0 %v1827
        %5812 = vmatpush.msra.mxu0 %v1825
        %5813 = vmatpush.msra.mxu0 %v1823
        %5814 = vmatpush.msra.mxu0 %v1821
        %5815 = vmatpush.msra.mxu0 %v1819
        %5816 = vmatpush.msra.mxu0 %v1817
        %5817 = vmatpush.msra.mxu0 %v1815
        %5818 = vmatpush.msra.mxu0 %v1813
        %5819 = vmatmul.f32.gmra.mxu0 %v3017
        %v5820 = vpop.f32.mrf.mxu0
        %v5821 = vadd.f32 %v5801, %v5820
        %5822 = vdwg.mxu0
        %5823 = vmatpush.msra.mxu0 %v1875
        %5824 = vmatpush.msra.mxu0 %v1873
        %5825 = vmatpush.msra.mxu0 %v1871
        %5826 = vmatpush.msra.mxu0 %v1869
        %5827 = vmatpush.msra.mxu0 %v1867
        %5828 = vmatpush.msra.mxu0 %v1865
        %5829 = vmatpush.msra.mxu0 %v1863
        %5830 = vmatpush.msra.mxu0 %v1861
        %5831 = vmatpush.msra.mxu0 %v1859
        %5832 = vmatpush.msra.mxu0 %v1857
        %5833 = vmatpush.msra.mxu0 %v1855
        %5834 = vmatpush.msra.mxu0 %v1853
        %5835 = vmatpush.msra.mxu0 %v1851
        %5836 = vmatpush.msra.mxu0 %v1849
        %5837 = vmatpush.msra.mxu0 %v1847
        %5838 = vmatpush.msra.mxu0 %v1845
        %5839 = vmatmul.f32.gmra.mxu0 %v3018
        %v5840 = vpop.f32.mrf.mxu0
        %v5841 = vadd.f32 %v5821, %v5840
        %5842 = vdwg.mxu0
        %5843 = vmatpush.msra.mxu0 %v1907
        %5844 = vmatpush.msra.mxu0 %v1905
        %5845 = vmatpush.msra.mxu0 %v1903
        %5846 = vmatpush.msra.mxu0 %v1901
        %5847 = vmatpush.msra.mxu0 %v1899
        %5848 = vmatpush.msra.mxu0 %v1897
        %5849 = vmatpush.msra.mxu0 %v1895
        %5850 = vmatpush.msra.mxu0 %v1893
        %5851 = vmatpush.msra.mxu0 %v1891
        %5852 = vmatpush.msra.mxu0 %v1889
        %5853 = vmatpush.msra.mxu0 %v1887
        %5854 = vmatpush.msra.mxu0 %v1885
        %5855 = vmatpush.msra.mxu0 %v1883
        %5856 = vmatpush.msra.mxu0 %v1881
        %5857 = vmatpush.msra.mxu0 %v1879
        %5858 = vmatpush.msra.mxu0 %v1877
        %5859 = vmatmul.f32.gmra.mxu0 %v3019
        %v5860 = vpop.f32.mrf.mxu0
        %v5861 = vadd.f32 %v5841, %v5860
        %5862 = vdwg.mxu0
        %5863 = vmatpush.msra.mxu0 %v1939
        %5864 = vmatpush.msra.mxu0 %v1937
        %5865 = vmatpush.msra.mxu0 %v1935
        %5866 = vmatpush.msra.mxu0 %v1933
        %5867 = vmatpush.msra.mxu0 %v1931
        %5868 = vmatpush.msra.mxu0 %v1929
        %5869 = vmatpush.msra.mxu0 %v1927
        %5870 = vmatpush.msra.mxu0 %v1925
        %5871 = vmatpush.msra.mxu0 %v1923
        %5872 = vmatpush.msra.mxu0 %v1921
        %5873 = vmatpush.msra.mxu0 %v1919
        %5874 = vmatpush.msra.mxu0 %v1917
        %5875 = vmatpush.msra.mxu0 %v1915
        %5876 = vmatpush.msra.mxu0 %v1913
        %5877 = vmatpush.msra.mxu0 %v1911
        %5878 = vmatpush.msra.mxu0 %v1909
        %5879 = vmatmul.f32.gmra.mxu0 %v3020
        %v5880 = vpop.f32.mrf.mxu0
        %v5881 = vadd.f32 %v5861, %v5880
        %5882 = vdwg.mxu0
        %5883 = vmatpush.msra.mxu0 %v1971
        %5884 = vmatpush.msra.mxu0 %v1969
        %5885 = vmatpush.msra.mxu0 %v1967
        %5886 = vmatpush.msra.mxu0 %v1965
        %5887 = vmatpush.msra.mxu0 %v1963
        %5888 = vmatpush.msra.mxu0 %v1961
        %5889 = vmatpush.msra.mxu0 %v1959
        %5890 = vmatpush.msra.mxu0 %v1957
        %5891 = vmatpush.msra.mxu0 %v1955
        %5892 = vmatpush.msra.mxu0 %v1953
        %5893 = vmatpush.msra.mxu0 %v1951
        %5894 = vmatpush.msra.mxu0 %v1949
        %5895 = vmatpush.msra.mxu0 %v1947
        %5896 = vmatpush.msra.mxu0 %v1945
        %5897 = vmatpush.msra.mxu0 %v1943
        %5898 = vmatpush.msra.mxu0 %v1941
        %5899 = vmatmul.f32.gmra.mxu0 %v3021
        %v5900 = vpop.f32.mrf.mxu0
        %v5901 = vadd.f32 %v5881, %v5900
        %5902 = vdwg.mxu0
        %5903 = vmatpush.msra.mxu0 %v2003
        %5904 = vmatpush.msra.mxu0 %v2001
        %5905 = vmatpush.msra.mxu0 %v1999
        %5906 = vmatpush.msra.mxu0 %v1997
        %5907 = vmatpush.msra.mxu0 %v1995
        %5908 = vmatpush.msra.mxu0 %v1993
        %5909 = vmatpush.msra.mxu0 %v1991
        %5910 = vmatpush.msra.mxu0 %v1989
        %5911 = vmatpush.msra.mxu0 %v1987
        %5912 = vmatpush.msra.mxu0 %v1985
        %5913 = vmatpush.msra.mxu0 %v1983
        %5914 = vmatpush.msra.mxu0 %v1981
        %5915 = vmatpush.msra.mxu0 %v1979
        %5916 = vmatpush.msra.mxu0 %v1977
        %5917 = vmatpush.msra.mxu0 %v1975
        %5918 = vmatpush.msra.mxu0 %v1973
        %5919 = vmatmul.f32.gmra.mxu0 %v3022
        %v5920 = vpop.f32.mrf.mxu0
        %v5921 = vadd.f32 %v5901, %v5920
        %5922 = vdwg.mxu0
        %5923 = vmatpush.msra.mxu0 %v2035
        %5924 = vmatpush.msra.mxu0 %v2033
        %5925 = vmatpush.msra.mxu0 %v2031
        %5926 = vmatpush.msra.mxu0 %v2029
        %5927 = vmatpush.msra.mxu0 %v2027
        %5928 = vmatpush.msra.mxu0 %v2025
        %5929 = vmatpush.msra.mxu0 %v2023
        %5930 = vmatpush.msra.mxu0 %v2021
        %5931 = vmatpush.msra.mxu0 %v2019
        %5932 = vmatpush.msra.mxu0 %v2017
        %5933 = vmatpush.msra.mxu0 %v2015
        %5934 = vmatpush.msra.mxu0 %v2013
        %5935 = vmatpush.msra.mxu0 %v2011
        %5936 = vmatpush.msra.mxu0 %v2009
        %5937 = vmatpush.msra.mxu0 %v2007
        %5938 = vmatpush.msra.mxu0 %v2005
        %5939 = vmatmul.f32.gmra.mxu0 %v3023
        %v5940 = vpop.f32.mrf.mxu0
        %v5941 = vadd.f32 %v5921, %v5940
        %5942 = vdwg.mxu0
        %5943 = vmatpush.msra.mxu0 %v2067
        %5944 = vmatpush.msra.mxu0 %v2065
        %5945 = vmatpush.msra.mxu0 %v2063
        %5946 = vmatpush.msra.mxu0 %v2061
        %5947 = vmatpush.msra.mxu0 %v2059
        %5948 = vmatpush.msra.mxu0 %v2057
        %5949 = vmatpush.msra.mxu0 %v2055
        %5950 = vmatpush.msra.mxu0 %v2053
        %5951 = vmatpush.msra.mxu0 %v2051
        %5952 = vmatpush.msra.mxu0 %v2049
        %5953 = vmatpush.msra.mxu0 %v2047
        %5954 = vmatpush.msra.mxu0 %v2045
        %5955 = vmatpush.msra.mxu0 %v2043
        %5956 = vmatpush.msra.mxu0 %v2041
        %5957 = vmatpush.msra.mxu0 %v2039
        %5958 = vmatpush.msra.mxu0 %v2037
        %5959 = vmatmul.f32.gmra.mxu0 %v3026
        %v5960 = vpop.f32.mrf.mxu0
        %v5961 = vadd.f32 %v5941, %v5960
        %5962 = vdwg.mxu0
        %5963 = vmatpush.msra.mxu0 %v2099
        %5964 = vmatpush.msra.mxu0 %v2097
        %5965 = vmatpush.msra.mxu0 %v2095
        %5966 = vmatpush.msra.mxu0 %v2093
        %5967 = vmatpush.msra.mxu0 %v2091
        %5968 = vmatpush.msra.mxu0 %v2089
        %5969 = vmatpush.msra.mxu0 %v2087
        %5970 = vmatpush.msra.mxu0 %v2085
        %5971 = vmatpush.msra.mxu0 %v2083
        %5972 = vmatpush.msra.mxu0 %v2081
        %5973 = vmatpush.msra.mxu0 %v2079
        %5974 = vmatpush.msra.mxu0 %v2077
        %5975 = vmatpush.msra.mxu0 %v2075
        %5976 = vmatpush.msra.mxu0 %v2073
        %5977 = vmatpush.msra.mxu0 %v2071
        %5978 = vmatpush.msra.mxu0 %v2069
        %5979 = vmatmul.f32.gmra.mxu0 %v3027
        %v5980 = vpop.f32.mrf.mxu0
        %v5981 = vadd.f32 %v5961, %v5980
        %5982 = vdwg.mxu0
        %5983 = vmatpush.msra.mxu0 %v2131
        %5984 = vmatpush.msra.mxu0 %v2129
        %5985 = vmatpush.msra.mxu0 %v2127
        %5986 = vmatpush.msra.mxu0 %v2125
        %5987 = vmatpush.msra.mxu0 %v2123
        %5988 = vmatpush.msra.mxu0 %v2121
        %5989 = vmatpush.msra.mxu0 %v2119
        %5990 = vmatpush.msra.mxu0 %v2117
        %5991 = vmatpush.msra.mxu0 %v2115
        %5992 = vmatpush.msra.mxu0 %v2113
        %5993 = vmatpush.msra.mxu0 %v2111
        %5994 = vmatpush.msra.mxu0 %v2109
        %5995 = vmatpush.msra.mxu0 %v2107
        %5996 = vmatpush.msra.mxu0 %v2105
        %5997 = vmatpush.msra.mxu0 %v2103
        %5998 = vmatpush.msra.mxu0 %v2101
        %5999 = vmatmul.f32.gmra.mxu0 %v3028
        %v6000 = vpop.f32.mrf.mxu0
        %v6001 = vadd.f32 %v5981, %v6000
        %6002 = vdwg.mxu0
        %6003 = vmatpush.msra.mxu0 %v2163
        %6004 = vmatpush.msra.mxu0 %v2161
        %6005 = vmatpush.msra.mxu0 %v2159
        %6006 = vmatpush.msra.mxu0 %v2157
        %6007 = vmatpush.msra.mxu0 %v2155
        %6008 = vmatpush.msra.mxu0 %v2153
        %6009 = vmatpush.msra.mxu0 %v2151
        %6010 = vmatpush.msra.mxu0 %v2149
        %6011 = vmatpush.msra.mxu0 %v2147
        %6012 = vmatpush.msra.mxu0 %v2145
        %6013 = vmatpush.msra.mxu0 %v2143
        %6014 = vmatpush.msra.mxu0 %v2141
        %6015 = vmatpush.msra.mxu0 %v2139
        %6016 = vmatpush.msra.mxu0 %v2137
        %6017 = vmatpush.msra.mxu0 %v2135
        %6018 = vmatpush.msra.mxu0 %v2133
        %6019 = vmatmul.f32.gmra.mxu0 %v3029
        %v6020 = vpop.f32.mrf.mxu0
        %v6021 = vadd.f32 %v6001, %v6020
        %6022 = vdwg.mxu0
        %6023 = vmatpush.msra.mxu0 %v2195
        %6024 = vmatpush.msra.mxu0 %v2193
        %6025 = vmatpush.msra.mxu0 %v2191
        %6026 = vmatpush.msra.mxu0 %v2189
        %6027 = vmatpush.msra.mxu0 %v2187
        %6028 = vmatpush.msra.mxu0 %v2185
        %6029 = vmatpush.msra.mxu0 %v2183
        %6030 = vmatpush.msra.mxu0 %v2181
        %6031 = vmatpush.msra.mxu0 %v2179
        %6032 = vmatpush.msra.mxu0 %v2177
        %6033 = vmatpush.msra.mxu0 %v2175
        %6034 = vmatpush.msra.mxu0 %v2173
        %6035 = vmatpush.msra.mxu0 %v2171
        %6036 = vmatpush.msra.mxu0 %v2169
        %6037 = vmatpush.msra.mxu0 %v2167
        %6038 = vmatpush.msra.mxu0 %v2165
        %6039 = vmatmul.f32.gmra.mxu0 %v3030
        %v6040 = vpop.f32.mrf.mxu0
        %v6041 = vadd.f32 %v6021, %v6040
        %6042 = vdwg.mxu0
        %6043 = vmatpush.msra.mxu0 %v2227
        %6044 = vmatpush.msra.mxu0 %v2225
        %6045 = vmatpush.msra.mxu0 %v2223
        %6046 = vmatpush.msra.mxu0 %v2221
        %6047 = vmatpush.msra.mxu0 %v2219
        %6048 = vmatpush.msra.mxu0 %v2217
        %6049 = vmatpush.msra.mxu0 %v2215
        %6050 = vmatpush.msra.mxu0 %v2213
        %6051 = vmatpush.msra.mxu0 %v2211
        %6052 = vmatpush.msra.mxu0 %v2209
        %6053 = vmatpush.msra.mxu0 %v2207
        %6054 = vmatpush.msra.mxu0 %v2205
        %6055 = vmatpush.msra.mxu0 %v2203
        %6056 = vmatpush.msra.mxu0 %v2201
        %6057 = vmatpush.msra.mxu0 %v2199
        %6058 = vmatpush.msra.mxu0 %v2197
        %6059 = vmatmul.f32.gmra.mxu0 %v3031
        %v6060 = vpop.f32.mrf.mxu0
        %v6061 = vadd.f32 %v6041, %v6060
        %6062 = vdwg.mxu0
        %6063 = vmatpush.msra.mxu0 %v2259
        %6064 = vmatpush.msra.mxu0 %v2257
        %6065 = vmatpush.msra.mxu0 %v2255
        %6066 = vmatpush.msra.mxu0 %v2253
        %6067 = vmatpush.msra.mxu0 %v2251
        %6068 = vmatpush.msra.mxu0 %v2249
        %6069 = vmatpush.msra.mxu0 %v2247
        %6070 = vmatpush.msra.mxu0 %v2245
        %6071 = vmatpush.msra.mxu0 %v2243
        %6072 = vmatpush.msra.mxu0 %v2241
        %6073 = vmatpush.msra.mxu0 %v2239
        %6074 = vmatpush.msra.mxu0 %v2237
        %6075 = vmatpush.msra.mxu0 %v2235
        %6076 = vmatpush.msra.mxu0 %v2233
        %6077 = vmatpush.msra.mxu0 %v2231
        %6078 = vmatpush.msra.mxu0 %v2229
        %6079 = vmatmul.f32.gmra.mxu0 %v3032
        %v6080 = vpop.f32.mrf.mxu0
        %v6081 = vadd.f32 %v6061, %v6080
        %6082 = vdwg.mxu0
        %6083 = vmatpush.msra.mxu0 %v2291
        %6084 = vmatpush.msra.mxu0 %v2289
        %6085 = vmatpush.msra.mxu0 %v2287
        %6086 = vmatpush.msra.mxu0 %v2285
        %6087 = vmatpush.msra.mxu0 %v2283
        %6088 = vmatpush.msra.mxu0 %v2281
        %6089 = vmatpush.msra.mxu0 %v2279
        %6090 = vmatpush.msra.mxu0 %v2277
        %6091 = vmatpush.msra.mxu0 %v2275
        %6092 = vmatpush.msra.mxu0 %v2273
        %6093 = vmatpush.msra.mxu0 %v2271
        %6094 = vmatpush.msra.mxu0 %v2269
        %6095 = vmatpush.msra.mxu0 %v2267
        %6096 = vmatpush.msra.mxu0 %v2265
        %6097 = vmatpush.msra.mxu0 %v2263
        %6098 = vmatpush.msra.mxu0 %v2261
        %6099 = vmatmul.f32.gmra.mxu0 %v3033
        %v6100 = vpop.f32.mrf.mxu0
        %v6101 = vadd.f32 %v6081, %v6100
        %6102 = vdwg.mxu0
        %6103 = vmatpush.msra.mxu0 %v2323
        %6104 = vmatpush.msra.mxu0 %v2321
        %6105 = vmatpush.msra.mxu0 %v2319
        %6106 = vmatpush.msra.mxu0 %v2317
        %6107 = vmatpush.msra.mxu0 %v2315
        %6108 = vmatpush.msra.mxu0 %v2313
        %6109 = vmatpush.msra.mxu0 %v2311
        %6110 = vmatpush.msra.mxu0 %v2309
        %6111 = vmatpush.msra.mxu0 %v2307
        %6112 = vmatpush.msra.mxu0 %v2305
        %6113 = vmatpush.msra.mxu0 %v2303
        %6114 = vmatpush.msra.mxu0 %v2301
        %6115 = vmatpush.msra.mxu0 %v2299
        %6116 = vmatpush.msra.mxu0 %v2297
        %6117 = vmatpush.msra.mxu0 %v2295
        %6118 = vmatpush.msra.mxu0 %v2293
        %6119 = vmatmul.f32.gmra.mxu0 %v3036
        %v6120 = vpop.f32.mrf.mxu0
        %v6121 = vadd.f32 %v6101, %v6120
        %6122 = vdwg.mxu0
        %6123 = vmatpush.msra.mxu0 %v2355
        %6124 = vmatpush.msra.mxu0 %v2353
        %6125 = vmatpush.msra.mxu0 %v2351
        %6126 = vmatpush.msra.mxu0 %v2349
        %6127 = vmatpush.msra.mxu0 %v2347
        %6128 = vmatpush.msra.mxu0 %v2345
        %6129 = vmatpush.msra.mxu0 %v2343
        %6130 = vmatpush.msra.mxu0 %v2341
        %6131 = vmatpush.msra.mxu0 %v2339
        %6132 = vmatpush.msra.mxu0 %v2337
        %6133 = vmatpush.msra.mxu0 %v2335
        %6134 = vmatpush.msra.mxu0 %v2333
        %6135 = vmatpush.msra.mxu0 %v2331
        %6136 = vmatpush.msra.mxu0 %v2329
        %6137 = vmatpush.msra.mxu0 %v2327
        %6138 = vmatpush.msra.mxu0 %v2325
        %6139 = vmatmul.f32.gmra.mxu0 %v3037
        %v6140 = vpop.f32.mrf.mxu0
        %v6141 = vadd.f32 %v6121, %v6140
        %6142 = vdwg.mxu0
        %6143 = vmatpush.msra.mxu0 %v2387
        %6144 = vmatpush.msra.mxu0 %v2385
        %6145 = vmatpush.msra.mxu0 %v2383
        %6146 = vmatpush.msra.mxu0 %v2381
        %6147 = vmatpush.msra.mxu0 %v2379
        %6148 = vmatpush.msra.mxu0 %v2377
        %6149 = vmatpush.msra.mxu0 %v2375
        %6150 = vmatpush.msra.mxu0 %v2373
        %6151 = vmatpush.msra.mxu0 %v2371
        %6152 = vmatpush.msra.mxu0 %v2369
        %6153 = vmatpush.msra.mxu0 %v2367
        %6154 = vmatpush.msra.mxu0 %v2365
        %6155 = vmatpush.msra.mxu0 %v2363
        %6156 = vmatpush.msra.mxu0 %v2361
        %6157 = vmatpush.msra.mxu0 %v2359
        %6158 = vmatpush.msra.mxu0 %v2357
        %6159 = vmatmul.f32.gmra.mxu0 %v3038
        %v6160 = vpop.f32.mrf.mxu0
        %v6161 = vadd.f32 %v6141, %v6160
        %6162 = vdwg.mxu0
        %6163 = vmatpush.msra.mxu0 %v2419
        %6164 = vmatpush.msra.mxu0 %v2417
        %6165 = vmatpush.msra.mxu0 %v2415
        %6166 = vmatpush.msra.mxu0 %v2413
        %6167 = vmatpush.msra.mxu0 %v2411
        %6168 = vmatpush.msra.mxu0 %v2409
        %6169 = vmatpush.msra.mxu0 %v2407
        %6170 = vmatpush.msra.mxu0 %v2405
        %6171 = vmatpush.msra.mxu0 %v2403
        %6172 = vmatpush.msra.mxu0 %v2401
        %6173 = vmatpush.msra.mxu0 %v2399
        %6174 = vmatpush.msra.mxu0 %v2397
        %6175 = vmatpush.msra.mxu0 %v2395
        %6176 = vmatpush.msra.mxu0 %v2393
        %6177 = vmatpush.msra.mxu0 %v2391
        %6178 = vmatpush.msra.mxu0 %v2389
        %6179 = vmatmul.f32.gmra.mxu0 %v3039
        %v6180 = vpop.f32.mrf.mxu0
        %v6181 = vadd.f32 %v6161, %v6180
        %6182 = vdwg.mxu0
        %6183 = vmatpush.msra.mxu0 %v2451
        %6184 = vmatpush.msra.mxu0 %v2449
        %6185 = vmatpush.msra.mxu0 %v2447
        %6186 = vmatpush.msra.mxu0 %v2445
        %6187 = vmatpush.msra.mxu0 %v2443
        %6188 = vmatpush.msra.mxu0 %v2441
        %6189 = vmatpush.msra.mxu0 %v2439
        %6190 = vmatpush.msra.mxu0 %v2437
        %6191 = vmatpush.msra.mxu0 %v2435
        %6192 = vmatpush.msra.mxu0 %v2433
        %6193 = vmatpush.msra.mxu0 %v2431
        %6194 = vmatpush.msra.mxu0 %v2429
        %6195 = vmatpush.msra.mxu0 %v2427
        %6196 = vmatpush.msra.mxu0 %v2425
        %6197 = vmatpush.msra.mxu0 %v2423
        %6198 = vmatpush.msra.mxu0 %v2421
        %6199 = vmatmul.f32.gmra.mxu0 %v3040
        %v6200 = vpop.f32.mrf.mxu0
        %v6201 = vadd.f32 %v6181, %v6200
        %6202 = vdwg.mxu0
        %6203 = vmatpush.msra.mxu0 %v2483
        %6204 = vmatpush.msra.mxu0 %v2481
        %6205 = vmatpush.msra.mxu0 %v2479
        %6206 = vmatpush.msra.mxu0 %v2477
        %6207 = vmatpush.msra.mxu0 %v2475
        %6208 = vmatpush.msra.mxu0 %v2473
        %6209 = vmatpush.msra.mxu0 %v2471
        %6210 = vmatpush.msra.mxu0 %v2469
        %6211 = vmatpush.msra.mxu0 %v2467
        %6212 = vmatpush.msra.mxu0 %v2465
        %6213 = vmatpush.msra.mxu0 %v2463
        %6214 = vmatpush.msra.mxu0 %v2461
        %6215 = vmatpush.msra.mxu0 %v2459
        %6216 = vmatpush.msra.mxu0 %v2457
        %6217 = vmatpush.msra.mxu0 %v2455
        %6218 = vmatpush.msra.mxu0 %v2453
        %6219 = vmatmul.f32.gmra.mxu0 %v3041
        %v6220 = vpop.f32.mrf.mxu0
        %v6221 = vadd.f32 %v6201, %v6220
        %6222 = vdwg.mxu0
        %6223 = vmatpush.msra.mxu0 %v2515
        %6224 = vmatpush.msra.mxu0 %v2513
        %6225 = vmatpush.msra.mxu0 %v2511
        %6226 = vmatpush.msra.mxu0 %v2509
        %6227 = vmatpush.msra.mxu0 %v2507
        %6228 = vmatpush.msra.mxu0 %v2505
        %6229 = vmatpush.msra.mxu0 %v2503
        %6230 = vmatpush.msra.mxu0 %v2501
        %6231 = vmatpush.msra.mxu0 %v2499
        %6232 = vmatpush.msra.mxu0 %v2497
        %6233 = vmatpush.msra.mxu0 %v2495
        %6234 = vmatpush.msra.mxu0 %v2493
        %6235 = vmatpush.msra.mxu0 %v2491
        %6236 = vmatpush.msra.mxu0 %v2489
        %6237 = vmatpush.msra.mxu0 %v2487
        %6238 = vmatpush.msra.mxu0 %v2485
        %6239 = vmatmul.f32.gmra.mxu0 %v3042
        %v6240 = vpop.f32.mrf.mxu0
        %v6241 = vadd.f32 %v6221, %v6240
        %6242 = vdwg.mxu0
        %6243 = vmatpush.msra.mxu0 %v2547
        %6244 = vmatpush.msra.mxu0 %v2545
        %6245 = vmatpush.msra.mxu0 %v2543
        %6246 = vmatpush.msra.mxu0 %v2541
        %6247 = vmatpush.msra.mxu0 %v2539
        %6248 = vmatpush.msra.mxu0 %v2537
        %6249 = vmatpush.msra.mxu0 %v2535
        %6250 = vmatpush.msra.mxu0 %v2533
        %6251 = vmatpush.msra.mxu0 %v2531
        %6252 = vmatpush.msra.mxu0 %v2529
        %6253 = vmatpush.msra.mxu0 %v2527
        %6254 = vmatpush.msra.mxu0 %v2525
        %6255 = vmatpush.msra.mxu0 %v2523
        %6256 = vmatpush.msra.mxu0 %v2521
        %6257 = vmatpush.msra.mxu0 %v2519
        %6258 = vmatpush.msra.mxu0 %v2517
        %6259 = vmatmul.f32.gmra.mxu0 %v3043
        %v6260 = vpop.f32.mrf.mxu0
        %v6261 = vadd.f32 %v6241, %v6260
        %6262 = vdwg.mxu0
        %6263 = vmatpush.msra.mxu0 %v2579
        %6264 = vmatpush.msra.mxu0 %v2577
        %6265 = vmatpush.msra.mxu0 %v2575
        %6266 = vmatpush.msra.mxu0 %v2573
        %6267 = vmatpush.msra.mxu0 %v2571
        %6268 = vmatpush.msra.mxu0 %v2569
        %6269 = vmatpush.msra.mxu0 %v2567
        %6270 = vmatpush.msra.mxu0 %v2565
        %6271 = vmatpush.msra.mxu0 %v2563
        %6272 = vmatpush.msra.mxu0 %v2561
        %6273 = vmatpush.msra.mxu0 %v2559
        %6274 = vmatpush.msra.mxu0 %v2557
        %6275 = vmatpush.msra.mxu0 %v2555
        %6276 = vmatpush.msra.mxu0 %v2553
        %6277 = vmatpush.msra.mxu0 %v2551
        %6278 = vmatpush.msra.mxu0 %v2549
        %6279 = vmatmul.f32.gmra.mxu0 %v3046
        %v6280 = vpop.f32.mrf.mxu0
        %v6281 = vadd.f32 %v6261, %v6280
        %6282 = vdwg.mxu0
        %6283 = vmatpush.msra.mxu0 %v2611
        %6284 = vmatpush.msra.mxu0 %v2609
        %6285 = vmatpush.msra.mxu0 %v2607
        %6286 = vmatpush.msra.mxu0 %v2605
        %6287 = vmatpush.msra.mxu0 %v2603
        %6288 = vmatpush.msra.mxu0 %v2601
        %6289 = vmatpush.msra.mxu0 %v2599
        %6290 = vmatpush.msra.mxu0 %v2597
        %6291 = vmatpush.msra.mxu0 %v2595
        %6292 = vmatpush.msra.mxu0 %v2593
        %6293 = vmatpush.msra.mxu0 %v2591
        %6294 = vmatpush.msra.mxu0 %v2589
        %6295 = vmatpush.msra.mxu0 %v2587
        %6296 = vmatpush.msra.mxu0 %v2585
        %6297 = vmatpush.msra.mxu0 %v2583
        %6298 = vmatpush.msra.mxu0 %v2581
        %6299 = vmatmul.f32.gmra.mxu0 %v3047
        %v6300 = vpop.f32.mrf.mxu0
        %v6301 = vadd.f32 %v6281, %v6300
        %6302 = vdwg.mxu0
        %6303 = vmatpush.msra.mxu0 %v2643
        %6304 = vmatpush.msra.mxu0 %v2641
        %6305 = vmatpush.msra.mxu0 %v2639
        %6306 = vmatpush.msra.mxu0 %v2637
        %6307 = vmatpush.msra.mxu0 %v2635
        %6308 = vmatpush.msra.mxu0 %v2633
        %6309 = vmatpush.msra.mxu0 %v2631
        %6310 = vmatpush.msra.mxu0 %v2629
        %6311 = vmatpush.msra.mxu0 %v2627
        %6312 = vmatpush.msra.mxu0 %v2625
        %6313 = vmatpush.msra.mxu0 %v2623
        %6314 = vmatpush.msra.mxu0 %v2621
        %6315 = vmatpush.msra.mxu0 %v2619
        %6316 = vmatpush.msra.mxu0 %v2617
        %6317 = vmatpush.msra.mxu0 %v2615
        %6318 = vmatpush.msra.mxu0 %v2613
        %6319 = vmatmul.f32.gmra.mxu0 %v3048
        %v6320 = vpop.f32.mrf.mxu0
        %v6321 = vadd.f32 %v6301, %v6320
        %6322 = vdwg.mxu0
        %6323 = vmatpush.msra.mxu0 %v2675
        %6324 = vmatpush.msra.mxu0 %v2673
        %6325 = vmatpush.msra.mxu0 %v2671
        %6326 = vmatpush.msra.mxu0 %v2669
        %6327 = vmatpush.msra.mxu0 %v2667
        %6328 = vmatpush.msra.mxu0 %v2665
        %6329 = vmatpush.msra.mxu0 %v2663
        %6330 = vmatpush.msra.mxu0 %v2661
        %6331 = vmatpush.msra.mxu0 %v2659
        %6332 = vmatpush.msra.mxu0 %v2657
        %6333 = vmatpush.msra.mxu0 %v2655
        %6334 = vmatpush.msra.mxu0 %v2653
        %6335 = vmatpush.msra.mxu0 %v2651
        %6336 = vmatpush.msra.mxu0 %v2649
        %6337 = vmatpush.msra.mxu0 %v2647
        %6338 = vmatpush.msra.mxu0 %v2645
        %6339 = vmatmul.f32.gmra.mxu0 %v3049
        %v6340 = vpop.f32.mrf.mxu0
        %v6341 = vadd.f32 %v6321, %v6340
        %6342 = vdwg.mxu0
        %6343 = vmatpush.msra.mxu0 %v2707
        %6344 = vmatpush.msra.mxu0 %v2705
        %6345 = vmatpush.msra.mxu0 %v2703
        %6346 = vmatpush.msra.mxu0 %v2701
        %6347 = vmatpush.msra.mxu0 %v2699
        %6348 = vmatpush.msra.mxu0 %v2697
        %6349 = vmatpush.msra.mxu0 %v2695
        %6350 = vmatpush.msra.mxu0 %v2693
        %6351 = vmatpush.msra.mxu0 %v2691
        %6352 = vmatpush.msra.mxu0 %v2689
        %6353 = vmatpush.msra.mxu0 %v2687
        %6354 = vmatpush.msra.mxu0 %v2685
        %6355 = vmatpush.msra.mxu0 %v2683
        %6356 = vmatpush.msra.mxu0 %v2681
        %6357 = vmatpush.msra.mxu0 %v2679
        %6358 = vmatpush.msra.mxu0 %v2677
        %6359 = vmatmul.f32.gmra.mxu0 %v3050
        %v6360 = vpop.f32.mrf.mxu0
        %v6361 = vadd.f32 %v6341, %v6360
        %6362 = vdwg.mxu0
        %6363 = vmatpush.msra.mxu0 %v2739
        %6364 = vmatpush.msra.mxu0 %v2737
        %6365 = vmatpush.msra.mxu0 %v2735
        %6366 = vmatpush.msra.mxu0 %v2733
        %6367 = vmatpush.msra.mxu0 %v2731
        %6368 = vmatpush.msra.mxu0 %v2729
        %6369 = vmatpush.msra.mxu0 %v2727
        %6370 = vmatpush.msra.mxu0 %v2725
        %6371 = vmatpush.msra.mxu0 %v2723
        %6372 = vmatpush.msra.mxu0 %v2721
        %6373 = vmatpush.msra.mxu0 %v2719
        %6374 = vmatpush.msra.mxu0 %v2717
        %6375 = vmatpush.msra.mxu0 %v2715
        %6376 = vmatpush.msra.mxu0 %v2713
        %6377 = vmatpush.msra.mxu0 %v2711
        %6378 = vmatpush.msra.mxu0 %v2709
        %6379 = vmatmul.f32.gmra.mxu0 %v3051
        %v6380 = vpop.f32.mrf.mxu0
        %v6381 = vadd.f32 %v6361, %v6380
        %6382 = vdwg.mxu0
        %6383 = vmatpush.msra.mxu0 %v2771
        %6384 = vmatpush.msra.mxu0 %v2769
        %6385 = vmatpush.msra.mxu0 %v2767
        %6386 = vmatpush.msra.mxu0 %v2765
        %6387 = vmatpush.msra.mxu0 %v2763
        %6388 = vmatpush.msra.mxu0 %v2761
        %6389 = vmatpush.msra.mxu0 %v2759
        %6390 = vmatpush.msra.mxu0 %v2757
        %6391 = vmatpush.msra.mxu0 %v2755
        %6392 = vmatpush.msra.mxu0 %v2753
        %6393 = vmatpush.msra.mxu0 %v2751
        %6394 = vmatpush.msra.mxu0 %v2749
        %6395 = vmatpush.msra.mxu0 %v2747
        %6396 = vmatpush.msra.mxu0 %v2745
        %6397 = vmatpush.msra.mxu0 %v2743
        %6398 = vmatpush.msra.mxu0 %v2741
        %6399 = vmatmul.f32.gmra.mxu0 %v3052
        %v6400 = vpop.f32.mrf.mxu0
        %v6401 = vadd.f32 %v6381, %v6400
        %6402 = vdwg.mxu0
        %6403 = vmatpush.msra.mxu0 %v2803
        %6404 = vmatpush.msra.mxu0 %v2801
        %6405 = vmatpush.msra.mxu0 %v2799
        %6406 = vmatpush.msra.mxu0 %v2797
        %6407 = vmatpush.msra.mxu0 %v2795
        %6408 = vmatpush.msra.mxu0 %v2793
        %6409 = vmatpush.msra.mxu0 %v2791
        %6410 = vmatpush.msra.mxu0 %v2789
        %6411 = vmatpush.msra.mxu0 %v2787
        %6412 = vmatpush.msra.mxu0 %v2785
        %6413 = vmatpush.msra.mxu0 %v2783
        %6414 = vmatpush.msra.mxu0 %v2781
        %6415 = vmatpush.msra.mxu0 %v2779
        %6416 = vmatpush.msra.mxu0 %v2777
        %6417 = vmatpush.msra.mxu0 %v2775
        %6418 = vmatpush.msra.mxu0 %v2773
        %6419 = vmatmul.f32.gmra.mxu0 %v3053
        %v6420 = vpop.f32.mrf.mxu0
        %v6421 = vadd.f32 %v6401, %v6420
        %6422 = vdwg.mxu0
        %6423 = vmatpush.msra.mxu0 %v2835
        %6424 = vmatpush.msra.mxu0 %v2833
        %6425 = vmatpush.msra.mxu0 %v2831
        %6426 = vmatpush.msra.mxu0 %v2829
        %6427 = vmatpush.msra.mxu0 %v2827
        %6428 = vmatpush.msra.mxu0 %v2825
        %6429 = vmatpush.msra.mxu0 %v2823
        %6430 = vmatpush.msra.mxu0 %v2821
        %6431 = vmatpush.msra.mxu0 %v2819
        %6432 = vmatpush.msra.mxu0 %v2817
        %6433 = vmatpush.msra.mxu0 %v2815
        %6434 = vmatpush.msra.mxu0 %v2813
        %6435 = vmatpush.msra.mxu0 %v2811
        %6436 = vmatpush.msra.mxu0 %v2809
        %6437 = vmatpush.msra.mxu0 %v2807
        %6438 = vmatpush.msra.mxu0 %v2805
        %6439 = vmatmul.f32.gmra.mxu0 %v3055
        %v6440 = vpop.f32.mrf.mxu0
        %v6441 = vadd.f32 %v6421, %v6440
        %6442 = vdwg.mxu0
        %6443 = vmatpush.msra.mxu0 %v2867
        %6444 = vmatpush.msra.mxu0 %v2865
        %6445 = vmatpush.msra.mxu0 %v2863
        %6446 = vmatpush.msra.mxu0 %v2861
        %6447 = vmatpush.msra.mxu0 %v2859
        %6448 = vmatpush.msra.mxu0 %v2857
        %6449 = vmatpush.msra.mxu0 %v2855
        %6450 = vmatpush.msra.mxu0 %v2853
        %6451 = vmatpush.msra.mxu0 %v2851
        %6452 = vmatpush.msra.mxu0 %v2849
        %6453 = vmatpush.msra.mxu0 %v2847
        %6454 = vmatpush.msra.mxu0 %v2845
        %6455 = vmatpush.msra.mxu0 %v2843
        %6456 = vmatpush.msra.mxu0 %v2841
        %6457 = vmatpush.msra.mxu0 %v2839
        %6458 = vmatpush.msra.mxu0 %v2837
        %6459 = vmatmul.f32.gmra.mxu0 %v3056
        %v6460 = vpop.f32.mrf.mxu0
        %v6461 = vadd.f32 %v6441, %v6460
        %6462 = vdwg.mxu0
        %6463 = vmatpush.msra.mxu0 %v2899
        %6464 = vmatpush.msra.mxu0 %v2897
        %6465 = vmatpush.msra.mxu0 %v2895
        %6466 = vmatpush.msra.mxu0 %v2893
        %6467 = vmatpush.msra.mxu0 %v2891
        %6468 = vmatpush.msra.mxu0 %v2889
        %6469 = vmatpush.msra.mxu0 %v2887
        %6470 = vmatpush.msra.mxu0 %v2885
        %6471 = vmatpush.msra.mxu0 %v2883
        %6472 = vmatpush.msra.mxu0 %v2881
        %6473 = vmatpush.msra.mxu0 %v2879
        %6474 = vmatpush.msra.mxu0 %v2877
        %6475 = vmatpush.msra.mxu0 %v2875
        %6476 = vmatpush.msra.mxu0 %v2873
        %6477 = vmatpush.msra.mxu0 %v2871
        %6478 = vmatpush.msra.mxu0 %v2869
        %6479 = vmatmul.f32.gmra.mxu0 %v3057
        %v6480 = vpop.f32.mrf.mxu0
        %v6481 = vadd.f32 %v6461, %v6480
        %6482 = vdwg.mxu0
        %6483 = vmatpush.msra.mxu0 %v2931
        %6484 = vmatpush.msra.mxu0 %v2929
        %6485 = vmatpush.msra.mxu0 %v2927
        %6486 = vmatpush.msra.mxu0 %v2925
        %6487 = vmatpush.msra.mxu0 %v2923
        %6488 = vmatpush.msra.mxu0 %v2921
        %6489 = vmatpush.msra.mxu0 %v2919
        %6490 = vmatpush.msra.mxu0 %v2917
        %6491 = vmatpush.msra.mxu0 %v2915
        %6492 = vmatpush.msra.mxu0 %v2913
        %6493 = vmatpush.msra.mxu0 %v2911
        %6494 = vmatpush.msra.mxu0 %v2909
        %6495 = vmatpush.msra.mxu0 %v2907
        %6496 = vmatpush.msra.mxu0 %v2905
        %6497 = vmatpush.msra.mxu0 %v2903
        %6498 = vmatpush.msra.mxu0 %v2901
        %6499 = vmatmul.f32.gmra.mxu0 %v3058
        %v6500 = vpop.f32.mrf.mxu0
        %v6501 = vadd.f32 %v6481, %v6500
        %6502 = vdwg.mxu0
        %v6505 = vrot.slane %v6501, 6
        %vm6506 = vcmask 1041408
        %v6507 = vsel %vm6506, %v4821, %v6505
        %v6509 = vadd.f32 %v222, %v6507
        %6510 = vst [vmem:[#allocation7] sm:$0xf] %v6509
        // Predicated region
        $region41: #{tpu_custom_call.1} parent=27 // pred_check
          %p6511 = pneg %p104
        $region42: #{tpu_custom_call.1} parent=27 // pred_check_branch
          %6513 = sbr.rel (%p6511) target = $region44
        $region43: #{tpu_custom_call.1} parent=27 // pred_region
          %s6514 = smul.u32 2, %s24
          %6516 = vsyncadd [#allocation4], 0
          %s6517 = smul.addr %s6514, 2
          %s6518 = scalar_lea.hbm %s2, %s6517
          %s6520 = sshll.u32 [#allocation7], 4
          %s6521 = int_to_ptr.vmem [resolvable:$true] %s6520
          %s6522 = sshll.u32 %s6518, 4
          %s6523 = int_to_ptr.hbm [resolvable:$true] %s6522
          %6525 = dma.vmem_to_hbm [thread:$0]  %s6521, 64, %s6523, [#allocation4]
        $region44: #{tpu_custom_call.1} parent=27 // pred_fallthru
          _
        // Predicated region
        $region45: #{tpu_custom_call.1} parent=27 // pred_check
          %p6526 = pneg %p104
        $region46: #{tpu_custom_call.1} parent=27 // pred_check_branch
          %6528 = sbr.rel (%p6526) target = $region48
        $region47: #{tpu_custom_call.1} parent=27 // pred_region
          %6530 = dma.done [#allocation4], 64
        $region48: #{tpu_custom_call.1} parent=27 // pred_fallthru
          _
      $region28: #{tpu_custom_call.1} parent=5 // pred_fallthru
        _
      %p6531 = scmp.le.s32.totalorder 2, %s15
      // Predicated region
      $region49: #{tpu_custom_call.1} parent=5 // pred_check
        %p6532 = pneg %p6531
      $region50: #{tpu_custom_call.1} parent=5 // pred_check_branch
        %6534 = sbr.rel (%p6532) target = $region52
      $region51: #{tpu_custom_call.1} parent=5 // pred_region
        %s6535 = ssub.s32 %s15, 2
      $region52: #{tpu_custom_call.1} parent=5 // pred_fallthru
        _
    $region6: #{tpu_custom_call.1} parent=1 // loop_footer
      %s19 = sadd.s32 1, %s15
    $region7: #{tpu_custom_call.1} parent=1 // loop_footer_branch
      %14 = sbr.rel target = $region3
    $region8: #{tpu_custom_call.1} parent=1 // loop_exit
      _
    %6536 = vsyncpa [#allocation3], 1
    %s6537 = scalar_lea.sflag [#allocation3], 1
    %6538 = vsyncpa %s6537, 1
    %6539 = vsyncpa [#allocation6], 1
    %s6540 = scalar_lea.sflag [#allocation6], 1
    %6541 = vsyncpa %s6540, 1
    %6542 = vsyncpa [#allocation4], 1
    %s6543 = scalar_lea.sflag [#allocation4], 1
    %6544 = vsyncpa %s6543, 1

</llo_original>
